<compile_context>
chip_gen: v7x
topology: tpu7x:2x2x1
jax: 0.10.0
libtpu: 0.0.40
codegen_flags: <defaults>
</compile_context>

<pallas_src>
import functools

import numpy as np
import jax
import jax.numpy as jnp
from jax.experimental import pallas as pl
from jax.experimental.pallas import tpu as pltpu

LN_EPS = 1e-6


def _row_tile(rows: int) -> int:
    """Largest row tile (multiple of 8, capped so VMEM stays small) dividing `rows`."""
    for t in (1024, 512, 256, 128, 64, 32, 16, 8):
        if rows % t == 0:
            return t
    return rows  # full extent (allowed even if not a multiple of 8)


# ---------------------------------------------------------------------------
# Kernel bodies
# ---------------------------------------------------------------------------
def _linear_kernel(x_ref, w_ref, o_ref):
    # (TR, Din) @ (Din, Dout) -> (TR, Dout)   (bias-free projections of MHA)
    o_ref[...] = jnp.dot(x_ref[...], w_ref[...],
                         preferred_element_type=jnp.float32).astype(o_ref.dtype)


def _attn_core(q, k, v, mask, scale):
    # q (Lq, dk), k (Lk, dk), v (Lk, dv), mask (Lq, Lk) or None
    q = q.astype(jnp.float32) * scale
    k = k.astype(jnp.float32)
    v = v.astype(jnp.float32)

    # scores = (q / temperature) @ k^T -> (Lq, Lk)
    s = jax.lax.dot_general(q, k, (((1,), (1,)), ((), ())),
                            preferred_element_type=jnp.float32)
    if mask is not None:
        s = jnp.where(mask == 0, -1e9, s)

    # numerically stable softmax along the key axis
    s_max = jnp.max(s, axis=-1, keepdims=True)
    p = jnp.exp(s - s_max)
    attn = p * pl.reciprocal(jnp.sum(p, axis=-1, keepdims=True), approx=False)
    out = jnp.dot(attn, v, preferred_element_type=jnp.float32)
    return out, attn


def _attention_kernel(q_ref, k_ref, v_ref, mask_ref, o_ref, attn_ref, *, scale):
    out, attn = _attn_core(q_ref[...], k_ref[...], v_ref[...], mask_ref[...], scale)
    attn_ref[...] = attn.astype(attn_ref.dtype)
    o_ref[...] = out.astype(o_ref.dtype)


def _attention_nomask_kernel(q_ref, k_ref, v_ref, o_ref, attn_ref, *, scale):
    out, attn = _attn_core(q_ref[...], k_ref[...], v_ref[...], None, scale)
    attn_ref[...] = attn.astype(attn_ref.dtype)
    o_ref[...] = out.astype(o_ref.dtype)


def _proj_add_norm_kernel(x_ref, w_ref, res_ref, g_ref, b_ref, o_ref, *, eps):
    # LayerNorm(x @ W_fc + residual)
    y = jnp.dot(x_ref[...], w_ref[...], preferred_element_type=jnp.float32)
    y = y + res_ref[...].astype(jnp.float32)
    mean = jnp.mean(y, axis=-1, keepdims=True)
    var = jnp.mean(jnp.square(y - mean), axis=-1, keepdims=True)
    y = (y - mean) * jax.lax.rsqrt(var + eps)
    o_ref[...] = (y * g_ref[...] + b_ref[...]).astype(o_ref.dtype)


def _ffn_kernel(x_ref, w1_ref, b1_ref, w2_ref, b2_ref, g_ref, beta_ref, o_ref, *, eps):
    # LayerNorm(relu(x @ W1 + b1) @ W2 + b2 + x)
    x = x_ref[...].astype(jnp.float32)
    h = jnp.dot(x, w1_ref[...], preferred_element_type=jnp.float32) + b1_ref[...]
    h = jnp.maximum(h, 0.0)
    y = jnp.dot(h, w2_ref[...], preferred_element_type=jnp.float32) + b2_ref[...]
    y = y + x
    mean = jnp.mean(y, axis=-1, keepdims=True)
    var = jnp.mean(jnp.square(y - mean), axis=-1, keepdims=True)
    y = (y - mean) * jax.lax.rsqrt(var + eps)
    o_ref[...] = (y * g_ref[...] + beta_ref[...]).astype(o_ref.dtype)


# ---------------------------------------------------------------------------
# pallas_call wrappers
# ---------------------------------------------------------------------------
def _linear(x2d, w):
    r, din = x2d.shape
    dout = w.shape[1]
    tr = _row_tile(r)
    return pl.pallas_call(
        _linear_kernel,
        out_shape=jax.ShapeDtypeStruct((r, dout), jnp.float32),
        grid_spec=pltpu.PrefetchScalarGridSpec(
            num_scalar_prefetch=0,
            grid=(r // tr,),
            in_specs=[
                pl.BlockSpec((tr, din), lambda i: (i, 0)),
                pl.BlockSpec((din, dout), lambda i: (0, 0)),
            ],
            out_specs=pl.BlockSpec((tr, dout), lambda i: (i, 0)),
        ),
        compiler_params=pltpu.CompilerParams(dimension_semantics=("parallel",)),
    )(x2d, w)


def _attention(qh, kh, vh, mask, d_k):
    b, h, lq, dk = qh.shape
    lk = kh.shape[2]
    dv = vh.shape[3]
    scale = 1.0 / (float(d_k) ** 0.5)

    out_shape = (
        jax.ShapeDtypeStruct((b, h, lq, dv), jnp.float32),
        jax.ShapeDtypeStruct((b, h, lq, lk), jnp.float32),
    )
    qkv_specs = [
        pl.BlockSpec((None, None, lq, dk), lambda i, j: (i, j, 0, 0)),
        pl.BlockSpec((None, None, lk, dk), lambda i, j: (i, j, 0, 0)),
        pl.BlockSpec((None, None, lk, dv), lambda i, j: (i, j, 0, 0)),
    ]
    out_specs = (
        pl.BlockSpec((None, None, lq, dv), lambda i, j: (i, j, 0, 0)),
        pl.BlockSpec((None, None, lq, lk), lambda i, j: (i, j, 0, 0)),
    )
    cparams = pltpu.CompilerParams(dimension_semantics=("parallel", "parallel"))

    if mask is None:
        kernel = functools.partial(_attention_nomask_kernel, scale=scale)
        return pl.pallas_call(
            kernel,
            out_shape=out_shape,
            grid_spec=pltpu.PrefetchScalarGridSpec(
                num_scalar_prefetch=0,
                grid=(b, h),
                in_specs=qkv_specs,
                out_specs=out_specs,
            ),
            compiler_params=cparams,
        )(qh, kh, vh)

    kernel = functools.partial(_attention_kernel, scale=scale)
    return pl.pallas_call(
        kernel,
        out_shape=out_shape,
        grid_spec=pltpu.PrefetchScalarGridSpec(
            num_scalar_prefetch=0,
            grid=(b, h),
            in_specs=qkv_specs + [
                pl.BlockSpec((None, lq, lk), lambda i, j: (i, 0, 0)),
            ],
            out_specs=out_specs,
        ),
        compiler_params=cparams,
    )(qh, kh, vh, mask.astype(jnp.float32))


def _proj_add_norm(x2d, w, res2d, gamma, beta):
    r, din = x2d.shape
    dout = w.shape[1]
    tr = _row_tile(r)
    kernel = functools.partial(_proj_add_norm_kernel, eps=LN_EPS)
    return pl.pallas_call(
        kernel,
        out_shape=jax.ShapeDtypeStruct((r, dout), jnp.float32),
        grid_spec=pltpu.PrefetchScalarGridSpec(
            num_scalar_prefetch=0,
            grid=(r // tr,),
            in_specs=[
                pl.BlockSpec((tr, din), lambda i: (i, 0)),
                pl.BlockSpec((din, dout), lambda i: (0, 0)),
                pl.BlockSpec((tr, dout), lambda i: (i, 0)),
                pl.BlockSpec((1, dout), lambda i: (0, 0)),
                pl.BlockSpec((1, dout), lambda i: (0, 0)),
            ],
            out_specs=pl.BlockSpec((tr, dout), lambda i: (i, 0)),
        ),
        compiler_params=pltpu.CompilerParams(dimension_semantics=("parallel",)),
    )(x2d, w, res2d, gamma, beta)


def _ffn(x2d, w1, b1, w2, b2, gamma, beta):
    r, d = x2d.shape
    dh = w1.shape[1]
    tr = _row_tile(r)
    kernel = functools.partial(_ffn_kernel, eps=LN_EPS)
    return pl.pallas_call(
        kernel,
        out_shape=jax.ShapeDtypeStruct((r, d), jnp.float32),
        grid_spec=pltpu.PrefetchScalarGridSpec(
            num_scalar_prefetch=0,
            grid=(r // tr,),
            in_specs=[
                pl.BlockSpec((tr, d), lambda i: (i, 0)),   # x
                pl.BlockSpec((d, dh), lambda i: (0, 0)),   # w1
                pl.BlockSpec((1, dh), lambda i: (0, 0)),   # b1
                pl.BlockSpec((dh, d), lambda i: (0, 0)),   # w2
                pl.BlockSpec((1, d), lambda i: (0, 0)),    # b2
                pl.BlockSpec((1, d), lambda i: (0, 0)),    # gamma
                pl.BlockSpec((1, d), lambda i: (0, 0)),    # beta
            ],
            out_specs=pl.BlockSpec((tr, d), lambda i: (i, 0)),
        ),
        compiler_params=pltpu.CompilerParams(dimension_semantics=("parallel",)),
    )(x2d, w1, b1, w2, b2, gamma, beta)


# ---------------------------------------------------------------------------
# Module-level forward (matches the PyTorch DecoderLayer.forward)
# ---------------------------------------------------------------------------
def multi_head_attention(x_q, x_kv, p, n_head, d_k, d_v, mask=None):
    B, Lq, D = x_q.shape
    Lk = x_kv.shape[1]
    xq2 = x_q.reshape(B * Lq, D)
    xkv2 = x_kv.reshape(B * Lk, D)

    q = _linear(xq2, p["w_qs"])          # (B*Lq, H*dk)
    k = _linear(xkv2, p["w_ks"])         # (B*Lk, H*dk)
    v = _linear(xkv2, p["w_vs"])         # (B*Lk, H*dv)

    # head split (layout glue in the wrapper, not in-kernel)
    qh = q.reshape(B, Lq, n_head, d_k).transpose(0, 2, 1, 3)
    kh = k.reshape(B, Lk, n_head, d_k).transpose(0, 2, 1, 3)
    vh = v.reshape(B, Lk, n_head, d_v).transpose(0, 2, 1, 3)

    oh, attn = _attention(qh, kh, vh, mask, d_k)          # (B,H,Lq,dv), (B,H,Lq,Lk)
    o2 = oh.transpose(0, 2, 1, 3).reshape(B * Lq, n_head * d_v)

    out2 = _proj_add_norm(o2, p["fc"], xq2, p["ln_g"], p["ln_b"])
    return out2.reshape(B, Lq, D), attn


def positionwise_feed_forward(x, p):
    B, L, D = x.shape
    out2 = _ffn(x.reshape(B * L, D), p["w1"], p["b1"], p["w2"], p["b2"],
                p["ln_g"], p["ln_b"])
    return out2.reshape(B, L, D)


def decoder_layer(dec_input, enc_output, params, n_head, d_k, d_v,
                  slf_attn_mask=None, dec_enc_attn_mask=None):
    # TODO(synk): nn.Dropout layers are identity here (eval-mode forward); no RNG dropout.
    dec_output, dec_slf_attn = multi_head_attention(
        dec_input, dec_input, params["slf_attn"], n_head, d_k, d_v, slf_attn_mask)
    dec_output, dec_enc_attn = multi_head_attention(
        dec_output, enc_output, params["enc_attn"], n_head, d_k, d_v, dec_enc_attn_mask)
    dec_output = positionwise_feed_forward(dec_output, params["pos_ffn"])
    return dec_output, dec_slf_attn, dec_enc_attn


# ---------------------------------------------------------------------------
# Pure-JAX reference (same math as the PyTorch module in eval mode)
# ---------------------------------------------------------------------------
def _ref_layer_norm(x, g, b, eps=LN_EPS):
    mean = jnp.mean(x, axis=-1, keepdims=True)
    var = jnp.mean(jnp.square(x - mean), axis=-1, keepdims=True)
    return (x - mean) / jnp.sqrt(var + eps) * g + b


def _ref_mha(x_q, x_kv, p, n_head, d_k, d_v, mask):
    B, Lq, D = x_q.shape
    Lk = x_kv.shape[1]
    q = (x_q @ p["w_qs"]).reshape(B, Lq, n_head, d_k).transpose(0, 2, 1, 3)
    k = (x_kv @ p["w_ks"]).reshape(B, Lk, n_head, d_k).transpose(0, 2, 1, 3)
    v = (x_kv @ p["w_vs"]).reshape(B, Lk, n_head, d_v).transpose(0, 2, 1, 3)
    s = jnp.einsum("bhqd,bhkd->bhqk", q / (d_k ** 0.5), k)
    if mask is not None:
        s = jnp.where(mask[:, None, :, :] == 0, -1e9, s)
    attn = jax.nn.softmax(s, axis=-1)
    o = jnp.einsum("bhqk,bhkd->bhqd", attn, v)
    o = o.transpose(0, 2, 1, 3).reshape(B, Lq, n_head * d_v)
    o = o @ p["fc"] + x_q
    return _ref_layer_norm(o, p["ln_g"][0], p["ln_b"][0]), attn


def _ref_decoder_layer(dec_input, enc_output, params, n_head, d_k, d_v,
                       slf_attn_mask, dec_enc_attn_mask):
    o, a1 = _ref_mha(dec_input, dec_input, params["slf_attn"],
                     n_head, d_k, d_v, slf_attn_mask)
    o, a2 = _ref_mha(o, enc_output, params["enc_attn"],
                     n_head, d_k, d_v, dec_enc_attn_mask)
    p = params["pos_ffn"]
    h = jnp.maximum(o @ p["w1"] + p["b1"][0], 0.0)
    y = h @ p["w2"] + p["b2"][0] + o
    y = _ref_layer_norm(y, p["ln_g"][0], p["ln_b"][0])
    return y, a1, a2


if __name__ == "__main__":
    # high-precision f32 matmuls for the pure-JAX reference (Pallas f32 dots are full f32)
    jax.config.update("jax_default_matmul_precision", "highest")

    B, len_dec, len_enc = 2, 8, 16
    d_model, d_inner, n_head, d_k, d_v = 32, 64, 4, 8, 8

    key = jax.random.PRNGKey(0)
    keys = iter(jax.random.split(key, 24))

    def nrm(k, shape, scale=0.1):
        return (scale * jax.random.normal(k, shape)).astype(jnp.float32)

    def mha_params():
        return {
            "w_qs": nrm(next(keys), (d_model, n_head * d_k)),
            "w_ks": nrm(next(keys), (d_model, n_head * d_k)),
            "w_vs": nrm(next(keys), (d_model, n_head * d_v)),
            "fc": nrm(next(keys), (n_head * d_v, d_model)),
            "ln_g": 1.0 + nrm(next(keys), (1, d_model)),
            "ln_b": nrm(next(keys), (1, d_model)),
        }

    params = {
        "slf_attn": mha_params(),
        "enc_attn": mha_params(),
        "pos_ffn": {
            "w1": nrm(next(keys), (d_model, d_inner)),
            "b1": nrm(next(keys), (1, d_inner)),
            "w2": nrm(next(keys), (d_inner, d_model)),
            "b2": nrm(next(keys), (1, d_model)),
            "ln_g": 1.0 + nrm(next(keys), (1, d_model)),
            "ln_b": nrm(next(keys), (1, d_model)),
        },
    }

    dec_input = jax.random.normal(next(keys), (B, len_dec, d_model), dtype=jnp.float32)
    enc_output = jax.random.normal(next(keys), (B, len_enc, d_model), dtype=jnp.float32)

    slf_attn_mask = jnp.broadcast_to(
        jnp.tril(jnp.ones((len_dec, len_dec), jnp.float32)), (B, len_dec, len_dec))
    dec_enc_attn_mask = None  # unmasked cross-attention (exercises the mask=None path)

    fwd = jax.jit(decoder_layer, static_argnums=(3, 4, 5))
    out, slf_attn, enc_attn = fwd(dec_input, enc_output, params, n_head, d_k, d_v,
                                  slf_attn_mask=slf_attn_mask,
                                  dec_enc_attn_mask=dec_enc_attn_mask)
    out = jax.block_until_ready(out)

    ref_out, ref_slf, ref_enc = _ref_decoder_layer(
        dec_input, enc_output, params, n_head, d_k, d_v,
        slf_attn_mask, dec_enc_attn_mask)

    np.testing.assert_allclose(np.asarray(out), np.asarray(ref_out), rtol=1e-4, atol=1e-4)
    np.testing.assert_allclose(np.asarray(slf_attn), np.asarray(ref_slf), rtol=1e-4, atol=1e-4)
    np.testing.assert_allclose(np.asarray(enc_attn), np.asarray(ref_enc), rtol=1e-4, atol=1e-4)

    print("KERNEL_OK")
</pallas_src>

<mosaic_0001>
module attributes {stable_mosaic.version = 11 : i64} {
  func.func @_linear_kernel(%arg0: i32, %arg1: memref<32x32xf32, #tpu.memory_space<vmem>>, %arg2: memref<32x32xf32, #tpu.memory_space<vmem>>, %arg3: memref<32x32xf32, #tpu.memory_space<vmem>>) attributes {dimension_semantics = [#tpu.dimension_semantics<parallel>], iteration_bounds = array<i64: 1>, scalar_prefetch = 0 : i64, scratch_operands = 0 : i64, tpu.core_type = #tpu.core_type<tc>, window_params = [{transform_indices = @transform_0, window_bounds = array<i64: 32, 32>}, {pipeline_mode = #tpu.pipeline_mode<synchronous>, transform_indices = @transform_1, window_bounds = array<i64: 32, 32>}, {transform_indices = @transform_2, window_bounds = array<i64: 32, 32>}]} {
    %c0 = arith.constant 0 : index
    %c0_0 = arith.constant 0 : index
    %0 = vector.load %arg1[%c0, %c0_0] : memref<32x32xf32, #tpu.memory_space<vmem>>, vector<32x32xf32>
    %c0_1 = arith.constant 0 : index
    %c0_2 = arith.constant 0 : index
    %1 = vector.load %arg2[%c0_1, %c0_2] : memref<32x32xf32, #tpu.memory_space<vmem>>, vector<32x32xf32>
    %cst = arith.constant dense<0.000000e+00> : vector<32x32xf32>
    %2 = tpu.matmul %0, %1, %cst {dimension_numbers = #tpu.dot_dimension_numbers<[1], [0], [0], [1], [0, 0, 1, 1], [], []>, precision = #tpu.contract_precision<fp32>} : vector<32x32xf32>, vector<32x32xf32>, vector<32x32xf32> -> vector<32x32xf32>
    %c0_3 = arith.constant 0 : index
    %c0_4 = arith.constant 0 : index
    %3 = vector.load %arg3[%c0_3, %c0_4] : memref<32x32xf32, #tpu.memory_space<vmem>>, vector<32x32xf32>
    tpu.vector_store %arg3[%c0_3, %c0_4], %2 {strides = array<i32>} : memref<32x32xf32, #tpu.memory_space<vmem>>, vector<32x32xf32>,
    return
  }
  func.func @transform_0(%arg0: i32) -> (i32, i32) {
    %c0_i32 = arith.constant 0 : i32
    %c0_i32_0 = arith.constant 0 : i32
    return %arg0, %c0_i32 : i32, i32
  }
  func.func @transform_1(%arg0: i32) -> (i32, i32) {
    %c0_i32 = arith.constant 0 : i32
    %c0_i32_0 = arith.constant 0 : i32
    %c0_i32_1 = arith.constant 0 : i32
    return %c0_i32, %c0_i32_0 : i32, i32
  }
  func.func @transform_2(%arg0: i32) -> (i32, i32) {
    %c0_i32 = arith.constant 0 : i32
    %c0_i32_0 = arith.constant 0 : i32
    return %arg0, %c0_i32 : i32, i32
  }
}

module attributes {stable_mosaic.version = 11 : i64} {
  func.func @_linear_kernel(%arg0: i32, %arg1: memref<16x32xf32, #tpu.memory_space<vmem>>, %arg2: memref<32x32xf32, #tpu.memory_space<vmem>>, %arg3: memref<16x32xf32, #tpu.memory_space<vmem>>) attributes {dimension_semantics = [#tpu.dimension_semantics<parallel>], iteration_bounds = array<i64: 1>, scalar_prefetch = 0 : i64, scratch_operands = 0 : i64, tpu.core_type = #tpu.core_type<tc>, window_params = [{transform_indices = @transform_0, window_bounds = array<i64: 16, 32>}, {pipeline_mode = #tpu.pipeline_mode<synchronous>, transform_indices = @transform_1, window_bounds = array<i64: 32, 32>}, {transform_indices = @transform_2, window_bounds = array<i64: 16, 32>}]} {
    %c0 = arith.constant 0 : index
    %c0_0 = arith.constant 0 : index
    %0 = vector.load %arg1[%c0, %c0_0] : memref<16x32xf32, #tpu.memory_space<vmem>>, vector<16x32xf32>
    %c0_1 = arith.constant 0 : index
    %c0_2 = arith.constant 0 : index
    %1 = vector.load %arg2[%c0_1, %c0_2] : memref<32x32xf32, #tpu.memory_space<vmem>>, vector<32x32xf32>
    %cst = arith.constant dense<0.000000e+00> : vector<16x32xf32>
    %2 = tpu.matmul %0, %1, %cst {dimension_numbers = #tpu.dot_dimension_numbers<[1], [0], [0], [1], [0, 0, 1, 1], [], []>, precision = #tpu.contract_precision<fp32>} : vector<16x32xf32>, vector<32x32xf32>, vector<16x32xf32> -> vector<16x32xf32>
    %c0_3 = arith.constant 0 : index
    %c0_4 = arith.constant 0 : index
    %3 = vector.load %arg3[%c0_3, %c0_4] : memref<16x32xf32, #tpu.memory_space<vmem>>, vector<16x32xf32>
    tpu.vector_store %arg3[%c0_3, %c0_4], %2 {strides = array<i32>} : memref<16x32xf32, #tpu.memory_space<vmem>>, vector<16x32xf32>,
    return
  }
  func.func @transform_0(%arg0: i32) -> (i32, i32) {
    %c0_i32 = arith.constant 0 : i32
    %c0_i32_0 = arith.constant 0 : i32
    return %arg0, %c0_i32 : i32, i32
  }
  func.func @transform_1(%arg0: i32) -> (i32, i32) {
    %c0_i32 = arith.constant 0 : i32
    %c0_i32_0 = arith.constant 0 : i32
    %c0_i32_1 = arith.constant 0 : i32
    return %c0_i32, %c0_i32_0 : i32, i32
  }
  func.func @transform_2(%arg0: i32) -> (i32, i32) {
    %c0_i32 = arith.constant 0 : i32
    %c0_i32_0 = arith.constant 0 : i32
    return %arg0, %c0_i32 : i32, i32
  }
}

module attributes {stable_mosaic.version = 11 : i64} {
  func.func @_linear_kernel(%arg0: i32, %arg1: memref<16x32xf32, #tpu.memory_space<vmem>>, %arg2: memref<32x32xf32, #tpu.memory_space<vmem>>, %arg3: memref<16x32xf32, #tpu.memory_space<vmem>>) attributes {dimension_semantics = [#tpu.dimension_semantics<parallel>], iteration_bounds = array<i64: 1>, scalar_prefetch = 0 : i64, scratch_operands = 0 : i64, tpu.core_type = #tpu.core_type<tc>, window_params = [{transform_indices = @transform_0, window_bounds = array<i64: 16, 32>}, {pipeline_mode = #tpu.pipeline_mode<synchronous>, transform_indices = @transform_1, window_bounds = array<i64: 32, 32>}, {transform_indices = @transform_2, window_bounds = array<i64: 16, 32>}]} {
    %c0 = arith.constant 0 : index
    %c0_0 = arith.constant 0 : index
    %0 = vector.load %arg1[%c0, %c0_0] : memref<16x32xf32, #tpu.memory_space<vmem>>, vector<16x32xf32>
    %c0_1 = arith.constant 0 : index
    %c0_2 = arith.constant 0 : index
    %1 = vector.load %arg2[%c0_1, %c0_2] : memref<32x32xf32, #tpu.memory_space<vmem>>, vector<32x32xf32>
    %cst = arith.constant dense<0.000000e+00> : vector<16x32xf32>
    %2 = tpu.matmul %0, %1, %cst {dimension_numbers = #tpu.dot_dimension_numbers<[1], [0], [0], [1], [0, 0, 1, 1], [], []>, precision = #tpu.contract_precision<fp32>} : vector<16x32xf32>, vector<32x32xf32>, vector<16x32xf32> -> vector<16x32xf32>
    %c0_3 = arith.constant 0 : index
    %c0_4 = arith.constant 0 : index
    %3 = vector.load %arg3[%c0_3, %c0_4] : memref<16x32xf32, #tpu.memory_space<vmem>>, vector<16x32xf32>
    tpu.vector_store %arg3[%c0_3, %c0_4], %2 {strides = array<i32>} : memref<16x32xf32, #tpu.memory_space<vmem>>, vector<16x32xf32>,
    return
  }
  func.func @transform_0(%arg0: i32) -> (i32, i32) {
    %c0_i32 = arith.constant 0 : i32
    %c0_i32_0 = arith.constant 0 : i32
    return %arg0, %c0_i32 : i32, i32
  }
  func.func @transform_1(%arg0: i32) -> (i32, i32) {
    %c0_i32 = arith.constant 0 : i32
    %c0_i32_0 = arith.constant 0 : i32
    %c0_i32_1 = arith.constant 0 : i32
    return %c0_i32, %c0_i32_0 : i32, i32
  }
  func.func @transform_2(%arg0: i32) -> (i32, i32) {
    %c0_i32 = arith.constant 0 : i32
    %c0_i32_0 = arith.constant 0 : i32
    return %arg0, %c0_i32 : i32, i32
  }
}

module attributes {stable_mosaic.version = 11 : i64} {
  func.func @_proj_add_norm_kernel(%arg0: i32, %arg1: memref<16x32xf32, #tpu.memory_space<vmem>>, %arg2: memref<32x32xf32, #tpu.memory_space<vmem>>, %arg3: memref<16x32xf32, #tpu.memory_space<vmem>>, %arg4: memref<1x32xf32, #tpu.memory_space<vmem>>, %arg5: memref<1x32xf32, #tpu.memory_space<vmem>>, %arg6: memref<16x32xf32, #tpu.memory_space<vmem>>) attributes {dimension_semantics = [#tpu.dimension_semantics<parallel>], iteration_bounds = array<i64: 1>, scalar_prefetch = 0 : i64, scratch_operands = 0 : i64, tpu.core_type = #tpu.core_type<tc>, window_params = [{transform_indices = @transform_0, window_bounds = array<i64: 16, 32>}, {pipeline_mode = #tpu.pipeline_mode<synchronous>, transform_indices = @transform_1, window_bounds = array<i64: 32, 32>}, {transform_indices = @transform_2, window_bounds = array<i64: 16, 32>}, {pipeline_mode = #tpu.pipeline_mode<synchronous>, transform_indices = @transform_3, window_bounds = array<i64: 1, 32>}, {pipeline_mode = #tpu.pipeline_mode<synchronous>, transform_indices = @transform_4, window_bounds = array<i64: 1, 32>}, {transform_indices = @transform_5, window_bounds = array<i64: 16, 32>}]} {
    %c0 = arith.constant 0 : index
    %c0_0 = arith.constant 0 : index
    %0 = vector.load %arg1[%c0, %c0_0] : memref<16x32xf32, #tpu.memory_space<vmem>>, vector<16x32xf32>
    %c0_1 = arith.constant 0 : index
    %c0_2 = arith.constant 0 : index
    %1 = vector.load %arg2[%c0_1, %c0_2] : memref<32x32xf32, #tpu.memory_space<vmem>>, vector<32x32xf32>
    %cst = arith.constant dense<0.000000e+00> : vector<16x32xf32>
    %2 = tpu.matmul %0, %1, %cst {dimension_numbers = #tpu.dot_dimension_numbers<[1], [0], [0], [1], [0, 0, 1, 1], [], []>, precision = #tpu.contract_precision<fp32>} : vector<16x32xf32>, vector<32x32xf32>, vector<16x32xf32> -> vector<16x32xf32>
    %c0_3 = arith.constant 0 : index
    %c0_4 = arith.constant 0 : index
    %3 = vector.load %arg3[%c0_3, %c0_4] : memref<16x32xf32, #tpu.memory_space<vmem>>, vector<16x32xf32>
    %4 = arith.addf %2, %3 : vector<16x32xf32>
    %cst_5 = arith.constant dense<0.000000e+00> : vector<16xf32>
    %5 = vector.multi_reduction <add>, %4, %cst_5 [1] : vector<16x32xf32> to vector<16xf32>
    %6 = vector.shape_cast %5 : vector<16xf32> to vector<16x1xf32>
    %cst_6 = arith.constant 3.200000e+01 : f32
    %7 = vector.broadcast %cst_6 : f32 to vector<16x1xf32>
    %8 = arith.divf %6, %7 : vector<16x1xf32>
    %9 = vector.broadcast %8 : vector<16x1xf32> to vector<16x32xf32>
    %10 = arith.subf %4, %9 : vector<16x32xf32>
    %11 = arith.mulf %10, %10 : vector<16x32xf32>
    %cst_7 = arith.constant dense<0.000000e+00> : vector<16xf32>
    %12 = vector.multi_reduction <add>, %11, %cst_7 [1] : vector<16x32xf32> to vector<16xf32>
    %13 = vector.shape_cast %12 : vector<16xf32> to vector<16x1xf32>
    %cst_8 = arith.constant 3.200000e+01 : f32
    %14 = vector.broadcast %cst_8 : f32 to vector<16x1xf32>
    %15 = arith.divf %13, %14 : vector<16x1xf32>
    %16 = vector.broadcast %8 : vector<16x1xf32> to vector<16x32xf32>
    %17 = arith.subf %4, %16 : vector<16x32xf32>
    %cst_9 = arith.constant 9.99999997E-7 : f32
    %18 = vector.broadcast %cst_9 : f32 to vector<16x1xf32>
    %19 = arith.addf %15, %18 : vector<16x1xf32>
    %20 = math.rsqrt %19 : vector<16x1xf32>
    %21 = vector.broadcast %20 : vector<16x1xf32> to vector<16x32xf32>
    %22 = arith.mulf %17, %21 : vector<16x32xf32>
    %c0_10 = arith.constant 0 : index
    %c0_11 = arith.constant 0 : index
    %23 = vector.load %arg4[%c0_10, %c0_11] : memref<1x32xf32, #tpu.memory_space<vmem>>, vector<1x32xf32>
    %24 = vector.broadcast %23 : vector<1x32xf32> to vector<16x32xf32>
    %25 = arith.mulf %22, %24 : vector<16x32xf32>
    %c0_12 = arith.constant 0 : index
    %c0_13 = arith.constant 0 : index
    %26 = vector.load %arg5[%c0_12, %c0_13] : memref<1x32xf32, #tpu.memory_space<vmem>>, vector<1x32xf32>
    %27 = vector.broadcast %26 : vector<1x32xf32> to vector<16x32xf32>
    %28 = arith.addf %25, %27 : vector<16x32xf32>
    %c0_14 = arith.constant 0 : index
    %c0_15 = arith.constant 0 : index
    %29 = vector.load %arg6[%c0_14, %c0_15] : memref<16x32xf32, #tpu.memory_space<vmem>>, vector<16x32xf32>
    tpu.vector_store %arg6[%c0_14, %c0_15], %28 {strides = array<i32>} : memref<16x32xf32, #tpu.memory_space<vmem>>, vector<16x32xf32>,
    return
  }
  func.func @transform_0(%arg0: i32) -> (i32, i32) {
    %c0_i32 = arith.constant 0 : i32
    %c0_i32_0 = arith.constant 0 : i32
    return %arg0, %c0_i32 : i32, i32
  }
  func.func @transform_1(%arg0: i32) -> (i32, i32) {
    %c0_i32 = arith.constant 0 : i32
    %c0_i32_0 = arith.constant 0 : i32
    %c0_i32_1 = arith.constant 0 : i32
    return %c0_i32, %c0_i32_0 : i32, i32
  }
  func.func @transform_2(%arg0: i32) -> (i32, i32) {
    %c0_i32 = arith.constant 0 : i32
    %c0_i32_0 = arith.constant 0 : i32
    return %arg0, %c0_i32 : i32, i32
  }
  func.func @transform_3(%arg0: i32) -> (i32, i32) {
    %c0_i32 = arith.constant 0 : i32
    %c0_i32_0 = arith.constant 0 : i32
    %c0_i32_1 = arith.constant 0 : i32
    return %c0_i32, %c0_i32_0 : i32, i32
  }
  func.func @transform_4(%arg0: i32) -> (i32, i32) {
    %c0_i32 = arith.constant 0 : i32
    %c0_i32_0 = arith.constant 0 : i32
    %c0_i32_1 = arith.constant 0 : i32
    return %c0_i32, %c0_i32_0 : i32, i32
  }
  func.func @transform_5(%arg0: i32) -> (i32, i32) {
    %c0_i32 = arith.constant 0 : i32
    %c0_i32_0 = arith.constant 0 : i32
    return %arg0, %c0_i32 : i32, i32
  }
}

module attributes {stable_mosaic.version = 11 : i64} {
  func.func @_attention_kernel(%arg0: i32, %arg1: i32, %arg2: memref<1x1x8x8xf32, #tpu.memory_space<vmem>>, %arg3: memref<1x1x8x8xf32, #tpu.memory_space<vmem>>, %arg4: memref<1x1x8x8xf32, #tpu.memory_space<vmem>>, %arg5: memref<1x8x8xf32, #tpu.memory_space<vmem>>, %arg6: memref<1x1x8x8xf32, #tpu.memory_space<vmem>>, %arg7: memref<1x1x8x8xf32, #tpu.memory_space<vmem>>) attributes {dimension_semantics = [#tpu.dimension_semantics<parallel>, #tpu.dimension_semantics<parallel>], iteration_bounds = array<i64: 2, 4>, scalar_prefetch = 0 : i64, scratch_operands = 0 : i64, tpu.core_type = #tpu.core_type<tc>, window_params = [{transform_indices = @transform_0, window_bounds = array<i64: 1, 1, 8, 8>}, {transform_indices = @transform_1, window_bounds = array<i64: 1, 1, 8, 8>}, {transform_indices = @transform_2, window_bounds = array<i64: 1, 1, 8, 8>}, {transform_indices = @transform_3, window_bounds = array<i64: 1, 8, 8>}, {transform_indices = @transform_4, window_bounds = array<i64: 1, 1, 8, 8>}, {transform_indices = @transform_5, window_bounds = array<i64: 1, 1, 8, 8>}]} {
    %c0 = arith.constant 0 : index
    %c0_0 = arith.constant 0 : index
    %c0_1 = arith.constant 0 : index
    %c0_2 = arith.constant 0 : index
    %0 = vector.load %arg2[%c0, %c0_0, %c0_1, %c0_2] : memref<1x1x8x8xf32, #tpu.memory_space<vmem>>, vector<1x1x8x8xf32>
    %1 = vector.shape_cast %0 : vector<1x1x8x8xf32> to vector<8x8xf32>
    %c0_3 = arith.constant 0 : index
    %c0_4 = arith.constant 0 : index
    %c0_5 = arith.constant 0 : index
    %c0_6 = arith.constant 0 : index
    %2 = vector.load %arg3[%c0_3, %c0_4, %c0_5, %c0_6] : memref<1x1x8x8xf32, #tpu.memory_space<vmem>>, vector<1x1x8x8xf32>
    %3 = vector.shape_cast %2 : vector<1x1x8x8xf32> to vector<8x8xf32>
    %c0_7 = arith.constant 0 : index
    %c0_8 = arith.constant 0 : index
    %c0_9 = arith.constant 0 : index
    %c0_10 = arith.constant 0 : index
    %4 = vector.load %arg4[%c0_7, %c0_8, %c0_9, %c0_10] : memref<1x1x8x8xf32, #tpu.memory_space<vmem>>, vector<1x1x8x8xf32>
    %5 = vector.shape_cast %4 : vector<1x1x8x8xf32> to vector<8x8xf32>
    %c0_11 = arith.constant 0 : index
    %c0_12 = arith.constant 0 : index
    %c0_13 = arith.constant 0 : index
    %6 = vector.load %arg5[%c0_11, %c0_12, %c0_13] : memref<1x8x8xf32, #tpu.memory_space<vmem>>, vector<1x8x8xf32>
    %7 = vector.shape_cast %6 : vector<1x8x8xf32> to vector<8x8xf32>
    %cst = arith.constant 0.353553385 : f32
    %8 = vector.broadcast %cst : f32 to vector<8x8xf32>
    %9 = arith.mulf %1, %8 : vector<8x8xf32>
    %cst_14 = arith.constant dense<0.000000e+00> : vector<8x8xf32>
    %10 = tpu.matmul %9, %3, %cst_14 {dimension_numbers = #tpu.dot_dimension_numbers<[1], [1], [0], [0], [0, 0, 1, 0], [], []>, precision = #tpu.contract_precision<fp32>} : vector<8x8xf32>, vector<8x8xf32>, vector<8x8xf32> -> vector<8x8xf32>
    %cst_15 = arith.constant 0.000000e+00 : f32
    %11 = vector.broadcast %cst_15 : f32 to vector<8x8xf32>
    %12 = arith.cmpf oeq, %7, %11 : vector<8x8xf32>
    %cst_16 = arith.constant -1.000000e+09 : f32
    %13 = vector.broadcast %cst_16 : f32 to vector<8x8xf32>
    %14 = arith.select %12, %13, %10 : vector<8x8xi1>, vector<8x8xf32>
    %cst_17 = arith.constant dense<0xFF800000> : vector<8xf32>
    %15 = vector.multi_reduction <maximumf>, %14, %cst_17 [1] : vector<8x8xf32> to vector<8xf32>
    %16 = vector.shape_cast %15 : vector<8xf32> to vector<8x1xf32>
    %17 = vector.broadcast %16 : vector<8x1xf32> to vector<8x8xf32>
    %18 = arith.subf %14, %17 : vector<8x8xf32>
    %19 = math.exp %18 : vector<8x8xf32>
    %cst_18 = arith.constant dense<0.000000e+00> : vector<8xf32>
    %20 = vector.multi_reduction <add>, %19, %cst_18 [1] : vector<8x8xf32> to vector<8xf32>
    %21 = vector.shape_cast %20 : vector<8xf32> to vector<8x1xf32>
    %22 = tpu.reciprocal %21 : vector<8x1xf32> -> vector<8x1xf32>
    %23 = vector.broadcast %22 : vector<8x1xf32> to vector<8x8xf32>
    %24 = arith.mulf %19, %23 : vector<8x8xf32>
    %cst_19 = arith.constant dense<0.000000e+00> : vector<8x8xf32>
    %25 = tpu.matmul %24, %5, %cst_19 {dimension_numbers = #tpu.dot_dimension_numbers<[1], [0], [0], [1], [0, 0, 1, 1], [], []>, precision = #tpu.contract_precision<fp32>} : vector<8x8xf32>, vector<8x8xf32>, vector<8x8xf32> -> vector<8x8xf32>
    %c0_20 = arith.constant 0 : index
    %c0_21 = arith.constant 0 : index
    %c0_22 = arith.constant 0 : index
    %c0_23 = arith.constant 0 : index
    %26 = vector.load %arg7[%c0_20, %c0_21, %c0_22, %c0_23] : memref<1x1x8x8xf32, #tpu.memory_space<vmem>>, vector<1x1x8x8xf32>
    %27 = vector.shape_cast %26 : vector<1x1x8x8xf32> to vector<8x8xf32>
    %28 = vector.shape_cast %24 : vector<8x8xf32> to vector<1x1x8x8xf32>
    tpu.vector_store %arg7[%c0_20, %c0_21, %c0_22, %c0_23], %28 {strides = array<i32>} : memref<1x1x8x8xf32, #tpu.memory_space<vmem>>, vector<1x1x8x8xf32>,
    %c0_24 = arith.constant 0 : index
    %c0_25 = arith.constant 0 : index
    %c0_26 = arith.constant 0 : index
    %c0_27 = arith.constant 0 : index
    %29 = vector.load %arg6[%c0_24, %c0_25, %c0_26, %c0_27] : memref<1x1x8x8xf32, #tpu.memory_space<vmem>>, vector<1x1x8x8xf32>
    %30 = vector.shape_cast %29 : vector<1x1x8x8xf32> to vector<8x8xf32>
    %31 = vector.shape_cast %25 : vector<8x8xf32> to vector<1x1x8x8xf32>
    tpu.vector_store %arg6[%c0_24, %c0_25, %c0_26, %c0_27], %31 {strides = array<i32>} : memref<1x1x8x8xf32, #tpu.memory_space<vmem>>, vector<1x1x8x8xf32>,
    return
  }
  func.func @transform_0(%arg0: i32, %arg1: i32) -> (i32, i32, i32, i32) {
    %c0_i32 = arith.constant 0 : i32
    %c0_i32_0 = arith.constant 0 : i32
    %c0_i32_1 = arith.constant 0 : i32
    return %arg0, %arg1, %c0_i32, %c0_i32_0 : i32, i32, i32, i32
  }
  func.func @transform_1(%arg0: i32, %arg1: i32) -> (i32, i32, i32, i32) {
    %c0_i32 = arith.constant 0 : i32
    %c0_i32_0 = arith.constant 0 : i32
    %c0_i32_1 = arith.constant 0 : i32
    return %arg0, %arg1, %c0_i32, %c0_i32_0 : i32, i32, i32, i32
  }
  func.func @transform_2(%arg0: i32, %arg1: i32) -> (i32, i32, i32, i32) {
    %c0_i32 = arith.constant 0 : i32
    %c0_i32_0 = arith.constant 0 : i32
    %c0_i32_1 = arith.constant 0 : i32
    return %arg0, %arg1, %c0_i32, %c0_i32_0 : i32, i32, i32, i32
  }
  func.func @transform_3(%arg0: i32, %arg1: i32) -> (i32, i32, i32) {
    %c0_i32 = arith.constant 0 : i32
    %c0_i32_0 = arith.constant 0 : i32
    %c0_i32_1 = arith.constant 0 : i32
    return %arg0, %c0_i32, %c0_i32_0 : i32, i32, i32
  }
  func.func @transform_4(%arg0: i32, %arg1: i32) -> (i32, i32, i32, i32) {
    %c0_i32 = arith.constant 0 : i32
    %c0_i32_0 = arith.constant 0 : i32
    %c0_i32_1 = arith.constant 0 : i32
    return %arg0, %arg1, %c0_i32, %c0_i32_0 : i32, i32, i32, i32
  }
  func.func @transform_5(%arg0: i32, %arg1: i32) -> (i32, i32, i32, i32) {
    %c0_i32 = arith.constant 0 : i32
    %c0_i32_0 = arith.constant 0 : i32
    %c0_i32_1 = arith.constant 0 : i32
    return %arg0, %arg1, %c0_i32, %c0_i32_0 : i32, i32, i32, i32
  }
}

module attributes {stable_mosaic.version = 11 : i64} {
  func.func @_ffn_kernel(%arg0: i32, %arg1: memref<16x32xf32, #tpu.memory_space<vmem>>, %arg2: memref<32x64xf32, #tpu.memory_space<vmem>>, %arg3: memref<1x64xf32, #tpu.memory_space<vmem>>, %arg4: memref<64x32xf32, #tpu.memory_space<vmem>>, %arg5: memref<1x32xf32, #tpu.memory_space<vmem>>, %arg6: memref<1x32xf32, #tpu.memory_space<vmem>>, %arg7: memref<1x32xf32, #tpu.memory_space<vmem>>, %arg8: memref<16x32xf32, #tpu.memory_space<vmem>>) attributes {dimension_semantics = [#tpu.dimension_semantics<parallel>], iteration_bounds = array<i64: 1>, scalar_prefetch = 0 : i64, scratch_operands = 0 : i64, tpu.core_type = #tpu.core_type<tc>, window_params = [{transform_indices = @transform_0, window_bounds = array<i64: 16, 32>}, {pipeline_mode = #tpu.pipeline_mode<synchronous>, transform_indices = @transform_1, window_bounds = array<i64: 32, 64>}, {pipeline_mode = #tpu.pipeline_mode<synchronous>, transform_indices = @transform_2, window_bounds = array<i64: 1, 64>}, {pipeline_mode = #tpu.pipeline_mode<synchronous>, transform_indices = @transform_3, window_bounds = array<i64: 64, 32>}, {pipeline_mode = #tpu.pipeline_mode<synchronous>, transform_indices = @transform_4, window_bounds = array<i64: 1, 32>}, {pipeline_mode = #tpu.pipeline_mode<synchronous>, transform_indices = @transform_5, window_bounds = array<i64: 1, 32>}, {pipeline_mode = #tpu.pipeline_mode<synchronous>, transform_indices = @transform_6, window_bounds = array<i64: 1, 32>}, {transform_indices = @transform_7, window_bounds = array<i64: 16, 32>}]} {
    %c0 = arith.constant 0 : index
    %c0_0 = arith.constant 0 : index
    %0 = vector.load %arg1[%c0, %c0_0] : memref<16x32xf32, #tpu.memory_space<vmem>>, vector<16x32xf32>
    %c0_1 = arith.constant 0 : index
    %c0_2 = arith.constant 0 : index
    %1 = vector.load %arg2[%c0_1, %c0_2] : memref<32x64xf32, #tpu.memory_space<vmem>>, vector<32x64xf32>
    %cst = arith.constant dense<0.000000e+00> : vector<16x64xf32>
    %2 = tpu.matmul %0, %1, %cst {dimension_numbers = #tpu.dot_dimension_numbers<[1], [0], [0], [1], [0, 0, 1, 1], [], []>, precision = #tpu.contract_precision<fp32>} : vector<16x32xf32>, vector<32x64xf32>, vector<16x64xf32> -> vector<16x64xf32>
    %c0_3 = arith.constant 0 : index
    %c0_4 = arith.constant 0 : index
    %3 = vector.load %arg3[%c0_3, %c0_4] : memref<1x64xf32, #tpu.memory_space<vmem>>, vector<1x64xf32>
    %4 = vector.broadcast %3 : vector<1x64xf32> to vector<16x64xf32>
    %5 = arith.addf %2, %4 : vector<16x64xf32>
    %cst_5 = arith.constant 0.000000e+00 : f32
    %6 = vector.broadcast %cst_5 : f32 to vector<16x64xf32>
    %7 = arith.maximumf %5, %6 : vector<16x64xf32>
    %c0_6 = arith.constant 0 : index
    %c0_7 = arith.constant 0 : index
    %8 = vector.load %arg4[%c0_6, %c0_7] : memref<64x32xf32, #tpu.memory_space<vmem>>, vector<64x32xf32>
    %cst_8 = arith.constant dense<0.000000e+00> : vector<16x32xf32>
    %9 = tpu.matmul %7, %8, %cst_8 {dimension_numbers = #tpu.dot_dimension_numbers<[1], [0], [0], [1], [0, 0, 1, 1], [], []>, precision = #tpu.contract_precision<fp32>} : vector<16x64xf32>, vector<64x32xf32>, vector<16x32xf32> -> vector<16x32xf32>
    %c0_9 = arith.constant 0 : index
    %c0_10 = arith.constant 0 : index
    %10 = vector.load %arg5[%c0_9, %c0_10] : memref<1x32xf32, #tpu.memory_space<vmem>>, vector<1x32xf32>
    %11 = vector.broadcast %10 : vector<1x32xf32> to vector<16x32xf32>
    %12 = arith.addf %9, %11 : vector<16x32xf32>
    %13 = arith.addf %12, %0 : vector<16x32xf32>
    %cst_11 = arith.constant dense<0.000000e+00> : vector<16xf32>
    %14 = vector.multi_reduction <add>, %13, %cst_11 [1] : vector<16x32xf32> to vector<16xf32>
    %15 = vector.shape_cast %14 : vector<16xf32> to vector<16x1xf32>
    %cst_12 = arith.constant 3.200000e+01 : f32
    %16 = vector.broadcast %cst_12 : f32 to vector<16x1xf32>
    %17 = arith.divf %15, %16 : vector<16x1xf32>
    %18 = vector.broadcast %17 : vector<16x1xf32> to vector<16x32xf32>
    %19 = arith.subf %13, %18 : vector<16x32xf32>
    %20 = arith.mulf %19, %19 : vector<16x32xf32>
    %cst_13 = arith.constant dense<0.000000e+00> : vector<16xf32>
    %21 = vector.multi_reduction <add>, %20, %cst_13 [1] : vector<16x32xf32> to vector<16xf32>
    %22 = vector.shape_cast %21 : vector<16xf32> to vector<16x1xf32>
    %cst_14 = arith.constant 3.200000e+01 : f32
    %23 = vector.broadcast %cst_14 : f32 to vector<16x1xf32>
    %24 = arith.divf %22, %23 : vector<16x1xf32>
    %25 = vector.broadcast %17 : vector<16x1xf32> to vector<16x32xf32>
    %26 = arith.subf %13, %25 : vector<16x32xf32>
    %cst_15 = arith.constant 9.99999997E-7 : f32
    %27 = vector.broadcast %cst_15 : f32 to vector<16x1xf32>
    %28 = arith.addf %24, %27 : vector<16x1xf32>
    %29 = math.rsqrt %28 : vector<16x1xf32>
    %30 = vector.broadcast %29 : vector<16x1xf32> to vector<16x32xf32>
    %31 = arith.mulf %26, %30 : vector<16x32xf32>
    %c0_16 = arith.constant 0 : index
    %c0_17 = arith.constant 0 : index
    %32 = vector.load %arg6[%c0_16, %c0_17] : memref<1x32xf32, #tpu.memory_space<vmem>>, vector<1x32xf32>
    %33 = vector.broadcast %32 : vector<1x32xf32> to vector<16x32xf32>
    %34 = arith.mulf %31, %33 : vector<16x32xf32>
    %c0_18 = arith.constant 0 : index
    %c0_19 = arith.constant 0 : index
    %35 = vector.load %arg7[%c0_18, %c0_19] : memref<1x32xf32, #tpu.memory_space<vmem>>, vector<1x32xf32>
    %36 = vector.broadcast %35 : vector<1x32xf32> to vector<16x32xf32>
    %37 = arith.addf %34, %36 : vector<16x32xf32>
    %c0_20 = arith.constant 0 : index
    %c0_21 = arith.constant 0 : index
    %38 = vector.load %arg8[%c0_20, %c0_21] : memref<16x32xf32, #tpu.memory_space<vmem>>, vector<16x32xf32>
    tpu.vector_store %arg8[%c0_20, %c0_21], %37 {strides = array<i32>} : memref<16x32xf32, #tpu.memory_space<vmem>>, vector<16x32xf32>,
    return
  }
  func.func @transform_0(%arg0: i32) -> (i32, i32) {
    %c0_i32 = arith.constant 0 : i32
    %c0_i32_0 = arith.constant 0 : i32
    return %arg0, %c0_i32 : i32, i32
  }
  func.func @transform_1(%arg0: i32) -> (i32, i32) {
    %c0_i32 = arith.constant 0 : i32
    %c0_i32_0 = arith.constant 0 : i32
    %c0_i32_1 = arith.constant 0 : i32
    return %c0_i32, %c0_i32_0 : i32, i32
  }
  func.func @transform_2(%arg0: i32) -> (i32, i32) {
    %c0_i32 = arith.constant 0 : i32
    %c0_i32_0 = arith.constant 0 : i32
    %c0_i32_1 = arith.constant 0 : i32
    return %c0_i32, %c0_i32_0 : i32, i32
  }
  func.func @transform_3(%arg0: i32) -> (i32, i32) {
    %c0_i32 = arith.constant 0 : i32
    %c0_i32_0 = arith.constant 0 : i32
    %c0_i32_1 = arith.constant 0 : i32
    return %c0_i32, %c0_i32_0 : i32, i32
  }
  func.func @transform_4(%arg0: i32) -> (i32, i32) {
    %c0_i32 = arith.constant 0 : i32
    %c0_i32_0 = arith.constant 0 : i32
    %c0_i32_1 = arith.constant 0 : i32
    return %c0_i32, %c0_i32_0 : i32, i32
  }
  func.func @transform_5(%arg0: i32) -> (i32, i32) {
    %c0_i32 = arith.constant 0 : i32
    %c0_i32_0 = arith.constant 0 : i32
    %c0_i32_1 = arith.constant 0 : i32
    return %c0_i32, %c0_i32_0 : i32, i32
  }
  func.func @transform_6(%arg0: i32) -> (i32, i32) {
    %c0_i32 = arith.constant 0 : i32
    %c0_i32_0 = arith.constant 0 : i32
    %c0_i32_1 = arith.constant 0 : i32
    return %c0_i32, %c0_i32_0 : i32, i32
  }
  func.func @transform_7(%arg0: i32) -> (i32, i32) {
    %c0_i32 = arith.constant 0 : i32
    %c0_i32_0 = arith.constant 0 : i32
    return %arg0, %c0_i32 : i32, i32
  }
}

module attributes {stable_mosaic.version = 11 : i64} {
  func.func @_attention_nomask_kernel(%arg0: i32, %arg1: i32, %arg2: memref<1x1x8x8xf32, #tpu.memory_space<vmem>>, %arg3: memref<1x1x16x8xf32, #tpu.memory_space<vmem>>, %arg4: memref<1x1x16x8xf32, #tpu.memory_space<vmem>>, %arg5: memref<1x1x8x8xf32, #tpu.memory_space<vmem>>, %arg6: memref<1x1x8x16xf32, #tpu.memory_space<vmem>>) attributes {dimension_semantics = [#tpu.dimension_semantics<parallel>, #tpu.dimension_semantics<parallel>], iteration_bounds = array<i64: 2, 4>, scalar_prefetch = 0 : i64, scratch_operands = 0 : i64, tpu.core_type = #tpu.core_type<tc>, window_params = [{transform_indices = @transform_0, window_bounds = array<i64: 1, 1, 8, 8>}, {transform_indices = @transform_1, window_bounds = array<i64: 1, 1, 16, 8>}, {transform_indices = @transform_2, window_bounds = array<i64: 1, 1, 16, 8>}, {transform_indices = @transform_3, window_bounds = array<i64: 1, 1, 8, 8>}, {transform_indices = @transform_4, window_bounds = array<i64: 1, 1, 8, 16>}]} {
    %c0 = arith.constant 0 : index
    %c0_0 = arith.constant 0 : index
    %c0_1 = arith.constant 0 : index
    %c0_2 = arith.constant 0 : index
    %0 = vector.load %arg2[%c0, %c0_0, %c0_1, %c0_2] : memref<1x1x8x8xf32, #tpu.memory_space<vmem>>, vector<1x1x8x8xf32>
    %1 = vector.shape_cast %0 : vector<1x1x8x8xf32> to vector<8x8xf32>
    %c0_3 = arith.constant 0 : index
    %c0_4 = arith.constant 0 : index
    %c0_5 = arith.constant 0 : index
    %c0_6 = arith.constant 0 : index
    %2 = vector.load %arg3[%c0_3, %c0_4, %c0_5, %c0_6] : memref<1x1x16x8xf32, #tpu.memory_space<vmem>>, vector<1x1x16x8xf32>
    %3 = vector.shape_cast %2 : vector<1x1x16x8xf32> to vector<16x8xf32>
    %c0_7 = arith.constant 0 : index
    %c0_8 = arith.constant 0 : index
    %c0_9 = arith.constant 0 : index
    %c0_10 = arith.constant 0 : index
    %4 = vector.load %arg4[%c0_7, %c0_8, %c0_9, %c0_10] : memref<1x1x16x8xf32, #tpu.memory_space<vmem>>, vector<1x1x16x8xf32>
    %5 = vector.shape_cast %4 : vector<1x1x16x8xf32> to vector<16x8xf32>
    %cst = arith.constant 0.353553385 : f32
    %6 = vector.broadcast %cst : f32 to vector<8x8xf32>
    %7 = arith.mulf %1, %6 : vector<8x8xf32>
    %cst_11 = arith.constant dense<0.000000e+00> : vector<8x16xf32>
    %8 = tpu.matmul %7, %3, %cst_11 {dimension_numbers = #tpu.dot_dimension_numbers<[1], [1], [0], [0], [0, 0, 1, 0], [], []>, precision = #tpu.contract_precision<fp32>} : vector<8x8xf32>, vector<16x8xf32>, vector<8x16xf32> -> vector<8x16xf32>
    %cst_12 = arith.constant dense<0xFF800000> : vector<8xf32>
    %9 = vector.multi_reduction <maximumf>, %8, %cst_12 [1] : vector<8x16xf32> to vector<8xf32>
    %10 = vector.shape_cast %9 : vector<8xf32> to vector<8x1xf32>
    %11 = vector.broadcast %10 : vector<8x1xf32> to vector<8x16xf32>
    %12 = arith.subf %8, %11 : vector<8x16xf32>
    %13 = math.exp %12 : vector<8x16xf32>
    %cst_13 = arith.constant dense<0.000000e+00> : vector<8xf32>
    %14 = vector.multi_reduction <add>, %13, %cst_13 [1] : vector<8x16xf32> to vector<8xf32>
    %15 = vector.shape_cast %14 : vector<8xf32> to vector<8x1xf32>
    %16 = tpu.reciprocal %15 : vector<8x1xf32> -> vector<8x1xf32>
    %17 = vector.broadcast %16 : vector<8x1xf32> to vector<8x16xf32>
    %18 = arith.mulf %13, %17 : vector<8x16xf32>
    %cst_14 = arith.constant dense<0.000000e+00> : vector<8x8xf32>
    %19 = tpu.matmul %18, %5, %cst_14 {dimension_numbers = #tpu.dot_dimension_numbers<[1], [0], [0], [1], [0, 0, 1, 1], [], []>, precision = #tpu.contract_precision<fp32>} : vector<8x16xf32>, vector<16x8xf32>, vector<8x8xf32> -> vector<8x8xf32>
    %c0_15 = arith.constant 0 : index
    %c0_16 = arith.constant 0 : index
    %c0_17 = arith.constant 0 : index
    %c0_18 = arith.constant 0 : index
    %20 = vector.load %arg6[%c0_15, %c0_16, %c0_17, %c0_18] : memref<1x1x8x16xf32, #tpu.memory_space<vmem>>, vector<1x1x8x16xf32>
    %21 = vector.shape_cast %20 : vector<1x1x8x16xf32> to vector<8x16xf32>
    %22 = vector.shape_cast %18 : vector<8x16xf32> to vector<1x1x8x16xf32>
    tpu.vector_store %arg6[%c0_15, %c0_16, %c0_17, %c0_18], %22 {strides = array<i32>} : memref<1x1x8x16xf32, #tpu.memory_space<vmem>>, vector<1x1x8x16xf32>,
    %c0_19 = arith.constant 0 : index
    %c0_20 = arith.constant 0 : index
    %c0_21 = arith.constant 0 : index
    %c0_22 = arith.constant 0 : index
    %23 = vector.load %arg5[%c0_19, %c0_20, %c0_21, %c0_22] : memref<1x1x8x8xf32, #tpu.memory_space<vmem>>, vector<1x1x8x8xf32>
    %24 = vector.shape_cast %23 : vector<1x1x8x8xf32> to vector<8x8xf32>
    %25 = vector.shape_cast %19 : vector<8x8xf32> to vector<1x1x8x8xf32>
    tpu.vector_store %arg5[%c0_19, %c0_20, %c0_21, %c0_22], %25 {strides = array<i32>} : memref<1x1x8x8xf32, #tpu.memory_space<vmem>>, vector<1x1x8x8xf32>,
    return
  }
  func.func @transform_0(%arg0: i32, %arg1: i32) -> (i32, i32, i32, i32) {
    %c0_i32 = arith.constant 0 : i32
    %c0_i32_0 = arith.constant 0 : i32
    %c0_i32_1 = arith.constant 0 : i32
    return %arg0, %arg1, %c0_i32, %c0_i32_0 : i32, i32, i32, i32
  }
  func.func @transform_1(%arg0: i32, %arg1: i32) -> (i32, i32, i32, i32) {
    %c0_i32 = arith.constant 0 : i32
    %c0_i32_0 = arith.constant 0 : i32
    %c0_i32_1 = arith.constant 0 : i32
    return %arg0, %arg1, %c0_i32, %c0_i32_0 : i32, i32, i32, i32
  }
  func.func @transform_2(%arg0: i32, %arg1: i32) -> (i32, i32, i32, i32) {
    %c0_i32 = arith.constant 0 : i32
    %c0_i32_0 = arith.constant 0 : i32
    %c0_i32_1 = arith.constant 0 : i32
    return %arg0, %arg1, %c0_i32, %c0_i32_0 : i32, i32, i32, i32
  }
  func.func @transform_3(%arg0: i32, %arg1: i32) -> (i32, i32, i32, i32) {
    %c0_i32 = arith.constant 0 : i32
    %c0_i32_0 = arith.constant 0 : i32
    %c0_i32_1 = arith.constant 0 : i32
    return %arg0, %arg1, %c0_i32, %c0_i32_0 : i32, i32, i32, i32
  }
  func.func @transform_4(%arg0: i32, %arg1: i32) -> (i32, i32, i32, i32) {
    %c0_i32 = arith.constant 0 : i32
    %c0_i32_0 = arith.constant 0 : i32
    %c0_i32_1 = arith.constant 0 : i32
    return %arg0, %arg1, %c0_i32, %c0_i32_0 : i32, i32, i32, i32
  }
}

</mosaic_0001>

<llo_original>
// kernel: decoder_layer.13
$region0: #{decoder_layer.13}
  #allocation0 [shape = 'u32[]', space=smem, size = 0x4, offset = 0x4, fixed_abs, tag = 'smem constant byte address 0x4 - core index']
  #allocation1 [shape = 'u32[144,128]{1,0:T(1,128)}', space=vmem, size = 0x12000, scoped, tag = 'internal scratch']
  %s0 = inlined_call_operand.hbm [shape: f32[16,32], index: 0, kind: input, shape index: {}]
  %s1 = inlined_call_operand.vmem [shape: f32[32,32], index: 1, kind: input, shape index: {}]
  %s2 = inlined_call_operand.vmem [shape: f32[16,32], index: 2, kind: output, shape index: {}]
  %s3 = sld [smem:[#allocation0]]
  $region22: #{decoder_layer.13} parent=0
    _
  %s5 = ssub.s32 1, %s3
  %s6 = scalar_select 0, %s5, %s3
  $region1: #{decoder_layer.13} parent=0
    #allocation2 [shape = 'u8[8192]{0}', space=vmem, size = 0x2000, scoped, tag = 'input window, operand 0, single buffered']
    #allocation3 [shape = 's32[1]{0}', space=sflag, size = 0x4, scoped, tag = 'scoped memory for decoder_layer.13']
    %7 = vsyncpa [#allocation3], 0
    // Predicated region
    $region2: #{decoder_layer.13} parent=1 // pred_check
      _
    $region3: #{decoder_layer.13} parent=1 // pred_check_branch
      %9 = sbr.rel (0) target = $region5
    $region4: #{decoder_layer.13} parent=1 // pred_region
      %s11 = ssub.s32 256, 256
      %12 = vsyncadd [#allocation3], %s11
      %s13 = sshll.u32 [#allocation2], 4
      %s14 = int_to_ptr.vmem [resolvable:$true] %s13
      %19 = dma.hbm_to_vmem [thread:$0]  %s0, 256, %s14, [#allocation3], 128, 128, 8
    $region5: #{decoder_layer.13} parent=1 // pred_fallthru
      _
    // Predicated region
    $region6: #{decoder_layer.13} parent=1 // pred_check
      _
    $region7: #{decoder_layer.13} parent=1 // pred_check_branch
      %21 = sbr.rel (0) target = $region9
    $region8: #{decoder_layer.13} parent=1 // pred_region
      _
    $region9: #{decoder_layer.13} parent=1 // pred_fallthru
      _
    // Predicated region
    $region10: #{decoder_layer.13} parent=1 // pred_check
      _
    $region11: #{decoder_layer.13} parent=1 // pred_check_branch
      %23 = sbr.rel (0) target = $region13
    $region12: #{decoder_layer.13} parent=1 // pred_region
      %24 = dma.done [#allocation3], 256
    $region13: #{decoder_layer.13} parent=1 // pred_fallthru
      _
    %v25 = vld [vmem:[#allocation2] sm:$0xff]
    %v26 = vld [vmem:[#allocation2 + $0x8] sm:$0xff]
    %v27 = vld [vmem:[%s1] sm:$0xff]
    %v28 = vld [vmem:[%s1 + $0x8] sm:$0xff]
    %v29 = vld [vmem:[%s1 + $0x10] sm:$0xff]
    %v30 = vld [vmem:[%s1 + $0x18] sm:$0xff]
    %vm31 = vcmask 261120
    %v33 = vsel %vm31, %v25, 0
    %v36 = vsel %vm31, %v26, 0
    %38 = vmatprep.subr.mxu0 0.0
    %v39 = vand.u32 %v27, 4294901760
    %40 = vmatpush1.msra.mxu0 %v39
    %41 = vmatprep.subr.mxu0 0.0
    %v42 = vand.u32 %v28, 4294901760
    %43 = vmatpush1.msra.mxu0 %v42
    %44 = vmatprep.subr.mxu0 0.0
    %v45 = vand.u32 %v29, 4294901760
    %46 = vmatpush1.msra.mxu0 %v45
    %47 = vmatprep.subr.mxu0 0.0
    %v48 = vand.u32 %v30, 4294901760
    %49 = vmatpush1.msra.mxu0 %v48
    %50 = vmatprep.subr.mxu0 0.0
    %51 = vmatpush1.msra.mxu0 0.0
    %52 = vmatprep.subr.mxu0 0.0
    %53 = vmatpush1.msra.mxu0 0.0
    %54 = vmatprep.subr.mxu0 0.0
    %55 = vmatpush1.msra.mxu0 0.0
    %56 = vmatprep.subr.mxu0 0.0
    %57 = vmatpush1.msra.mxu0 0.0
    %58 = vmatprep.subr.mxu0 0.0
    %59 = vmatpush1.msra.mxu0 0.0
    %60 = vmatprep.subr.mxu0 0.0
    %61 = vmatpush1.msra.mxu0 0.0
    %62 = vmatprep.subr.mxu0 0.0
    %63 = vmatpush1.msra.mxu0 0.0
    %64 = vmatprep.subr.mxu0 0.0
    %65 = vmatpush1.msra.mxu0 0.0
    %66 = vmatprep.subr.mxu0 0.0
    %67 = vmatpush1.msra.mxu0 0.0
    %68 = vmatprep.subr.mxu0 0.0
    %69 = vmatpush1.msra.mxu0 0.0
    %70 = vmatprep.subr.mxu0 0.0
    %71 = vmatpush1.msra.mxu0 0.0
    %72 = vmatprep.subr.mxu0 0.0
    %73 = vmatpush1.msra.mxu0 0.0
    %74 = vmatprep.subr.mxu0 0.0
    %75 = vmatpush1.msra.mxu0 0.0
    %76 = vmatprep.subr.mxu0 0.0
    %77 = vmatpush1.msra.mxu0 0.0
    %78 = vmatprep.subr.mxu0 0.0
    %79 = vmatpush1.msra.mxu0 0.0
    %80 = vmatprep.subr.mxu0 0.0
    %81 = vmatpush1.msra.mxu0 0.0
    %82 = vmatprep.subr.mxu0 0.0
    %83 = vmatpush1.msra.mxu0 0.0
    %84 = vmatprep.subr.mxu0 0.0
    %85 = vmatpush1.msra.mxu0 0.0
    %86 = vmatprep.subr.mxu0 0.0
    %87 = vmatpush1.msra.mxu0 0.0
    %88 = vmatprep.subr.mxu0 0.0
    %89 = vmatpush1.msra.mxu0 0.0
    %90 = vmatprep.subr.mxu0 0.0
    %91 = vmatpush1.msra.mxu0 0.0
    %92 = vmatprep.subr.mxu0 0.0
    %93 = vmatpush1.msra.mxu0 0.0
    %94 = vmatprep.subr.mxu0 0.0
    %95 = vmatpush1.msra.mxu0 0.0
    %96 = vmatprep.subr.mxu0 0.0
    %97 = vmatpush1.msra.mxu0 0.0
    %98 = vmatprep.subr.mxu0 0.0
    %99 = vmatpush1.msra.mxu0 0.0
    %100 = vmatprep.subr.mxu0 0.0
    %101 = vmatpush1.msra.mxu0 0.0
    %102 = vmatprep.subr.mxu0 0.0
    %103 = vmatpush1.msra.mxu0 0.0
    %104 = vmatprep.subr.mxu0 0.0
    %105 = vmatpush1.msra.mxu0 0.0
    %106 = vmatprep.mubr.f32.mxu0 0.0
    %v107 = vand.u32 %v33, 4294901760
    %v108 = vsub.f32 %v33, %v107
    %v109 = vand.u32 %v108, 4294901760
    %v110 = vsub.f32 %v108, %v109
    %v111 = vand.u32 %v110, 4294901760
    %112 = vmatmul.mubr.f32.gmra.mrb[0].mxu0 %v111
    %v113 = vpop.f32.mrb[0].mxu0
    %v114 = vadd.f32 0.0, %v113
    %v115 = vpop.f32.mrb[0].mxu0
    %116 = vmatprep.mubr.f32.mxu0 0.0
    %v117 = vand.u32 %v36, 4294901760
    %v118 = vsub.f32 %v36, %v117
    %v119 = vand.u32 %v118, 4294901760
    %v120 = vsub.f32 %v118, %v119
    %v121 = vand.u32 %v120, 4294901760
    %122 = vmatmul.mubr.f32.gmra.mrb[0].mxu0 %v121
    %v123 = vpop.f32.mrb[0].mxu0
    %v124 = vadd.f32 0.0, %v123
    %v125 = vpop.f32.mrb[0].mxu0
    %126 = vdwg.mxu0
    %127 = vmatprep.subr.mxu0 0.0
    %v128 = vand.u32 %v27, 4294901760
    %v129 = vsub.f32 %v27, %v128
    %v130 = vand.u32 %v129, 4294901760
    %v131 = vsub.f32 %v129, %v130
    %v132 = vand.u32 %v131, 4294901760
    %133 = vmatpush1.msra.mxu0 %v132
    %134 = vmatprep.subr.mxu0 0.0
    %v135 = vand.u32 %v28, 4294901760
    %v136 = vsub.f32 %v28, %v135
    %v137 = vand.u32 %v136, 4294901760
    %v138 = vsub.f32 %v136, %v137
    %v139 = vand.u32 %v138, 4294901760
    %140 = vmatpush1.msra.mxu0 %v139
    %141 = vmatprep.subr.mxu0 0.0
    %v142 = vand.u32 %v29, 4294901760
    %v143 = vsub.f32 %v29, %v142
    %v144 = vand.u32 %v143, 4294901760
    %v145 = vsub.f32 %v143, %v144
    %v146 = vand.u32 %v145, 4294901760
    %147 = vmatpush1.msra.mxu0 %v146
    %148 = vmatprep.subr.mxu0 0.0
    %v149 = vand.u32 %v30, 4294901760
    %v150 = vsub.f32 %v30, %v149
    %v151 = vand.u32 %v150, 4294901760
    %v152 = vsub.f32 %v150, %v151
    %v153 = vand.u32 %v152, 4294901760
    %154 = vmatpush1.msra.mxu0 %v153
    %155 = vmatprep.subr.mxu0 0.0
    %156 = vmatpush1.msra.mxu0 0.0
    %157 = vmatprep.subr.mxu0 0.0
    %158 = vmatpush1.msra.mxu0 0.0
    %159 = vmatprep.subr.mxu0 0.0
    %160 = vmatpush1.msra.mxu0 0.0
    %161 = vmatprep.subr.mxu0 0.0
    %162 = vmatpush1.msra.mxu0 0.0
    %163 = vmatprep.subr.mxu0 0.0
    %164 = vmatpush1.msra.mxu0 0.0
    %165 = vmatprep.subr.mxu0 0.0
    %166 = vmatpush1.msra.mxu0 0.0
    %167 = vmatprep.subr.mxu0 0.0
    %168 = vmatpush1.msra.mxu0 0.0
    %169 = vmatprep.subr.mxu0 0.0
    %170 = vmatpush1.msra.mxu0 0.0
    %171 = vmatprep.subr.mxu0 0.0
    %172 = vmatpush1.msra.mxu0 0.0
    %173 = vmatprep.subr.mxu0 0.0
    %174 = vmatpush1.msra.mxu0 0.0
    %175 = vmatprep.subr.mxu0 0.0
    %176 = vmatpush1.msra.mxu0 0.0
    %177 = vmatprep.subr.mxu0 0.0
    %178 = vmatpush1.msra.mxu0 0.0
    %179 = vmatprep.subr.mxu0 0.0
    %180 = vmatpush1.msra.mxu0 0.0
    %181 = vmatprep.subr.mxu0 0.0
    %182 = vmatpush1.msra.mxu0 0.0
    %183 = vmatprep.subr.mxu0 0.0
    %184 = vmatpush1.msra.mxu0 0.0
    %185 = vmatprep.subr.mxu0 0.0
    %186 = vmatpush1.msra.mxu0 0.0
    %187 = vmatprep.subr.mxu0 0.0
    %188 = vmatpush1.msra.mxu0 0.0
    %189 = vmatprep.subr.mxu0 0.0
    %190 = vmatpush1.msra.mxu0 0.0
    %191 = vmatprep.subr.mxu0 0.0
    %192 = vmatpush1.msra.mxu0 0.0
    %193 = vmatprep.subr.mxu0 0.0
    %194 = vmatpush1.msra.mxu0 0.0
    %195 = vmatprep.subr.mxu0 0.0
    %196 = vmatpush1.msra.mxu0 0.0
    %197 = vmatprep.subr.mxu0 0.0
    %198 = vmatpush1.msra.mxu0 0.0
    %199 = vmatprep.subr.mxu0 0.0
    %200 = vmatpush1.msra.mxu0 0.0
    %201 = vmatprep.subr.mxu0 0.0
    %202 = vmatpush1.msra.mxu0 0.0
    %203 = vmatprep.subr.mxu0 0.0
    %204 = vmatpush1.msra.mxu0 0.0
    %205 = vmatprep.subr.mxu0 0.0
    %206 = vmatpush1.msra.mxu0 0.0
    %207 = vmatprep.subr.mxu0 0.0
    %208 = vmatpush1.msra.mxu0 0.0
    %209 = vmatprep.subr.mxu0 0.0
    %210 = vmatpush1.msra.mxu0 0.0
    %211 = vmatprep.mubr.f32.mxu0 0.0
    %v212 = vand.u32 %v33, 4294901760
    %213 = vmatmul.mubr.f32.gmra.mrb[0].mxu0 %v212
    %v214 = vpop.f32.mrb[0].mxu0
    %v215 = vadd.f32 %v114, %v214
    %v216 = vpop.f32.mrb[0].mxu0
    %217 = vmatprep.mubr.f32.mxu0 0.0
    %v218 = vand.u32 %v36, 4294901760
    %219 = vmatmul.mubr.f32.gmra.mrb[0].mxu0 %v218
    %v220 = vpop.f32.mrb[0].mxu0
    %v221 = vadd.f32 %v124, %v220
    %v222 = vpop.f32.mrb[0].mxu0
    %223 = vdwg.mxu0
    %224 = vmatprep.subr.mxu0 0.0
    %v225 = vand.u32 %v27, 4294901760
    %v226 = vsub.f32 %v27, %v225
    %227 = vmatpush1.msra.mxu0 %v226
    %228 = vmatprep.subr.mxu0 0.0
    %v229 = vand.u32 %v28, 4294901760
    %v230 = vsub.f32 %v28, %v229
    %231 = vmatpush1.msra.mxu0 %v230
    %232 = vmatprep.subr.mxu0 0.0
    %v233 = vand.u32 %v29, 4294901760
    %v234 = vsub.f32 %v29, %v233
    %235 = vmatpush1.msra.mxu0 %v234
    %236 = vmatprep.subr.mxu0 0.0
    %v237 = vand.u32 %v30, 4294901760
    %v238 = vsub.f32 %v30, %v237
    %239 = vmatpush1.msra.mxu0 %v238
    %240 = vmatprep.subr.mxu0 0.0
    %241 = vmatpush1.msra.mxu0 0.0
    %242 = vmatprep.subr.mxu0 0.0
    %243 = vmatpush1.msra.mxu0 0.0
    %244 = vmatprep.subr.mxu0 0.0
    %245 = vmatpush1.msra.mxu0 0.0
    %246 = vmatprep.subr.mxu0 0.0
    %247 = vmatpush1.msra.mxu0 0.0
    %248 = vmatprep.subr.mxu0 0.0
    %249 = vmatpush1.msra.mxu0 0.0
    %250 = vmatprep.subr.mxu0 0.0
    %251 = vmatpush1.msra.mxu0 0.0
    %252 = vmatprep.subr.mxu0 0.0
    %253 = vmatpush1.msra.mxu0 0.0
    %254 = vmatprep.subr.mxu0 0.0
    %255 = vmatpush1.msra.mxu0 0.0
    %256 = vmatprep.subr.mxu0 0.0
    %257 = vmatpush1.msra.mxu0 0.0
    %258 = vmatprep.subr.mxu0 0.0
    %259 = vmatpush1.msra.mxu0 0.0
    %260 = vmatprep.subr.mxu0 0.0
    %261 = vmatpush1.msra.mxu0 0.0
    %262 = vmatprep.subr.mxu0 0.0
    %263 = vmatpush1.msra.mxu0 0.0
    %264 = vmatprep.subr.mxu0 0.0
    %265 = vmatpush1.msra.mxu0 0.0
    %266 = vmatprep.subr.mxu0 0.0
    %267 = vmatpush1.msra.mxu0 0.0
    %268 = vmatprep.subr.mxu0 0.0
    %269 = vmatpush1.msra.mxu0 0.0
    %270 = vmatprep.subr.mxu0 0.0
    %271 = vmatpush1.msra.mxu0 0.0
    %272 = vmatprep.subr.mxu0 0.0
    %273 = vmatpush1.msra.mxu0 0.0
    %274 = vmatprep.subr.mxu0 0.0
    %275 = vmatpush1.msra.mxu0 0.0
    %276 = vmatprep.subr.mxu0 0.0
    %277 = vmatpush1.msra.mxu0 0.0
    %278 = vmatprep.subr.mxu0 0.0
    %279 = vmatpush1.msra.mxu0 0.0
    %280 = vmatprep.subr.mxu0 0.0
    %281 = vmatpush1.msra.mxu0 0.0
    %282 = vmatprep.subr.mxu0 0.0
    %283 = vmatpush1.msra.mxu0 0.0
    %284 = vmatprep.subr.mxu0 0.0
    %285 = vmatpush1.msra.mxu0 0.0
    %286 = vmatprep.subr.mxu0 0.0
    %287 = vmatpush1.msra.mxu0 0.0
    %288 = vmatprep.subr.mxu0 0.0
    %289 = vmatpush1.msra.mxu0 0.0
    %290 = vmatprep.subr.mxu0 0.0
    %291 = vmatpush1.msra.mxu0 0.0
    %292 = vmatprep.subr.mxu0 0.0
    %293 = vmatpush1.msra.mxu0 0.0
    %294 = vmatprep.subr.mxu0 0.0
    %295 = vmatpush1.msra.mxu0 0.0
    %296 = vmatprep.mubr.f32.mxu0 0.0
    %v297 = vand.u32 %v33, 4294901760
    %v298 = vsub.f32 %v33, %v297
    %299 = vmatmul.mubr.f32.gmra.mrb[0].mxu0 %v298
    %v300 = vpop.f32.mrb[0].mxu0
    %v301 = vadd.f32 %v215, %v300
    %v302 = vpop.f32.mrb[0].mxu0
    %303 = vmatprep.mubr.f32.mxu0 0.0
    %v304 = vand.u32 %v36, 4294901760
    %v305 = vsub.f32 %v36, %v304
    %306 = vmatmul.mubr.f32.gmra.mrb[0].mxu0 %v305
    %v307 = vpop.f32.mrb[0].mxu0
    %v308 = vadd.f32 %v221, %v307
    %v309 = vpop.f32.mrb[0].mxu0
    %310 = vdwg.mxu0
    %311 = vmatprep.subr.mxu0 0.0
    %v312 = vand.u32 %v27, 4294901760
    %313 = vmatpush1.msra.mxu0 %v312
    %314 = vmatprep.subr.mxu0 0.0
    %v315 = vand.u32 %v28, 4294901760
    %316 = vmatpush1.msra.mxu0 %v315
    %317 = vmatprep.subr.mxu0 0.0
    %v318 = vand.u32 %v29, 4294901760
    %319 = vmatpush1.msra.mxu0 %v318
    %320 = vmatprep.subr.mxu0 0.0
    %v321 = vand.u32 %v30, 4294901760
    %322 = vmatpush1.msra.mxu0 %v321
    %323 = vmatprep.subr.mxu0 0.0
    %324 = vmatpush1.msra.mxu0 0.0
    %325 = vmatprep.subr.mxu0 0.0
    %326 = vmatpush1.msra.mxu0 0.0
    %327 = vmatprep.subr.mxu0 0.0
    %328 = vmatpush1.msra.mxu0 0.0
    %329 = vmatprep.subr.mxu0 0.0
    %330 = vmatpush1.msra.mxu0 0.0
    %331 = vmatprep.subr.mxu0 0.0
    %332 = vmatpush1.msra.mxu0 0.0
    %333 = vmatprep.subr.mxu0 0.0
    %334 = vmatpush1.msra.mxu0 0.0
    %335 = vmatprep.subr.mxu0 0.0
    %336 = vmatpush1.msra.mxu0 0.0
    %337 = vmatprep.subr.mxu0 0.0
    %338 = vmatpush1.msra.mxu0 0.0
    %339 = vmatprep.subr.mxu0 0.0
    %340 = vmatpush1.msra.mxu0 0.0
    %341 = vmatprep.subr.mxu0 0.0
    %342 = vmatpush1.msra.mxu0 0.0
    %343 = vmatprep.subr.mxu0 0.0
    %344 = vmatpush1.msra.mxu0 0.0
    %345 = vmatprep.subr.mxu0 0.0
    %346 = vmatpush1.msra.mxu0 0.0
    %347 = vmatprep.subr.mxu0 0.0
    %348 = vmatpush1.msra.mxu0 0.0
    %349 = vmatprep.subr.mxu0 0.0
    %350 = vmatpush1.msra.mxu0 0.0
    %351 = vmatprep.subr.mxu0 0.0
    %352 = vmatpush1.msra.mxu0 0.0
    %353 = vmatprep.subr.mxu0 0.0
    %354 = vmatpush1.msra.mxu0 0.0
    %355 = vmatprep.subr.mxu0 0.0
    %356 = vmatpush1.msra.mxu0 0.0
    %357 = vmatprep.subr.mxu0 0.0
    %358 = vmatpush1.msra.mxu0 0.0
    %359 = vmatprep.subr.mxu0 0.0
    %360 = vmatpush1.msra.mxu0 0.0
    %361 = vmatprep.subr.mxu0 0.0
    %362 = vmatpush1.msra.mxu0 0.0
    %363 = vmatprep.subr.mxu0 0.0
    %364 = vmatpush1.msra.mxu0 0.0
    %365 = vmatprep.subr.mxu0 0.0
    %366 = vmatpush1.msra.mxu0 0.0
    %367 = vmatprep.subr.mxu0 0.0
    %368 = vmatpush1.msra.mxu0 0.0
    %369 = vmatprep.subr.mxu0 0.0
    %370 = vmatpush1.msra.mxu0 0.0
    %371 = vmatprep.subr.mxu0 0.0
    %372 = vmatpush1.msra.mxu0 0.0
    %373 = vmatprep.subr.mxu0 0.0
    %374 = vmatpush1.msra.mxu0 0.0
    %375 = vmatprep.subr.mxu0 0.0
    %376 = vmatpush1.msra.mxu0 0.0
    %377 = vmatprep.subr.mxu0 0.0
    %378 = vmatpush1.msra.mxu0 0.0
    %379 = vmatprep.mubr.f32.mxu0 0.0
    %v380 = vand.u32 %v33, 4294901760
    %v381 = vsub.f32 %v33, %v380
    %v382 = vand.u32 %v381, 4294901760
    %383 = vmatmul.mubr.f32.gmra.mrb[0].mxu0 %v382
    %v384 = vpop.f32.mrb[0].mxu0
    %v385 = vadd.f32 %v301, %v384
    %v386 = vpop.f32.mrb[0].mxu0
    %387 = vmatprep.mubr.f32.mxu0 0.0
    %v388 = vand.u32 %v36, 4294901760
    %v389 = vsub.f32 %v36, %v388
    %v390 = vand.u32 %v389, 4294901760
    %391 = vmatmul.mubr.f32.gmra.mrb[0].mxu0 %v390
    %v392 = vpop.f32.mrb[0].mxu0
    %v393 = vadd.f32 %v308, %v392
    %v394 = vpop.f32.mrb[0].mxu0
    %395 = vdwg.mxu0
    %396 = vmatprep.subr.mxu0 0.0
    %v397 = vand.u32 %v27, 4294901760
    %v398 = vsub.f32 %v27, %v397
    %v399 = vand.u32 %v398, 4294901760
    %400 = vmatpush1.msra.mxu0 %v399
    %401 = vmatprep.subr.mxu0 0.0
    %v402 = vand.u32 %v28, 4294901760
    %v403 = vsub.f32 %v28, %v402
    %v404 = vand.u32 %v403, 4294901760
    %405 = vmatpush1.msra.mxu0 %v404
    %406 = vmatprep.subr.mxu0 0.0
    %v407 = vand.u32 %v29, 4294901760
    %v408 = vsub.f32 %v29, %v407
    %v409 = vand.u32 %v408, 4294901760
    %410 = vmatpush1.msra.mxu0 %v409
    %411 = vmatprep.subr.mxu0 0.0
    %v412 = vand.u32 %v30, 4294901760
    %v413 = vsub.f32 %v30, %v412
    %v414 = vand.u32 %v413, 4294901760
    %415 = vmatpush1.msra.mxu0 %v414
    %416 = vmatprep.subr.mxu0 0.0
    %417 = vmatpush1.msra.mxu0 0.0
    %418 = vmatprep.subr.mxu0 0.0
    %419 = vmatpush1.msra.mxu0 0.0
    %420 = vmatprep.subr.mxu0 0.0
    %421 = vmatpush1.msra.mxu0 0.0
    %422 = vmatprep.subr.mxu0 0.0
    %423 = vmatpush1.msra.mxu0 0.0
    %424 = vmatprep.subr.mxu0 0.0
    %425 = vmatpush1.msra.mxu0 0.0
    %426 = vmatprep.subr.mxu0 0.0
    %427 = vmatpush1.msra.mxu0 0.0
    %428 = vmatprep.subr.mxu0 0.0
    %429 = vmatpush1.msra.mxu0 0.0
    %430 = vmatprep.subr.mxu0 0.0
    %431 = vmatpush1.msra.mxu0 0.0
    %432 = vmatprep.subr.mxu0 0.0
    %433 = vmatpush1.msra.mxu0 0.0
    %434 = vmatprep.subr.mxu0 0.0
    %435 = vmatpush1.msra.mxu0 0.0
    %436 = vmatprep.subr.mxu0 0.0
    %437 = vmatpush1.msra.mxu0 0.0
    %438 = vmatprep.subr.mxu0 0.0
    %439 = vmatpush1.msra.mxu0 0.0
    %440 = vmatprep.subr.mxu0 0.0
    %441 = vmatpush1.msra.mxu0 0.0
    %442 = vmatprep.subr.mxu0 0.0
    %443 = vmatpush1.msra.mxu0 0.0
    %444 = vmatprep.subr.mxu0 0.0
    %445 = vmatpush1.msra.mxu0 0.0
    %446 = vmatprep.subr.mxu0 0.0
    %447 = vmatpush1.msra.mxu0 0.0
    %448 = vmatprep.subr.mxu0 0.0
    %449 = vmatpush1.msra.mxu0 0.0
    %450 = vmatprep.subr.mxu0 0.0
    %451 = vmatpush1.msra.mxu0 0.0
    %452 = vmatprep.subr.mxu0 0.0
    %453 = vmatpush1.msra.mxu0 0.0
    %454 = vmatprep.subr.mxu0 0.0
    %455 = vmatpush1.msra.mxu0 0.0
    %456 = vmatprep.subr.mxu0 0.0
    %457 = vmatpush1.msra.mxu0 0.0
    %458 = vmatprep.subr.mxu0 0.0
    %459 = vmatpush1.msra.mxu0 0.0
    %460 = vmatprep.subr.mxu0 0.0
    %461 = vmatpush1.msra.mxu0 0.0
    %462 = vmatprep.subr.mxu0 0.0
    %463 = vmatpush1.msra.mxu0 0.0
    %464 = vmatprep.subr.mxu0 0.0
    %465 = vmatpush1.msra.mxu0 0.0
    %466 = vmatprep.subr.mxu0 0.0
    %467 = vmatpush1.msra.mxu0 0.0
    %468 = vmatprep.subr.mxu0 0.0
    %469 = vmatpush1.msra.mxu0 0.0
    %470 = vmatprep.subr.mxu0 0.0
    %471 = vmatpush1.msra.mxu0 0.0
    %472 = vmatprep.mubr.f32.mxu0 0.0
    %v473 = vand.u32 %v33, 4294901760
    %474 = vmatmul.mubr.f32.gmra.mrb[0].mxu0 %v473
    %v475 = vpop.f32.mrb[0].mxu0
    %v476 = vadd.f32 %v385, %v475
    %v477 = vpop.f32.mrb[0].mxu0
    %478 = vmatprep.mubr.f32.mxu0 0.0
    %v479 = vand.u32 %v36, 4294901760
    %480 = vmatmul.mubr.f32.gmra.mrb[0].mxu0 %v479
    %v481 = vpop.f32.mrb[0].mxu0
    %v482 = vadd.f32 %v393, %v481
    %v483 = vpop.f32.mrb[0].mxu0
    %484 = vdwg.mxu0
    %485 = vmatprep.subr.mxu0 0.0
    %v486 = vand.u32 %v27, 4294901760
    %487 = vmatpush1.msra.mxu0 %v486
    %488 = vmatprep.subr.mxu0 0.0
    %v489 = vand.u32 %v28, 4294901760
    %490 = vmatpush1.msra.mxu0 %v489
    %491 = vmatprep.subr.mxu0 0.0
    %v492 = vand.u32 %v29, 4294901760
    %493 = vmatpush1.msra.mxu0 %v492
    %494 = vmatprep.subr.mxu0 0.0
    %v495 = vand.u32 %v30, 4294901760
    %496 = vmatpush1.msra.mxu0 %v495
    %497 = vmatprep.subr.mxu0 0.0
    %498 = vmatpush1.msra.mxu0 0.0
    %499 = vmatprep.subr.mxu0 0.0
    %500 = vmatpush1.msra.mxu0 0.0
    %501 = vmatprep.subr.mxu0 0.0
    %502 = vmatpush1.msra.mxu0 0.0
    %503 = vmatprep.subr.mxu0 0.0
    %504 = vmatpush1.msra.mxu0 0.0
    %505 = vmatprep.subr.mxu0 0.0
    %506 = vmatpush1.msra.mxu0 0.0
    %507 = vmatprep.subr.mxu0 0.0
    %508 = vmatpush1.msra.mxu0 0.0
    %509 = vmatprep.subr.mxu0 0.0
    %510 = vmatpush1.msra.mxu0 0.0
    %511 = vmatprep.subr.mxu0 0.0
    %512 = vmatpush1.msra.mxu0 0.0
    %513 = vmatprep.subr.mxu0 0.0
    %514 = vmatpush1.msra.mxu0 0.0
    %515 = vmatprep.subr.mxu0 0.0
    %516 = vmatpush1.msra.mxu0 0.0
    %517 = vmatprep.subr.mxu0 0.0
    %518 = vmatpush1.msra.mxu0 0.0
    %519 = vmatprep.subr.mxu0 0.0
    %520 = vmatpush1.msra.mxu0 0.0
    %521 = vmatprep.subr.mxu0 0.0
    %522 = vmatpush1.msra.mxu0 0.0
    %523 = vmatprep.subr.mxu0 0.0
    %524 = vmatpush1.msra.mxu0 0.0
    %525 = vmatprep.subr.mxu0 0.0
    %526 = vmatpush1.msra.mxu0 0.0
    %527 = vmatprep.subr.mxu0 0.0
    %528 = vmatpush1.msra.mxu0 0.0
    %529 = vmatprep.subr.mxu0 0.0
    %530 = vmatpush1.msra.mxu0 0.0
    %531 = vmatprep.subr.mxu0 0.0
    %532 = vmatpush1.msra.mxu0 0.0
    %533 = vmatprep.subr.mxu0 0.0
    %534 = vmatpush1.msra.mxu0 0.0
    %535 = vmatprep.subr.mxu0 0.0
    %536 = vmatpush1.msra.mxu0 0.0
    %537 = vmatprep.subr.mxu0 0.0
    %538 = vmatpush1.msra.mxu0 0.0
    %539 = vmatprep.subr.mxu0 0.0
    %540 = vmatpush1.msra.mxu0 0.0
    %541 = vmatprep.subr.mxu0 0.0
    %542 = vmatpush1.msra.mxu0 0.0
    %543 = vmatprep.subr.mxu0 0.0
    %544 = vmatpush1.msra.mxu0 0.0
    %545 = vmatprep.subr.mxu0 0.0
    %546 = vmatpush1.msra.mxu0 0.0
    %547 = vmatprep.subr.mxu0 0.0
    %548 = vmatpush1.msra.mxu0 0.0
    %549 = vmatprep.subr.mxu0 0.0
    %550 = vmatpush1.msra.mxu0 0.0
    %551 = vmatprep.subr.mxu0 0.0
    %552 = vmatpush1.msra.mxu0 0.0
    %553 = vmatprep.mubr.f32.mxu0 0.0
    %v554 = vand.u32 %v33, 4294901760
    %555 = vmatmul.mubr.f32.gmra.mrb[0].mxu0 %v554
    %v556 = vpop.f32.mrb[0].mxu0
    %v557 = vadd.f32 %v476, %v556
    %v558 = vpop.f32.mrb[0].mxu0
    %559 = vmatprep.mubr.f32.mxu0 0.0
    %v560 = vand.u32 %v36, 4294901760
    %561 = vmatmul.mubr.f32.gmra.mrb[0].mxu0 %v560
    %v562 = vpop.f32.mrb[0].mxu0
    %v563 = vadd.f32 %v482, %v562
    %v564 = vpop.f32.mrb[0].mxu0
    %565 = vdwg.mxu0
    %566 = vst.msk [vmem:[%s2] sm:$0xff] %vm31, %v557
    %567 = vst.msk [vmem:[%s2 + $0x8] sm:$0xff] %vm31, %v563
    // Predicated region
    $region14: #{decoder_layer.13} parent=1 // pred_check
      _
    $region15: #{decoder_layer.13} parent=1 // pred_check_branch
      %569 = sbr.rel (0) target = $region17
    $region16: #{decoder_layer.13} parent=1 // pred_region
      _
    $region17: #{decoder_layer.13} parent=1 // pred_fallthru
      _
    // Predicated region
    $region18: #{decoder_layer.13} parent=1 // pred_check
      _
    $region19: #{decoder_layer.13} parent=1 // pred_check_branch
      %571 = sbr.rel (0) target = $region21
    $region20: #{decoder_layer.13} parent=1 // pred_region
      _
    $region21: #{decoder_layer.13} parent=1 // pred_fallthru
      _
    %572 = vsyncpa [#allocation3], 1

// kernel: decoder_layer.18
$region0: #{decoder_layer.18}
  #allocation0 [shape = 'u32[]', space=smem, size = 0x4, offset = 0x4, fixed_abs, tag = 'smem constant byte address 0x4 - core index']
  #allocation1 [shape = 'u32[144,128]{1,0:T(1,128)}', space=vmem, size = 0x12000, scoped, tag = 'internal scratch']
  %s0 = inlined_call_operand.vmem [shape: f32[32,32], index: 0, kind: input, shape index: {}]
  %s1 = inlined_call_operand.vmem [shape: f32[32,32], index: 1, kind: input, shape index: {}]
  %s2 = inlined_call_operand.vmem [shape: f32[32,32], index: 2, kind: output, shape index: {}]
  %s3 = sld [smem:[#allocation0]]
  $region18: #{decoder_layer.18} parent=0
    _
  %s5 = ssub.s32 1, %s3
  %s6 = scalar_select 0, %s5, %s3
  // Predicated region
  $region2: #{decoder_layer.18} parent=0 // pred_check
    _
  $region3: #{decoder_layer.18} parent=0 // pred_check_branch
    %8 = sbr.rel (0) target = $region5
  $region4: #{decoder_layer.18} parent=0 // pred_region
    _
  $region5: #{decoder_layer.18} parent=0 // pred_fallthru
    _
  // Predicated region
  $region6: #{decoder_layer.18} parent=0 // pred_check
    _
  $region7: #{decoder_layer.18} parent=0 // pred_check_branch
    %10 = sbr.rel (0) target = $region9
  $region8: #{decoder_layer.18} parent=0 // pred_region
    _
  $region9: #{decoder_layer.18} parent=0 // pred_fallthru
    _
  %v11 = vld [vmem:[%s0] sm:$0xff]
  %v12 = vld [vmem:[%s0 + $0x8] sm:$0xff]
  %v13 = vld [vmem:[%s0 + $0x10] sm:$0xff]
  %v14 = vld [vmem:[%s0 + $0x18] sm:$0xff]
  %v15 = vld [vmem:[%s1] sm:$0xff]
  %v16 = vld [vmem:[%s1 + $0x8] sm:$0xff]
  %v17 = vld [vmem:[%s1 + $0x10] sm:$0xff]
  %v18 = vld [vmem:[%s1 + $0x18] sm:$0xff]
  %vm19 = vcmask 261120
  %v21 = vsel %vm19, %v11, 0
  %v24 = vsel %vm19, %v12, 0
  %v27 = vsel %vm19, %v13, 0
  %v30 = vsel %vm19, %v14, 0
  %32 = vmatprep.subr.mxu0 0.0
  %v33 = vand.u32 %v15, 4294901760
  %34 = vmatpush1.msra.mxu0 %v33
  %35 = vmatprep.subr.mxu0 0.0
  %v36 = vand.u32 %v16, 4294901760
  %37 = vmatpush1.msra.mxu0 %v36
  %38 = vmatprep.subr.mxu0 0.0
  %v39 = vand.u32 %v17, 4294901760
  %40 = vmatpush1.msra.mxu0 %v39
  %41 = vmatprep.subr.mxu0 0.0
  %v42 = vand.u32 %v18, 4294901760
  %43 = vmatpush1.msra.mxu0 %v42
  %44 = vmatprep.subr.mxu0 0.0
  %45 = vmatpush1.msra.mxu0 0.0
  %46 = vmatprep.subr.mxu0 0.0
  %47 = vmatpush1.msra.mxu0 0.0
  %48 = vmatprep.subr.mxu0 0.0
  %49 = vmatpush1.msra.mxu0 0.0
  %50 = vmatprep.subr.mxu0 0.0
  %51 = vmatpush1.msra.mxu0 0.0
  %52 = vmatprep.subr.mxu0 0.0
  %53 = vmatpush1.msra.mxu0 0.0
  %54 = vmatprep.subr.mxu0 0.0
  %55 = vmatpush1.msra.mxu0 0.0
  %56 = vmatprep.subr.mxu0 0.0
  %57 = vmatpush1.msra.mxu0 0.0
  %58 = vmatprep.subr.mxu0 0.0
  %59 = vmatpush1.msra.mxu0 0.0
  %60 = vmatprep.subr.mxu0 0.0
  %61 = vmatpush1.msra.mxu0 0.0
  %62 = vmatprep.subr.mxu0 0.0
  %63 = vmatpush1.msra.mxu0 0.0
  %64 = vmatprep.subr.mxu0 0.0
  %65 = vmatpush1.msra.mxu0 0.0
  %66 = vmatprep.subr.mxu0 0.0
  %67 = vmatpush1.msra.mxu0 0.0
  %68 = vmatprep.subr.mxu0 0.0
  %69 = vmatpush1.msra.mxu0 0.0
  %70 = vmatprep.subr.mxu0 0.0
  %71 = vmatpush1.msra.mxu0 0.0
  %72 = vmatprep.subr.mxu0 0.0
  %73 = vmatpush1.msra.mxu0 0.0
  %74 = vmatprep.subr.mxu0 0.0
  %75 = vmatpush1.msra.mxu0 0.0
  %76 = vmatprep.subr.mxu0 0.0
  %77 = vmatpush1.msra.mxu0 0.0
  %78 = vmatprep.subr.mxu0 0.0
  %79 = vmatpush1.msra.mxu0 0.0
  %80 = vmatprep.subr.mxu0 0.0
  %81 = vmatpush1.msra.mxu0 0.0
  %82 = vmatprep.subr.mxu0 0.0
  %83 = vmatpush1.msra.mxu0 0.0
  %84 = vmatprep.subr.mxu0 0.0
  %85 = vmatpush1.msra.mxu0 0.0
  %86 = vmatprep.subr.mxu0 0.0
  %87 = vmatpush1.msra.mxu0 0.0
  %88 = vmatprep.subr.mxu0 0.0
  %89 = vmatpush1.msra.mxu0 0.0
  %90 = vmatprep.subr.mxu0 0.0
  %91 = vmatpush1.msra.mxu0 0.0
  %92 = vmatprep.subr.mxu0 0.0
  %93 = vmatpush1.msra.mxu0 0.0
  %94 = vmatprep.subr.mxu0 0.0
  %95 = vmatpush1.msra.mxu0 0.0
  %96 = vmatprep.subr.mxu0 0.0
  %97 = vmatpush1.msra.mxu0 0.0
  %98 = vmatprep.subr.mxu0 0.0
  %99 = vmatpush1.msra.mxu0 0.0
  %100 = vmatprep.mubr.f32.mxu0 0.0
  %v101 = vand.u32 %v21, 4294901760
  %v102 = vsub.f32 %v21, %v101
  %v103 = vand.u32 %v102, 4294901760
  %v104 = vsub.f32 %v102, %v103
  %v105 = vand.u32 %v104, 4294901760
  %106 = vmatmul.mubr.f32.gmra.mrb[0].mxu0 %v105
  %v107 = vpop.f32.mrb[0].mxu0
  %v108 = vadd.f32 0.0, %v107
  %v109 = vpop.f32.mrb[0].mxu0
  %110 = vmatprep.mubr.f32.mxu0 0.0
  %v111 = vand.u32 %v24, 4294901760
  %v112 = vsub.f32 %v24, %v111
  %v113 = vand.u32 %v112, 4294901760
  %v114 = vsub.f32 %v112, %v113
  %v115 = vand.u32 %v114, 4294901760
  %116 = vmatmul.mubr.f32.gmra.mrb[0].mxu0 %v115
  %v117 = vpop.f32.mrb[0].mxu0
  %v118 = vadd.f32 0.0, %v117
  %v119 = vpop.f32.mrb[0].mxu0
  %120 = vmatprep.mubr.f32.mxu0 0.0
  %v121 = vand.u32 %v27, 4294901760
  %v122 = vsub.f32 %v27, %v121
  %v123 = vand.u32 %v122, 4294901760
  %v124 = vsub.f32 %v122, %v123
  %v125 = vand.u32 %v124, 4294901760
  %126 = vmatmul.mubr.f32.gmra.mrb[0].mxu0 %v125
  %v127 = vpop.f32.mrb[0].mxu0
  %v128 = vadd.f32 0.0, %v127
  %v129 = vpop.f32.mrb[0].mxu0
  %130 = vmatprep.mubr.f32.mxu0 0.0
  %v131 = vand.u32 %v30, 4294901760
  %v132 = vsub.f32 %v30, %v131
  %v133 = vand.u32 %v132, 4294901760
  %v134 = vsub.f32 %v132, %v133
  %v135 = vand.u32 %v134, 4294901760
  %136 = vmatmul.mubr.f32.gmra.mrb[0].mxu0 %v135
  %v137 = vpop.f32.mrb[0].mxu0
  %v138 = vadd.f32 0.0, %v137
  %v139 = vpop.f32.mrb[0].mxu0
  %140 = vdwg.mxu0
  %141 = vmatprep.subr.mxu0 0.0
  %v142 = vand.u32 %v15, 4294901760
  %v143 = vsub.f32 %v15, %v142
  %v144 = vand.u32 %v143, 4294901760
  %v145 = vsub.f32 %v143, %v144
  %v146 = vand.u32 %v145, 4294901760
  %147 = vmatpush1.msra.mxu0 %v146
  %148 = vmatprep.subr.mxu0 0.0
  %v149 = vand.u32 %v16, 4294901760
  %v150 = vsub.f32 %v16, %v149
  %v151 = vand.u32 %v150, 4294901760
  %v152 = vsub.f32 %v150, %v151
  %v153 = vand.u32 %v152, 4294901760
  %154 = vmatpush1.msra.mxu0 %v153
  %155 = vmatprep.subr.mxu0 0.0
  %v156 = vand.u32 %v17, 4294901760
  %v157 = vsub.f32 %v17, %v156
  %v158 = vand.u32 %v157, 4294901760
  %v159 = vsub.f32 %v157, %v158
  %v160 = vand.u32 %v159, 4294901760
  %161 = vmatpush1.msra.mxu0 %v160
  %162 = vmatprep.subr.mxu0 0.0
  %v163 = vand.u32 %v18, 4294901760
  %v164 = vsub.f32 %v18, %v163
  %v165 = vand.u32 %v164, 4294901760
  %v166 = vsub.f32 %v164, %v165
  %v167 = vand.u32 %v166, 4294901760
  %168 = vmatpush1.msra.mxu0 %v167
  %169 = vmatprep.subr.mxu0 0.0
  %170 = vmatpush1.msra.mxu0 0.0
  %171 = vmatprep.subr.mxu0 0.0
  %172 = vmatpush1.msra.mxu0 0.0
  %173 = vmatprep.subr.mxu0 0.0
  %174 = vmatpush1.msra.mxu0 0.0
  %175 = vmatprep.subr.mxu0 0.0
  %176 = vmatpush1.msra.mxu0 0.0
  %177 = vmatprep.subr.mxu0 0.0
  %178 = vmatpush1.msra.mxu0 0.0
  %179 = vmatprep.subr.mxu0 0.0
  %180 = vmatpush1.msra.mxu0 0.0
  %181 = vmatprep.subr.mxu0 0.0
  %182 = vmatpush1.msra.mxu0 0.0
  %183 = vmatprep.subr.mxu0 0.0
  %184 = vmatpush1.msra.mxu0 0.0
  %185 = vmatprep.subr.mxu0 0.0
  %186 = vmatpush1.msra.mxu0 0.0
  %187 = vmatprep.subr.mxu0 0.0
  %188 = vmatpush1.msra.mxu0 0.0
  %189 = vmatprep.subr.mxu0 0.0
  %190 = vmatpush1.msra.mxu0 0.0
  %191 = vmatprep.subr.mxu0 0.0
  %192 = vmatpush1.msra.mxu0 0.0
  %193 = vmatprep.subr.mxu0 0.0
  %194 = vmatpush1.msra.mxu0 0.0
  %195 = vmatprep.subr.mxu0 0.0
  %196 = vmatpush1.msra.mxu0 0.0
  %197 = vmatprep.subr.mxu0 0.0
  %198 = vmatpush1.msra.mxu0 0.0
  %199 = vmatprep.subr.mxu0 0.0
  %200 = vmatpush1.msra.mxu0 0.0
  %201 = vmatprep.subr.mxu0 0.0
  %202 = vmatpush1.msra.mxu0 0.0
  %203 = vmatprep.subr.mxu0 0.0
  %204 = vmatpush1.msra.mxu0 0.0
  %205 = vmatprep.subr.mxu0 0.0
  %206 = vmatpush1.msra.mxu0 0.0
  %207 = vmatprep.subr.mxu0 0.0
  %208 = vmatpush1.msra.mxu0 0.0
  %209 = vmatprep.subr.mxu0 0.0
  %210 = vmatpush1.msra.mxu0 0.0
  %211 = vmatprep.subr.mxu0 0.0
  %212 = vmatpush1.msra.mxu0 0.0
  %213 = vmatprep.subr.mxu0 0.0
  %214 = vmatpush1.msra.mxu0 0.0
  %215 = vmatprep.subr.mxu0 0.0
  %216 = vmatpush1.msra.mxu0 0.0
  %217 = vmatprep.subr.mxu0 0.0
  %218 = vmatpush1.msra.mxu0 0.0
  %219 = vmatprep.subr.mxu0 0.0
  %220 = vmatpush1.msra.mxu0 0.0
  %221 = vmatprep.subr.mxu0 0.0
  %222 = vmatpush1.msra.mxu0 0.0
  %223 = vmatprep.subr.mxu0 0.0
  %224 = vmatpush1.msra.mxu0 0.0
  %225 = vmatprep.mubr.f32.mxu0 0.0
  %v226 = vand.u32 %v21, 4294901760
  %227 = vmatmul.mubr.f32.gmra.mrb[0].mxu0 %v226
  %v228 = vpop.f32.mrb[0].mxu0
  %v229 = vadd.f32 %v108, %v228
  %v230 = vpop.f32.mrb[0].mxu0
  %231 = vmatprep.mubr.f32.mxu0 0.0
  %v232 = vand.u32 %v24, 4294901760
  %233 = vmatmul.mubr.f32.gmra.mrb[0].mxu0 %v232
  %v234 = vpop.f32.mrb[0].mxu0
  %v235 = vadd.f32 %v118, %v234
  %v236 = vpop.f32.mrb[0].mxu0
  %237 = vmatprep.mubr.f32.mxu0 0.0
  %v238 = vand.u32 %v27, 4294901760
  %239 = vmatmul.mubr.f32.gmra.mrb[0].mxu0 %v238
  %v240 = vpop.f32.mrb[0].mxu0
  %v241 = vadd.f32 %v128, %v240
  %v242 = vpop.f32.mrb[0].mxu0
  %243 = vmatprep.mubr.f32.mxu0 0.0
  %v244 = vand.u32 %v30, 4294901760
  %245 = vmatmul.mubr.f32.gmra.mrb[0].mxu0 %v244
  %v246 = vpop.f32.mrb[0].mxu0
  %v247 = vadd.f32 %v138, %v246
  %v248 = vpop.f32.mrb[0].mxu0
  %249 = vdwg.mxu0
  %250 = vmatprep.subr.mxu0 0.0
  %v251 = vand.u32 %v15, 4294901760
  %v252 = vsub.f32 %v15, %v251
  %253 = vmatpush1.msra.mxu0 %v252
  %254 = vmatprep.subr.mxu0 0.0
  %v255 = vand.u32 %v16, 4294901760
  %v256 = vsub.f32 %v16, %v255
  %257 = vmatpush1.msra.mxu0 %v256
  %258 = vmatprep.subr.mxu0 0.0
  %v259 = vand.u32 %v17, 4294901760
  %v260 = vsub.f32 %v17, %v259
  %261 = vmatpush1.msra.mxu0 %v260
  %262 = vmatprep.subr.mxu0 0.0
  %v263 = vand.u32 %v18, 4294901760
  %v264 = vsub.f32 %v18, %v263
  %265 = vmatpush1.msra.mxu0 %v264
  %266 = vmatprep.subr.mxu0 0.0
  %267 = vmatpush1.msra.mxu0 0.0
  %268 = vmatprep.subr.mxu0 0.0
  %269 = vmatpush1.msra.mxu0 0.0
  %270 = vmatprep.subr.mxu0 0.0
  %271 = vmatpush1.msra.mxu0 0.0
  %272 = vmatprep.subr.mxu0 0.0
  %273 = vmatpush1.msra.mxu0 0.0
  %274 = vmatprep.subr.mxu0 0.0
  %275 = vmatpush1.msra.mxu0 0.0
  %276 = vmatprep.subr.mxu0 0.0
  %277 = vmatpush1.msra.mxu0 0.0
  %278 = vmatprep.subr.mxu0 0.0
  %279 = vmatpush1.msra.mxu0 0.0
  %280 = vmatprep.subr.mxu0 0.0
  %281 = vmatpush1.msra.mxu0 0.0
  %282 = vmatprep.subr.mxu0 0.0
  %283 = vmatpush1.msra.mxu0 0.0
  %284 = vmatprep.subr.mxu0 0.0
  %285 = vmatpush1.msra.mxu0 0.0
  %286 = vmatprep.subr.mxu0 0.0
  %287 = vmatpush1.msra.mxu0 0.0
  %288 = vmatprep.subr.mxu0 0.0
  %289 = vmatpush1.msra.mxu0 0.0
  %290 = vmatprep.subr.mxu0 0.0
  %291 = vmatpush1.msra.mxu0 0.0
  %292 = vmatprep.subr.mxu0 0.0
  %293 = vmatpush1.msra.mxu0 0.0
  %294 = vmatprep.subr.mxu0 0.0
  %295 = vmatpush1.msra.mxu0 0.0
  %296 = vmatprep.subr.mxu0 0.0
  %297 = vmatpush1.msra.mxu0 0.0
  %298 = vmatprep.subr.mxu0 0.0
  %299 = vmatpush1.msra.mxu0 0.0
  %300 = vmatprep.subr.mxu0 0.0
  %301 = vmatpush1.msra.mxu0 0.0
  %302 = vmatprep.subr.mxu0 0.0
  %303 = vmatpush1.msra.mxu0 0.0
  %304 = vmatprep.subr.mxu0 0.0
  %305 = vmatpush1.msra.mxu0 0.0
  %306 = vmatprep.subr.mxu0 0.0
  %307 = vmatpush1.msra.mxu0 0.0
  %308 = vmatprep.subr.mxu0 0.0
  %309 = vmatpush1.msra.mxu0 0.0
  %310 = vmatprep.subr.mxu0 0.0
  %311 = vmatpush1.msra.mxu0 0.0
  %312 = vmatprep.subr.mxu0 0.0
  %313 = vmatpush1.msra.mxu0 0.0
  %314 = vmatprep.subr.mxu0 0.0
  %315 = vmatpush1.msra.mxu0 0.0
  %316 = vmatprep.subr.mxu0 0.0
  %317 = vmatpush1.msra.mxu0 0.0
  %318 = vmatprep.subr.mxu0 0.0
  %319 = vmatpush1.msra.mxu0 0.0
  %320 = vmatprep.subr.mxu0 0.0
  %321 = vmatpush1.msra.mxu0 0.0
  %322 = vmatprep.mubr.f32.mxu0 0.0
  %v323 = vand.u32 %v21, 4294901760
  %v324 = vsub.f32 %v21, %v323
  %325 = vmatmul.mubr.f32.gmra.mrb[0].mxu0 %v324
  %v326 = vpop.f32.mrb[0].mxu0
  %v327 = vadd.f32 %v229, %v326
  %v328 = vpop.f32.mrb[0].mxu0
  %329 = vmatprep.mubr.f32.mxu0 0.0
  %v330 = vand.u32 %v24, 4294901760
  %v331 = vsub.f32 %v24, %v330
  %332 = vmatmul.mubr.f32.gmra.mrb[0].mxu0 %v331
  %v333 = vpop.f32.mrb[0].mxu0
  %v334 = vadd.f32 %v235, %v333
  %v335 = vpop.f32.mrb[0].mxu0
  %336 = vmatprep.mubr.f32.mxu0 0.0
  %v337 = vand.u32 %v27, 4294901760
  %v338 = vsub.f32 %v27, %v337
  %339 = vmatmul.mubr.f32.gmra.mrb[0].mxu0 %v338
  %v340 = vpop.f32.mrb[0].mxu0
  %v341 = vadd.f32 %v241, %v340
  %v342 = vpop.f32.mrb[0].mxu0
  %343 = vmatprep.mubr.f32.mxu0 0.0
  %v344 = vand.u32 %v30, 4294901760
  %v345 = vsub.f32 %v30, %v344
  %346 = vmatmul.mubr.f32.gmra.mrb[0].mxu0 %v345
  %v347 = vpop.f32.mrb[0].mxu0
  %v348 = vadd.f32 %v247, %v347
  %v349 = vpop.f32.mrb[0].mxu0
  %350 = vdwg.mxu0
  %351 = vmatprep.subr.mxu0 0.0
  %v352 = vand.u32 %v15, 4294901760
  %353 = vmatpush1.msra.mxu0 %v352
  %354 = vmatprep.subr.mxu0 0.0
  %v355 = vand.u32 %v16, 4294901760
  %356 = vmatpush1.msra.mxu0 %v355
  %357 = vmatprep.subr.mxu0 0.0
  %v358 = vand.u32 %v17, 4294901760
  %359 = vmatpush1.msra.mxu0 %v358
  %360 = vmatprep.subr.mxu0 0.0
  %v361 = vand.u32 %v18, 4294901760
  %362 = vmatpush1.msra.mxu0 %v361
  %363 = vmatprep.subr.mxu0 0.0
  %364 = vmatpush1.msra.mxu0 0.0
  %365 = vmatprep.subr.mxu0 0.0
  %366 = vmatpush1.msra.mxu0 0.0
  %367 = vmatprep.subr.mxu0 0.0
  %368 = vmatpush1.msra.mxu0 0.0
  %369 = vmatprep.subr.mxu0 0.0
  %370 = vmatpush1.msra.mxu0 0.0
  %371 = vmatprep.subr.mxu0 0.0
  %372 = vmatpush1.msra.mxu0 0.0
  %373 = vmatprep.subr.mxu0 0.0
  %374 = vmatpush1.msra.mxu0 0.0
  %375 = vmatprep.subr.mxu0 0.0
  %376 = vmatpush1.msra.mxu0 0.0
  %377 = vmatprep.subr.mxu0 0.0
  %378 = vmatpush1.msra.mxu0 0.0
  %379 = vmatprep.subr.mxu0 0.0
  %380 = vmatpush1.msra.mxu0 0.0
  %381 = vmatprep.subr.mxu0 0.0
  %382 = vmatpush1.msra.mxu0 0.0
  %383 = vmatprep.subr.mxu0 0.0
  %384 = vmatpush1.msra.mxu0 0.0
  %385 = vmatprep.subr.mxu0 0.0
  %386 = vmatpush1.msra.mxu0 0.0
  %387 = vmatprep.subr.mxu0 0.0
  %388 = vmatpush1.msra.mxu0 0.0
  %389 = vmatprep.subr.mxu0 0.0
  %390 = vmatpush1.msra.mxu0 0.0
  %391 = vmatprep.subr.mxu0 0.0
  %392 = vmatpush1.msra.mxu0 0.0
  %393 = vmatprep.subr.mxu0 0.0
  %394 = vmatpush1.msra.mxu0 0.0
  %395 = vmatprep.subr.mxu0 0.0
  %396 = vmatpush1.msra.mxu0 0.0
  %397 = vmatprep.subr.mxu0 0.0
  %398 = vmatpush1.msra.mxu0 0.0
  %399 = vmatprep.subr.mxu0 0.0
  %400 = vmatpush1.msra.mxu0 0.0
  %401 = vmatprep.subr.mxu0 0.0
  %402 = vmatpush1.msra.mxu0 0.0
  %403 = vmatprep.subr.mxu0 0.0
  %404 = vmatpush1.msra.mxu0 0.0
  %405 = vmatprep.subr.mxu0 0.0
  %406 = vmatpush1.msra.mxu0 0.0
  %407 = vmatprep.subr.mxu0 0.0
  %408 = vmatpush1.msra.mxu0 0.0
  %409 = vmatprep.subr.mxu0 0.0
  %410 = vmatpush1.msra.mxu0 0.0
  %411 = vmatprep.subr.mxu0 0.0
  %412 = vmatpush1.msra.mxu0 0.0
  %413 = vmatprep.subr.mxu0 0.0
  %414 = vmatpush1.msra.mxu0 0.0
  %415 = vmatprep.subr.mxu0 0.0
  %416 = vmatpush1.msra.mxu0 0.0
  %417 = vmatprep.subr.mxu0 0.0
  %418 = vmatpush1.msra.mxu0 0.0
  %419 = vmatprep.mubr.f32.mxu0 0.0
  %v420 = vand.u32 %v21, 4294901760
  %v421 = vsub.f32 %v21, %v420
  %v422 = vand.u32 %v421, 4294901760
  %423 = vmatmul.mubr.f32.gmra.mrb[0].mxu0 %v422
  %v424 = vpop.f32.mrb[0].mxu0
  %v425 = vadd.f32 %v327, %v424
  %v426 = vpop.f32.mrb[0].mxu0
  %427 = vmatprep.mubr.f32.mxu0 0.0
  %v428 = vand.u32 %v24, 4294901760
  %v429 = vsub.f32 %v24, %v428
  %v430 = vand.u32 %v429, 4294901760
  %431 = vmatmul.mubr.f32.gmra.mrb[0].mxu0 %v430
  %v432 = vpop.f32.mrb[0].mxu0
  %v433 = vadd.f32 %v334, %v432
  %v434 = vpop.f32.mrb[0].mxu0
  %435 = vmatprep.mubr.f32.mxu0 0.0
  %v436 = vand.u32 %v27, 4294901760
  %v437 = vsub.f32 %v27, %v436
  %v438 = vand.u32 %v437, 4294901760
  %439 = vmatmul.mubr.f32.gmra.mrb[0].mxu0 %v438
  %v440 = vpop.f32.mrb[0].mxu0
  %v441 = vadd.f32 %v341, %v440
  %v442 = vpop.f32.mrb[0].mxu0
  %443 = vmatprep.mubr.f32.mxu0 0.0
  %v444 = vand.u32 %v30, 4294901760
  %v445 = vsub.f32 %v30, %v444
  %v446 = vand.u32 %v445, 4294901760
  %447 = vmatmul.mubr.f32.gmra.mrb[0].mxu0 %v446
  %v448 = vpop.f32.mrb[0].mxu0
  %v449 = vadd.f32 %v348, %v448
  %v450 = vpop.f32.mrb[0].mxu0
  %451 = vdwg.mxu0
  %452 = vmatprep.subr.mxu0 0.0
  %v453 = vand.u32 %v15, 4294901760
  %v454 = vsub.f32 %v15, %v453
  %v455 = vand.u32 %v454, 4294901760
  %456 = vmatpush1.msra.mxu0 %v455
  %457 = vmatprep.subr.mxu0 0.0
  %v458 = vand.u32 %v16, 4294901760
  %v459 = vsub.f32 %v16, %v458
  %v460 = vand.u32 %v459, 4294901760
  %461 = vmatpush1.msra.mxu0 %v460
  %462 = vmatprep.subr.mxu0 0.0
  %v463 = vand.u32 %v17, 4294901760
  %v464 = vsub.f32 %v17, %v463
  %v465 = vand.u32 %v464, 4294901760
  %466 = vmatpush1.msra.mxu0 %v465
  %467 = vmatprep.subr.mxu0 0.0
  %v468 = vand.u32 %v18, 4294901760
  %v469 = vsub.f32 %v18, %v468
  %v470 = vand.u32 %v469, 4294901760
  %471 = vmatpush1.msra.mxu0 %v470
  %472 = vmatprep.subr.mxu0 0.0
  %473 = vmatpush1.msra.mxu0 0.0
  %474 = vmatprep.subr.mxu0 0.0
  %475 = vmatpush1.msra.mxu0 0.0
  %476 = vmatprep.subr.mxu0 0.0
  %477 = vmatpush1.msra.mxu0 0.0
  %478 = vmatprep.subr.mxu0 0.0
  %479 = vmatpush1.msra.mxu0 0.0
  %480 = vmatprep.subr.mxu0 0.0
  %481 = vmatpush1.msra.mxu0 0.0
  %482 = vmatprep.subr.mxu0 0.0
  %483 = vmatpush1.msra.mxu0 0.0
  %484 = vmatprep.subr.mxu0 0.0
  %485 = vmatpush1.msra.mxu0 0.0
  %486 = vmatprep.subr.mxu0 0.0
  %487 = vmatpush1.msra.mxu0 0.0
  %488 = vmatprep.subr.mxu0 0.0
  %489 = vmatpush1.msra.mxu0 0.0
  %490 = vmatprep.subr.mxu0 0.0
  %491 = vmatpush1.msra.mxu0 0.0
  %492 = vmatprep.subr.mxu0 0.0
  %493 = vmatpush1.msra.mxu0 0.0
  %494 = vmatprep.subr.mxu0 0.0
  %495 = vmatpush1.msra.mxu0 0.0
  %496 = vmatprep.subr.mxu0 0.0
  %497 = vmatpush1.msra.mxu0 0.0
  %498 = vmatprep.subr.mxu0 0.0
  %499 = vmatpush1.msra.mxu0 0.0
  %500 = vmatprep.subr.mxu0 0.0
  %501 = vmatpush1.msra.mxu0 0.0
  %502 = vmatprep.subr.mxu0 0.0
  %503 = vmatpush1.msra.mxu0 0.0
  %504 = vmatprep.subr.mxu0 0.0
  %505 = vmatpush1.msra.mxu0 0.0
  %506 = vmatprep.subr.mxu0 0.0
  %507 = vmatpush1.msra.mxu0 0.0
  %508 = vmatprep.subr.mxu0 0.0
  %509 = vmatpush1.msra.mxu0 0.0
  %510 = vmatprep.subr.mxu0 0.0
  %511 = vmatpush1.msra.mxu0 0.0
  %512 = vmatprep.subr.mxu0 0.0
  %513 = vmatpush1.msra.mxu0 0.0
  %514 = vmatprep.subr.mxu0 0.0
  %515 = vmatpush1.msra.mxu0 0.0
  %516 = vmatprep.subr.mxu0 0.0
  %517 = vmatpush1.msra.mxu0 0.0
  %518 = vmatprep.subr.mxu0 0.0
  %519 = vmatpush1.msra.mxu0 0.0
  %520 = vmatprep.subr.mxu0 0.0
  %521 = vmatpush1.msra.mxu0 0.0
  %522 = vmatprep.subr.mxu0 0.0
  %523 = vmatpush1.msra.mxu0 0.0
  %524 = vmatprep.subr.mxu0 0.0
  %525 = vmatpush1.msra.mxu0 0.0
  %526 = vmatprep.subr.mxu0 0.0
  %527 = vmatpush1.msra.mxu0 0.0
  %528 = vmatprep.mubr.f32.mxu0 0.0
  %v529 = vand.u32 %v21, 4294901760
  %530 = vmatmul.mubr.f32.gmra.mrb[0].mxu0 %v529
  %v531 = vpop.f32.mrb[0].mxu0
  %v532 = vadd.f32 %v425, %v531
  %v533 = vpop.f32.mrb[0].mxu0
  %534 = vmatprep.mubr.f32.mxu0 0.0
  %v535 = vand.u32 %v24, 4294901760
  %536 = vmatmul.mubr.f32.gmra.mrb[0].mxu0 %v535
  %v537 = vpop.f32.mrb[0].mxu0
  %v538 = vadd.f32 %v433, %v537
  %v539 = vpop.f32.mrb[0].mxu0
  %540 = vmatprep.mubr.f32.mxu0 0.0
  %v541 = vand.u32 %v27, 4294901760
  %542 = vmatmul.mubr.f32.gmra.mrb[0].mxu0 %v541
  %v543 = vpop.f32.mrb[0].mxu0
  %v544 = vadd.f32 %v441, %v543
  %v545 = vpop.f32.mrb[0].mxu0
  %546 = vmatprep.mubr.f32.mxu0 0.0
  %v547 = vand.u32 %v30, 4294901760
  %548 = vmatmul.mubr.f32.gmra.mrb[0].mxu0 %v547
  %v549 = vpop.f32.mrb[0].mxu0
  %v550 = vadd.f32 %v449, %v549
  %v551 = vpop.f32.mrb[0].mxu0
  %552 = vdwg.mxu0
  %553 = vmatprep.subr.mxu0 0.0
  %v554 = vand.u32 %v15, 4294901760
  %555 = vmatpush1.msra.mxu0 %v554
  %556 = vmatprep.subr.mxu0 0.0
  %v557 = vand.u32 %v16, 4294901760
  %558 = vmatpush1.msra.mxu0 %v557
  %559 = vmatprep.subr.mxu0 0.0
  %v560 = vand.u32 %v17, 4294901760
  %561 = vmatpush1.msra.mxu0 %v560
  %562 = vmatprep.subr.mxu0 0.0
  %v563 = vand.u32 %v18, 4294901760
  %564 = vmatpush1.msra.mxu0 %v563
  %565 = vmatprep.subr.mxu0 0.0
  %566 = vmatpush1.msra.mxu0 0.0
  %567 = vmatprep.subr.mxu0 0.0
  %568 = vmatpush1.msra.mxu0 0.0
  %569 = vmatprep.subr.mxu0 0.0
  %570 = vmatpush1.msra.mxu0 0.0
  %571 = vmatprep.subr.mxu0 0.0
  %572 = vmatpush1.msra.mxu0 0.0
  %573 = vmatprep.subr.mxu0 0.0
  %574 = vmatpush1.msra.mxu0 0.0
  %575 = vmatprep.subr.mxu0 0.0
  %576 = vmatpush1.msra.mxu0 0.0
  %577 = vmatprep.subr.mxu0 0.0
  %578 = vmatpush1.msra.mxu0 0.0
  %579 = vmatprep.subr.mxu0 0.0
  %580 = vmatpush1.msra.mxu0 0.0
  %581 = vmatprep.subr.mxu0 0.0
  %582 = vmatpush1.msra.mxu0 0.0
  %583 = vmatprep.subr.mxu0 0.0
  %584 = vmatpush1.msra.mxu0 0.0
  %585 = vmatprep.subr.mxu0 0.0
  %586 = vmatpush1.msra.mxu0 0.0
  %587 = vmatprep.subr.mxu0 0.0
  %588 = vmatpush1.msra.mxu0 0.0
  %589 = vmatprep.subr.mxu0 0.0
  %590 = vmatpush1.msra.mxu0 0.0
  %591 = vmatprep.subr.mxu0 0.0
  %592 = vmatpush1.msra.mxu0 0.0
  %593 = vmatprep.subr.mxu0 0.0
  %594 = vmatpush1.msra.mxu0 0.0
  %595 = vmatprep.subr.mxu0 0.0
  %596 = vmatpush1.msra.mxu0 0.0
  %597 = vmatprep.subr.mxu0 0.0
  %598 = vmatpush1.msra.mxu0 0.0
  %599 = vmatprep.subr.mxu0 0.0
  %600 = vmatpush1.msra.mxu0 0.0
  %601 = vmatprep.subr.mxu0 0.0
  %602 = vmatpush1.msra.mxu0 0.0
  %603 = vmatprep.subr.mxu0 0.0
  %604 = vmatpush1.msra.mxu0 0.0
  %605 = vmatprep.subr.mxu0 0.0
  %606 = vmatpush1.msra.mxu0 0.0
  %607 = vmatprep.subr.mxu0 0.0
  %608 = vmatpush1.msra.mxu0 0.0
  %609 = vmatprep.subr.mxu0 0.0
  %610 = vmatpush1.msra.mxu0 0.0
  %611 = vmatprep.subr.mxu0 0.0
  %612 = vmatpush1.msra.mxu0 0.0
  %613 = vmatprep.subr.mxu0 0.0
  %614 = vmatpush1.msra.mxu0 0.0
  %615 = vmatprep.subr.mxu0 0.0
  %616 = vmatpush1.msra.mxu0 0.0
  %617 = vmatprep.subr.mxu0 0.0
  %618 = vmatpush1.msra.mxu0 0.0
  %619 = vmatprep.subr.mxu0 0.0
  %620 = vmatpush1.msra.mxu0 0.0
  %621 = vmatprep.mubr.f32.mxu0 0.0
  %v622 = vand.u32 %v21, 4294901760
  %623 = vmatmul.mubr.f32.gmra.mrb[0].mxu0 %v622
  %v624 = vpop.f32.mrb[0].mxu0
  %v625 = vadd.f32 %v532, %v624
  %v626 = vpop.f32.mrb[0].mxu0
  %627 = vmatprep.mubr.f32.mxu0 0.0
  %v628 = vand.u32 %v24, 4294901760
  %629 = vmatmul.mubr.f32.gmra.mrb[0].mxu0 %v628
  %v630 = vpop.f32.mrb[0].mxu0
  %v631 = vadd.f32 %v538, %v630
  %v632 = vpop.f32.mrb[0].mxu0
  %633 = vmatprep.mubr.f32.mxu0 0.0
  %v634 = vand.u32 %v27, 4294901760
  %635 = vmatmul.mubr.f32.gmra.mrb[0].mxu0 %v634
  %v636 = vpop.f32.mrb[0].mxu0
  %v637 = vadd.f32 %v544, %v636
  %v638 = vpop.f32.mrb[0].mxu0
  %639 = vmatprep.mubr.f32.mxu0 0.0
  %v640 = vand.u32 %v30, 4294901760
  %641 = vmatmul.mubr.f32.gmra.mrb[0].mxu0 %v640
  %v642 = vpop.f32.mrb[0].mxu0
  %v643 = vadd.f32 %v550, %v642
  %v644 = vpop.f32.mrb[0].mxu0
  %645 = vdwg.mxu0
  %646 = vst.msk [vmem:[%s2] sm:$0xff] %vm19, %v625
  %647 = vst.msk [vmem:[%s2 + $0x8] sm:$0xff] %vm19, %v631
  %648 = vst.msk [vmem:[%s2 + $0x10] sm:$0xff] %vm19, %v637
  %649 = vst.msk [vmem:[%s2 + $0x18] sm:$0xff] %vm19, %v643
  // Predicated region
  $region10: #{decoder_layer.18} parent=0 // pred_check
    _
  $region11: #{decoder_layer.18} parent=0 // pred_check_branch
    %651 = sbr.rel (0) target = $region13
  $region12: #{decoder_layer.18} parent=0 // pred_region
    _
  $region13: #{decoder_layer.18} parent=0 // pred_fallthru
    _
  // Predicated region
  $region14: #{decoder_layer.18} parent=0 // pred_check
    _
  $region15: #{decoder_layer.18} parent=0 // pred_check_branch
    %653 = sbr.rel (0) target = $region17
  $region16: #{decoder_layer.18} parent=0 // pred_region
    _
  $region17: #{decoder_layer.18} parent=0 // pred_fallthru
    _

// kernel: decoder_layer.12
$region0: #{decoder_layer.12}
  #allocation0 [shape = 'u32[]', space=smem, size = 0x4, offset = 0x4, fixed_abs, tag = 'smem constant byte address 0x4 - core index']
  #allocation1 [shape = 'u32[144,128]{1,0:T(1,128)}', space=vmem, size = 0x12000, scoped, tag = 'internal scratch']
  %s0 = inlined_call_operand.vmem [shape: f32[16,32], index: 0, kind: input, shape index: {}]
  %s1 = inlined_call_operand.vmem [shape: f32[32,32], index: 1, kind: input, shape index: {}]
  %s2 = inlined_call_operand.vmem [shape: f32[16,32], index: 2, kind: output, shape index: {}]
  %s3 = sld [smem:[#allocation0]]
  $region18: #{decoder_layer.12} parent=0
    _
  %s5 = ssub.s32 1, %s3
  %s6 = scalar_select 0, %s5, %s3
  // Predicated region
  $region2: #{decoder_layer.12} parent=0 // pred_check
    _
  $region3: #{decoder_layer.12} parent=0 // pred_check_branch
    %8 = sbr.rel (0) target = $region5
  $region4: #{decoder_layer.12} parent=0 // pred_region
    _
  $region5: #{decoder_layer.12} parent=0 // pred_fallthru
    _
  // Predicated region
  $region6: #{decoder_layer.12} parent=0 // pred_check
    _
  $region7: #{decoder_layer.12} parent=0 // pred_check_branch
    %10 = sbr.rel (0) target = $region9
  $region8: #{decoder_layer.12} parent=0 // pred_region
    _
  $region9: #{decoder_layer.12} parent=0 // pred_fallthru
    _
  %v11 = vld [vmem:[%s0] sm:$0xff]
  %v12 = vld [vmem:[%s0 + $0x8] sm:$0xff]
  %v13 = vld [vmem:[%s1] sm:$0xff]
  %v14 = vld [vmem:[%s1 + $0x8] sm:$0xff]
  %v15 = vld [vmem:[%s1 + $0x10] sm:$0xff]
  %v16 = vld [vmem:[%s1 + $0x18] sm:$0xff]
  %vm17 = vcmask 261120
  %v19 = vsel %vm17, %v11, 0
  %v22 = vsel %vm17, %v12, 0
  %24 = vmatprep.subr.mxu0 0.0
  %v25 = vand.u32 %v13, 4294901760
  %26 = vmatpush1.msra.mxu0 %v25
  %27 = vmatprep.subr.mxu0 0.0
  %v28 = vand.u32 %v14, 4294901760
  %29 = vmatpush1.msra.mxu0 %v28
  %30 = vmatprep.subr.mxu0 0.0
  %v31 = vand.u32 %v15, 4294901760
  %32 = vmatpush1.msra.mxu0 %v31
  %33 = vmatprep.subr.mxu0 0.0
  %v34 = vand.u32 %v16, 4294901760
  %35 = vmatpush1.msra.mxu0 %v34
  %36 = vmatprep.subr.mxu0 0.0
  %37 = vmatpush1.msra.mxu0 0.0
  %38 = vmatprep.subr.mxu0 0.0
  %39 = vmatpush1.msra.mxu0 0.0
  %40 = vmatprep.subr.mxu0 0.0
  %41 = vmatpush1.msra.mxu0 0.0
  %42 = vmatprep.subr.mxu0 0.0
  %43 = vmatpush1.msra.mxu0 0.0
  %44 = vmatprep.subr.mxu0 0.0
  %45 = vmatpush1.msra.mxu0 0.0
  %46 = vmatprep.subr.mxu0 0.0
  %47 = vmatpush1.msra.mxu0 0.0
  %48 = vmatprep.subr.mxu0 0.0
  %49 = vmatpush1.msra.mxu0 0.0
  %50 = vmatprep.subr.mxu0 0.0
  %51 = vmatpush1.msra.mxu0 0.0
  %52 = vmatprep.subr.mxu0 0.0
  %53 = vmatpush1.msra.mxu0 0.0
  %54 = vmatprep.subr.mxu0 0.0
  %55 = vmatpush1.msra.mxu0 0.0
  %56 = vmatprep.subr.mxu0 0.0
  %57 = vmatpush1.msra.mxu0 0.0
  %58 = vmatprep.subr.mxu0 0.0
  %59 = vmatpush1.msra.mxu0 0.0
  %60 = vmatprep.subr.mxu0 0.0
  %61 = vmatpush1.msra.mxu0 0.0
  %62 = vmatprep.subr.mxu0 0.0
  %63 = vmatpush1.msra.mxu0 0.0
  %64 = vmatprep.subr.mxu0 0.0
  %65 = vmatpush1.msra.mxu0 0.0
  %66 = vmatprep.subr.mxu0 0.0
  %67 = vmatpush1.msra.mxu0 0.0
  %68 = vmatprep.subr.mxu0 0.0
  %69 = vmatpush1.msra.mxu0 0.0
  %70 = vmatprep.subr.mxu0 0.0
  %71 = vmatpush1.msra.mxu0 0.0
  %72 = vmatprep.subr.mxu0 0.0
  %73 = vmatpush1.msra.mxu0 0.0
  %74 = vmatprep.subr.mxu0 0.0
  %75 = vmatpush1.msra.mxu0 0.0
  %76 = vmatprep.subr.mxu0 0.0
  %77 = vmatpush1.msra.mxu0 0.0
  %78 = vmatprep.subr.mxu0 0.0
  %79 = vmatpush1.msra.mxu0 0.0
  %80 = vmatprep.subr.mxu0 0.0
  %81 = vmatpush1.msra.mxu0 0.0
  %82 = vmatprep.subr.mxu0 0.0
  %83 = vmatpush1.msra.mxu0 0.0
  %84 = vmatprep.subr.mxu0 0.0
  %85 = vmatpush1.msra.mxu0 0.0
  %86 = vmatprep.subr.mxu0 0.0
  %87 = vmatpush1.msra.mxu0 0.0
  %88 = vmatprep.subr.mxu0 0.0
  %89 = vmatpush1.msra.mxu0 0.0
  %90 = vmatprep.subr.mxu0 0.0
  %91 = vmatpush1.msra.mxu0 0.0
  %92 = vmatprep.mubr.f32.mxu0 0.0
  %v93 = vand.u32 %v19, 4294901760
  %v94 = vsub.f32 %v19, %v93
  %v95 = vand.u32 %v94, 4294901760
  %v96 = vsub.f32 %v94, %v95
  %v97 = vand.u32 %v96, 4294901760
  %98 = vmatmul.mubr.f32.gmra.mrb[0].mxu0 %v97
  %v99 = vpop.f32.mrb[0].mxu0
  %v100 = vadd.f32 0.0, %v99
  %v101 = vpop.f32.mrb[0].mxu0
  %102 = vmatprep.mubr.f32.mxu0 0.0
  %v103 = vand.u32 %v22, 4294901760
  %v104 = vsub.f32 %v22, %v103
  %v105 = vand.u32 %v104, 4294901760
  %v106 = vsub.f32 %v104, %v105
  %v107 = vand.u32 %v106, 4294901760
  %108 = vmatmul.mubr.f32.gmra.mrb[0].mxu0 %v107
  %v109 = vpop.f32.mrb[0].mxu0
  %v110 = vadd.f32 0.0, %v109
  %v111 = vpop.f32.mrb[0].mxu0
  %112 = vdwg.mxu0
  %113 = vmatprep.subr.mxu0 0.0
  %v114 = vand.u32 %v13, 4294901760
  %v115 = vsub.f32 %v13, %v114
  %v116 = vand.u32 %v115, 4294901760
  %v117 = vsub.f32 %v115, %v116
  %v118 = vand.u32 %v117, 4294901760
  %119 = vmatpush1.msra.mxu0 %v118
  %120 = vmatprep.subr.mxu0 0.0
  %v121 = vand.u32 %v14, 4294901760
  %v122 = vsub.f32 %v14, %v121
  %v123 = vand.u32 %v122, 4294901760
  %v124 = vsub.f32 %v122, %v123
  %v125 = vand.u32 %v124, 4294901760
  %126 = vmatpush1.msra.mxu0 %v125
  %127 = vmatprep.subr.mxu0 0.0
  %v128 = vand.u32 %v15, 4294901760
  %v129 = vsub.f32 %v15, %v128
  %v130 = vand.u32 %v129, 4294901760
  %v131 = vsub.f32 %v129, %v130
  %v132 = vand.u32 %v131, 4294901760
  %133 = vmatpush1.msra.mxu0 %v132
  %134 = vmatprep.subr.mxu0 0.0
  %v135 = vand.u32 %v16, 4294901760
  %v136 = vsub.f32 %v16, %v135
  %v137 = vand.u32 %v136, 4294901760
  %v138 = vsub.f32 %v136, %v137
  %v139 = vand.u32 %v138, 4294901760
  %140 = vmatpush1.msra.mxu0 %v139
  %141 = vmatprep.subr.mxu0 0.0
  %142 = vmatpush1.msra.mxu0 0.0
  %143 = vmatprep.subr.mxu0 0.0
  %144 = vmatpush1.msra.mxu0 0.0
  %145 = vmatprep.subr.mxu0 0.0
  %146 = vmatpush1.msra.mxu0 0.0
  %147 = vmatprep.subr.mxu0 0.0
  %148 = vmatpush1.msra.mxu0 0.0
  %149 = vmatprep.subr.mxu0 0.0
  %150 = vmatpush1.msra.mxu0 0.0
  %151 = vmatprep.subr.mxu0 0.0
  %152 = vmatpush1.msra.mxu0 0.0
  %153 = vmatprep.subr.mxu0 0.0
  %154 = vmatpush1.msra.mxu0 0.0
  %155 = vmatprep.subr.mxu0 0.0
  %156 = vmatpush1.msra.mxu0 0.0
  %157 = vmatprep.subr.mxu0 0.0
  %158 = vmatpush1.msra.mxu0 0.0
  %159 = vmatprep.subr.mxu0 0.0
  %160 = vmatpush1.msra.mxu0 0.0
  %161 = vmatprep.subr.mxu0 0.0
  %162 = vmatpush1.msra.mxu0 0.0
  %163 = vmatprep.subr.mxu0 0.0
  %164 = vmatpush1.msra.mxu0 0.0
  %165 = vmatprep.subr.mxu0 0.0
  %166 = vmatpush1.msra.mxu0 0.0
  %167 = vmatprep.subr.mxu0 0.0
  %168 = vmatpush1.msra.mxu0 0.0
  %169 = vmatprep.subr.mxu0 0.0
  %170 = vmatpush1.msra.mxu0 0.0
  %171 = vmatprep.subr.mxu0 0.0
  %172 = vmatpush1.msra.mxu0 0.0
  %173 = vmatprep.subr.mxu0 0.0
  %174 = vmatpush1.msra.mxu0 0.0
  %175 = vmatprep.subr.mxu0 0.0
  %176 = vmatpush1.msra.mxu0 0.0
  %177 = vmatprep.subr.mxu0 0.0
  %178 = vmatpush1.msra.mxu0 0.0
  %179 = vmatprep.subr.mxu0 0.0
  %180 = vmatpush1.msra.mxu0 0.0
  %181 = vmatprep.subr.mxu0 0.0
  %182 = vmatpush1.msra.mxu0 0.0
  %183 = vmatprep.subr.mxu0 0.0
  %184 = vmatpush1.msra.mxu0 0.0
  %185 = vmatprep.subr.mxu0 0.0
  %186 = vmatpush1.msra.mxu0 0.0
  %187 = vmatprep.subr.mxu0 0.0
  %188 = vmatpush1.msra.mxu0 0.0
  %189 = vmatprep.subr.mxu0 0.0
  %190 = vmatpush1.msra.mxu0 0.0
  %191 = vmatprep.subr.mxu0 0.0
  %192 = vmatpush1.msra.mxu0 0.0
  %193 = vmatprep.subr.mxu0 0.0
  %194 = vmatpush1.msra.mxu0 0.0
  %195 = vmatprep.subr.mxu0 0.0
  %196 = vmatpush1.msra.mxu0 0.0
  %197 = vmatprep.mubr.f32.mxu0 0.0
  %v198 = vand.u32 %v19, 4294901760
  %199 = vmatmul.mubr.f32.gmra.mrb[0].mxu0 %v198
  %v200 = vpop.f32.mrb[0].mxu0
  %v201 = vadd.f32 %v100, %v200
  %v202 = vpop.f32.mrb[0].mxu0
  %203 = vmatprep.mubr.f32.mxu0 0.0
  %v204 = vand.u32 %v22, 4294901760
  %205 = vmatmul.mubr.f32.gmra.mrb[0].mxu0 %v204
  %v206 = vpop.f32.mrb[0].mxu0
  %v207 = vadd.f32 %v110, %v206
  %v208 = vpop.f32.mrb[0].mxu0
  %209 = vdwg.mxu0
  %210 = vmatprep.subr.mxu0 0.0
  %v211 = vand.u32 %v13, 4294901760
  %v212 = vsub.f32 %v13, %v211
  %213 = vmatpush1.msra.mxu0 %v212
  %214 = vmatprep.subr.mxu0 0.0
  %v215 = vand.u32 %v14, 4294901760
  %v216 = vsub.f32 %v14, %v215
  %217 = vmatpush1.msra.mxu0 %v216
  %218 = vmatprep.subr.mxu0 0.0
  %v219 = vand.u32 %v15, 4294901760
  %v220 = vsub.f32 %v15, %v219
  %221 = vmatpush1.msra.mxu0 %v220
  %222 = vmatprep.subr.mxu0 0.0
  %v223 = vand.u32 %v16, 4294901760
  %v224 = vsub.f32 %v16, %v223
  %225 = vmatpush1.msra.mxu0 %v224
  %226 = vmatprep.subr.mxu0 0.0
  %227 = vmatpush1.msra.mxu0 0.0
  %228 = vmatprep.subr.mxu0 0.0
  %229 = vmatpush1.msra.mxu0 0.0
  %230 = vmatprep.subr.mxu0 0.0
  %231 = vmatpush1.msra.mxu0 0.0
  %232 = vmatprep.subr.mxu0 0.0
  %233 = vmatpush1.msra.mxu0 0.0
  %234 = vmatprep.subr.mxu0 0.0
  %235 = vmatpush1.msra.mxu0 0.0
  %236 = vmatprep.subr.mxu0 0.0
  %237 = vmatpush1.msra.mxu0 0.0
  %238 = vmatprep.subr.mxu0 0.0
  %239 = vmatpush1.msra.mxu0 0.0
  %240 = vmatprep.subr.mxu0 0.0
  %241 = vmatpush1.msra.mxu0 0.0
  %242 = vmatprep.subr.mxu0 0.0
  %243 = vmatpush1.msra.mxu0 0.0
  %244 = vmatprep.subr.mxu0 0.0
  %245 = vmatpush1.msra.mxu0 0.0
  %246 = vmatprep.subr.mxu0 0.0
  %247 = vmatpush1.msra.mxu0 0.0
  %248 = vmatprep.subr.mxu0 0.0
  %249 = vmatpush1.msra.mxu0 0.0
  %250 = vmatprep.subr.mxu0 0.0
  %251 = vmatpush1.msra.mxu0 0.0
  %252 = vmatprep.subr.mxu0 0.0
  %253 = vmatpush1.msra.mxu0 0.0
  %254 = vmatprep.subr.mxu0 0.0
  %255 = vmatpush1.msra.mxu0 0.0
  %256 = vmatprep.subr.mxu0 0.0
  %257 = vmatpush1.msra.mxu0 0.0
  %258 = vmatprep.subr.mxu0 0.0
  %259 = vmatpush1.msra.mxu0 0.0
  %260 = vmatprep.subr.mxu0 0.0
  %261 = vmatpush1.msra.mxu0 0.0
  %262 = vmatprep.subr.mxu0 0.0
  %263 = vmatpush1.msra.mxu0 0.0
  %264 = vmatprep.subr.mxu0 0.0
  %265 = vmatpush1.msra.mxu0 0.0
  %266 = vmatprep.subr.mxu0 0.0
  %267 = vmatpush1.msra.mxu0 0.0
  %268 = vmatprep.subr.mxu0 0.0
  %269 = vmatpush1.msra.mxu0 0.0
  %270 = vmatprep.subr.mxu0 0.0
  %271 = vmatpush1.msra.mxu0 0.0
  %272 = vmatprep.subr.mxu0 0.0
  %273 = vmatpush1.msra.mxu0 0.0
  %274 = vmatprep.subr.mxu0 0.0
  %275 = vmatpush1.msra.mxu0 0.0
  %276 = vmatprep.subr.mxu0 0.0
  %277 = vmatpush1.msra.mxu0 0.0
  %278 = vmatprep.subr.mxu0 0.0
  %279 = vmatpush1.msra.mxu0 0.0
  %280 = vmatprep.subr.mxu0 0.0
  %281 = vmatpush1.msra.mxu0 0.0
  %282 = vmatprep.mubr.f32.mxu0 0.0
  %v283 = vand.u32 %v19, 4294901760
  %v284 = vsub.f32 %v19, %v283
  %285 = vmatmul.mubr.f32.gmra.mrb[0].mxu0 %v284
  %v286 = vpop.f32.mrb[0].mxu0
  %v287 = vadd.f32 %v201, %v286
  %v288 = vpop.f32.mrb[0].mxu0
  %289 = vmatprep.mubr.f32.mxu0 0.0
  %v290 = vand.u32 %v22, 4294901760
  %v291 = vsub.f32 %v22, %v290
  %292 = vmatmul.mubr.f32.gmra.mrb[0].mxu0 %v291
  %v293 = vpop.f32.mrb[0].mxu0
  %v294 = vadd.f32 %v207, %v293
  %v295 = vpop.f32.mrb[0].mxu0
  %296 = vdwg.mxu0
  %297 = vmatprep.subr.mxu0 0.0
  %v298 = vand.u32 %v13, 4294901760
  %299 = vmatpush1.msra.mxu0 %v298
  %300 = vmatprep.subr.mxu0 0.0
  %v301 = vand.u32 %v14, 4294901760
  %302 = vmatpush1.msra.mxu0 %v301
  %303 = vmatprep.subr.mxu0 0.0
  %v304 = vand.u32 %v15, 4294901760
  %305 = vmatpush1.msra.mxu0 %v304
  %306 = vmatprep.subr.mxu0 0.0
  %v307 = vand.u32 %v16, 4294901760
  %308 = vmatpush1.msra.mxu0 %v307
  %309 = vmatprep.subr.mxu0 0.0
  %310 = vmatpush1.msra.mxu0 0.0
  %311 = vmatprep.subr.mxu0 0.0
  %312 = vmatpush1.msra.mxu0 0.0
  %313 = vmatprep.subr.mxu0 0.0
  %314 = vmatpush1.msra.mxu0 0.0
  %315 = vmatprep.subr.mxu0 0.0
  %316 = vmatpush1.msra.mxu0 0.0
  %317 = vmatprep.subr.mxu0 0.0
  %318 = vmatpush1.msra.mxu0 0.0
  %319 = vmatprep.subr.mxu0 0.0
  %320 = vmatpush1.msra.mxu0 0.0
  %321 = vmatprep.subr.mxu0 0.0
  %322 = vmatpush1.msra.mxu0 0.0
  %323 = vmatprep.subr.mxu0 0.0
  %324 = vmatpush1.msra.mxu0 0.0
  %325 = vmatprep.subr.mxu0 0.0
  %326 = vmatpush1.msra.mxu0 0.0
  %327 = vmatprep.subr.mxu0 0.0
  %328 = vmatpush1.msra.mxu0 0.0
  %329 = vmatprep.subr.mxu0 0.0
  %330 = vmatpush1.msra.mxu0 0.0
  %331 = vmatprep.subr.mxu0 0.0
  %332 = vmatpush1.msra.mxu0 0.0
  %333 = vmatprep.subr.mxu0 0.0
  %334 = vmatpush1.msra.mxu0 0.0
  %335 = vmatprep.subr.mxu0 0.0
  %336 = vmatpush1.msra.mxu0 0.0
  %337 = vmatprep.subr.mxu0 0.0
  %338 = vmatpush1.msra.mxu0 0.0
  %339 = vmatprep.subr.mxu0 0.0
  %340 = vmatpush1.msra.mxu0 0.0
  %341 = vmatprep.subr.mxu0 0.0
  %342 = vmatpush1.msra.mxu0 0.0
  %343 = vmatprep.subr.mxu0 0.0
  %344 = vmatpush1.msra.mxu0 0.0
  %345 = vmatprep.subr.mxu0 0.0
  %346 = vmatpush1.msra.mxu0 0.0
  %347 = vmatprep.subr.mxu0 0.0
  %348 = vmatpush1.msra.mxu0 0.0
  %349 = vmatprep.subr.mxu0 0.0
  %350 = vmatpush1.msra.mxu0 0.0
  %351 = vmatprep.subr.mxu0 0.0
  %352 = vmatpush1.msra.mxu0 0.0
  %353 = vmatprep.subr.mxu0 0.0
  %354 = vmatpush1.msra.mxu0 0.0
  %355 = vmatprep.subr.mxu0 0.0
  %356 = vmatpush1.msra.mxu0 0.0
  %357 = vmatprep.subr.mxu0 0.0
  %358 = vmatpush1.msra.mxu0 0.0
  %359 = vmatprep.subr.mxu0 0.0
  %360 = vmatpush1.msra.mxu0 0.0
  %361 = vmatprep.subr.mxu0 0.0
  %362 = vmatpush1.msra.mxu0 0.0
  %363 = vmatprep.subr.mxu0 0.0
  %364 = vmatpush1.msra.mxu0 0.0
  %365 = vmatprep.mubr.f32.mxu0 0.0
  %v366 = vand.u32 %v19, 4294901760
  %v367 = vsub.f32 %v19, %v366
  %v368 = vand.u32 %v367, 4294901760
  %369 = vmatmul.mubr.f32.gmra.mrb[0].mxu0 %v368
  %v370 = vpop.f32.mrb[0].mxu0
  %v371 = vadd.f32 %v287, %v370
  %v372 = vpop.f32.mrb[0].mxu0
  %373 = vmatprep.mubr.f32.mxu0 0.0
  %v374 = vand.u32 %v22, 4294901760
  %v375 = vsub.f32 %v22, %v374
  %v376 = vand.u32 %v375, 4294901760
  %377 = vmatmul.mubr.f32.gmra.mrb[0].mxu0 %v376
  %v378 = vpop.f32.mrb[0].mxu0
  %v379 = vadd.f32 %v294, %v378
  %v380 = vpop.f32.mrb[0].mxu0
  %381 = vdwg.mxu0
  %382 = vmatprep.subr.mxu0 0.0
  %v383 = vand.u32 %v13, 4294901760
  %v384 = vsub.f32 %v13, %v383
  %v385 = vand.u32 %v384, 4294901760
  %386 = vmatpush1.msra.mxu0 %v385
  %387 = vmatprep.subr.mxu0 0.0
  %v388 = vand.u32 %v14, 4294901760
  %v389 = vsub.f32 %v14, %v388
  %v390 = vand.u32 %v389, 4294901760
  %391 = vmatpush1.msra.mxu0 %v390
  %392 = vmatprep.subr.mxu0 0.0
  %v393 = vand.u32 %v15, 4294901760
  %v394 = vsub.f32 %v15, %v393
  %v395 = vand.u32 %v394, 4294901760
  %396 = vmatpush1.msra.mxu0 %v395
  %397 = vmatprep.subr.mxu0 0.0
  %v398 = vand.u32 %v16, 4294901760
  %v399 = vsub.f32 %v16, %v398
  %v400 = vand.u32 %v399, 4294901760
  %401 = vmatpush1.msra.mxu0 %v400
  %402 = vmatprep.subr.mxu0 0.0
  %403 = vmatpush1.msra.mxu0 0.0
  %404 = vmatprep.subr.mxu0 0.0
  %405 = vmatpush1.msra.mxu0 0.0
  %406 = vmatprep.subr.mxu0 0.0
  %407 = vmatpush1.msra.mxu0 0.0
  %408 = vmatprep.subr.mxu0 0.0
  %409 = vmatpush1.msra.mxu0 0.0
  %410 = vmatprep.subr.mxu0 0.0
  %411 = vmatpush1.msra.mxu0 0.0
  %412 = vmatprep.subr.mxu0 0.0
  %413 = vmatpush1.msra.mxu0 0.0
  %414 = vmatprep.subr.mxu0 0.0
  %415 = vmatpush1.msra.mxu0 0.0
  %416 = vmatprep.subr.mxu0 0.0
  %417 = vmatpush1.msra.mxu0 0.0
  %418 = vmatprep.subr.mxu0 0.0
  %419 = vmatpush1.msra.mxu0 0.0
  %420 = vmatprep.subr.mxu0 0.0
  %421 = vmatpush1.msra.mxu0 0.0
  %422 = vmatprep.subr.mxu0 0.0
  %423 = vmatpush1.msra.mxu0 0.0
  %424 = vmatprep.subr.mxu0 0.0
  %425 = vmatpush1.msra.mxu0 0.0
  %426 = vmatprep.subr.mxu0 0.0
  %427 = vmatpush1.msra.mxu0 0.0
  %428 = vmatprep.subr.mxu0 0.0
  %429 = vmatpush1.msra.mxu0 0.0
  %430 = vmatprep.subr.mxu0 0.0
  %431 = vmatpush1.msra.mxu0 0.0
  %432 = vmatprep.subr.mxu0 0.0
  %433 = vmatpush1.msra.mxu0 0.0
  %434 = vmatprep.subr.mxu0 0.0
  %435 = vmatpush1.msra.mxu0 0.0
  %436 = vmatprep.subr.mxu0 0.0
  %437 = vmatpush1.msra.mxu0 0.0
  %438 = vmatprep.subr.mxu0 0.0
  %439 = vmatpush1.msra.mxu0 0.0
  %440 = vmatprep.subr.mxu0 0.0
  %441 = vmatpush1.msra.mxu0 0.0
  %442 = vmatprep.subr.mxu0 0.0
  %443 = vmatpush1.msra.mxu0 0.0
  %444 = vmatprep.subr.mxu0 0.0
  %445 = vmatpush1.msra.mxu0 0.0
  %446 = vmatprep.subr.mxu0 0.0
  %447 = vmatpush1.msra.mxu0 0.0
  %448 = vmatprep.subr.mxu0 0.0
  %449 = vmatpush1.msra.mxu0 0.0
  %450 = vmatprep.subr.mxu0 0.0
  %451 = vmatpush1.msra.mxu0 0.0
  %452 = vmatprep.subr.mxu0 0.0
  %453 = vmatpush1.msra.mxu0 0.0
  %454 = vmatprep.subr.mxu0 0.0
  %455 = vmatpush1.msra.mxu0 0.0
  %456 = vmatprep.subr.mxu0 0.0
  %457 = vmatpush1.msra.mxu0 0.0
  %458 = vmatprep.mubr.f32.mxu0 0.0
  %v459 = vand.u32 %v19, 4294901760
  %460 = vmatmul.mubr.f32.gmra.mrb[0].mxu0 %v459
  %v461 = vpop.f32.mrb[0].mxu0
  %v462 = vadd.f32 %v371, %v461
  %v463 = vpop.f32.mrb[0].mxu0
  %464 = vmatprep.mubr.f32.mxu0 0.0
  %v465 = vand.u32 %v22, 4294901760
  %466 = vmatmul.mubr.f32.gmra.mrb[0].mxu0 %v465
  %v467 = vpop.f32.mrb[0].mxu0
  %v468 = vadd.f32 %v379, %v467
  %v469 = vpop.f32.mrb[0].mxu0
  %470 = vdwg.mxu0
  %471 = vmatprep.subr.mxu0 0.0
  %v472 = vand.u32 %v13, 4294901760
  %473 = vmatpush1.msra.mxu0 %v472
  %474 = vmatprep.subr.mxu0 0.0
  %v475 = vand.u32 %v14, 4294901760
  %476 = vmatpush1.msra.mxu0 %v475
  %477 = vmatprep.subr.mxu0 0.0
  %v478 = vand.u32 %v15, 4294901760
  %479 = vmatpush1.msra.mxu0 %v478
  %480 = vmatprep.subr.mxu0 0.0
  %v481 = vand.u32 %v16, 4294901760
  %482 = vmatpush1.msra.mxu0 %v481
  %483 = vmatprep.subr.mxu0 0.0
  %484 = vmatpush1.msra.mxu0 0.0
  %485 = vmatprep.subr.mxu0 0.0
  %486 = vmatpush1.msra.mxu0 0.0
  %487 = vmatprep.subr.mxu0 0.0
  %488 = vmatpush1.msra.mxu0 0.0
  %489 = vmatprep.subr.mxu0 0.0
  %490 = vmatpush1.msra.mxu0 0.0
  %491 = vmatprep.subr.mxu0 0.0
  %492 = vmatpush1.msra.mxu0 0.0
  %493 = vmatprep.subr.mxu0 0.0
  %494 = vmatpush1.msra.mxu0 0.0
  %495 = vmatprep.subr.mxu0 0.0
  %496 = vmatpush1.msra.mxu0 0.0
  %497 = vmatprep.subr.mxu0 0.0
  %498 = vmatpush1.msra.mxu0 0.0
  %499 = vmatprep.subr.mxu0 0.0
  %500 = vmatpush1.msra.mxu0 0.0
  %501 = vmatprep.subr.mxu0 0.0
  %502 = vmatpush1.msra.mxu0 0.0
  %503 = vmatprep.subr.mxu0 0.0
  %504 = vmatpush1.msra.mxu0 0.0
  %505 = vmatprep.subr.mxu0 0.0
  %506 = vmatpush1.msra.mxu0 0.0
  %507 = vmatprep.subr.mxu0 0.0
  %508 = vmatpush1.msra.mxu0 0.0
  %509 = vmatprep.subr.mxu0 0.0
  %510 = vmatpush1.msra.mxu0 0.0
  %511 = vmatprep.subr.mxu0 0.0
  %512 = vmatpush1.msra.mxu0 0.0
  %513 = vmatprep.subr.mxu0 0.0
  %514 = vmatpush1.msra.mxu0 0.0
  %515 = vmatprep.subr.mxu0 0.0
  %516 = vmatpush1.msra.mxu0 0.0
  %517 = vmatprep.subr.mxu0 0.0
  %518 = vmatpush1.msra.mxu0 0.0
  %519 = vmatprep.subr.mxu0 0.0
  %520 = vmatpush1.msra.mxu0 0.0
  %521 = vmatprep.subr.mxu0 0.0
  %522 = vmatpush1.msra.mxu0 0.0
  %523 = vmatprep.subr.mxu0 0.0
  %524 = vmatpush1.msra.mxu0 0.0
  %525 = vmatprep.subr.mxu0 0.0
  %526 = vmatpush1.msra.mxu0 0.0
  %527 = vmatprep.subr.mxu0 0.0
  %528 = vmatpush1.msra.mxu0 0.0
  %529 = vmatprep.subr.mxu0 0.0
  %530 = vmatpush1.msra.mxu0 0.0
  %531 = vmatprep.subr.mxu0 0.0
  %532 = vmatpush1.msra.mxu0 0.0
  %533 = vmatprep.subr.mxu0 0.0
  %534 = vmatpush1.msra.mxu0 0.0
  %535 = vmatprep.subr.mxu0 0.0
  %536 = vmatpush1.msra.mxu0 0.0
  %537 = vmatprep.subr.mxu0 0.0
  %538 = vmatpush1.msra.mxu0 0.0
  %539 = vmatprep.mubr.f32.mxu0 0.0
  %v540 = vand.u32 %v19, 4294901760
  %541 = vmatmul.mubr.f32.gmra.mrb[0].mxu0 %v540
  %v542 = vpop.f32.mrb[0].mxu0
  %v543 = vadd.f32 %v462, %v542
  %v544 = vpop.f32.mrb[0].mxu0
  %545 = vmatprep.mubr.f32.mxu0 0.0
  %v546 = vand.u32 %v22, 4294901760
  %547 = vmatmul.mubr.f32.gmra.mrb[0].mxu0 %v546
  %v548 = vpop.f32.mrb[0].mxu0
  %v549 = vadd.f32 %v468, %v548
  %v550 = vpop.f32.mrb[0].mxu0
  %551 = vdwg.mxu0
  %552 = vst.msk [vmem:[%s2] sm:$0xff] %vm17, %v543
  %553 = vst.msk [vmem:[%s2 + $0x8] sm:$0xff] %vm17, %v549
  // Predicated region
  $region10: #{decoder_layer.12} parent=0 // pred_check
    _
  $region11: #{decoder_layer.12} parent=0 // pred_check_branch
    %555 = sbr.rel (0) target = $region13
  $region12: #{decoder_layer.12} parent=0 // pred_region
    _
  $region13: #{decoder_layer.12} parent=0 // pred_fallthru
    _
  // Predicated region
  $region14: #{decoder_layer.12} parent=0 // pred_check
    _
  $region15: #{decoder_layer.12} parent=0 // pred_check_branch
    %557 = sbr.rel (0) target = $region17
  $region16: #{decoder_layer.12} parent=0 // pred_region
    _
  $region17: #{decoder_layer.12} parent=0 // pred_fallthru
    _

// kernel: decoder_layer.15
$region0: #{decoder_layer.15}
  #allocation0 [shape = 'u32[]', space=smem, size = 0x4, offset = 0x4, fixed_abs, tag = 'smem constant byte address 0x4 - core index']
  #allocation1 [shape = 'u32[144,128]{1,0:T(1,128)}', space=vmem, size = 0x12000, scoped, tag = 'internal scratch']
  %s0 = inlined_call_operand.vmem [shape: f32[16,32], index: 0, kind: input, shape index: {}]
  %s1 = inlined_call_operand.vmem [shape: f32[32,32], index: 1, kind: input, shape index: {}]
  %s2 = inlined_call_operand.vmem [shape: f32[16,32], index: 2, kind: input, shape index: {}]
  %s3 = inlined_call_operand.vmem [shape: f32[1,32], index: 3, kind: input, shape index: {}]
  %s4 = inlined_call_operand.vmem [shape: f32[1,32], index: 4, kind: input, shape index: {}]
  %s5 = inlined_call_operand.vmem [shape: f32[16,32], index: 5, kind: output, shape index: {}]
  %s6 = sld [smem:[#allocation0]]
  $region30: #{decoder_layer.15} parent=0
    _
  %s8 = ssub.s32 1, %s6
  %s9 = scalar_select 0, %s8, %s6
  // Predicated region
  $region2: #{decoder_layer.15} parent=0 // pred_check
    _
  $region3: #{decoder_layer.15} parent=0 // pred_check_branch
    %11 = sbr.rel (0) target = $region5
  $region4: #{decoder_layer.15} parent=0 // pred_region
    _
  $region5: #{decoder_layer.15} parent=0 // pred_fallthru
    _
  // Predicated region
  $region6: #{decoder_layer.15} parent=0 // pred_check
    _
  $region7: #{decoder_layer.15} parent=0 // pred_check_branch
    %13 = sbr.rel (0) target = $region9
  $region8: #{decoder_layer.15} parent=0 // pred_region
    _
  $region9: #{decoder_layer.15} parent=0 // pred_fallthru
    _
  // Predicated region
  $region10: #{decoder_layer.15} parent=0 // pred_check
    _
  $region11: #{decoder_layer.15} parent=0 // pred_check_branch
    %15 = sbr.rel (0) target = $region13
  $region12: #{decoder_layer.15} parent=0 // pred_region
    _
  $region13: #{decoder_layer.15} parent=0 // pred_fallthru
    _
  // Predicated region
  $region14: #{decoder_layer.15} parent=0 // pred_check
    _
  $region15: #{decoder_layer.15} parent=0 // pred_check_branch
    %17 = sbr.rel (0) target = $region17
  $region16: #{decoder_layer.15} parent=0 // pred_region
    _
  $region17: #{decoder_layer.15} parent=0 // pred_fallthru
    _
  // Predicated region
  $region18: #{decoder_layer.15} parent=0 // pred_check
    _
  $region19: #{decoder_layer.15} parent=0 // pred_check_branch
    %19 = sbr.rel (0) target = $region21
  $region20: #{decoder_layer.15} parent=0 // pred_region
    _
  $region21: #{decoder_layer.15} parent=0 // pred_fallthru
    _
  %v20 = vld [vmem:[%s0] sm:$0xff]
  %v21 = vld [vmem:[%s0 + $0x8] sm:$0xff]
  %v22 = vld [vmem:[%s1] sm:$0xff]
  %v23 = vld [vmem:[%s1 + $0x8] sm:$0xff]
  %v24 = vld [vmem:[%s1 + $0x10] sm:$0xff]
  %v25 = vld [vmem:[%s1 + $0x18] sm:$0xff]
  %v26 = vld [vmem:[%s2] sm:$0xff]
  %v27 = vld [vmem:[%s2 + $0x8] sm:$0xff]
  %vm28 = vcmask 261120
  %v30 = vsel %vm28, %v20, 0
  %v33 = vsel %vm28, %v21, 0
  %35 = vmatprep.subr.mxu0 0.0
  %v36 = vand.u32 %v22, 4294901760
  %37 = vmatpush1.msra.mxu0 %v36
  %38 = vmatprep.subr.mxu0 0.0
  %v39 = vand.u32 %v23, 4294901760
  %40 = vmatpush1.msra.mxu0 %v39
  %41 = vmatprep.subr.mxu0 0.0
  %v42 = vand.u32 %v24, 4294901760
  %43 = vmatpush1.msra.mxu0 %v42
  %44 = vmatprep.subr.mxu0 0.0
  %v45 = vand.u32 %v25, 4294901760
  %46 = vmatpush1.msra.mxu0 %v45
  %47 = vmatprep.subr.mxu0 0.0
  %48 = vmatpush1.msra.mxu0 0.0
  %49 = vmatprep.subr.mxu0 0.0
  %50 = vmatpush1.msra.mxu0 0.0
  %51 = vmatprep.subr.mxu0 0.0
  %52 = vmatpush1.msra.mxu0 0.0
  %53 = vmatprep.subr.mxu0 0.0
  %54 = vmatpush1.msra.mxu0 0.0
  %55 = vmatprep.subr.mxu0 0.0
  %56 = vmatpush1.msra.mxu0 0.0
  %57 = vmatprep.subr.mxu0 0.0
  %58 = vmatpush1.msra.mxu0 0.0
  %59 = vmatprep.subr.mxu0 0.0
  %60 = vmatpush1.msra.mxu0 0.0
  %61 = vmatprep.subr.mxu0 0.0
  %62 = vmatpush1.msra.mxu0 0.0
  %63 = vmatprep.subr.mxu0 0.0
  %64 = vmatpush1.msra.mxu0 0.0
  %65 = vmatprep.subr.mxu0 0.0
  %66 = vmatpush1.msra.mxu0 0.0
  %67 = vmatprep.subr.mxu0 0.0
  %68 = vmatpush1.msra.mxu0 0.0
  %69 = vmatprep.subr.mxu0 0.0
  %70 = vmatpush1.msra.mxu0 0.0
  %71 = vmatprep.subr.mxu0 0.0
  %72 = vmatpush1.msra.mxu0 0.0
  %73 = vmatprep.subr.mxu0 0.0
  %74 = vmatpush1.msra.mxu0 0.0
  %75 = vmatprep.subr.mxu0 0.0
  %76 = vmatpush1.msra.mxu0 0.0
  %77 = vmatprep.subr.mxu0 0.0
  %78 = vmatpush1.msra.mxu0 0.0
  %79 = vmatprep.subr.mxu0 0.0
  %80 = vmatpush1.msra.mxu0 0.0
  %81 = vmatprep.subr.mxu0 0.0
  %82 = vmatpush1.msra.mxu0 0.0
  %83 = vmatprep.subr.mxu0 0.0
  %84 = vmatpush1.msra.mxu0 0.0
  %85 = vmatprep.subr.mxu0 0.0
  %86 = vmatpush1.msra.mxu0 0.0
  %87 = vmatprep.subr.mxu0 0.0
  %88 = vmatpush1.msra.mxu0 0.0
  %89 = vmatprep.subr.mxu0 0.0
  %90 = vmatpush1.msra.mxu0 0.0
  %91 = vmatprep.subr.mxu0 0.0
  %92 = vmatpush1.msra.mxu0 0.0
  %93 = vmatprep.subr.mxu0 0.0
  %94 = vmatpush1.msra.mxu0 0.0
  %95 = vmatprep.subr.mxu0 0.0
  %96 = vmatpush1.msra.mxu0 0.0
  %97 = vmatprep.subr.mxu0 0.0
  %98 = vmatpush1.msra.mxu0 0.0
  %99 = vmatprep.subr.mxu0 0.0
  %100 = vmatpush1.msra.mxu0 0.0
  %101 = vmatprep.subr.mxu0 0.0
  %102 = vmatpush1.msra.mxu0 0.0
  %103 = vmatprep.mubr.f32.mxu0 0.0
  %v104 = vand.u32 %v30, 4294901760
  %v105 = vsub.f32 %v30, %v104
  %v106 = vand.u32 %v105, 4294901760
  %v107 = vsub.f32 %v105, %v106
  %v108 = vand.u32 %v107, 4294901760
  %109 = vmatmul.mubr.f32.gmra.mrb[0].mxu0 %v108
  %v110 = vpop.f32.mrb[0].mxu0
  %v111 = vadd.f32 %v26, %v110
  %v112 = vpop.f32.mrb[0].mxu0
  %113 = vmatprep.mubr.f32.mxu0 0.0
  %v114 = vand.u32 %v33, 4294901760
  %v115 = vsub.f32 %v33, %v114
  %v116 = vand.u32 %v115, 4294901760
  %v117 = vsub.f32 %v115, %v116
  %v118 = vand.u32 %v117, 4294901760
  %119 = vmatmul.mubr.f32.gmra.mrb[0].mxu0 %v118
  %v120 = vpop.f32.mrb[0].mxu0
  %v121 = vadd.f32 %v27, %v120
  %v122 = vpop.f32.mrb[0].mxu0
  %123 = vdwg.mxu0
  %124 = vmatprep.subr.mxu0 0.0
  %v125 = vand.u32 %v22, 4294901760
  %v126 = vsub.f32 %v22, %v125
  %v127 = vand.u32 %v126, 4294901760
  %v128 = vsub.f32 %v126, %v127
  %v129 = vand.u32 %v128, 4294901760
  %130 = vmatpush1.msra.mxu0 %v129
  %131 = vmatprep.subr.mxu0 0.0
  %v132 = vand.u32 %v23, 4294901760
  %v133 = vsub.f32 %v23, %v132
  %v134 = vand.u32 %v133, 4294901760
  %v135 = vsub.f32 %v133, %v134
  %v136 = vand.u32 %v135, 4294901760
  %137 = vmatpush1.msra.mxu0 %v136
  %138 = vmatprep.subr.mxu0 0.0
  %v139 = vand.u32 %v24, 4294901760
  %v140 = vsub.f32 %v24, %v139
  %v141 = vand.u32 %v140, 4294901760
  %v142 = vsub.f32 %v140, %v141
  %v143 = vand.u32 %v142, 4294901760
  %144 = vmatpush1.msra.mxu0 %v143
  %145 = vmatprep.subr.mxu0 0.0
  %v146 = vand.u32 %v25, 4294901760
  %v147 = vsub.f32 %v25, %v146
  %v148 = vand.u32 %v147, 4294901760
  %v149 = vsub.f32 %v147, %v148
  %v150 = vand.u32 %v149, 4294901760
  %151 = vmatpush1.msra.mxu0 %v150
  %152 = vmatprep.subr.mxu0 0.0
  %153 = vmatpush1.msra.mxu0 0.0
  %154 = vmatprep.subr.mxu0 0.0
  %155 = vmatpush1.msra.mxu0 0.0
  %156 = vmatprep.subr.mxu0 0.0
  %157 = vmatpush1.msra.mxu0 0.0
  %158 = vmatprep.subr.mxu0 0.0
  %159 = vmatpush1.msra.mxu0 0.0
  %160 = vmatprep.subr.mxu0 0.0
  %161 = vmatpush1.msra.mxu0 0.0
  %162 = vmatprep.subr.mxu0 0.0
  %163 = vmatpush1.msra.mxu0 0.0
  %164 = vmatprep.subr.mxu0 0.0
  %165 = vmatpush1.msra.mxu0 0.0
  %166 = vmatprep.subr.mxu0 0.0
  %167 = vmatpush1.msra.mxu0 0.0
  %168 = vmatprep.subr.mxu0 0.0
  %169 = vmatpush1.msra.mxu0 0.0
  %170 = vmatprep.subr.mxu0 0.0
  %171 = vmatpush1.msra.mxu0 0.0
  %172 = vmatprep.subr.mxu0 0.0
  %173 = vmatpush1.msra.mxu0 0.0
  %174 = vmatprep.subr.mxu0 0.0
  %175 = vmatpush1.msra.mxu0 0.0
  %176 = vmatprep.subr.mxu0 0.0
  %177 = vmatpush1.msra.mxu0 0.0
  %178 = vmatprep.subr.mxu0 0.0
  %179 = vmatpush1.msra.mxu0 0.0
  %180 = vmatprep.subr.mxu0 0.0
  %181 = vmatpush1.msra.mxu0 0.0
  %182 = vmatprep.subr.mxu0 0.0
  %183 = vmatpush1.msra.mxu0 0.0
  %184 = vmatprep.subr.mxu0 0.0
  %185 = vmatpush1.msra.mxu0 0.0
  %186 = vmatprep.subr.mxu0 0.0
  %187 = vmatpush1.msra.mxu0 0.0
  %188 = vmatprep.subr.mxu0 0.0
  %189 = vmatpush1.msra.mxu0 0.0
  %190 = vmatprep.subr.mxu0 0.0
  %191 = vmatpush1.msra.mxu0 0.0
  %192 = vmatprep.subr.mxu0 0.0
  %193 = vmatpush1.msra.mxu0 0.0
  %194 = vmatprep.subr.mxu0 0.0
  %195 = vmatpush1.msra.mxu0 0.0
  %196 = vmatprep.subr.mxu0 0.0
  %197 = vmatpush1.msra.mxu0 0.0
  %198 = vmatprep.subr.mxu0 0.0
  %199 = vmatpush1.msra.mxu0 0.0
  %200 = vmatprep.subr.mxu0 0.0
  %201 = vmatpush1.msra.mxu0 0.0
  %202 = vmatprep.subr.mxu0 0.0
  %203 = vmatpush1.msra.mxu0 0.0
  %204 = vmatprep.subr.mxu0 0.0
  %205 = vmatpush1.msra.mxu0 0.0
  %206 = vmatprep.subr.mxu0 0.0
  %207 = vmatpush1.msra.mxu0 0.0
  %208 = vmatprep.mubr.f32.mxu0 0.0
  %v209 = vand.u32 %v30, 4294901760
  %210 = vmatmul.mubr.f32.gmra.mrb[0].mxu0 %v209
  %v211 = vpop.f32.mrb[0].mxu0
  %v212 = vadd.f32 %v111, %v211
  %v213 = vpop.f32.mrb[0].mxu0
  %214 = vmatprep.mubr.f32.mxu0 0.0
  %v215 = vand.u32 %v33, 4294901760
  %216 = vmatmul.mubr.f32.gmra.mrb[0].mxu0 %v215
  %v217 = vpop.f32.mrb[0].mxu0
  %v218 = vadd.f32 %v121, %v217
  %v219 = vpop.f32.mrb[0].mxu0
  %220 = vdwg.mxu0
  %221 = vmatprep.subr.mxu0 0.0
  %v222 = vand.u32 %v22, 4294901760
  %v223 = vsub.f32 %v22, %v222
  %224 = vmatpush1.msra.mxu0 %v223
  %225 = vmatprep.subr.mxu0 0.0
  %v226 = vand.u32 %v23, 4294901760
  %v227 = vsub.f32 %v23, %v226
  %228 = vmatpush1.msra.mxu0 %v227
  %229 = vmatprep.subr.mxu0 0.0
  %v230 = vand.u32 %v24, 4294901760
  %v231 = vsub.f32 %v24, %v230
  %232 = vmatpush1.msra.mxu0 %v231
  %233 = vmatprep.subr.mxu0 0.0
  %v234 = vand.u32 %v25, 4294901760
  %v235 = vsub.f32 %v25, %v234
  %236 = vmatpush1.msra.mxu0 %v235
  %237 = vmatprep.subr.mxu0 0.0
  %238 = vmatpush1.msra.mxu0 0.0
  %239 = vmatprep.subr.mxu0 0.0
  %240 = vmatpush1.msra.mxu0 0.0
  %241 = vmatprep.subr.mxu0 0.0
  %242 = vmatpush1.msra.mxu0 0.0
  %243 = vmatprep.subr.mxu0 0.0
  %244 = vmatpush1.msra.mxu0 0.0
  %245 = vmatprep.subr.mxu0 0.0
  %246 = vmatpush1.msra.mxu0 0.0
  %247 = vmatprep.subr.mxu0 0.0
  %248 = vmatpush1.msra.mxu0 0.0
  %249 = vmatprep.subr.mxu0 0.0
  %250 = vmatpush1.msra.mxu0 0.0
  %251 = vmatprep.subr.mxu0 0.0
  %252 = vmatpush1.msra.mxu0 0.0
  %253 = vmatprep.subr.mxu0 0.0
  %254 = vmatpush1.msra.mxu0 0.0
  %255 = vmatprep.subr.mxu0 0.0
  %256 = vmatpush1.msra.mxu0 0.0
  %257 = vmatprep.subr.mxu0 0.0
  %258 = vmatpush1.msra.mxu0 0.0
  %259 = vmatprep.subr.mxu0 0.0
  %260 = vmatpush1.msra.mxu0 0.0
  %261 = vmatprep.subr.mxu0 0.0
  %262 = vmatpush1.msra.mxu0 0.0
  %263 = vmatprep.subr.mxu0 0.0
  %264 = vmatpush1.msra.mxu0 0.0
  %265 = vmatprep.subr.mxu0 0.0
  %266 = vmatpush1.msra.mxu0 0.0
  %267 = vmatprep.subr.mxu0 0.0
  %268 = vmatpush1.msra.mxu0 0.0
  %269 = vmatprep.subr.mxu0 0.0
  %270 = vmatpush1.msra.mxu0 0.0
  %271 = vmatprep.subr.mxu0 0.0
  %272 = vmatpush1.msra.mxu0 0.0
  %273 = vmatprep.subr.mxu0 0.0
  %274 = vmatpush1.msra.mxu0 0.0
  %275 = vmatprep.subr.mxu0 0.0
  %276 = vmatpush1.msra.mxu0 0.0
  %277 = vmatprep.subr.mxu0 0.0
  %278 = vmatpush1.msra.mxu0 0.0
  %279 = vmatprep.subr.mxu0 0.0
  %280 = vmatpush1.msra.mxu0 0.0
  %281 = vmatprep.subr.mxu0 0.0
  %282 = vmatpush1.msra.mxu0 0.0
  %283 = vmatprep.subr.mxu0 0.0
  %284 = vmatpush1.msra.mxu0 0.0
  %285 = vmatprep.subr.mxu0 0.0
  %286 = vmatpush1.msra.mxu0 0.0
  %287 = vmatprep.subr.mxu0 0.0
  %288 = vmatpush1.msra.mxu0 0.0
  %289 = vmatprep.subr.mxu0 0.0
  %290 = vmatpush1.msra.mxu0 0.0
  %291 = vmatprep.subr.mxu0 0.0
  %292 = vmatpush1.msra.mxu0 0.0
  %293 = vmatprep.mubr.f32.mxu0 0.0
  %v294 = vand.u32 %v30, 4294901760
  %v295 = vsub.f32 %v30, %v294
  %296 = vmatmul.mubr.f32.gmra.mrb[0].mxu0 %v295
  %v297 = vpop.f32.mrb[0].mxu0
  %v298 = vadd.f32 %v212, %v297
  %v299 = vpop.f32.mrb[0].mxu0
  %300 = vmatprep.mubr.f32.mxu0 0.0
  %v301 = vand.u32 %v33, 4294901760
  %v302 = vsub.f32 %v33, %v301
  %303 = vmatmul.mubr.f32.gmra.mrb[0].mxu0 %v302
  %v304 = vpop.f32.mrb[0].mxu0
  %v305 = vadd.f32 %v218, %v304
  %v306 = vpop.f32.mrb[0].mxu0
  %307 = vdwg.mxu0
  %308 = vmatprep.subr.mxu0 0.0
  %v309 = vand.u32 %v22, 4294901760
  %310 = vmatpush1.msra.mxu0 %v309
  %311 = vmatprep.subr.mxu0 0.0
  %v312 = vand.u32 %v23, 4294901760
  %313 = vmatpush1.msra.mxu0 %v312
  %314 = vmatprep.subr.mxu0 0.0
  %v315 = vand.u32 %v24, 4294901760
  %316 = vmatpush1.msra.mxu0 %v315
  %317 = vmatprep.subr.mxu0 0.0
  %v318 = vand.u32 %v25, 4294901760
  %319 = vmatpush1.msra.mxu0 %v318
  %320 = vmatprep.subr.mxu0 0.0
  %321 = vmatpush1.msra.mxu0 0.0
  %322 = vmatprep.subr.mxu0 0.0
  %323 = vmatpush1.msra.mxu0 0.0
  %324 = vmatprep.subr.mxu0 0.0
  %325 = vmatpush1.msra.mxu0 0.0
  %326 = vmatprep.subr.mxu0 0.0
  %327 = vmatpush1.msra.mxu0 0.0
  %328 = vmatprep.subr.mxu0 0.0
  %329 = vmatpush1.msra.mxu0 0.0
  %330 = vmatprep.subr.mxu0 0.0
  %331 = vmatpush1.msra.mxu0 0.0
  %332 = vmatprep.subr.mxu0 0.0
  %333 = vmatpush1.msra.mxu0 0.0
  %334 = vmatprep.subr.mxu0 0.0
  %335 = vmatpush1.msra.mxu0 0.0
  %336 = vmatprep.subr.mxu0 0.0
  %337 = vmatpush1.msra.mxu0 0.0
  %338 = vmatprep.subr.mxu0 0.0
  %339 = vmatpush1.msra.mxu0 0.0
  %340 = vmatprep.subr.mxu0 0.0
  %341 = vmatpush1.msra.mxu0 0.0
  %342 = vmatprep.subr.mxu0 0.0
  %343 = vmatpush1.msra.mxu0 0.0
  %344 = vmatprep.subr.mxu0 0.0
  %345 = vmatpush1.msra.mxu0 0.0
  %346 = vmatprep.subr.mxu0 0.0
  %347 = vmatpush1.msra.mxu0 0.0
  %348 = vmatprep.subr.mxu0 0.0
  %349 = vmatpush1.msra.mxu0 0.0
  %350 = vmatprep.subr.mxu0 0.0
  %351 = vmatpush1.msra.mxu0 0.0
  %352 = vmatprep.subr.mxu0 0.0
  %353 = vmatpush1.msra.mxu0 0.0
  %354 = vmatprep.subr.mxu0 0.0
  %355 = vmatpush1.msra.mxu0 0.0
  %356 = vmatprep.subr.mxu0 0.0
  %357 = vmatpush1.msra.mxu0 0.0
  %358 = vmatprep.subr.mxu0 0.0
  %359 = vmatpush1.msra.mxu0 0.0
  %360 = vmatprep.subr.mxu0 0.0
  %361 = vmatpush1.msra.mxu0 0.0
  %362 = vmatprep.subr.mxu0 0.0
  %363 = vmatpush1.msra.mxu0 0.0
  %364 = vmatprep.subr.mxu0 0.0
  %365 = vmatpush1.msra.mxu0 0.0
  %366 = vmatprep.subr.mxu0 0.0
  %367 = vmatpush1.msra.mxu0 0.0
  %368 = vmatprep.subr.mxu0 0.0
  %369 = vmatpush1.msra.mxu0 0.0
  %370 = vmatprep.subr.mxu0 0.0
  %371 = vmatpush1.msra.mxu0 0.0
  %372 = vmatprep.subr.mxu0 0.0
  %373 = vmatpush1.msra.mxu0 0.0
  %374 = vmatprep.subr.mxu0 0.0
  %375 = vmatpush1.msra.mxu0 0.0
  %376 = vmatprep.mubr.f32.mxu0 0.0
  %v377 = vand.u32 %v30, 4294901760
  %v378 = vsub.f32 %v30, %v377
  %v379 = vand.u32 %v378, 4294901760
  %380 = vmatmul.mubr.f32.gmra.mrb[0].mxu0 %v379
  %v381 = vpop.f32.mrb[0].mxu0
  %v382 = vadd.f32 %v298, %v381
  %v383 = vpop.f32.mrb[0].mxu0
  %384 = vmatprep.mubr.f32.mxu0 0.0
  %v385 = vand.u32 %v33, 4294901760
  %v386 = vsub.f32 %v33, %v385
  %v387 = vand.u32 %v386, 4294901760
  %388 = vmatmul.mubr.f32.gmra.mrb[0].mxu0 %v387
  %v389 = vpop.f32.mrb[0].mxu0
  %v390 = vadd.f32 %v305, %v389
  %v391 = vpop.f32.mrb[0].mxu0
  %392 = vdwg.mxu0
  %393 = vmatprep.subr.mxu0 0.0
  %v394 = vand.u32 %v22, 4294901760
  %v395 = vsub.f32 %v22, %v394
  %v396 = vand.u32 %v395, 4294901760
  %397 = vmatpush1.msra.mxu0 %v396
  %398 = vmatprep.subr.mxu0 0.0
  %v399 = vand.u32 %v23, 4294901760
  %v400 = vsub.f32 %v23, %v399
  %v401 = vand.u32 %v400, 4294901760
  %402 = vmatpush1.msra.mxu0 %v401
  %403 = vmatprep.subr.mxu0 0.0
  %v404 = vand.u32 %v24, 4294901760
  %v405 = vsub.f32 %v24, %v404
  %v406 = vand.u32 %v405, 4294901760
  %407 = vmatpush1.msra.mxu0 %v406
  %408 = vmatprep.subr.mxu0 0.0
  %v409 = vand.u32 %v25, 4294901760
  %v410 = vsub.f32 %v25, %v409
  %v411 = vand.u32 %v410, 4294901760
  %412 = vmatpush1.msra.mxu0 %v411
  %413 = vmatprep.subr.mxu0 0.0
  %414 = vmatpush1.msra.mxu0 0.0
  %415 = vmatprep.subr.mxu0 0.0
  %416 = vmatpush1.msra.mxu0 0.0
  %417 = vmatprep.subr.mxu0 0.0
  %418 = vmatpush1.msra.mxu0 0.0
  %419 = vmatprep.subr.mxu0 0.0
  %420 = vmatpush1.msra.mxu0 0.0
  %421 = vmatprep.subr.mxu0 0.0
  %422 = vmatpush1.msra.mxu0 0.0
  %423 = vmatprep.subr.mxu0 0.0
  %424 = vmatpush1.msra.mxu0 0.0
  %425 = vmatprep.subr.mxu0 0.0
  %426 = vmatpush1.msra.mxu0 0.0
  %427 = vmatprep.subr.mxu0 0.0
  %428 = vmatpush1.msra.mxu0 0.0
  %429 = vmatprep.subr.mxu0 0.0
  %430 = vmatpush1.msra.mxu0 0.0
  %431 = vmatprep.subr.mxu0 0.0
  %432 = vmatpush1.msra.mxu0 0.0
  %433 = vmatprep.subr.mxu0 0.0
  %434 = vmatpush1.msra.mxu0 0.0
  %435 = vmatprep.subr.mxu0 0.0
  %436 = vmatpush1.msra.mxu0 0.0
  %437 = vmatprep.subr.mxu0 0.0
  %438 = vmatpush1.msra.mxu0 0.0
  %439 = vmatprep.subr.mxu0 0.0
  %440 = vmatpush1.msra.mxu0 0.0
  %441 = vmatprep.subr.mxu0 0.0
  %442 = vmatpush1.msra.mxu0 0.0
  %443 = vmatprep.subr.mxu0 0.0
  %444 = vmatpush1.msra.mxu0 0.0
  %445 = vmatprep.subr.mxu0 0.0
  %446 = vmatpush1.msra.mxu0 0.0
  %447 = vmatprep.subr.mxu0 0.0
  %448 = vmatpush1.msra.mxu0 0.0
  %449 = vmatprep.subr.mxu0 0.0
  %450 = vmatpush1.msra.mxu0 0.0
  %451 = vmatprep.subr.mxu0 0.0
  %452 = vmatpush1.msra.mxu0 0.0
  %453 = vmatprep.subr.mxu0 0.0
  %454 = vmatpush1.msra.mxu0 0.0
  %455 = vmatprep.subr.mxu0 0.0
  %456 = vmatpush1.msra.mxu0 0.0
  %457 = vmatprep.subr.mxu0 0.0
  %458 = vmatpush1.msra.mxu0 0.0
  %459 = vmatprep.subr.mxu0 0.0
  %460 = vmatpush1.msra.mxu0 0.0
  %461 = vmatprep.subr.mxu0 0.0
  %462 = vmatpush1.msra.mxu0 0.0
  %463 = vmatprep.subr.mxu0 0.0
  %464 = vmatpush1.msra.mxu0 0.0
  %465 = vmatprep.subr.mxu0 0.0
  %466 = vmatpush1.msra.mxu0 0.0
  %467 = vmatprep.subr.mxu0 0.0
  %468 = vmatpush1.msra.mxu0 0.0
  %469 = vmatprep.mubr.f32.mxu0 0.0
  %v470 = vand.u32 %v30, 4294901760
  %471 = vmatmul.mubr.f32.gmra.mrb[0].mxu0 %v470
  %v472 = vpop.f32.mrb[0].mxu0
  %v473 = vadd.f32 %v382, %v472
  %v474 = vpop.f32.mrb[0].mxu0
  %475 = vmatprep.mubr.f32.mxu0 0.0
  %v476 = vand.u32 %v33, 4294901760
  %477 = vmatmul.mubr.f32.gmra.mrb[0].mxu0 %v476
  %v478 = vpop.f32.mrb[0].mxu0
  %v479 = vadd.f32 %v390, %v478
  %v480 = vpop.f32.mrb[0].mxu0
  %481 = vdwg.mxu0
  %482 = vmatprep.subr.mxu0 0.0
  %v483 = vand.u32 %v22, 4294901760
  %484 = vmatpush1.msra.mxu0 %v483
  %485 = vmatprep.subr.mxu0 0.0
  %v486 = vand.u32 %v23, 4294901760
  %487 = vmatpush1.msra.mxu0 %v486
  %488 = vmatprep.subr.mxu0 0.0
  %v489 = vand.u32 %v24, 4294901760
  %490 = vmatpush1.msra.mxu0 %v489
  %491 = vmatprep.subr.mxu0 0.0
  %v492 = vand.u32 %v25, 4294901760
  %493 = vmatpush1.msra.mxu0 %v492
  %494 = vmatprep.subr.mxu0 0.0
  %495 = vmatpush1.msra.mxu0 0.0
  %496 = vmatprep.subr.mxu0 0.0
  %497 = vmatpush1.msra.mxu0 0.0
  %498 = vmatprep.subr.mxu0 0.0
  %499 = vmatpush1.msra.mxu0 0.0
  %500 = vmatprep.subr.mxu0 0.0
  %501 = vmatpush1.msra.mxu0 0.0
  %502 = vmatprep.subr.mxu0 0.0
  %503 = vmatpush1.msra.mxu0 0.0
  %504 = vmatprep.subr.mxu0 0.0
  %505 = vmatpush1.msra.mxu0 0.0
  %506 = vmatprep.subr.mxu0 0.0
  %507 = vmatpush1.msra.mxu0 0.0
  %508 = vmatprep.subr.mxu0 0.0
  %509 = vmatpush1.msra.mxu0 0.0
  %510 = vmatprep.subr.mxu0 0.0
  %511 = vmatpush1.msra.mxu0 0.0
  %512 = vmatprep.subr.mxu0 0.0
  %513 = vmatpush1.msra.mxu0 0.0
  %514 = vmatprep.subr.mxu0 0.0
  %515 = vmatpush1.msra.mxu0 0.0
  %516 = vmatprep.subr.mxu0 0.0
  %517 = vmatpush1.msra.mxu0 0.0
  %518 = vmatprep.subr.mxu0 0.0
  %519 = vmatpush1.msra.mxu0 0.0
  %520 = vmatprep.subr.mxu0 0.0
  %521 = vmatpush1.msra.mxu0 0.0
  %522 = vmatprep.subr.mxu0 0.0
  %523 = vmatpush1.msra.mxu0 0.0
  %524 = vmatprep.subr.mxu0 0.0
  %525 = vmatpush1.msra.mxu0 0.0
  %526 = vmatprep.subr.mxu0 0.0
  %527 = vmatpush1.msra.mxu0 0.0
  %528 = vmatprep.subr.mxu0 0.0
  %529 = vmatpush1.msra.mxu0 0.0
  %530 = vmatprep.subr.mxu0 0.0
  %531 = vmatpush1.msra.mxu0 0.0
  %532 = vmatprep.subr.mxu0 0.0
  %533 = vmatpush1.msra.mxu0 0.0
  %534 = vmatprep.subr.mxu0 0.0
  %535 = vmatpush1.msra.mxu0 0.0
  %536 = vmatprep.subr.mxu0 0.0
  %537 = vmatpush1.msra.mxu0 0.0
  %538 = vmatprep.subr.mxu0 0.0
  %539 = vmatpush1.msra.mxu0 0.0
  %540 = vmatprep.subr.mxu0 0.0
  %541 = vmatpush1.msra.mxu0 0.0
  %542 = vmatprep.subr.mxu0 0.0
  %543 = vmatpush1.msra.mxu0 0.0
  %544 = vmatprep.subr.mxu0 0.0
  %545 = vmatpush1.msra.mxu0 0.0
  %546 = vmatprep.subr.mxu0 0.0
  %547 = vmatpush1.msra.mxu0 0.0
  %548 = vmatprep.subr.mxu0 0.0
  %549 = vmatpush1.msra.mxu0 0.0
  %550 = vmatprep.mubr.f32.mxu0 0.0
  %v551 = vand.u32 %v30, 4294901760
  %552 = vmatmul.mubr.f32.gmra.mrb[0].mxu0 %v551
  %v553 = vpop.f32.mrb[0].mxu0
  %v554 = vadd.f32 %v473, %v553
  %v555 = vpop.f32.mrb[0].mxu0
  %556 = vmatprep.mubr.f32.mxu0 0.0
  %v557 = vand.u32 %v33, 4294901760
  %558 = vmatmul.mubr.f32.gmra.mrb[0].mxu0 %v557
  %v559 = vpop.f32.mrb[0].mxu0
  %v560 = vadd.f32 %v479, %v559
  %v561 = vpop.f32.mrb[0].mxu0
  %562 = vdwg.mxu0
  %v563 = vsel %vm28, %v554, 0.0
  %564 = vadd.xlane.f32.xlu0 %v563
  %v565 = vpop.xlane.xlu0 %564
  %v566 = vsel %vm28, %v560, 0.0
  %567 = vadd.xlane.f32.xlu0 %v566
  %v568 = vpop.xlane.xlu0 %567
  %v569 = vrcp.pop 32.0
  %v570 = vmul.f32 %v565, %v569
  %v571 = vmul.f32 %v568, %v569
  %v572 = vsub.f32 %v554, %v570
  %v573 = vsub.f32 %v560, %v571
  %v574 = vmul.f32 %v572, %v572
  %v575 = vmul.f32 %v573, %v573
  %v576 = vsel %vm28, %v574, 0.0
  %577 = vadd.xlane.f32.xlu0 %v576
  %v578 = vpop.xlane.xlu0 %577
  %v579 = vsel %vm28, %v575, 0.0
  %580 = vadd.xlane.f32.xlu0 %v579
  %v581 = vpop.xlane.xlu0 %580
  %v582 = vmul.f32 %v578, %v569
  %v583 = vmul.f32 %v581, %v569
  %v584 = vadd.f32 %v582, 1e-06
  %v585 = vadd.f32 %v583, 1e-06
  %v586 = vrsqrt.pop %v584
  %v587 = vrsqrt.pop %v585
  %v588 = vmul.f32 %v572, %v586
  %v589 = vmul.f32 %v573, %v587
  %v590 = vld [vmem:[%s3] sm:$0x1]
  %v592 = vlaneseq
  %v593 = vshrl.u32 %v592, 7
  %v594 = vsub.s32 0, %v593
  %v595 = vrot.slane %v590, %v594
  %v597 = vmul.f32 %v588, %v595
  %v598 = vmul.f32 %v589, %v595
  %v599 = vld [vmem:[%s4] sm:$0x1]
  %v601 = vlaneseq
  %v602 = vshrl.u32 %v601, 7
  %v603 = vsub.s32 0, %v602
  %v604 = vrot.slane %v599, %v603
  %v606 = vadd.f32 %v597, %v604
  %v607 = vadd.f32 %v598, %v604
  %608 = vst.msk [vmem:[%s5] sm:$0xff] %vm28, %v606
  %609 = vst.msk [vmem:[%s5 + $0x8] sm:$0xff] %vm28, %v607
  // Predicated region
  $region22: #{decoder_layer.15} parent=0 // pred_check
    _
  $region23: #{decoder_layer.15} parent=0 // pred_check_branch
    %611 = sbr.rel (0) target = $region25
  $region24: #{decoder_layer.15} parent=0 // pred_region
    _
  $region25: #{decoder_layer.15} parent=0 // pred_fallthru
    _
  // Predicated region
  $region26: #{decoder_layer.15} parent=0 // pred_check
    _
  $region27: #{decoder_layer.15} parent=0 // pred_check_branch
    %613 = sbr.rel (0) target = $region29
  $region28: #{decoder_layer.15} parent=0 // pred_region
    _
  $region29: #{decoder_layer.15} parent=0 // pred_fallthru
    _

// kernel: decoder_layer.14
$region0: #{decoder_layer.14}
  #allocation0 [shape = 'u32[]', space=smem, size = 0x4, offset = 0x4, fixed_abs, tag = 'smem constant byte address 0x4 - core index']
  #allocation1 [shape = 'u32[144,128]{1,0:T(1,128)}', space=vmem, size = 0x12000, scoped, tag = 'internal scratch']
  %s0 = inlined_call_operand.vmem [shape: f32[2,4,8,8], index: 0, kind: input, shape index: {}]
  %s1 = inlined_call_operand.vmem [shape: f32[2,4,8,8], index: 1, kind: input, shape index: {}]
  %s2 = inlined_call_operand.vmem [shape: f32[2,4,8,8], index: 2, kind: input, shape index: {}]
  %s3 = inlined_call_operand.vmem [shape: f32[2,8,8], index: 3, kind: input, shape index: {}]
  %s4 = inlined_call_operand.vmem [shape: f32[2,4,8,8], index: 4, kind: output, shape index: {0}]
  %s5 = inlined_call_operand.hbm [shape: f32[2,4,8,8], index: 5, kind: output, shape index: {1}]
  %6 = xla_tuple %s4, %s5
  %s7 = sld [smem:[#allocation0]]
  $region57: #{decoder_layer.14} parent=0
    _
  %s9 = ssub.s32 1, %s7
  %s10 = scalar_select 0, %s9, %s7
  $region1: #{decoder_layer.14} parent=0
    #allocation2 [shape = 'u8[8192]{0}', space=vmem, size = 0x2000, scoped, tag = 'output window, operand 1']
    #allocation3 [shape = 's32[2]{0}', space=sflag, size = 0x8, scoped, tag = 'scoped memory for decoder_layer.14']
    %11 = vsyncpa [#allocation3], 0
    %s12 = scalar_lea.sflag [#allocation3], 1
    %13 = vsyncpa %s12, 0
    loop: start=0, step=1, limit=10
    $region2: #{decoder_layer.14} parent=1 // loop_pre_header
      _
    $region3: #{decoder_layer.14} parent=1 // loop_header
      %s15 = sphi 0, %s19
      %p16 = scmp.ge.s32.totalorder %s15, 10
      %s22 = sphi 0, %s34
      %s23 = sphi 0, %s30
      %s24 = sphi 0, %s22
      %s25 = sphi 0, %s23
      %s26 = sphi 0, %s24
      %s27 = sphi 0, %s25
      %s39 = sphi 0, %s41
      %s42 = sphi 0, %s39
      %s43 = sphi 0, %s42
      %s59 = sphi 0, %s43
      %s67 = sphi 0, %s69
      %s70 = sphi 0, %s67
      %s71 = sphi 0, %s70
      %s87 = sphi 0, %s71
      %s95 = sphi 0, %s97
      %s98 = sphi 0, %s95
      %s99 = sphi 0, %s98
      %s115 = sphi 0, %s99
      %s121 = sphi 0, %s123
      %s124 = sphi 0, %s121
      %s125 = sphi 0, %s124
      %s141 = sphi 0, %s125
      %s149 = sphi 0, %s151
      %s152 = sphi 0, %s149
      %s153 = sphi 0, %s152
      %s169 = sphi 0, %s153
      %s177 = sphi 0, %s179
      %s180 = sphi 0, %s177
      %s181 = sphi 0, %s180
      %s197 = sphi 0, %s181
    $region4: #{decoder_layer.14} parent=1 // loop_header_branch
      %18 = sbr.rel (%p16) target = $region8
    $region5: #{decoder_layer.14} parent=1 // loop_body
      %s20 = ssub.s32 %s15, 1
      %s21 = ssub.s32 %s15, 2
      %s28 = sadd.s32 1, %s23
      %p29 = scmp.ge.s32.totalorder %s28, 4
      %s30 = scalar_select %p29, 0, %s28
      %s31 = sadd.s32 1, %s22
      %s32 = scalar_select %p29, %s31, %s22
      %p33 = scmp.ge.s32.totalorder %s32, 2
      %s34 = scalar_select %p33, 0, %s32
      %s35 = ssub.s32 %s22, %s34
      %s36 = ssub.s32 %s23, %s30
      %s37 = sor.u32 %s35, %s36
      %p38 = scmp.eq.s32.totalorder %s37, 0
      %s40 = sadd.s32 %s39, 1
      %s41 = scalar_select %p38, %s39, %s40
      %p44 = pneg %p38
      %p45 = scmp.eq.s32.totalorder %s15, 7
      %p46 = por %p44, %p45
      %p47 = scmp.ne.s32.totalorder %s39, %s42
      %p48 = scmp.eq.s32.totalorder %s15, 0
      %p49 = por %p47, %p48
      %p50 = scmp.ne.s32.totalorder %s39, %s42
      %p51 = scmp.eq.s32.totalorder %s20, 7
      %p52 = por %p50, %p51
      %p53 = scmp.ne.s32.totalorder %s42, %s43
      %p54 = scmp.eq.s32.totalorder %s20, 0
      %p55 = por %p53, %p54
      %p56 = scmp.ne.s32.totalorder %s42, %s43
      %p57 = scmp.eq.s32.totalorder %s21, 7
      %p58 = por %p56, %p57
      %p60 = scmp.ne.s32.totalorder %s43, %s59
      %p61 = scmp.eq.s32.totalorder %s21, 0
      %p62 = por %p60, %p61
      %s63 = ssub.s32 %s22, %s34
      %s64 = ssub.s32 %s23, %s30
      %s65 = sor.u32 %s63, %s64
      %p66 = scmp.eq.s32.totalorder %s65, 0
      %s68 = sadd.s32 %s67, 1
      %s69 = scalar_select %p66, %s67, %s68
      %p72 = pneg %p66
      %p73 = scmp.eq.s32.totalorder %s15, 7
      %p74 = por %p72, %p73
      %p75 = scmp.ne.s32.totalorder %s67, %s70
      %p76 = scmp.eq.s32.totalorder %s15, 0
      %p77 = por %p75, %p76
      %p78 = scmp.ne.s32.totalorder %s67, %s70
      %p79 = scmp.eq.s32.totalorder %s20, 7
      %p80 = por %p78, %p79
      %p81 = scmp.ne.s32.totalorder %s70, %s71
      %p82 = scmp.eq.s32.totalorder %s20, 0
      %p83 = por %p81, %p82
      %p84 = scmp.ne.s32.totalorder %s70, %s71
      %p85 = scmp.eq.s32.totalorder %s21, 7
      %p86 = por %p84, %p85
      %p88 = scmp.ne.s32.totalorder %s71, %s87
      %p89 = scmp.eq.s32.totalorder %s21, 0
      %p90 = por %p88, %p89
      %s91 = ssub.s32 %s22, %s34
      %s92 = ssub.s32 %s23, %s30
      %s93 = sor.u32 %s91, %s92
      %p94 = scmp.eq.s32.totalorder %s93, 0
      %s96 = sadd.s32 %s95, 1
      %s97 = scalar_select %p94, %s95, %s96
      %p100 = pneg %p94
      %p101 = scmp.eq.s32.totalorder %s15, 7
      %p102 = por %p100, %p101
      %p103 = scmp.ne.s32.totalorder %s95, %s98
      %p104 = scmp.eq.s32.totalorder %s15, 0
      %p105 = por %p103, %p104
      %p106 = scmp.ne.s32.totalorder %s95, %s98
      %p107 = scmp.eq.s32.totalorder %s20, 7
      %p108 = por %p106, %p107
      %p109 = scmp.ne.s32.totalorder %s98, %s99
      %p110 = scmp.eq.s32.totalorder %s20, 0
      %p111 = por %p109, %p110
      %p112 = scmp.ne.s32.totalorder %s98, %s99
      %p113 = scmp.eq.s32.totalorder %s21, 7
      %p114 = por %p112, %p113
      %p116 = scmp.ne.s32.totalorder %s99, %s115
      %p117 = scmp.eq.s32.totalorder %s21, 0
      %p118 = por %p116, %p117
      %s119 = ssub.s32 %s22, %s34
      %p120 = scmp.eq.s32.totalorder %s119, 0
      %s122 = sadd.s32 %s121, 1
      %s123 = scalar_select %p120, %s121, %s122
      %p126 = pneg %p120
      %p127 = scmp.eq.s32.totalorder %s15, 7
      %p128 = por %p126, %p127
      %p129 = scmp.ne.s32.totalorder %s121, %s124
      %p130 = scmp.eq.s32.totalorder %s15, 0
      %p131 = por %p129, %p130
      %p132 = scmp.ne.s32.totalorder %s121, %s124
      %p133 = scmp.eq.s32.totalorder %s20, 7
      %p134 = por %p132, %p133
      %p135 = scmp.ne.s32.totalorder %s124, %s125
      %p136 = scmp.eq.s32.totalorder %s20, 0
      %p137 = por %p135, %p136
      %p138 = scmp.ne.s32.totalorder %s124, %s125
      %p139 = scmp.eq.s32.totalorder %s21, 7
      %p140 = por %p138, %p139
      %p142 = scmp.ne.s32.totalorder %s125, %s141
      %p143 = scmp.eq.s32.totalorder %s21, 0
      %p144 = por %p142, %p143
      %s145 = ssub.s32 %s22, %s34
      %s146 = ssub.s32 %s23, %s30
      %s147 = sor.u32 %s145, %s146
      %p148 = scmp.eq.s32.totalorder %s147, 0
      %s150 = sadd.s32 %s149, 1
      %s151 = scalar_select %p148, %s149, %s150
      %p154 = pneg %p148
      %p155 = scmp.eq.s32.totalorder %s15, 7
      %p156 = por %p154, %p155
      %p157 = scmp.ne.s32.totalorder %s149, %s152
      %p158 = scmp.eq.s32.totalorder %s15, 0
      %p159 = por %p157, %p158
      %p160 = scmp.ne.s32.totalorder %s149, %s152
      %p161 = scmp.eq.s32.totalorder %s20, 7
      %p162 = por %p160, %p161
      %p163 = scmp.ne.s32.totalorder %s152, %s153
      %p164 = scmp.eq.s32.totalorder %s20, 0
      %p165 = por %p163, %p164
      %p166 = scmp.ne.s32.totalorder %s152, %s153
      %p167 = scmp.eq.s32.totalorder %s21, 7
      %p168 = por %p166, %p167
      %p170 = scmp.ne.s32.totalorder %s153, %s169
      %p171 = scmp.eq.s32.totalorder %s21, 0
      %p172 = por %p170, %p171
      %s173 = ssub.s32 %s22, %s34
      %s174 = ssub.s32 %s23, %s30
      %s175 = sor.u32 %s173, %s174
      %p176 = scmp.eq.s32.totalorder %s175, 0
      %s178 = sadd.s32 %s177, 1
      %s179 = scalar_select %p176, %s177, %s178
      %p182 = pneg %p176
      %p183 = scmp.eq.s32.totalorder %s15, 7
      %p184 = por %p182, %p183
      %p185 = scmp.ne.s32.totalorder %s177, %s180
      %p186 = scmp.eq.s32.totalorder %s15, 0
      %p187 = por %p185, %p186
      %p188 = scmp.ne.s32.totalorder %s177, %s180
      %p189 = scmp.eq.s32.totalorder %s20, 7
      %p190 = por %p188, %p189
      %p191 = scmp.ne.s32.totalorder %s180, %s181
      %p192 = scmp.eq.s32.totalorder %s20, 0
      %p193 = por %p191, %p192
      %p194 = scmp.ne.s32.totalorder %s180, %s181
      %p195 = scmp.eq.s32.totalorder %s21, 7
      %p196 = por %p194, %p195
      %p198 = scmp.ne.s32.totalorder %s181, %s197
      %p199 = scmp.eq.s32.totalorder %s21, 0
      %p200 = por %p198, %p199
      %p201 = scmp.le.s32.totalorder 1, %s15
      %p202 = scmp.lt.s32.totalorder %s15, 9
      %p203 = pnand %p201, %p202
      %p204 = pneg %p203
      // Predicated region
      $region9: #{decoder_layer.14} parent=5 // pred_check
        _
      $region10: #{decoder_layer.14} parent=5 // pred_check_branch
        %206 = sbr.rel (%p203) target = $region12
      $region11: #{decoder_layer.14} parent=5 // pred_region
        %s207 = ssub.s32 %s15, 1
      $region12: #{decoder_layer.14} parent=5 // pred_fallthru
        _
      %p208 = scmp.lt.s32.totalorder %s15, 8
      // Predicated region
      $region13: #{decoder_layer.14} parent=5 // pred_check
        %p209 = pneg %p208
      $region14: #{decoder_layer.14} parent=5 // pred_check_branch
        %211 = sbr.rel (%p209) target = $region16
      $region15: #{decoder_layer.14} parent=5 // pred_region
        // Predicated region
        $region17: #{decoder_layer.14} parent=15 // pred_check
          %p212 = pneg %p49
        $region18: #{decoder_layer.14} parent=15 // pred_check_branch
          %214 = sbr.rel (%p212) target = $region20
        $region19: #{decoder_layer.14} parent=15 // pred_region
          %p215 = scmp.lt.s32.totalorder %s22, 1
          %s216 = scalar_select %p215, %s22, 1
          %p217 = scmp.lt.s32.totalorder %s23, 3
          %s218 = scalar_select %p217, %s23, 3
          %s219 = smul.addr %s216, 4
          %s220 = sadd.s32 %s218, %s219
          %s221 = smul.addr %s220, 8
          %s222 = scalar_lea.vmem %s0, %s221
        $region20: #{decoder_layer.14} parent=15 // pred_fallthru
          _
        // Predicated region
        $region21: #{decoder_layer.14} parent=15 // pred_check
          %p223 = pneg %p77
        $region22: #{decoder_layer.14} parent=15 // pred_check_branch
          %225 = sbr.rel (%p223) target = $region24
        $region23: #{decoder_layer.14} parent=15 // pred_region
          %p226 = scmp.lt.s32.totalorder %s22, 1
          %s227 = scalar_select %p226, %s22, 1
          %p228 = scmp.lt.s32.totalorder %s23, 3
          %s229 = scalar_select %p228, %s23, 3
          %s230 = smul.addr %s227, 4
          %s231 = sadd.s32 %s229, %s230
          %s232 = smul.addr %s231, 8
          %s233 = scalar_lea.vmem %s1, %s232
        $region24: #{decoder_layer.14} parent=15 // pred_fallthru
          _
        // Predicated region
        $region25: #{decoder_layer.14} parent=15 // pred_check
          %p234 = pneg %p105
        $region26: #{decoder_layer.14} parent=15 // pred_check_branch
          %236 = sbr.rel (%p234) target = $region28
        $region27: #{decoder_layer.14} parent=15 // pred_region
          %p237 = scmp.lt.s32.totalorder %s22, 1
          %s238 = scalar_select %p237, %s22, 1
          %p239 = scmp.lt.s32.totalorder %s23, 3
          %s240 = scalar_select %p239, %s23, 3
          %s241 = smul.addr %s238, 4
          %s242 = sadd.s32 %s240, %s241
          %s243 = smul.addr %s242, 8
          %s244 = scalar_lea.vmem %s2, %s243
        $region28: #{decoder_layer.14} parent=15 // pred_fallthru
          _
        // Predicated region
        $region29: #{decoder_layer.14} parent=15 // pred_check
          %p245 = pneg %p131
        $region30: #{decoder_layer.14} parent=15 // pred_check_branch
          %247 = sbr.rel (%p245) target = $region32
        $region31: #{decoder_layer.14} parent=15 // pred_region
          %p248 = scmp.lt.s32.totalorder %s22, 1
          %s249 = scalar_select %p248, %s22, 1
          %s250 = smul.addr %s249, 8
          %s251 = scalar_lea.vmem %s3, %s250
        $region32: #{decoder_layer.14} parent=15 // pred_fallthru
          _
      $region16: #{decoder_layer.14} parent=5 // pred_fallthru
        _
      %p252 = scmp.le.s32.totalorder 1, %s15
      %p253 = scmp.lt.s32.totalorder %s15, 9
      %p254 = pnand %p252, %p253
      %p255 = pneg %p254
      // Predicated region
      $region33: #{decoder_layer.14} parent=5 // pred_check
        _
      $region34: #{decoder_layer.14} parent=5 // pred_check_branch
        %257 = sbr.rel (%p254) target = $region36
      $region35: #{decoder_layer.14} parent=5 // pred_region
        %s258 = ssub.s32 %s15, 1
        %p259 = scmp.lt.s32.totalorder %s24, 1
        %s260 = scalar_select %p259, %s24, 1
        %p261 = scmp.lt.s32.totalorder %s25, 3
        %s262 = scalar_select %p261, %s25, 3
        %s263 = smul.addr %s260, 4
        %s264 = sadd.s32 %s262, %s263
        %s265 = smul.addr %s264, 8
        %s266 = scalar_lea.vmem %s0, %s265
        %p267 = pneg %p55
        %p268 = pneg %p52
        %p269 = scmp.lt.s32.totalorder %s24, 1
        %s270 = scalar_select %p269, %s24, 1
        %p271 = scmp.lt.s32.totalorder %s25, 3
        %s272 = scalar_select %p271, %s25, 3
        %s273 = smul.addr %s270, 4
        %s274 = sadd.s32 %s272, %s273
        %s275 = smul.addr %s274, 8
        %s276 = scalar_lea.vmem %s1, %s275
        %p277 = pneg %p83
        %p278 = pneg %p80
        %p279 = scmp.lt.s32.totalorder %s24, 1
        %s280 = scalar_select %p279, %s24, 1
        %p281 = scmp.lt.s32.totalorder %s25, 3
        %s282 = scalar_select %p281, %s25, 3
        %s283 = smul.addr %s280, 4
        %s284 = sadd.s32 %s282, %s283
        %s285 = smul.addr %s284, 8
        %s286 = scalar_lea.vmem %s2, %s285
        %p287 = pneg %p111
        %p288 = pneg %p108
        %p289 = scmp.lt.s32.totalorder %s24, 1
        %s290 = scalar_select %p289, %s24, 1
        %s291 = smul.addr %s290, 8
        %s292 = scalar_lea.vmem %s3, %s291
        %p293 = pneg %p137
        %p294 = pneg %p134
        %p295 = pneg %p165
        %p296 = pneg %p162
        %p297 = scmp.lt.s32.totalorder %s24, 1
        %s298 = scalar_select %p297, %s24, 1
        %p299 = scmp.lt.s32.totalorder %s25, 3
        %s300 = scalar_select %p299, %s25, 3
        %s301 = smul.addr %s298, 4
        %s302 = sadd.s32 %s300, %s301
        %s303 = smul.addr %s302, 8
        %s304 = scalar_lea.vmem %s4, %s303
        %p305 = pneg %p193
        %p306 = pneg %p190
        %s307 = sand.u32 %s180, 1
        %s308 = scalar_lea.sflag [#allocation3], %s307
        %s309 = sand.u32 %s180, 1
        %s310 = smul.addr %s309, 8
        %s311 = scalar_lea.vmem [#allocation2], %s310
        %p312 = scmp.lt.s32.totalorder %s24, 1
        %s313 = scalar_select %p312, %s24, 1
        %p314 = scmp.lt.s32.totalorder %s25, 3
        %s315 = scalar_select %p314, %s25, 3
        %s316 = smul.addr %s313, 4
        %s317 = sadd.s32 %s315, %s316
        %s318 = smul.addr %s317, 8
        %s319 = scalar_lea.vmem %s0, %s318
        %p320 = scmp.lt.s32.totalorder %s24, 1
        %s321 = scalar_select %p320, %s24, 1
        %p322 = scmp.lt.s32.totalorder %s25, 3
        %s323 = scalar_select %p322, %s25, 3
        %s324 = smul.addr %s321, 4
        %s325 = sadd.s32 %s323, %s324
        %s326 = smul.addr %s325, 8
        %s327 = scalar_lea.vmem %s1, %s326
        %p328 = scmp.lt.s32.totalorder %s24, 1
        %s329 = scalar_select %p328, %s24, 1
        %p330 = scmp.lt.s32.totalorder %s25, 3
        %s331 = scalar_select %p330, %s25, 3
        %s332 = smul.addr %s329, 4
        %s333 = sadd.s32 %s331, %s332
        %s334 = smul.addr %s333, 8
        %s335 = scalar_lea.vmem %s2, %s334
        %p336 = scmp.lt.s32.totalorder %s24, 1
        %s337 = scalar_select %p336, %s24, 1
        %s338 = smul.addr %s337, 8
        %s339 = scalar_lea.vmem %s3, %s338
        %p340 = scmp.lt.s32.totalorder %s24, 1
        %s341 = scalar_select %p340, %s24, 1
        %p342 = scmp.lt.s32.totalorder %s25, 3
        %s343 = scalar_select %p342, %s25, 3
        %s344 = smul.addr %s341, 4
        %s345 = sadd.s32 %s343, %s344
        %s346 = smul.addr %s345, 8
        %s347 = scalar_lea.vmem %s4, %s346
        %v348 = vld [vmem:[%s319] sm:$0xff]
        %v349 = vld [vmem:[%s327] sm:$0xff]
        %v350 = vld [vmem:[%s335] sm:$0xff]
        %v351 = vld [vmem:[%s339] sm:$0xff]
        %v352 = vmul.f32 %v348, 0.35355338
        %vm353 = vcmask 64512
        %v355 = vsel %vm353, %v352, 0
        %v358 = vsel %vm353, %v349, 0
        %360 = vmatprep.subr.mxu0 0.0
        %v361 = vand.u32 %v358, 4294901760
        %362 = vmatpush1.xpose.msra.mxu0 %v361
        %363 = vmatprep.subr.mxu0 0.0
        %364 = vmatpush1.xpose.msra.mxu0 0.0
        %365 = vmatprep.subr.mxu0 0.0
        %366 = vmatpush1.xpose.msra.mxu0 0.0
        %367 = vmatprep.subr.mxu0 0.0
        %368 = vmatpush1.xpose.msra.mxu0 0.0
        %369 = vmatprep.subr.mxu0 0.0
        %370 = vmatpush1.xpose.msra.mxu0 0.0
        %371 = vmatprep.subr.mxu0 0.0
        %372 = vmatpush1.xpose.msra.mxu0 0.0
        %373 = vmatprep.subr.mxu0 0.0
        %374 = vmatpush1.xpose.msra.mxu0 0.0
        %375 = vmatprep.subr.mxu0 0.0
        %376 = vmatpush1.xpose.msra.mxu0 0.0
        %377 = vmatprep.subr.mxu0 0.0
        %378 = vmatpush1.xpose.msra.mxu0 0.0
        %379 = vmatprep.subr.mxu0 0.0
        %380 = vmatpush1.xpose.msra.mxu0 0.0
        %381 = vmatprep.subr.mxu0 0.0
        %382 = vmatpush1.xpose.msra.mxu0 0.0
        %383 = vmatprep.subr.mxu0 0.0
        %384 = vmatpush1.xpose.msra.mxu0 0.0
        %385 = vmatprep.subr.mxu0 0.0
        %386 = vmatpush1.xpose.msra.mxu0 0.0
        %387 = vmatprep.subr.mxu0 0.0
        %388 = vmatpush1.xpose.msra.mxu0 0.0
        %389 = vmatprep.subr.mxu0 0.0
        %390 = vmatpush1.xpose.msra.mxu0 0.0
        %391 = vmatprep.subr.mxu0 0.0
        %392 = vmatpush1.xpose.msra.mxu0 0.0
        %393 = vmatprep.subr.mxu0 0.0
        %394 = vmatpush1.xpose.msra.mxu0 0.0
        %395 = vmatprep.subr.mxu0 0.0
        %396 = vmatpush1.xpose.msra.mxu0 0.0
        %397 = vmatprep.subr.mxu0 0.0
        %398 = vmatpush1.xpose.msra.mxu0 0.0
        %399 = vmatprep.subr.mxu0 0.0
        %400 = vmatpush1.xpose.msra.mxu0 0.0
        %401 = vmatprep.subr.mxu0 0.0
        %402 = vmatpush1.xpose.msra.mxu0 0.0
        %403 = vmatprep.subr.mxu0 0.0
        %404 = vmatpush1.xpose.msra.mxu0 0.0
        %405 = vmatprep.subr.mxu0 0.0
        %406 = vmatpush1.xpose.msra.mxu0 0.0
        %407 = vmatprep.subr.mxu0 0.0
        %408 = vmatpush1.xpose.msra.mxu0 0.0
        %409 = vmatprep.subr.mxu0 0.0
        %410 = vmatpush1.xpose.msra.mxu0 0.0
        %411 = vmatprep.subr.mxu0 0.0
        %412 = vmatpush1.xpose.msra.mxu0 0.0
        %413 = vmatprep.subr.mxu0 0.0
        %414 = vmatpush1.xpose.msra.mxu0 0.0
        %415 = vmatprep.subr.mxu0 0.0
        %416 = vmatpush1.xpose.msra.mxu0 0.0
        %417 = vmatprep.subr.mxu0 0.0
        %418 = vmatpush1.xpose.msra.mxu0 0.0
        %419 = vmatprep.subr.mxu0 0.0
        %420 = vmatpush1.xpose.msra.mxu0 0.0
        %421 = vmatprep.subr.mxu0 0.0
        %422 = vmatpush1.xpose.msra.mxu0 0.0
        %423 = vmatprep.subr.mxu0 0.0
        %424 = vmatpush1.xpose.msra.mxu0 0.0
        %425 = vmatprep.mubr.f32.mxu0 0.0
        %v426 = vand.u32 %v355, 4294901760
        %v427 = vsub.f32 %v355, %v426
        %v428 = vand.u32 %v427, 4294901760
        %v429 = vsub.f32 %v427, %v428
        %v430 = vand.u32 %v429, 4294901760
        %431 = vmatmul.mubr.f32.gmra.mrb[0].mxu0 %v430
        %v432 = vpop.f32.mrb[0].mxu0
        %v433 = vadd.f32 0.0, %v432
        %v434 = vpop.f32.mrb[0].mxu0
        %435 = vdwg.mxu0
        %436 = vmatprep.subr.mxu0 0.0
        %v437 = vand.u32 %v358, 4294901760
        %v438 = vsub.f32 %v358, %v437
        %v439 = vand.u32 %v438, 4294901760
        %v440 = vsub.f32 %v438, %v439
        %v441 = vand.u32 %v440, 4294901760
        %442 = vmatpush1.xpose.msra.mxu0 %v441
        %443 = vmatprep.subr.mxu0 0.0
        %444 = vmatpush1.xpose.msra.mxu0 0.0
        %445 = vmatprep.subr.mxu0 0.0
        %446 = vmatpush1.xpose.msra.mxu0 0.0
        %447 = vmatprep.subr.mxu0 0.0
        %448 = vmatpush1.xpose.msra.mxu0 0.0
        %449 = vmatprep.subr.mxu0 0.0
        %450 = vmatpush1.xpose.msra.mxu0 0.0
        %451 = vmatprep.subr.mxu0 0.0
        %452 = vmatpush1.xpose.msra.mxu0 0.0
        %453 = vmatprep.subr.mxu0 0.0
        %454 = vmatpush1.xpose.msra.mxu0 0.0
        %455 = vmatprep.subr.mxu0 0.0
        %456 = vmatpush1.xpose.msra.mxu0 0.0
        %457 = vmatprep.subr.mxu0 0.0
        %458 = vmatpush1.xpose.msra.mxu0 0.0
        %459 = vmatprep.subr.mxu0 0.0
        %460 = vmatpush1.xpose.msra.mxu0 0.0
        %461 = vmatprep.subr.mxu0 0.0
        %462 = vmatpush1.xpose.msra.mxu0 0.0
        %463 = vmatprep.subr.mxu0 0.0
        %464 = vmatpush1.xpose.msra.mxu0 0.0
        %465 = vmatprep.subr.mxu0 0.0
        %466 = vmatpush1.xpose.msra.mxu0 0.0
        %467 = vmatprep.subr.mxu0 0.0
        %468 = vmatpush1.xpose.msra.mxu0 0.0
        %469 = vmatprep.subr.mxu0 0.0
        %470 = vmatpush1.xpose.msra.mxu0 0.0
        %471 = vmatprep.subr.mxu0 0.0
        %472 = vmatpush1.xpose.msra.mxu0 0.0
        %473 = vmatprep.subr.mxu0 0.0
        %474 = vmatpush1.xpose.msra.mxu0 0.0
        %475 = vmatprep.subr.mxu0 0.0
        %476 = vmatpush1.xpose.msra.mxu0 0.0
        %477 = vmatprep.subr.mxu0 0.0
        %478 = vmatpush1.xpose.msra.mxu0 0.0
        %479 = vmatprep.subr.mxu0 0.0
        %480 = vmatpush1.xpose.msra.mxu0 0.0
        %481 = vmatprep.subr.mxu0 0.0
        %482 = vmatpush1.xpose.msra.mxu0 0.0
        %483 = vmatprep.subr.mxu0 0.0
        %484 = vmatpush1.xpose.msra.mxu0 0.0
        %485 = vmatprep.subr.mxu0 0.0
        %486 = vmatpush1.xpose.msra.mxu0 0.0
        %487 = vmatprep.subr.mxu0 0.0
        %488 = vmatpush1.xpose.msra.mxu0 0.0
        %489 = vmatprep.subr.mxu0 0.0
        %490 = vmatpush1.xpose.msra.mxu0 0.0
        %491 = vmatprep.subr.mxu0 0.0
        %492 = vmatpush1.xpose.msra.mxu0 0.0
        %493 = vmatprep.subr.mxu0 0.0
        %494 = vmatpush1.xpose.msra.mxu0 0.0
        %495 = vmatprep.subr.mxu0 0.0
        %496 = vmatpush1.xpose.msra.mxu0 0.0
        %497 = vmatprep.subr.mxu0 0.0
        %498 = vmatpush1.xpose.msra.mxu0 0.0
        %499 = vmatprep.subr.mxu0 0.0
        %500 = vmatpush1.xpose.msra.mxu0 0.0
        %501 = vmatprep.subr.mxu0 0.0
        %502 = vmatpush1.xpose.msra.mxu0 0.0
        %503 = vmatprep.subr.mxu0 0.0
        %504 = vmatpush1.xpose.msra.mxu0 0.0
        %505 = vmatprep.mubr.f32.mxu0 0.0
        %v506 = vand.u32 %v355, 4294901760
        %507 = vmatmul.mubr.f32.gmra.mrb[0].mxu0 %v506
        %v508 = vpop.f32.mrb[0].mxu0
        %v509 = vadd.f32 %v433, %v508
        %v510 = vpop.f32.mrb[0].mxu0
        %511 = vdwg.mxu0
        %512 = vmatprep.subr.mxu0 0.0
        %v513 = vand.u32 %v358, 4294901760
        %v514 = vsub.f32 %v358, %v513
        %515 = vmatpush1.xpose.msra.mxu0 %v514
        %516 = vmatprep.subr.mxu0 0.0
        %517 = vmatpush1.xpose.msra.mxu0 0.0
        %518 = vmatprep.subr.mxu0 0.0
        %519 = vmatpush1.xpose.msra.mxu0 0.0
        %520 = vmatprep.subr.mxu0 0.0
        %521 = vmatpush1.xpose.msra.mxu0 0.0
        %522 = vmatprep.subr.mxu0 0.0
        %523 = vmatpush1.xpose.msra.mxu0 0.0
        %524 = vmatprep.subr.mxu0 0.0
        %525 = vmatpush1.xpose.msra.mxu0 0.0
        %526 = vmatprep.subr.mxu0 0.0
        %527 = vmatpush1.xpose.msra.mxu0 0.0
        %528 = vmatprep.subr.mxu0 0.0
        %529 = vmatpush1.xpose.msra.mxu0 0.0
        %530 = vmatprep.subr.mxu0 0.0
        %531 = vmatpush1.xpose.msra.mxu0 0.0
        %532 = vmatprep.subr.mxu0 0.0
        %533 = vmatpush1.xpose.msra.mxu0 0.0
        %534 = vmatprep.subr.mxu0 0.0
        %535 = vmatpush1.xpose.msra.mxu0 0.0
        %536 = vmatprep.subr.mxu0 0.0
        %537 = vmatpush1.xpose.msra.mxu0 0.0
        %538 = vmatprep.subr.mxu0 0.0
        %539 = vmatpush1.xpose.msra.mxu0 0.0
        %540 = vmatprep.subr.mxu0 0.0
        %541 = vmatpush1.xpose.msra.mxu0 0.0
        %542 = vmatprep.subr.mxu0 0.0
        %543 = vmatpush1.xpose.msra.mxu0 0.0
        %544 = vmatprep.subr.mxu0 0.0
        %545 = vmatpush1.xpose.msra.mxu0 0.0
        %546 = vmatprep.subr.mxu0 0.0
        %547 = vmatpush1.xpose.msra.mxu0 0.0
        %548 = vmatprep.subr.mxu0 0.0
        %549 = vmatpush1.xpose.msra.mxu0 0.0
        %550 = vmatprep.subr.mxu0 0.0
        %551 = vmatpush1.xpose.msra.mxu0 0.0
        %552 = vmatprep.subr.mxu0 0.0
        %553 = vmatpush1.xpose.msra.mxu0 0.0
        %554 = vmatprep.subr.mxu0 0.0
        %555 = vmatpush1.xpose.msra.mxu0 0.0
        %556 = vmatprep.subr.mxu0 0.0
        %557 = vmatpush1.xpose.msra.mxu0 0.0
        %558 = vmatprep.subr.mxu0 0.0
        %559 = vmatpush1.xpose.msra.mxu0 0.0
        %560 = vmatprep.subr.mxu0 0.0
        %561 = vmatpush1.xpose.msra.mxu0 0.0
        %562 = vmatprep.subr.mxu0 0.0
        %563 = vmatpush1.xpose.msra.mxu0 0.0
        %564 = vmatprep.subr.mxu0 0.0
        %565 = vmatpush1.xpose.msra.mxu0 0.0
        %566 = vmatprep.subr.mxu0 0.0
        %567 = vmatpush1.xpose.msra.mxu0 0.0
        %568 = vmatprep.subr.mxu0 0.0
        %569 = vmatpush1.xpose.msra.mxu0 0.0
        %570 = vmatprep.subr.mxu0 0.0
        %571 = vmatpush1.xpose.msra.mxu0 0.0
        %572 = vmatprep.subr.mxu0 0.0
        %573 = vmatpush1.xpose.msra.mxu0 0.0
        %574 = vmatprep.subr.mxu0 0.0
        %575 = vmatpush1.xpose.msra.mxu0 0.0
        %576 = vmatprep.subr.mxu0 0.0
        %577 = vmatpush1.xpose.msra.mxu0 0.0
        %578 = vmatprep.mubr.f32.mxu0 0.0
        %v579 = vand.u32 %v355, 4294901760
        %v580 = vsub.f32 %v355, %v579
        %581 = vmatmul.mubr.f32.gmra.mrb[0].mxu0 %v580
        %v582 = vpop.f32.mrb[0].mxu0
        %v583 = vadd.f32 %v509, %v582
        %v584 = vpop.f32.mrb[0].mxu0
        %585 = vdwg.mxu0
        %586 = vmatprep.subr.mxu0 0.0
        %v587 = vand.u32 %v358, 4294901760
        %588 = vmatpush1.xpose.msra.mxu0 %v587
        %589 = vmatprep.subr.mxu0 0.0
        %590 = vmatpush1.xpose.msra.mxu0 0.0
        %591 = vmatprep.subr.mxu0 0.0
        %592 = vmatpush1.xpose.msra.mxu0 0.0
        %593 = vmatprep.subr.mxu0 0.0
        %594 = vmatpush1.xpose.msra.mxu0 0.0
        %595 = vmatprep.subr.mxu0 0.0
        %596 = vmatpush1.xpose.msra.mxu0 0.0
        %597 = vmatprep.subr.mxu0 0.0
        %598 = vmatpush1.xpose.msra.mxu0 0.0
        %599 = vmatprep.subr.mxu0 0.0
        %600 = vmatpush1.xpose.msra.mxu0 0.0
        %601 = vmatprep.subr.mxu0 0.0
        %602 = vmatpush1.xpose.msra.mxu0 0.0
        %603 = vmatprep.subr.mxu0 0.0
        %604 = vmatpush1.xpose.msra.mxu0 0.0
        %605 = vmatprep.subr.mxu0 0.0
        %606 = vmatpush1.xpose.msra.mxu0 0.0
        %607 = vmatprep.subr.mxu0 0.0
        %608 = vmatpush1.xpose.msra.mxu0 0.0
        %609 = vmatprep.subr.mxu0 0.0
        %610 = vmatpush1.xpose.msra.mxu0 0.0
        %611 = vmatprep.subr.mxu0 0.0
        %612 = vmatpush1.xpose.msra.mxu0 0.0
        %613 = vmatprep.subr.mxu0 0.0
        %614 = vmatpush1.xpose.msra.mxu0 0.0
        %615 = vmatprep.subr.mxu0 0.0
        %616 = vmatpush1.xpose.msra.mxu0 0.0
        %617 = vmatprep.subr.mxu0 0.0
        %618 = vmatpush1.xpose.msra.mxu0 0.0
        %619 = vmatprep.subr.mxu0 0.0
        %620 = vmatpush1.xpose.msra.mxu0 0.0
        %621 = vmatprep.subr.mxu0 0.0
        %622 = vmatpush1.xpose.msra.mxu0 0.0
        %623 = vmatprep.subr.mxu0 0.0
        %624 = vmatpush1.xpose.msra.mxu0 0.0
        %625 = vmatprep.subr.mxu0 0.0
        %626 = vmatpush1.xpose.msra.mxu0 0.0
        %627 = vmatprep.subr.mxu0 0.0
        %628 = vmatpush1.xpose.msra.mxu0 0.0
        %629 = vmatprep.subr.mxu0 0.0
        %630 = vmatpush1.xpose.msra.mxu0 0.0
        %631 = vmatprep.subr.mxu0 0.0
        %632 = vmatpush1.xpose.msra.mxu0 0.0
        %633 = vmatprep.subr.mxu0 0.0
        %634 = vmatpush1.xpose.msra.mxu0 0.0
        %635 = vmatprep.subr.mxu0 0.0
        %636 = vmatpush1.xpose.msra.mxu0 0.0
        %637 = vmatprep.subr.mxu0 0.0
        %638 = vmatpush1.xpose.msra.mxu0 0.0
        %639 = vmatprep.subr.mxu0 0.0
        %640 = vmatpush1.xpose.msra.mxu0 0.0
        %641 = vmatprep.subr.mxu0 0.0
        %642 = vmatpush1.xpose.msra.mxu0 0.0
        %643 = vmatprep.subr.mxu0 0.0
        %644 = vmatpush1.xpose.msra.mxu0 0.0
        %645 = vmatprep.subr.mxu0 0.0
        %646 = vmatpush1.xpose.msra.mxu0 0.0
        %647 = vmatprep.subr.mxu0 0.0
        %648 = vmatpush1.xpose.msra.mxu0 0.0
        %649 = vmatprep.subr.mxu0 0.0
        %650 = vmatpush1.xpose.msra.mxu0 0.0
        %651 = vmatprep.mubr.f32.mxu0 0.0
        %v652 = vand.u32 %v355, 4294901760
        %v653 = vsub.f32 %v355, %v652
        %v654 = vand.u32 %v653, 4294901760
        %655 = vmatmul.mubr.f32.gmra.mrb[0].mxu0 %v654
        %v656 = vpop.f32.mrb[0].mxu0
        %v657 = vadd.f32 %v583, %v656
        %v658 = vpop.f32.mrb[0].mxu0
        %659 = vdwg.mxu0
        %660 = vmatprep.subr.mxu0 0.0
        %v661 = vand.u32 %v358, 4294901760
        %v662 = vsub.f32 %v358, %v661
        %v663 = vand.u32 %v662, 4294901760
        %664 = vmatpush1.xpose.msra.mxu0 %v663
        %665 = vmatprep.subr.mxu0 0.0
        %666 = vmatpush1.xpose.msra.mxu0 0.0
        %667 = vmatprep.subr.mxu0 0.0
        %668 = vmatpush1.xpose.msra.mxu0 0.0
        %669 = vmatprep.subr.mxu0 0.0
        %670 = vmatpush1.xpose.msra.mxu0 0.0
        %671 = vmatprep.subr.mxu0 0.0
        %672 = vmatpush1.xpose.msra.mxu0 0.0
        %673 = vmatprep.subr.mxu0 0.0
        %674 = vmatpush1.xpose.msra.mxu0 0.0
        %675 = vmatprep.subr.mxu0 0.0
        %676 = vmatpush1.xpose.msra.mxu0 0.0
        %677 = vmatprep.subr.mxu0 0.0
        %678 = vmatpush1.xpose.msra.mxu0 0.0
        %679 = vmatprep.subr.mxu0 0.0
        %680 = vmatpush1.xpose.msra.mxu0 0.0
        %681 = vmatprep.subr.mxu0 0.0
        %682 = vmatpush1.xpose.msra.mxu0 0.0
        %683 = vmatprep.subr.mxu0 0.0
        %684 = vmatpush1.xpose.msra.mxu0 0.0
        %685 = vmatprep.subr.mxu0 0.0
        %686 = vmatpush1.xpose.msra.mxu0 0.0
        %687 = vmatprep.subr.mxu0 0.0
        %688 = vmatpush1.xpose.msra.mxu0 0.0
        %689 = vmatprep.subr.mxu0 0.0
        %690 = vmatpush1.xpose.msra.mxu0 0.0
        %691 = vmatprep.subr.mxu0 0.0
        %692 = vmatpush1.xpose.msra.mxu0 0.0
        %693 = vmatprep.subr.mxu0 0.0
        %694 = vmatpush1.xpose.msra.mxu0 0.0
        %695 = vmatprep.subr.mxu0 0.0
        %696 = vmatpush1.xpose.msra.mxu0 0.0
        %697 = vmatprep.subr.mxu0 0.0
        %698 = vmatpush1.xpose.msra.mxu0 0.0
        %699 = vmatprep.subr.mxu0 0.0
        %700 = vmatpush1.xpose.msra.mxu0 0.0
        %701 = vmatprep.subr.mxu0 0.0
        %702 = vmatpush1.xpose.msra.mxu0 0.0
        %703 = vmatprep.subr.mxu0 0.0
        %704 = vmatpush1.xpose.msra.mxu0 0.0
        %705 = vmatprep.subr.mxu0 0.0
        %706 = vmatpush1.xpose.msra.mxu0 0.0
        %707 = vmatprep.subr.mxu0 0.0
        %708 = vmatpush1.xpose.msra.mxu0 0.0
        %709 = vmatprep.subr.mxu0 0.0
        %710 = vmatpush1.xpose.msra.mxu0 0.0
        %711 = vmatprep.subr.mxu0 0.0
        %712 = vmatpush1.xpose.msra.mxu0 0.0
        %713 = vmatprep.subr.mxu0 0.0
        %714 = vmatpush1.xpose.msra.mxu0 0.0
        %715 = vmatprep.subr.mxu0 0.0
        %716 = vmatpush1.xpose.msra.mxu0 0.0
        %717 = vmatprep.subr.mxu0 0.0
        %718 = vmatpush1.xpose.msra.mxu0 0.0
        %719 = vmatprep.subr.mxu0 0.0
        %720 = vmatpush1.xpose.msra.mxu0 0.0
        %721 = vmatprep.subr.mxu0 0.0
        %722 = vmatpush1.xpose.msra.mxu0 0.0
        %723 = vmatprep.subr.mxu0 0.0
        %724 = vmatpush1.xpose.msra.mxu0 0.0
        %725 = vmatprep.subr.mxu0 0.0
        %726 = vmatpush1.xpose.msra.mxu0 0.0
        %727 = vmatprep.mubr.f32.mxu0 0.0
        %v728 = vand.u32 %v355, 4294901760
        %729 = vmatmul.mubr.f32.gmra.mrb[0].mxu0 %v728
        %v730 = vpop.f32.mrb[0].mxu0
        %v731 = vadd.f32 %v657, %v730
        %v732 = vpop.f32.mrb[0].mxu0
        %733 = vdwg.mxu0
        %734 = vmatprep.subr.mxu0 0.0
        %v735 = vand.u32 %v358, 4294901760
        %736 = vmatpush1.xpose.msra.mxu0 %v735
        %737 = vmatprep.subr.mxu0 0.0
        %738 = vmatpush1.xpose.msra.mxu0 0.0
        %739 = vmatprep.subr.mxu0 0.0
        %740 = vmatpush1.xpose.msra.mxu0 0.0
        %741 = vmatprep.subr.mxu0 0.0
        %742 = vmatpush1.xpose.msra.mxu0 0.0
        %743 = vmatprep.subr.mxu0 0.0
        %744 = vmatpush1.xpose.msra.mxu0 0.0
        %745 = vmatprep.subr.mxu0 0.0
        %746 = vmatpush1.xpose.msra.mxu0 0.0
        %747 = vmatprep.subr.mxu0 0.0
        %748 = vmatpush1.xpose.msra.mxu0 0.0
        %749 = vmatprep.subr.mxu0 0.0
        %750 = vmatpush1.xpose.msra.mxu0 0.0
        %751 = vmatprep.subr.mxu0 0.0
        %752 = vmatpush1.xpose.msra.mxu0 0.0
        %753 = vmatprep.subr.mxu0 0.0
        %754 = vmatpush1.xpose.msra.mxu0 0.0
        %755 = vmatprep.subr.mxu0 0.0
        %756 = vmatpush1.xpose.msra.mxu0 0.0
        %757 = vmatprep.subr.mxu0 0.0
        %758 = vmatpush1.xpose.msra.mxu0 0.0
        %759 = vmatprep.subr.mxu0 0.0
        %760 = vmatpush1.xpose.msra.mxu0 0.0
        %761 = vmatprep.subr.mxu0 0.0
        %762 = vmatpush1.xpose.msra.mxu0 0.0
        %763 = vmatprep.subr.mxu0 0.0
        %764 = vmatpush1.xpose.msra.mxu0 0.0
        %765 = vmatprep.subr.mxu0 0.0
        %766 = vmatpush1.xpose.msra.mxu0 0.0
        %767 = vmatprep.subr.mxu0 0.0
        %768 = vmatpush1.xpose.msra.mxu0 0.0
        %769 = vmatprep.subr.mxu0 0.0
        %770 = vmatpush1.xpose.msra.mxu0 0.0
        %771 = vmatprep.subr.mxu0 0.0
        %772 = vmatpush1.xpose.msra.mxu0 0.0
        %773 = vmatprep.subr.mxu0 0.0
        %774 = vmatpush1.xpose.msra.mxu0 0.0
        %775 = vmatprep.subr.mxu0 0.0
        %776 = vmatpush1.xpose.msra.mxu0 0.0
        %777 = vmatprep.subr.mxu0 0.0
        %778 = vmatpush1.xpose.msra.mxu0 0.0
        %779 = vmatprep.subr.mxu0 0.0
        %780 = vmatpush1.xpose.msra.mxu0 0.0
        %781 = vmatprep.subr.mxu0 0.0
        %782 = vmatpush1.xpose.msra.mxu0 0.0
        %783 = vmatprep.subr.mxu0 0.0
        %784 = vmatpush1.xpose.msra.mxu0 0.0
        %785 = vmatprep.subr.mxu0 0.0
        %786 = vmatpush1.xpose.msra.mxu0 0.0
        %787 = vmatprep.subr.mxu0 0.0
        %788 = vmatpush1.xpose.msra.mxu0 0.0
        %789 = vmatprep.subr.mxu0 0.0
        %790 = vmatpush1.xpose.msra.mxu0 0.0
        %791 = vmatprep.subr.mxu0 0.0
        %792 = vmatpush1.xpose.msra.mxu0 0.0
        %793 = vmatprep.subr.mxu0 0.0
        %794 = vmatpush1.xpose.msra.mxu0 0.0
        %795 = vmatprep.subr.mxu0 0.0
        %796 = vmatpush1.xpose.msra.mxu0 0.0
        %797 = vmatprep.subr.mxu0 0.0
        %798 = vmatpush1.xpose.msra.mxu0 0.0
        %799 = vmatprep.mubr.f32.mxu0 0.0
        %v800 = vand.u32 %v355, 4294901760
        %801 = vmatmul.mubr.f32.gmra.mrb[0].mxu0 %v800
        %v802 = vpop.f32.mrb[0].mxu0
        %v803 = vadd.f32 %v731, %v802
        %v804 = vpop.f32.mrb[0].mxu0
        %805 = vdwg.mxu0
        %vm806 = vcmp.eq.f32.partialorder %v351, 0.0
        %v807 = vsel %vm806, -1e+09, %v803
        %v808 = vsel %vm353, %v807, -inf
        %809 = vmax.xlane.f32.xlu0 %v808
        %v810 = vpop.xlane.xlu0 %809
        %v811 = vsub.f32 %v807, %v810
        %v812 = vmul.f32 %v811, 1.442695
        %v813 = vpow.pop %v812
        %v814 = vsel %vm353, %v813, 0.0
        %815 = vadd.xlane.f32.xlu0 %v814
        %v816 = vpop.xlane.xlu0 %815
        %v817 = vrcp.pop %v816
        %v818 = vmul.f32 %v813, %v817
        %v820 = vsel %vm353, %v818, 0
        %822 = vmatprep.subr.mxu0 0.0
        %v823 = vand.u32 %v350, 4294901760
        %824 = vmatpush1.msra.mxu0 %v823
        %825 = vmatprep.subr.mxu0 0.0
        %826 = vmatpush1.msra.mxu0 0.0
        %827 = vmatprep.subr.mxu0 0.0
        %828 = vmatpush1.msra.mxu0 0.0
        %829 = vmatprep.subr.mxu0 0.0
        %830 = vmatpush1.msra.mxu0 0.0
        %831 = vmatprep.subr.mxu0 0.0
        %832 = vmatpush1.msra.mxu0 0.0
        %833 = vmatprep.subr.mxu0 0.0
        %834 = vmatpush1.msra.mxu0 0.0
        %835 = vmatprep.subr.mxu0 0.0
        %836 = vmatpush1.msra.mxu0 0.0
        %837 = vmatprep.subr.mxu0 0.0
        %838 = vmatpush1.msra.mxu0 0.0
        %839 = vmatprep.subr.mxu0 0.0
        %840 = vmatpush1.msra.mxu0 0.0
        %841 = vmatprep.subr.mxu0 0.0
        %842 = vmatpush1.msra.mxu0 0.0
        %843 = vmatprep.subr.mxu0 0.0
        %844 = vmatpush1.msra.mxu0 0.0
        %845 = vmatprep.subr.mxu0 0.0
        %846 = vmatpush1.msra.mxu0 0.0
        %847 = vmatprep.subr.mxu0 0.0
        %848 = vmatpush1.msra.mxu0 0.0
        %849 = vmatprep.subr.mxu0 0.0
        %850 = vmatpush1.msra.mxu0 0.0
        %851 = vmatprep.subr.mxu0 0.0
        %852 = vmatpush1.msra.mxu0 0.0
        %853 = vmatprep.subr.mxu0 0.0
        %854 = vmatpush1.msra.mxu0 0.0
        %855 = vmatprep.subr.mxu0 0.0
        %856 = vmatpush1.msra.mxu0 0.0
        %857 = vmatprep.subr.mxu0 0.0
        %858 = vmatpush1.msra.mxu0 0.0
        %859 = vmatprep.subr.mxu0 0.0
        %860 = vmatpush1.msra.mxu0 0.0
        %861 = vmatprep.subr.mxu0 0.0
        %862 = vmatpush1.msra.mxu0 0.0
        %863 = vmatprep.subr.mxu0 0.0
        %864 = vmatpush1.msra.mxu0 0.0
        %865 = vmatprep.subr.mxu0 0.0
        %866 = vmatpush1.msra.mxu0 0.0
        %867 = vmatprep.subr.mxu0 0.0
        %868 = vmatpush1.msra.mxu0 0.0
        %869 = vmatprep.subr.mxu0 0.0
        %870 = vmatpush1.msra.mxu0 0.0
        %871 = vmatprep.subr.mxu0 0.0
        %872 = vmatpush1.msra.mxu0 0.0
        %873 = vmatprep.subr.mxu0 0.0
        %874 = vmatpush1.msra.mxu0 0.0
        %875 = vmatprep.subr.mxu0 0.0
        %876 = vmatpush1.msra.mxu0 0.0
        %877 = vmatprep.subr.mxu0 0.0
        %878 = vmatpush1.msra.mxu0 0.0
        %879 = vmatprep.subr.mxu0 0.0
        %880 = vmatpush1.msra.mxu0 0.0
        %881 = vmatprep.subr.mxu0 0.0
        %882 = vmatpush1.msra.mxu0 0.0
        %883 = vmatprep.subr.mxu0 0.0
        %884 = vmatpush1.msra.mxu0 0.0
        %885 = vmatprep.subr.mxu0 0.0
        %886 = vmatpush1.msra.mxu0 0.0
        %887 = vmatprep.mubr.f32.mxu0 0.0
        %v888 = vand.u32 %v820, 4294901760
        %v889 = vsub.f32 %v820, %v888
        %v890 = vand.u32 %v889, 4294901760
        %v891 = vsub.f32 %v889, %v890
        %v892 = vand.u32 %v891, 4294901760
        %893 = vmatmul.mubr.f32.gmra.mrb[0].mxu0 %v892
        %v894 = vpop.f32.mrb[0].mxu0
        %v895 = vadd.f32 0.0, %v894
        %v896 = vpop.f32.mrb[0].mxu0
        %897 = vdwg.mxu0
        %898 = vmatprep.subr.mxu0 0.0
        %v899 = vand.u32 %v350, 4294901760
        %v900 = vsub.f32 %v350, %v899
        %v901 = vand.u32 %v900, 4294901760
        %v902 = vsub.f32 %v900, %v901
        %v903 = vand.u32 %v902, 4294901760
        %904 = vmatpush1.msra.mxu0 %v903
        %905 = vmatprep.subr.mxu0 0.0
        %906 = vmatpush1.msra.mxu0 0.0
        %907 = vmatprep.subr.mxu0 0.0
        %908 = vmatpush1.msra.mxu0 0.0
        %909 = vmatprep.subr.mxu0 0.0
        %910 = vmatpush1.msra.mxu0 0.0
        %911 = vmatprep.subr.mxu0 0.0
        %912 = vmatpush1.msra.mxu0 0.0
        %913 = vmatprep.subr.mxu0 0.0
        %914 = vmatpush1.msra.mxu0 0.0
        %915 = vmatprep.subr.mxu0 0.0
        %916 = vmatpush1.msra.mxu0 0.0
        %917 = vmatprep.subr.mxu0 0.0
        %918 = vmatpush1.msra.mxu0 0.0
        %919 = vmatprep.subr.mxu0 0.0
        %920 = vmatpush1.msra.mxu0 0.0
        %921 = vmatprep.subr.mxu0 0.0
        %922 = vmatpush1.msra.mxu0 0.0
        %923 = vmatprep.subr.mxu0 0.0
        %924 = vmatpush1.msra.mxu0 0.0
        %925 = vmatprep.subr.mxu0 0.0
        %926 = vmatpush1.msra.mxu0 0.0
        %927 = vmatprep.subr.mxu0 0.0
        %928 = vmatpush1.msra.mxu0 0.0
        %929 = vmatprep.subr.mxu0 0.0
        %930 = vmatpush1.msra.mxu0 0.0
        %931 = vmatprep.subr.mxu0 0.0
        %932 = vmatpush1.msra.mxu0 0.0
        %933 = vmatprep.subr.mxu0 0.0
        %934 = vmatpush1.msra.mxu0 0.0
        %935 = vmatprep.subr.mxu0 0.0
        %936 = vmatpush1.msra.mxu0 0.0
        %937 = vmatprep.subr.mxu0 0.0
        %938 = vmatpush1.msra.mxu0 0.0
        %939 = vmatprep.subr.mxu0 0.0
        %940 = vmatpush1.msra.mxu0 0.0
        %941 = vmatprep.subr.mxu0 0.0
        %942 = vmatpush1.msra.mxu0 0.0
        %943 = vmatprep.subr.mxu0 0.0
        %944 = vmatpush1.msra.mxu0 0.0
        %945 = vmatprep.subr.mxu0 0.0
        %946 = vmatpush1.msra.mxu0 0.0
        %947 = vmatprep.subr.mxu0 0.0
        %948 = vmatpush1.msra.mxu0 0.0
        %949 = vmatprep.subr.mxu0 0.0
        %950 = vmatpush1.msra.mxu0 0.0
        %951 = vmatprep.subr.mxu0 0.0
        %952 = vmatpush1.msra.mxu0 0.0
        %953 = vmatprep.subr.mxu0 0.0
        %954 = vmatpush1.msra.mxu0 0.0
        %955 = vmatprep.subr.mxu0 0.0
        %956 = vmatpush1.msra.mxu0 0.0
        %957 = vmatprep.subr.mxu0 0.0
        %958 = vmatpush1.msra.mxu0 0.0
        %959 = vmatprep.subr.mxu0 0.0
        %960 = vmatpush1.msra.mxu0 0.0
        %961 = vmatprep.subr.mxu0 0.0
        %962 = vmatpush1.msra.mxu0 0.0
        %963 = vmatprep.subr.mxu0 0.0
        %964 = vmatpush1.msra.mxu0 0.0
        %965 = vmatprep.subr.mxu0 0.0
        %966 = vmatpush1.msra.mxu0 0.0
        %967 = vmatprep.mubr.f32.mxu0 0.0
        %v968 = vand.u32 %v820, 4294901760
        %969 = vmatmul.mubr.f32.gmra.mrb[0].mxu0 %v968
        %v970 = vpop.f32.mrb[0].mxu0
        %v971 = vadd.f32 %v895, %v970
        %v972 = vpop.f32.mrb[0].mxu0
        %973 = vdwg.mxu0
        %974 = vmatprep.subr.mxu0 0.0
        %v975 = vand.u32 %v350, 4294901760
        %v976 = vsub.f32 %v350, %v975
        %977 = vmatpush1.msra.mxu0 %v976
        %978 = vmatprep.subr.mxu0 0.0
        %979 = vmatpush1.msra.mxu0 0.0
        %980 = vmatprep.subr.mxu0 0.0
        %981 = vmatpush1.msra.mxu0 0.0
        %982 = vmatprep.subr.mxu0 0.0
        %983 = vmatpush1.msra.mxu0 0.0
        %984 = vmatprep.subr.mxu0 0.0
        %985 = vmatpush1.msra.mxu0 0.0
        %986 = vmatprep.subr.mxu0 0.0
        %987 = vmatpush1.msra.mxu0 0.0
        %988 = vmatprep.subr.mxu0 0.0
        %989 = vmatpush1.msra.mxu0 0.0
        %990 = vmatprep.subr.mxu0 0.0
        %991 = vmatpush1.msra.mxu0 0.0
        %992 = vmatprep.subr.mxu0 0.0
        %993 = vmatpush1.msra.mxu0 0.0
        %994 = vmatprep.subr.mxu0 0.0
        %995 = vmatpush1.msra.mxu0 0.0
        %996 = vmatprep.subr.mxu0 0.0
        %997 = vmatpush1.msra.mxu0 0.0
        %998 = vmatprep.subr.mxu0 0.0
        %999 = vmatpush1.msra.mxu0 0.0
        %1000 = vmatprep.subr.mxu0 0.0
        %1001 = vmatpush1.msra.mxu0 0.0
        %1002 = vmatprep.subr.mxu0 0.0
        %1003 = vmatpush1.msra.mxu0 0.0
        %1004 = vmatprep.subr.mxu0 0.0
        %1005 = vmatpush1.msra.mxu0 0.0
        %1006 = vmatprep.subr.mxu0 0.0
        %1007 = vmatpush1.msra.mxu0 0.0
        %1008 = vmatprep.subr.mxu0 0.0
        %1009 = vmatpush1.msra.mxu0 0.0
        %1010 = vmatprep.subr.mxu0 0.0
        %1011 = vmatpush1.msra.mxu0 0.0
        %1012 = vmatprep.subr.mxu0 0.0
        %1013 = vmatpush1.msra.mxu0 0.0
        %1014 = vmatprep.subr.mxu0 0.0
        %1015 = vmatpush1.msra.mxu0 0.0
        %1016 = vmatprep.subr.mxu0 0.0
        %1017 = vmatpush1.msra.mxu0 0.0
        %1018 = vmatprep.subr.mxu0 0.0
        %1019 = vmatpush1.msra.mxu0 0.0
        %1020 = vmatprep.subr.mxu0 0.0
        %1021 = vmatpush1.msra.mxu0 0.0
        %1022 = vmatprep.subr.mxu0 0.0
        %1023 = vmatpush1.msra.mxu0 0.0
        %1024 = vmatprep.subr.mxu0 0.0
        %1025 = vmatpush1.msra.mxu0 0.0
        %1026 = vmatprep.subr.mxu0 0.0
        %1027 = vmatpush1.msra.mxu0 0.0
        %1028 = vmatprep.subr.mxu0 0.0
        %1029 = vmatpush1.msra.mxu0 0.0
        %1030 = vmatprep.subr.mxu0 0.0
        %1031 = vmatpush1.msra.mxu0 0.0
        %1032 = vmatprep.subr.mxu0 0.0
        %1033 = vmatpush1.msra.mxu0 0.0
        %1034 = vmatprep.subr.mxu0 0.0
        %1035 = vmatpush1.msra.mxu0 0.0
        %1036 = vmatprep.subr.mxu0 0.0
        %1037 = vmatpush1.msra.mxu0 0.0
        %1038 = vmatprep.subr.mxu0 0.0
        %1039 = vmatpush1.msra.mxu0 0.0
        %1040 = vmatprep.mubr.f32.mxu0 0.0
        %v1041 = vand.u32 %v820, 4294901760
        %v1042 = vsub.f32 %v820, %v1041
        %1043 = vmatmul.mubr.f32.gmra.mrb[0].mxu0 %v1042
        %v1044 = vpop.f32.mrb[0].mxu0
        %v1045 = vadd.f32 %v971, %v1044
        %v1046 = vpop.f32.mrb[0].mxu0
        %1047 = vdwg.mxu0
        %1048 = vmatprep.subr.mxu0 0.0
        %v1049 = vand.u32 %v350, 4294901760
        %1050 = vmatpush1.msra.mxu0 %v1049
        %1051 = vmatprep.subr.mxu0 0.0
        %1052 = vmatpush1.msra.mxu0 0.0
        %1053 = vmatprep.subr.mxu0 0.0
        %1054 = vmatpush1.msra.mxu0 0.0
        %1055 = vmatprep.subr.mxu0 0.0
        %1056 = vmatpush1.msra.mxu0 0.0
        %1057 = vmatprep.subr.mxu0 0.0
        %1058 = vmatpush1.msra.mxu0 0.0
        %1059 = vmatprep.subr.mxu0 0.0
        %1060 = vmatpush1.msra.mxu0 0.0
        %1061 = vmatprep.subr.mxu0 0.0
        %1062 = vmatpush1.msra.mxu0 0.0
        %1063 = vmatprep.subr.mxu0 0.0
        %1064 = vmatpush1.msra.mxu0 0.0
        %1065 = vmatprep.subr.mxu0 0.0
        %1066 = vmatpush1.msra.mxu0 0.0
        %1067 = vmatprep.subr.mxu0 0.0
        %1068 = vmatpush1.msra.mxu0 0.0
        %1069 = vmatprep.subr.mxu0 0.0
        %1070 = vmatpush1.msra.mxu0 0.0
        %1071 = vmatprep.subr.mxu0 0.0
        %1072 = vmatpush1.msra.mxu0 0.0
        %1073 = vmatprep.subr.mxu0 0.0
        %1074 = vmatpush1.msra.mxu0 0.0
        %1075 = vmatprep.subr.mxu0 0.0
        %1076 = vmatpush1.msra.mxu0 0.0
        %1077 = vmatprep.subr.mxu0 0.0
        %1078 = vmatpush1.msra.mxu0 0.0
        %1079 = vmatprep.subr.mxu0 0.0
        %1080 = vmatpush1.msra.mxu0 0.0
        %1081 = vmatprep.subr.mxu0 0.0
        %1082 = vmatpush1.msra.mxu0 0.0
        %1083 = vmatprep.subr.mxu0 0.0
        %1084 = vmatpush1.msra.mxu0 0.0
        %1085 = vmatprep.subr.mxu0 0.0
        %1086 = vmatpush1.msra.mxu0 0.0
        %1087 = vmatprep.subr.mxu0 0.0
        %1088 = vmatpush1.msra.mxu0 0.0
        %1089 = vmatprep.subr.mxu0 0.0
        %1090 = vmatpush1.msra.mxu0 0.0
        %1091 = vmatprep.subr.mxu0 0.0
        %1092 = vmatpush1.msra.mxu0 0.0
        %1093 = vmatprep.subr.mxu0 0.0
        %1094 = vmatpush1.msra.mxu0 0.0
        %1095 = vmatprep.subr.mxu0 0.0
        %1096 = vmatpush1.msra.mxu0 0.0
        %1097 = vmatprep.subr.mxu0 0.0
        %1098 = vmatpush1.msra.mxu0 0.0
        %1099 = vmatprep.subr.mxu0 0.0
        %1100 = vmatpush1.msra.mxu0 0.0
        %1101 = vmatprep.subr.mxu0 0.0
        %1102 = vmatpush1.msra.mxu0 0.0
        %1103 = vmatprep.subr.mxu0 0.0
        %1104 = vmatpush1.msra.mxu0 0.0
        %1105 = vmatprep.subr.mxu0 0.0
        %1106 = vmatpush1.msra.mxu0 0.0
        %1107 = vmatprep.subr.mxu0 0.0
        %1108 = vmatpush1.msra.mxu0 0.0
        %1109 = vmatprep.subr.mxu0 0.0
        %1110 = vmatpush1.msra.mxu0 0.0
        %1111 = vmatprep.subr.mxu0 0.0
        %1112 = vmatpush1.msra.mxu0 0.0
        %1113 = vmatprep.mubr.f32.mxu0 0.0
        %v1114 = vand.u32 %v820, 4294901760
        %v1115 = vsub.f32 %v820, %v1114
        %v1116 = vand.u32 %v1115, 4294901760
        %1117 = vmatmul.mubr.f32.gmra.mrb[0].mxu0 %v1116
        %v1118 = vpop.f32.mrb[0].mxu0
        %v1119 = vadd.f32 %v1045, %v1118
        %v1120 = vpop.f32.mrb[0].mxu0
        %1121 = vdwg.mxu0
        %1122 = vmatprep.subr.mxu0 0.0
        %v1123 = vand.u32 %v350, 4294901760
        %v1124 = vsub.f32 %v350, %v1123
        %v1125 = vand.u32 %v1124, 4294901760
        %1126 = vmatpush1.msra.mxu0 %v1125
        %1127 = vmatprep.subr.mxu0 0.0
        %1128 = vmatpush1.msra.mxu0 0.0
        %1129 = vmatprep.subr.mxu0 0.0
        %1130 = vmatpush1.msra.mxu0 0.0
        %1131 = vmatprep.subr.mxu0 0.0
        %1132 = vmatpush1.msra.mxu0 0.0
        %1133 = vmatprep.subr.mxu0 0.0
        %1134 = vmatpush1.msra.mxu0 0.0
        %1135 = vmatprep.subr.mxu0 0.0
        %1136 = vmatpush1.msra.mxu0 0.0
        %1137 = vmatprep.subr.mxu0 0.0
        %1138 = vmatpush1.msra.mxu0 0.0
        %1139 = vmatprep.subr.mxu0 0.0
        %1140 = vmatpush1.msra.mxu0 0.0
        %1141 = vmatprep.subr.mxu0 0.0
        %1142 = vmatpush1.msra.mxu0 0.0
        %1143 = vmatprep.subr.mxu0 0.0
        %1144 = vmatpush1.msra.mxu0 0.0
        %1145 = vmatprep.subr.mxu0 0.0
        %1146 = vmatpush1.msra.mxu0 0.0
        %1147 = vmatprep.subr.mxu0 0.0
        %1148 = vmatpush1.msra.mxu0 0.0
        %1149 = vmatprep.subr.mxu0 0.0
        %1150 = vmatpush1.msra.mxu0 0.0
        %1151 = vmatprep.subr.mxu0 0.0
        %1152 = vmatpush1.msra.mxu0 0.0
        %1153 = vmatprep.subr.mxu0 0.0
        %1154 = vmatpush1.msra.mxu0 0.0
        %1155 = vmatprep.subr.mxu0 0.0
        %1156 = vmatpush1.msra.mxu0 0.0
        %1157 = vmatprep.subr.mxu0 0.0
        %1158 = vmatpush1.msra.mxu0 0.0
        %1159 = vmatprep.subr.mxu0 0.0
        %1160 = vmatpush1.msra.mxu0 0.0
        %1161 = vmatprep.subr.mxu0 0.0
        %1162 = vmatpush1.msra.mxu0 0.0
        %1163 = vmatprep.subr.mxu0 0.0
        %1164 = vmatpush1.msra.mxu0 0.0
        %1165 = vmatprep.subr.mxu0 0.0
        %1166 = vmatpush1.msra.mxu0 0.0
        %1167 = vmatprep.subr.mxu0 0.0
        %1168 = vmatpush1.msra.mxu0 0.0
        %1169 = vmatprep.subr.mxu0 0.0
        %1170 = vmatpush1.msra.mxu0 0.0
        %1171 = vmatprep.subr.mxu0 0.0
        %1172 = vmatpush1.msra.mxu0 0.0
        %1173 = vmatprep.subr.mxu0 0.0
        %1174 = vmatpush1.msra.mxu0 0.0
        %1175 = vmatprep.subr.mxu0 0.0
        %1176 = vmatpush1.msra.mxu0 0.0
        %1177 = vmatprep.subr.mxu0 0.0
        %1178 = vmatpush1.msra.mxu0 0.0
        %1179 = vmatprep.subr.mxu0 0.0
        %1180 = vmatpush1.msra.mxu0 0.0
        %1181 = vmatprep.subr.mxu0 0.0
        %1182 = vmatpush1.msra.mxu0 0.0
        %1183 = vmatprep.subr.mxu0 0.0
        %1184 = vmatpush1.msra.mxu0 0.0
        %1185 = vmatprep.subr.mxu0 0.0
        %1186 = vmatpush1.msra.mxu0 0.0
        %1187 = vmatprep.subr.mxu0 0.0
        %1188 = vmatpush1.msra.mxu0 0.0
        %1189 = vmatprep.mubr.f32.mxu0 0.0
        %v1190 = vand.u32 %v820, 4294901760
        %1191 = vmatmul.mubr.f32.gmra.mrb[0].mxu0 %v1190
        %v1192 = vpop.f32.mrb[0].mxu0
        %v1193 = vadd.f32 %v1119, %v1192
        %v1194 = vpop.f32.mrb[0].mxu0
        %1195 = vdwg.mxu0
        %1196 = vmatprep.subr.mxu0 0.0
        %v1197 = vand.u32 %v350, 4294901760
        %1198 = vmatpush1.msra.mxu0 %v1197
        %1199 = vmatprep.subr.mxu0 0.0
        %1200 = vmatpush1.msra.mxu0 0.0
        %1201 = vmatprep.subr.mxu0 0.0
        %1202 = vmatpush1.msra.mxu0 0.0
        %1203 = vmatprep.subr.mxu0 0.0
        %1204 = vmatpush1.msra.mxu0 0.0
        %1205 = vmatprep.subr.mxu0 0.0
        %1206 = vmatpush1.msra.mxu0 0.0
        %1207 = vmatprep.subr.mxu0 0.0
        %1208 = vmatpush1.msra.mxu0 0.0
        %1209 = vmatprep.subr.mxu0 0.0
        %1210 = vmatpush1.msra.mxu0 0.0
        %1211 = vmatprep.subr.mxu0 0.0
        %1212 = vmatpush1.msra.mxu0 0.0
        %1213 = vmatprep.subr.mxu0 0.0
        %1214 = vmatpush1.msra.mxu0 0.0
        %1215 = vmatprep.subr.mxu0 0.0
        %1216 = vmatpush1.msra.mxu0 0.0
        %1217 = vmatprep.subr.mxu0 0.0
        %1218 = vmatpush1.msra.mxu0 0.0
        %1219 = vmatprep.subr.mxu0 0.0
        %1220 = vmatpush1.msra.mxu0 0.0
        %1221 = vmatprep.subr.mxu0 0.0
        %1222 = vmatpush1.msra.mxu0 0.0
        %1223 = vmatprep.subr.mxu0 0.0
        %1224 = vmatpush1.msra.mxu0 0.0
        %1225 = vmatprep.subr.mxu0 0.0
        %1226 = vmatpush1.msra.mxu0 0.0
        %1227 = vmatprep.subr.mxu0 0.0
        %1228 = vmatpush1.msra.mxu0 0.0
        %1229 = vmatprep.subr.mxu0 0.0
        %1230 = vmatpush1.msra.mxu0 0.0
        %1231 = vmatprep.subr.mxu0 0.0
        %1232 = vmatpush1.msra.mxu0 0.0
        %1233 = vmatprep.subr.mxu0 0.0
        %1234 = vmatpush1.msra.mxu0 0.0
        %1235 = vmatprep.subr.mxu0 0.0
        %1236 = vmatpush1.msra.mxu0 0.0
        %1237 = vmatprep.subr.mxu0 0.0
        %1238 = vmatpush1.msra.mxu0 0.0
        %1239 = vmatprep.subr.mxu0 0.0
        %1240 = vmatpush1.msra.mxu0 0.0
        %1241 = vmatprep.subr.mxu0 0.0
        %1242 = vmatpush1.msra.mxu0 0.0
        %1243 = vmatprep.subr.mxu0 0.0
        %1244 = vmatpush1.msra.mxu0 0.0
        %1245 = vmatprep.subr.mxu0 0.0
        %1246 = vmatpush1.msra.mxu0 0.0
        %1247 = vmatprep.subr.mxu0 0.0
        %1248 = vmatpush1.msra.mxu0 0.0
        %1249 = vmatprep.subr.mxu0 0.0
        %1250 = vmatpush1.msra.mxu0 0.0
        %1251 = vmatprep.subr.mxu0 0.0
        %1252 = vmatpush1.msra.mxu0 0.0
        %1253 = vmatprep.subr.mxu0 0.0
        %1254 = vmatpush1.msra.mxu0 0.0
        %1255 = vmatprep.subr.mxu0 0.0
        %1256 = vmatpush1.msra.mxu0 0.0
        %1257 = vmatprep.subr.mxu0 0.0
        %1258 = vmatpush1.msra.mxu0 0.0
        %1259 = vmatprep.subr.mxu0 0.0
        %1260 = vmatpush1.msra.mxu0 0.0
        %1261 = vmatprep.mubr.f32.mxu0 0.0
        %v1262 = vand.u32 %v820, 4294901760
        %1263 = vmatmul.mubr.f32.gmra.mrb[0].mxu0 %v1262
        %v1264 = vpop.f32.mrb[0].mxu0
        %v1265 = vadd.f32 %v1193, %v1264
        %v1266 = vpop.f32.mrb[0].mxu0
        %1267 = vdwg.mxu0
        %1268 = vst.msk [vmem:[%s311] sm:$0xff] %vm353, %v818
        %1269 = vst.msk [vmem:[%s347] sm:$0xff] %vm353, %v1265
        %p1270 = scmp.lt.s32.totalorder %s24, 1
        %s1271 = scalar_select %p1270, %s24, 1
        %p1272 = scmp.lt.s32.totalorder %s25, 3
        %s1273 = scalar_select %p1272, %s25, 3
        %s1274 = smul.addr %s1271, 4
        %s1275 = sadd.s32 %s1273, %s1274
        %s1276 = smul.addr %s1275, 8
        %s1277 = scalar_lea.vmem %s4, %s1276
        %s1278 = sand.u32 %s180, 1
        %s1279 = scalar_lea.sflag [#allocation3], %s1278
        %s1280 = sand.u32 %s180, 1
        %s1281 = smul.addr %s1280, 8
        %s1282 = scalar_lea.vmem [#allocation2], %s1281
        // Predicated region
        $region37: #{decoder_layer.14} parent=35 // pred_check
          %p1283 = pneg %p162
        $region38: #{decoder_layer.14} parent=35 // pred_check_branch
          %1285 = sbr.rel (%p1283) target = $region40
        $region39: #{decoder_layer.14} parent=35 // pred_region
          _
        $region40: #{decoder_layer.14} parent=35 // pred_fallthru
          _
        // Predicated region
        $region41: #{decoder_layer.14} parent=35 // pred_check
          %p1286 = pneg %p190
        $region42: #{decoder_layer.14} parent=35 // pred_check_branch
          %1288 = sbr.rel (%p1286) target = $region44
        $region43: #{decoder_layer.14} parent=35 // pred_region
          %s1290 = ssub.s32 128, 128
          %1291 = vsyncadd %s1279, %s1290
          %s1292 = smul.addr %s24, 4
          %s1293 = sadd.s32 %s25, %s1292
          %s1294 = smul.addr %s1293, 128
          %s1295 = scalar_lea.hbm %s5, %s1294
          %s1297 = sshll.u32 %s1282, 4
          %s1298 = int_to_ptr.vmem [resolvable:$true] %s1297
          %1300 = dma.vmem_to_hbm [thread:$0]  %s1298, 128, %s1295, %s1279
        $region44: #{decoder_layer.14} parent=35 // pred_fallthru
          _
      $region36: #{decoder_layer.14} parent=5 // pred_fallthru
        _
      %p1301 = scmp.le.s32.totalorder 2, %s15
      // Predicated region
      $region45: #{decoder_layer.14} parent=5 // pred_check
        %p1302 = pneg %p1301
      $region46: #{decoder_layer.14} parent=5 // pred_check_branch
        %1304 = sbr.rel (%p1302) target = $region48
      $region47: #{decoder_layer.14} parent=5 // pred_region
        %s1305 = ssub.s32 %s15, 2
        // Predicated region
        $region49: #{decoder_layer.14} parent=47 // pred_check
          %p1306 = pneg %p168
        $region50: #{decoder_layer.14} parent=47 // pred_check_branch
          %1308 = sbr.rel (%p1306) target = $region52
        $region51: #{decoder_layer.14} parent=47 // pred_region
          %p1309 = scmp.lt.s32.totalorder %s26, 1
          %s1310 = scalar_select %p1309, %s26, 1
          %p1311 = scmp.lt.s32.totalorder %s27, 3
          %s1312 = scalar_select %p1311, %s27, 3
          %s1313 = smul.addr %s1310, 4
          %s1314 = sadd.s32 %s1312, %s1313
          %s1315 = smul.addr %s1314, 8
          %s1316 = scalar_lea.vmem %s4, %s1315
        $region52: #{decoder_layer.14} parent=47 // pred_fallthru
          _
        // Predicated region
        $region53: #{decoder_layer.14} parent=47 // pred_check
          %p1317 = pneg %p196
        $region54: #{decoder_layer.14} parent=47 // pred_check_branch
          %1319 = sbr.rel (%p1317) target = $region56
        $region55: #{decoder_layer.14} parent=47 // pred_region
          %s1320 = sand.u32 %s181, 1
          %s1321 = scalar_lea.sflag [#allocation3], %s1320
          %s1322 = sand.u32 %s181, 1
          %s1323 = smul.addr %s1322, 8
          %s1324 = scalar_lea.vmem [#allocation2], %s1323
          %1325 = dma.done %s1321, 128
        $region56: #{decoder_layer.14} parent=47 // pred_fallthru
          _
      $region48: #{decoder_layer.14} parent=5 // pred_fallthru
        _
    $region6: #{decoder_layer.14} parent=1 // loop_footer
      %s19 = sadd.s32 1, %s15
    $region7: #{decoder_layer.14} parent=1 // loop_footer_branch
      %14 = sbr.rel target = $region3
    $region8: #{decoder_layer.14} parent=1 // loop_exit
      _
    %1326 = vsyncpa [#allocation3], 1
    %s1327 = scalar_lea.sflag [#allocation3], 1
    %1328 = vsyncpa %s1327, 1

// kernel: decoder_layer.21
$region0: #{decoder_layer.21}
  #allocation0 [shape = 'u32[]', space=smem, size = 0x4, offset = 0x4, fixed_abs, tag = 'smem constant byte address 0x4 - core index']
  #allocation1 [shape = 'u32[144,128]{1,0:T(1,128)}', space=vmem, size = 0x12000, scoped, tag = 'internal scratch']
  %s0 = inlined_call_operand.vmem [shape: f32[16,32], index: 0, kind: input, shape index: {}]
  %s1 = inlined_call_operand.vmem [shape: f32[32,64], index: 1, kind: input, shape index: {}]
  %s2 = inlined_call_operand.vmem [shape: f32[1,64], index: 2, kind: input, shape index: {}]
  %s3 = inlined_call_operand.vmem [shape: f32[64,32], index: 3, kind: input, shape index: {}]
  %s4 = inlined_call_operand.vmem [shape: f32[1,32], index: 4, kind: input, shape index: {}]
  %s5 = inlined_call_operand.vmem [shape: f32[1,32], index: 5, kind: input, shape index: {}]
  %s6 = inlined_call_operand.vmem [shape: f32[1,32], index: 6, kind: input, shape index: {}]
  %s7 = inlined_call_operand.hbm [shape: f32[16,32], index: 7, kind: output, shape index: {}]
  %s8 = sld [smem:[#allocation0]]
  $region38: #{decoder_layer.21} parent=0
    _
  %s10 = ssub.s32 1, %s8
  %s11 = scalar_select 0, %s10, %s8
  $region1: #{decoder_layer.21} parent=0
    #allocation2 [shape = 'u8[8192]{0}', space=vmem, size = 0x2000, scoped, tag = 'output window, operand 0, single buffered']
    #allocation3 [shape = 's32[1]{0}', space=sflag, size = 0x4, scoped, tag = 'scoped memory for decoder_layer.21']
    %12 = vsyncpa [#allocation3], 0
    // Predicated region
    $region2: #{decoder_layer.21} parent=1 // pred_check
      _
    $region3: #{decoder_layer.21} parent=1 // pred_check_branch
      %14 = sbr.rel (0) target = $region5
    $region4: #{decoder_layer.21} parent=1 // pred_region
      _
    $region5: #{decoder_layer.21} parent=1 // pred_fallthru
      _
    // Predicated region
    $region6: #{decoder_layer.21} parent=1 // pred_check
      _
    $region7: #{decoder_layer.21} parent=1 // pred_check_branch
      %16 = sbr.rel (0) target = $region9
    $region8: #{decoder_layer.21} parent=1 // pred_region
      _
    $region9: #{decoder_layer.21} parent=1 // pred_fallthru
      _
    // Predicated region
    $region10: #{decoder_layer.21} parent=1 // pred_check
      _
    $region11: #{decoder_layer.21} parent=1 // pred_check_branch
      %18 = sbr.rel (0) target = $region13
    $region12: #{decoder_layer.21} parent=1 // pred_region
      _
    $region13: #{decoder_layer.21} parent=1 // pred_fallthru
      _
    // Predicated region
    $region14: #{decoder_layer.21} parent=1 // pred_check
      _
    $region15: #{decoder_layer.21} parent=1 // pred_check_branch
      %20 = sbr.rel (0) target = $region17
    $region16: #{decoder_layer.21} parent=1 // pred_region
      _
    $region17: #{decoder_layer.21} parent=1 // pred_fallthru
      _
    // Predicated region
    $region18: #{decoder_layer.21} parent=1 // pred_check
      _
    $region19: #{decoder_layer.21} parent=1 // pred_check_branch
      %22 = sbr.rel (0) target = $region21
    $region20: #{decoder_layer.21} parent=1 // pred_region
      _
    $region21: #{decoder_layer.21} parent=1 // pred_fallthru
      _
    // Predicated region
    $region22: #{decoder_layer.21} parent=1 // pred_check
      _
    $region23: #{decoder_layer.21} parent=1 // pred_check_branch
      %24 = sbr.rel (0) target = $region25
    $region24: #{decoder_layer.21} parent=1 // pred_region
      _
    $region25: #{decoder_layer.21} parent=1 // pred_fallthru
      _
    // Predicated region
    $region26: #{decoder_layer.21} parent=1 // pred_check
      _
    $region27: #{decoder_layer.21} parent=1 // pred_check_branch
      %26 = sbr.rel (0) target = $region29
    $region28: #{decoder_layer.21} parent=1 // pred_region
      _
    $region29: #{decoder_layer.21} parent=1 // pred_fallthru
      _
    %v27 = vld [vmem:[%s0] sm:$0xff]
    %v28 = vld [vmem:[%s0 + $0x8] sm:$0xff]
    %v29 = vld [vmem:[%s1] sm:$0xff]
    %v30 = vld [vmem:[%s1 + $0x8] sm:$0xff]
    %v31 = vld [vmem:[%s1 + $0x10] sm:$0xff]
    %v32 = vld [vmem:[%s1 + $0x18] sm:$0xff]
    %v33 = vld [vmem:[%s2] sm:$0x1]
    %v35 = vlaneseq
    %v36 = vshrl.u32 %v35, 7
    %v37 = vsub.s32 0, %v36
    %v38 = vrot.slane %v33, %v37
    %vm40 = vcmask 261120
    %v42 = vsel %vm40, %v27, 0
    %v45 = vsel %vm40, %v28, 0
    %47 = vmatprep.subr.mxu0 0.0
    %v48 = vand.u32 %v29, 4294901760
    %49 = vmatpush1.msra.mxu0 %v48
    %50 = vmatprep.subr.mxu0 0.0
    %v51 = vand.u32 %v30, 4294901760
    %52 = vmatpush1.msra.mxu0 %v51
    %53 = vmatprep.subr.mxu0 0.0
    %v54 = vand.u32 %v31, 4294901760
    %55 = vmatpush1.msra.mxu0 %v54
    %56 = vmatprep.subr.mxu0 0.0
    %v57 = vand.u32 %v32, 4294901760
    %58 = vmatpush1.msra.mxu0 %v57
    %59 = vmatprep.subr.mxu0 0.0
    %60 = vmatpush1.msra.mxu0 0.0
    %61 = vmatprep.subr.mxu0 0.0
    %62 = vmatpush1.msra.mxu0 0.0
    %63 = vmatprep.subr.mxu0 0.0
    %64 = vmatpush1.msra.mxu0 0.0
    %65 = vmatprep.subr.mxu0 0.0
    %66 = vmatpush1.msra.mxu0 0.0
    %67 = vmatprep.subr.mxu0 0.0
    %68 = vmatpush1.msra.mxu0 0.0
    %69 = vmatprep.subr.mxu0 0.0
    %70 = vmatpush1.msra.mxu0 0.0
    %71 = vmatprep.subr.mxu0 0.0
    %72 = vmatpush1.msra.mxu0 0.0
    %73 = vmatprep.subr.mxu0 0.0
    %74 = vmatpush1.msra.mxu0 0.0
    %75 = vmatprep.subr.mxu0 0.0
    %76 = vmatpush1.msra.mxu0 0.0
    %77 = vmatprep.subr.mxu0 0.0
    %78 = vmatpush1.msra.mxu0 0.0
    %79 = vmatprep.subr.mxu0 0.0
    %80 = vmatpush1.msra.mxu0 0.0
    %81 = vmatprep.subr.mxu0 0.0
    %82 = vmatpush1.msra.mxu0 0.0
    %83 = vmatprep.subr.mxu0 0.0
    %84 = vmatpush1.msra.mxu0 0.0
    %85 = vmatprep.subr.mxu0 0.0
    %86 = vmatpush1.msra.mxu0 0.0
    %87 = vmatprep.subr.mxu0 0.0
    %88 = vmatpush1.msra.mxu0 0.0
    %89 = vmatprep.subr.mxu0 0.0
    %90 = vmatpush1.msra.mxu0 0.0
    %91 = vmatprep.subr.mxu0 0.0
    %92 = vmatpush1.msra.mxu0 0.0
    %93 = vmatprep.subr.mxu0 0.0
    %94 = vmatpush1.msra.mxu0 0.0
    %95 = vmatprep.subr.mxu0 0.0
    %96 = vmatpush1.msra.mxu0 0.0
    %97 = vmatprep.subr.mxu0 0.0
    %98 = vmatpush1.msra.mxu0 0.0
    %99 = vmatprep.subr.mxu0 0.0
    %100 = vmatpush1.msra.mxu0 0.0
    %101 = vmatprep.subr.mxu0 0.0
    %102 = vmatpush1.msra.mxu0 0.0
    %103 = vmatprep.subr.mxu0 0.0
    %104 = vmatpush1.msra.mxu0 0.0
    %105 = vmatprep.subr.mxu0 0.0
    %106 = vmatpush1.msra.mxu0 0.0
    %107 = vmatprep.subr.mxu0 0.0
    %108 = vmatpush1.msra.mxu0 0.0
    %109 = vmatprep.subr.mxu0 0.0
    %110 = vmatpush1.msra.mxu0 0.0
    %111 = vmatprep.subr.mxu0 0.0
    %112 = vmatpush1.msra.mxu0 0.0
    %113 = vmatprep.subr.mxu0 0.0
    %114 = vmatpush1.msra.mxu0 0.0
    %115 = vmatprep.mubr.f32.mxu0 0.0
    %v116 = vand.u32 %v42, 4294901760
    %v117 = vsub.f32 %v42, %v116
    %v118 = vand.u32 %v117, 4294901760
    %v119 = vsub.f32 %v117, %v118
    %v120 = vand.u32 %v119, 4294901760
    %121 = vmatmul.mubr.f32.gmra.mrb[0].mxu0 %v120
    %v122 = vpop.f32.mrb[0].mxu0
    %v123 = vadd.f32 %v38, %v122
    %v124 = vpop.f32.mrb[0].mxu0
    %125 = vmatprep.mubr.f32.mxu0 0.0
    %v126 = vand.u32 %v45, 4294901760
    %v127 = vsub.f32 %v45, %v126
    %v128 = vand.u32 %v127, 4294901760
    %v129 = vsub.f32 %v127, %v128
    %v130 = vand.u32 %v129, 4294901760
    %131 = vmatmul.mubr.f32.gmra.mrb[0].mxu0 %v130
    %v132 = vpop.f32.mrb[0].mxu0
    %v133 = vadd.f32 %v38, %v132
    %v134 = vpop.f32.mrb[0].mxu0
    %135 = vdwg.mxu0
    %136 = vmatprep.subr.mxu0 0.0
    %v137 = vand.u32 %v29, 4294901760
    %v138 = vsub.f32 %v29, %v137
    %v139 = vand.u32 %v138, 4294901760
    %v140 = vsub.f32 %v138, %v139
    %v141 = vand.u32 %v140, 4294901760
    %142 = vmatpush1.msra.mxu0 %v141
    %143 = vmatprep.subr.mxu0 0.0
    %v144 = vand.u32 %v30, 4294901760
    %v145 = vsub.f32 %v30, %v144
    %v146 = vand.u32 %v145, 4294901760
    %v147 = vsub.f32 %v145, %v146
    %v148 = vand.u32 %v147, 4294901760
    %149 = vmatpush1.msra.mxu0 %v148
    %150 = vmatprep.subr.mxu0 0.0
    %v151 = vand.u32 %v31, 4294901760
    %v152 = vsub.f32 %v31, %v151
    %v153 = vand.u32 %v152, 4294901760
    %v154 = vsub.f32 %v152, %v153
    %v155 = vand.u32 %v154, 4294901760
    %156 = vmatpush1.msra.mxu0 %v155
    %157 = vmatprep.subr.mxu0 0.0
    %v158 = vand.u32 %v32, 4294901760
    %v159 = vsub.f32 %v32, %v158
    %v160 = vand.u32 %v159, 4294901760
    %v161 = vsub.f32 %v159, %v160
    %v162 = vand.u32 %v161, 4294901760
    %163 = vmatpush1.msra.mxu0 %v162
    %164 = vmatprep.subr.mxu0 0.0
    %165 = vmatpush1.msra.mxu0 0.0
    %166 = vmatprep.subr.mxu0 0.0
    %167 = vmatpush1.msra.mxu0 0.0
    %168 = vmatprep.subr.mxu0 0.0
    %169 = vmatpush1.msra.mxu0 0.0
    %170 = vmatprep.subr.mxu0 0.0
    %171 = vmatpush1.msra.mxu0 0.0
    %172 = vmatprep.subr.mxu0 0.0
    %173 = vmatpush1.msra.mxu0 0.0
    %174 = vmatprep.subr.mxu0 0.0
    %175 = vmatpush1.msra.mxu0 0.0
    %176 = vmatprep.subr.mxu0 0.0
    %177 = vmatpush1.msra.mxu0 0.0
    %178 = vmatprep.subr.mxu0 0.0
    %179 = vmatpush1.msra.mxu0 0.0
    %180 = vmatprep.subr.mxu0 0.0
    %181 = vmatpush1.msra.mxu0 0.0
    %182 = vmatprep.subr.mxu0 0.0
    %183 = vmatpush1.msra.mxu0 0.0
    %184 = vmatprep.subr.mxu0 0.0
    %185 = vmatpush1.msra.mxu0 0.0
    %186 = vmatprep.subr.mxu0 0.0
    %187 = vmatpush1.msra.mxu0 0.0
    %188 = vmatprep.subr.mxu0 0.0
    %189 = vmatpush1.msra.mxu0 0.0
    %190 = vmatprep.subr.mxu0 0.0
    %191 = vmatpush1.msra.mxu0 0.0
    %192 = vmatprep.subr.mxu0 0.0
    %193 = vmatpush1.msra.mxu0 0.0
    %194 = vmatprep.subr.mxu0 0.0
    %195 = vmatpush1.msra.mxu0 0.0
    %196 = vmatprep.subr.mxu0 0.0
    %197 = vmatpush1.msra.mxu0 0.0
    %198 = vmatprep.subr.mxu0 0.0
    %199 = vmatpush1.msra.mxu0 0.0
    %200 = vmatprep.subr.mxu0 0.0
    %201 = vmatpush1.msra.mxu0 0.0
    %202 = vmatprep.subr.mxu0 0.0
    %203 = vmatpush1.msra.mxu0 0.0
    %204 = vmatprep.subr.mxu0 0.0
    %205 = vmatpush1.msra.mxu0 0.0
    %206 = vmatprep.subr.mxu0 0.0
    %207 = vmatpush1.msra.mxu0 0.0
    %208 = vmatprep.subr.mxu0 0.0
    %209 = vmatpush1.msra.mxu0 0.0
    %210 = vmatprep.subr.mxu0 0.0
    %211 = vmatpush1.msra.mxu0 0.0
    %212 = vmatprep.subr.mxu0 0.0
    %213 = vmatpush1.msra.mxu0 0.0
    %214 = vmatprep.subr.mxu0 0.0
    %215 = vmatpush1.msra.mxu0 0.0
    %216 = vmatprep.subr.mxu0 0.0
    %217 = vmatpush1.msra.mxu0 0.0
    %218 = vmatprep.subr.mxu0 0.0
    %219 = vmatpush1.msra.mxu0 0.0
    %220 = vmatprep.mubr.f32.mxu0 0.0
    %v221 = vand.u32 %v42, 4294901760
    %222 = vmatmul.mubr.f32.gmra.mrb[0].mxu0 %v221
    %v223 = vpop.f32.mrb[0].mxu0
    %v224 = vadd.f32 %v123, %v223
    %v225 = vpop.f32.mrb[0].mxu0
    %226 = vmatprep.mubr.f32.mxu0 0.0
    %v227 = vand.u32 %v45, 4294901760
    %228 = vmatmul.mubr.f32.gmra.mrb[0].mxu0 %v227
    %v229 = vpop.f32.mrb[0].mxu0
    %v230 = vadd.f32 %v133, %v229
    %v231 = vpop.f32.mrb[0].mxu0
    %232 = vdwg.mxu0
    %233 = vmatprep.subr.mxu0 0.0
    %v234 = vand.u32 %v29, 4294901760
    %v235 = vsub.f32 %v29, %v234
    %236 = vmatpush1.msra.mxu0 %v235
    %237 = vmatprep.subr.mxu0 0.0
    %v238 = vand.u32 %v30, 4294901760
    %v239 = vsub.f32 %v30, %v238
    %240 = vmatpush1.msra.mxu0 %v239
    %241 = vmatprep.subr.mxu0 0.0
    %v242 = vand.u32 %v31, 4294901760
    %v243 = vsub.f32 %v31, %v242
    %244 = vmatpush1.msra.mxu0 %v243
    %245 = vmatprep.subr.mxu0 0.0
    %v246 = vand.u32 %v32, 4294901760
    %v247 = vsub.f32 %v32, %v246
    %248 = vmatpush1.msra.mxu0 %v247
    %249 = vmatprep.subr.mxu0 0.0
    %250 = vmatpush1.msra.mxu0 0.0
    %251 = vmatprep.subr.mxu0 0.0
    %252 = vmatpush1.msra.mxu0 0.0
    %253 = vmatprep.subr.mxu0 0.0
    %254 = vmatpush1.msra.mxu0 0.0
    %255 = vmatprep.subr.mxu0 0.0
    %256 = vmatpush1.msra.mxu0 0.0
    %257 = vmatprep.subr.mxu0 0.0
    %258 = vmatpush1.msra.mxu0 0.0
    %259 = vmatprep.subr.mxu0 0.0
    %260 = vmatpush1.msra.mxu0 0.0
    %261 = vmatprep.subr.mxu0 0.0
    %262 = vmatpush1.msra.mxu0 0.0
    %263 = vmatprep.subr.mxu0 0.0
    %264 = vmatpush1.msra.mxu0 0.0
    %265 = vmatprep.subr.mxu0 0.0
    %266 = vmatpush1.msra.mxu0 0.0
    %267 = vmatprep.subr.mxu0 0.0
    %268 = vmatpush1.msra.mxu0 0.0
    %269 = vmatprep.subr.mxu0 0.0
    %270 = vmatpush1.msra.mxu0 0.0
    %271 = vmatprep.subr.mxu0 0.0
    %272 = vmatpush1.msra.mxu0 0.0
    %273 = vmatprep.subr.mxu0 0.0
    %274 = vmatpush1.msra.mxu0 0.0
    %275 = vmatprep.subr.mxu0 0.0
    %276 = vmatpush1.msra.mxu0 0.0
    %277 = vmatprep.subr.mxu0 0.0
    %278 = vmatpush1.msra.mxu0 0.0
    %279 = vmatprep.subr.mxu0 0.0
    %280 = vmatpush1.msra.mxu0 0.0
    %281 = vmatprep.subr.mxu0 0.0
    %282 = vmatpush1.msra.mxu0 0.0
    %283 = vmatprep.subr.mxu0 0.0
    %284 = vmatpush1.msra.mxu0 0.0
    %285 = vmatprep.subr.mxu0 0.0
    %286 = vmatpush1.msra.mxu0 0.0
    %287 = vmatprep.subr.mxu0 0.0
    %288 = vmatpush1.msra.mxu0 0.0
    %289 = vmatprep.subr.mxu0 0.0
    %290 = vmatpush1.msra.mxu0 0.0
    %291 = vmatprep.subr.mxu0 0.0
    %292 = vmatpush1.msra.mxu0 0.0
    %293 = vmatprep.subr.mxu0 0.0
    %294 = vmatpush1.msra.mxu0 0.0
    %295 = vmatprep.subr.mxu0 0.0
    %296 = vmatpush1.msra.mxu0 0.0
    %297 = vmatprep.subr.mxu0 0.0
    %298 = vmatpush1.msra.mxu0 0.0
    %299 = vmatprep.subr.mxu0 0.0
    %300 = vmatpush1.msra.mxu0 0.0
    %301 = vmatprep.subr.mxu0 0.0
    %302 = vmatpush1.msra.mxu0 0.0
    %303 = vmatprep.subr.mxu0 0.0
    %304 = vmatpush1.msra.mxu0 0.0
    %305 = vmatprep.mubr.f32.mxu0 0.0
    %v306 = vand.u32 %v42, 4294901760
    %v307 = vsub.f32 %v42, %v306
    %308 = vmatmul.mubr.f32.gmra.mrb[0].mxu0 %v307
    %v309 = vpop.f32.mrb[0].mxu0
    %v310 = vadd.f32 %v224, %v309
    %v311 = vpop.f32.mrb[0].mxu0
    %312 = vmatprep.mubr.f32.mxu0 0.0
    %v313 = vand.u32 %v45, 4294901760
    %v314 = vsub.f32 %v45, %v313
    %315 = vmatmul.mubr.f32.gmra.mrb[0].mxu0 %v314
    %v316 = vpop.f32.mrb[0].mxu0
    %v317 = vadd.f32 %v230, %v316
    %v318 = vpop.f32.mrb[0].mxu0
    %319 = vdwg.mxu0
    %320 = vmatprep.subr.mxu0 0.0
    %v321 = vand.u32 %v29, 4294901760
    %322 = vmatpush1.msra.mxu0 %v321
    %323 = vmatprep.subr.mxu0 0.0
    %v324 = vand.u32 %v30, 4294901760
    %325 = vmatpush1.msra.mxu0 %v324
    %326 = vmatprep.subr.mxu0 0.0
    %v327 = vand.u32 %v31, 4294901760
    %328 = vmatpush1.msra.mxu0 %v327
    %329 = vmatprep.subr.mxu0 0.0
    %v330 = vand.u32 %v32, 4294901760
    %331 = vmatpush1.msra.mxu0 %v330
    %332 = vmatprep.subr.mxu0 0.0
    %333 = vmatpush1.msra.mxu0 0.0
    %334 = vmatprep.subr.mxu0 0.0
    %335 = vmatpush1.msra.mxu0 0.0
    %336 = vmatprep.subr.mxu0 0.0
    %337 = vmatpush1.msra.mxu0 0.0
    %338 = vmatprep.subr.mxu0 0.0
    %339 = vmatpush1.msra.mxu0 0.0
    %340 = vmatprep.subr.mxu0 0.0
    %341 = vmatpush1.msra.mxu0 0.0
    %342 = vmatprep.subr.mxu0 0.0
    %343 = vmatpush1.msra.mxu0 0.0
    %344 = vmatprep.subr.mxu0 0.0
    %345 = vmatpush1.msra.mxu0 0.0
    %346 = vmatprep.subr.mxu0 0.0
    %347 = vmatpush1.msra.mxu0 0.0
    %348 = vmatprep.subr.mxu0 0.0
    %349 = vmatpush1.msra.mxu0 0.0
    %350 = vmatprep.subr.mxu0 0.0
    %351 = vmatpush1.msra.mxu0 0.0
    %352 = vmatprep.subr.mxu0 0.0
    %353 = vmatpush1.msra.mxu0 0.0
    %354 = vmatprep.subr.mxu0 0.0
    %355 = vmatpush1.msra.mxu0 0.0
    %356 = vmatprep.subr.mxu0 0.0
    %357 = vmatpush1.msra.mxu0 0.0
    %358 = vmatprep.subr.mxu0 0.0
    %359 = vmatpush1.msra.mxu0 0.0
    %360 = vmatprep.subr.mxu0 0.0
    %361 = vmatpush1.msra.mxu0 0.0
    %362 = vmatprep.subr.mxu0 0.0
    %363 = vmatpush1.msra.mxu0 0.0
    %364 = vmatprep.subr.mxu0 0.0
    %365 = vmatpush1.msra.mxu0 0.0
    %366 = vmatprep.subr.mxu0 0.0
    %367 = vmatpush1.msra.mxu0 0.0
    %368 = vmatprep.subr.mxu0 0.0
    %369 = vmatpush1.msra.mxu0 0.0
    %370 = vmatprep.subr.mxu0 0.0
    %371 = vmatpush1.msra.mxu0 0.0
    %372 = vmatprep.subr.mxu0 0.0
    %373 = vmatpush1.msra.mxu0 0.0
    %374 = vmatprep.subr.mxu0 0.0
    %375 = vmatpush1.msra.mxu0 0.0
    %376 = vmatprep.subr.mxu0 0.0
    %377 = vmatpush1.msra.mxu0 0.0
    %378 = vmatprep.subr.mxu0 0.0
    %379 = vmatpush1.msra.mxu0 0.0
    %380 = vmatprep.subr.mxu0 0.0
    %381 = vmatpush1.msra.mxu0 0.0
    %382 = vmatprep.subr.mxu0 0.0
    %383 = vmatpush1.msra.mxu0 0.0
    %384 = vmatprep.subr.mxu0 0.0
    %385 = vmatpush1.msra.mxu0 0.0
    %386 = vmatprep.subr.mxu0 0.0
    %387 = vmatpush1.msra.mxu0 0.0
    %388 = vmatprep.mubr.f32.mxu0 0.0
    %v389 = vand.u32 %v42, 4294901760
    %v390 = vsub.f32 %v42, %v389
    %v391 = vand.u32 %v390, 4294901760
    %392 = vmatmul.mubr.f32.gmra.mrb[0].mxu0 %v391
    %v393 = vpop.f32.mrb[0].mxu0
    %v394 = vadd.f32 %v310, %v393
    %v395 = vpop.f32.mrb[0].mxu0
    %396 = vmatprep.mubr.f32.mxu0 0.0
    %v397 = vand.u32 %v45, 4294901760
    %v398 = vsub.f32 %v45, %v397
    %v399 = vand.u32 %v398, 4294901760
    %400 = vmatmul.mubr.f32.gmra.mrb[0].mxu0 %v399
    %v401 = vpop.f32.mrb[0].mxu0
    %v402 = vadd.f32 %v317, %v401
    %v403 = vpop.f32.mrb[0].mxu0
    %404 = vdwg.mxu0
    %405 = vmatprep.subr.mxu0 0.0
    %v406 = vand.u32 %v29, 4294901760
    %v407 = vsub.f32 %v29, %v406
    %v408 = vand.u32 %v407, 4294901760
    %409 = vmatpush1.msra.mxu0 %v408
    %410 = vmatprep.subr.mxu0 0.0
    %v411 = vand.u32 %v30, 4294901760
    %v412 = vsub.f32 %v30, %v411
    %v413 = vand.u32 %v412, 4294901760
    %414 = vmatpush1.msra.mxu0 %v413
    %415 = vmatprep.subr.mxu0 0.0
    %v416 = vand.u32 %v31, 4294901760
    %v417 = vsub.f32 %v31, %v416
    %v418 = vand.u32 %v417, 4294901760
    %419 = vmatpush1.msra.mxu0 %v418
    %420 = vmatprep.subr.mxu0 0.0
    %v421 = vand.u32 %v32, 4294901760
    %v422 = vsub.f32 %v32, %v421
    %v423 = vand.u32 %v422, 4294901760
    %424 = vmatpush1.msra.mxu0 %v423
    %425 = vmatprep.subr.mxu0 0.0
    %426 = vmatpush1.msra.mxu0 0.0
    %427 = vmatprep.subr.mxu0 0.0
    %428 = vmatpush1.msra.mxu0 0.0
    %429 = vmatprep.subr.mxu0 0.0
    %430 = vmatpush1.msra.mxu0 0.0
    %431 = vmatprep.subr.mxu0 0.0
    %432 = vmatpush1.msra.mxu0 0.0
    %433 = vmatprep.subr.mxu0 0.0
    %434 = vmatpush1.msra.mxu0 0.0
    %435 = vmatprep.subr.mxu0 0.0
    %436 = vmatpush1.msra.mxu0 0.0
    %437 = vmatprep.subr.mxu0 0.0
    %438 = vmatpush1.msra.mxu0 0.0
    %439 = vmatprep.subr.mxu0 0.0
    %440 = vmatpush1.msra.mxu0 0.0
    %441 = vmatprep.subr.mxu0 0.0
    %442 = vmatpush1.msra.mxu0 0.0
    %443 = vmatprep.subr.mxu0 0.0
    %444 = vmatpush1.msra.mxu0 0.0
    %445 = vmatprep.subr.mxu0 0.0
    %446 = vmatpush1.msra.mxu0 0.0
    %447 = vmatprep.subr.mxu0 0.0
    %448 = vmatpush1.msra.mxu0 0.0
    %449 = vmatprep.subr.mxu0 0.0
    %450 = vmatpush1.msra.mxu0 0.0
    %451 = vmatprep.subr.mxu0 0.0
    %452 = vmatpush1.msra.mxu0 0.0
    %453 = vmatprep.subr.mxu0 0.0
    %454 = vmatpush1.msra.mxu0 0.0
    %455 = vmatprep.subr.mxu0 0.0
    %456 = vmatpush1.msra.mxu0 0.0
    %457 = vmatprep.subr.mxu0 0.0
    %458 = vmatpush1.msra.mxu0 0.0
    %459 = vmatprep.subr.mxu0 0.0
    %460 = vmatpush1.msra.mxu0 0.0
    %461 = vmatprep.subr.mxu0 0.0
    %462 = vmatpush1.msra.mxu0 0.0
    %463 = vmatprep.subr.mxu0 0.0
    %464 = vmatpush1.msra.mxu0 0.0
    %465 = vmatprep.subr.mxu0 0.0
    %466 = vmatpush1.msra.mxu0 0.0
    %467 = vmatprep.subr.mxu0 0.0
    %468 = vmatpush1.msra.mxu0 0.0
    %469 = vmatprep.subr.mxu0 0.0
    %470 = vmatpush1.msra.mxu0 0.0
    %471 = vmatprep.subr.mxu0 0.0
    %472 = vmatpush1.msra.mxu0 0.0
    %473 = vmatprep.subr.mxu0 0.0
    %474 = vmatpush1.msra.mxu0 0.0
    %475 = vmatprep.subr.mxu0 0.0
    %476 = vmatpush1.msra.mxu0 0.0
    %477 = vmatprep.subr.mxu0 0.0
    %478 = vmatpush1.msra.mxu0 0.0
    %479 = vmatprep.subr.mxu0 0.0
    %480 = vmatpush1.msra.mxu0 0.0
    %481 = vmatprep.mubr.f32.mxu0 0.0
    %v482 = vand.u32 %v42, 4294901760
    %483 = vmatmul.mubr.f32.gmra.mrb[0].mxu0 %v482
    %v484 = vpop.f32.mrb[0].mxu0
    %v485 = vadd.f32 %v394, %v484
    %v486 = vpop.f32.mrb[0].mxu0
    %487 = vmatprep.mubr.f32.mxu0 0.0
    %v488 = vand.u32 %v45, 4294901760
    %489 = vmatmul.mubr.f32.gmra.mrb[0].mxu0 %v488
    %v490 = vpop.f32.mrb[0].mxu0
    %v491 = vadd.f32 %v402, %v490
    %v492 = vpop.f32.mrb[0].mxu0
    %493 = vdwg.mxu0
    %494 = vmatprep.subr.mxu0 0.0
    %v495 = vand.u32 %v29, 4294901760
    %496 = vmatpush1.msra.mxu0 %v495
    %497 = vmatprep.subr.mxu0 0.0
    %v498 = vand.u32 %v30, 4294901760
    %499 = vmatpush1.msra.mxu0 %v498
    %500 = vmatprep.subr.mxu0 0.0
    %v501 = vand.u32 %v31, 4294901760
    %502 = vmatpush1.msra.mxu0 %v501
    %503 = vmatprep.subr.mxu0 0.0
    %v504 = vand.u32 %v32, 4294901760
    %505 = vmatpush1.msra.mxu0 %v504
    %506 = vmatprep.subr.mxu0 0.0
    %507 = vmatpush1.msra.mxu0 0.0
    %508 = vmatprep.subr.mxu0 0.0
    %509 = vmatpush1.msra.mxu0 0.0
    %510 = vmatprep.subr.mxu0 0.0
    %511 = vmatpush1.msra.mxu0 0.0
    %512 = vmatprep.subr.mxu0 0.0
    %513 = vmatpush1.msra.mxu0 0.0
    %514 = vmatprep.subr.mxu0 0.0
    %515 = vmatpush1.msra.mxu0 0.0
    %516 = vmatprep.subr.mxu0 0.0
    %517 = vmatpush1.msra.mxu0 0.0
    %518 = vmatprep.subr.mxu0 0.0
    %519 = vmatpush1.msra.mxu0 0.0
    %520 = vmatprep.subr.mxu0 0.0
    %521 = vmatpush1.msra.mxu0 0.0
    %522 = vmatprep.subr.mxu0 0.0
    %523 = vmatpush1.msra.mxu0 0.0
    %524 = vmatprep.subr.mxu0 0.0
    %525 = vmatpush1.msra.mxu0 0.0
    %526 = vmatprep.subr.mxu0 0.0
    %527 = vmatpush1.msra.mxu0 0.0
    %528 = vmatprep.subr.mxu0 0.0
    %529 = vmatpush1.msra.mxu0 0.0
    %530 = vmatprep.subr.mxu0 0.0
    %531 = vmatpush1.msra.mxu0 0.0
    %532 = vmatprep.subr.mxu0 0.0
    %533 = vmatpush1.msra.mxu0 0.0
    %534 = vmatprep.subr.mxu0 0.0
    %535 = vmatpush1.msra.mxu0 0.0
    %536 = vmatprep.subr.mxu0 0.0
    %537 = vmatpush1.msra.mxu0 0.0
    %538 = vmatprep.subr.mxu0 0.0
    %539 = vmatpush1.msra.mxu0 0.0
    %540 = vmatprep.subr.mxu0 0.0
    %541 = vmatpush1.msra.mxu0 0.0
    %542 = vmatprep.subr.mxu0 0.0
    %543 = vmatpush1.msra.mxu0 0.0
    %544 = vmatprep.subr.mxu0 0.0
    %545 = vmatpush1.msra.mxu0 0.0
    %546 = vmatprep.subr.mxu0 0.0
    %547 = vmatpush1.msra.mxu0 0.0
    %548 = vmatprep.subr.mxu0 0.0
    %549 = vmatpush1.msra.mxu0 0.0
    %550 = vmatprep.subr.mxu0 0.0
    %551 = vmatpush1.msra.mxu0 0.0
    %552 = vmatprep.subr.mxu0 0.0
    %553 = vmatpush1.msra.mxu0 0.0
    %554 = vmatprep.subr.mxu0 0.0
    %555 = vmatpush1.msra.mxu0 0.0
    %556 = vmatprep.subr.mxu0 0.0
    %557 = vmatpush1.msra.mxu0 0.0
    %558 = vmatprep.subr.mxu0 0.0
    %559 = vmatpush1.msra.mxu0 0.0
    %560 = vmatprep.subr.mxu0 0.0
    %561 = vmatpush1.msra.mxu0 0.0
    %562 = vmatprep.mubr.f32.mxu0 0.0
    %v563 = vand.u32 %v42, 4294901760
    %564 = vmatmul.mubr.f32.gmra.mrb[0].mxu0 %v563
    %v565 = vpop.f32.mrb[0].mxu0
    %v566 = vadd.f32 %v485, %v565
    %v567 = vpop.f32.mrb[0].mxu0
    %568 = vmatprep.mubr.f32.mxu0 0.0
    %v569 = vand.u32 %v45, 4294901760
    %570 = vmatmul.mubr.f32.gmra.mrb[0].mxu0 %v569
    %v571 = vpop.f32.mrb[0].mxu0
    %v572 = vadd.f32 %v491, %v571
    %v573 = vpop.f32.mrb[0].mxu0
    %574 = vdwg.mxu0
    %v575 = vmax.f32 %v566, 0.0
    %v576 = vmax.f32 %v572, 0.0
    %v577 = vld [vmem:[%s3] sm:$0xff]
    %v578 = vld [vmem:[%s3 + $0x8] sm:$0xff]
    %v579 = vld [vmem:[%s3 + $0x10] sm:$0xff]
    %v580 = vld [vmem:[%s3 + $0x18] sm:$0xff]
    %v581 = vld [vmem:[%s3 + $0x20] sm:$0xff]
    %v582 = vld [vmem:[%s3 + $0x28] sm:$0xff]
    %v583 = vld [vmem:[%s3 + $0x30] sm:$0xff]
    %v584 = vld [vmem:[%s3 + $0x38] sm:$0xff]
    %v585 = vld [vmem:[%s4] sm:$0x1]
    %v587 = vlaneseq
    %v588 = vshrl.u32 %v587, 7
    %v589 = vsub.s32 0, %v588
    %v590 = vrot.slane %v585, %v589
    %vm592 = vcmask 523264
    %v594 = vsel %vm592, %v575, 0
    %v597 = vsel %vm592, %v576, 0
    %599 = vmatprep.subr.mxu0 0.0
    %v600 = vand.u32 %v577, 4294901760
    %601 = vmatpush1.msra.mxu0 %v600
    %602 = vmatprep.subr.mxu0 0.0
    %v603 = vand.u32 %v578, 4294901760
    %604 = vmatpush1.msra.mxu0 %v603
    %605 = vmatprep.subr.mxu0 0.0
    %v606 = vand.u32 %v579, 4294901760
    %607 = vmatpush1.msra.mxu0 %v606
    %608 = vmatprep.subr.mxu0 0.0
    %v609 = vand.u32 %v580, 4294901760
    %610 = vmatpush1.msra.mxu0 %v609
    %611 = vmatprep.subr.mxu0 0.0
    %v612 = vand.u32 %v581, 4294901760
    %613 = vmatpush1.msra.mxu0 %v612
    %614 = vmatprep.subr.mxu0 0.0
    %v615 = vand.u32 %v582, 4294901760
    %616 = vmatpush1.msra.mxu0 %v615
    %617 = vmatprep.subr.mxu0 0.0
    %v618 = vand.u32 %v583, 4294901760
    %619 = vmatpush1.msra.mxu0 %v618
    %620 = vmatprep.subr.mxu0 0.0
    %v621 = vand.u32 %v584, 4294901760
    %622 = vmatpush1.msra.mxu0 %v621
    %623 = vmatprep.subr.mxu0 0.0
    %624 = vmatpush1.msra.mxu0 0.0
    %625 = vmatprep.subr.mxu0 0.0
    %626 = vmatpush1.msra.mxu0 0.0
    %627 = vmatprep.subr.mxu0 0.0
    %628 = vmatpush1.msra.mxu0 0.0
    %629 = vmatprep.subr.mxu0 0.0
    %630 = vmatpush1.msra.mxu0 0.0
    %631 = vmatprep.subr.mxu0 0.0
    %632 = vmatpush1.msra.mxu0 0.0
    %633 = vmatprep.subr.mxu0 0.0
    %634 = vmatpush1.msra.mxu0 0.0
    %635 = vmatprep.subr.mxu0 0.0
    %636 = vmatpush1.msra.mxu0 0.0
    %637 = vmatprep.subr.mxu0 0.0
    %638 = vmatpush1.msra.mxu0 0.0
    %639 = vmatprep.subr.mxu0 0.0
    %640 = vmatpush1.msra.mxu0 0.0
    %641 = vmatprep.subr.mxu0 0.0
    %642 = vmatpush1.msra.mxu0 0.0
    %643 = vmatprep.subr.mxu0 0.0
    %644 = vmatpush1.msra.mxu0 0.0
    %645 = vmatprep.subr.mxu0 0.0
    %646 = vmatpush1.msra.mxu0 0.0
    %647 = vmatprep.subr.mxu0 0.0
    %648 = vmatpush1.msra.mxu0 0.0
    %649 = vmatprep.subr.mxu0 0.0
    %650 = vmatpush1.msra.mxu0 0.0
    %651 = vmatprep.subr.mxu0 0.0
    %652 = vmatpush1.msra.mxu0 0.0
    %653 = vmatprep.subr.mxu0 0.0
    %654 = vmatpush1.msra.mxu0 0.0
    %655 = vmatprep.subr.mxu0 0.0
    %656 = vmatpush1.msra.mxu0 0.0
    %657 = vmatprep.subr.mxu0 0.0
    %658 = vmatpush1.msra.mxu0 0.0
    %659 = vmatprep.subr.mxu0 0.0
    %660 = vmatpush1.msra.mxu0 0.0
    %661 = vmatprep.subr.mxu0 0.0
    %662 = vmatpush1.msra.mxu0 0.0
    %663 = vmatprep.subr.mxu0 0.0
    %664 = vmatpush1.msra.mxu0 0.0
    %665 = vmatprep.subr.mxu0 0.0
    %666 = vmatpush1.msra.mxu0 0.0
    %667 = vmatprep.subr.mxu0 0.0
    %668 = vmatpush1.msra.mxu0 0.0
    %669 = vmatprep.subr.mxu0 0.0
    %670 = vmatpush1.msra.mxu0 0.0
    %671 = vmatprep.mubr.f32.mxu0 0.0
    %v672 = vand.u32 %v594, 4294901760
    %v673 = vsub.f32 %v594, %v672
    %v674 = vand.u32 %v673, 4294901760
    %v675 = vsub.f32 %v673, %v674
    %v676 = vand.u32 %v675, 4294901760
    %677 = vmatmul.mubr.f32.gmra.mrb[0].mxu0 %v676
    %v678 = vpop.f32.mrb[0].mxu0
    %v679 = vadd.f32 %v590, %v678
    %v680 = vpop.f32.mrb[0].mxu0
    %681 = vmatprep.mubr.f32.mxu0 0.0
    %v682 = vand.u32 %v597, 4294901760
    %v683 = vsub.f32 %v597, %v682
    %v684 = vand.u32 %v683, 4294901760
    %v685 = vsub.f32 %v683, %v684
    %v686 = vand.u32 %v685, 4294901760
    %687 = vmatmul.mubr.f32.gmra.mrb[0].mxu0 %v686
    %v688 = vpop.f32.mrb[0].mxu0
    %v689 = vadd.f32 %v590, %v688
    %v690 = vpop.f32.mrb[0].mxu0
    %691 = vdwg.mxu0
    %692 = vmatprep.subr.mxu0 0.0
    %v693 = vand.u32 %v577, 4294901760
    %v694 = vsub.f32 %v577, %v693
    %v695 = vand.u32 %v694, 4294901760
    %v696 = vsub.f32 %v694, %v695
    %v697 = vand.u32 %v696, 4294901760
    %698 = vmatpush1.msra.mxu0 %v697
    %699 = vmatprep.subr.mxu0 0.0
    %v700 = vand.u32 %v578, 4294901760
    %v701 = vsub.f32 %v578, %v700
    %v702 = vand.u32 %v701, 4294901760
    %v703 = vsub.f32 %v701, %v702
    %v704 = vand.u32 %v703, 4294901760
    %705 = vmatpush1.msra.mxu0 %v704
    %706 = vmatprep.subr.mxu0 0.0
    %v707 = vand.u32 %v579, 4294901760
    %v708 = vsub.f32 %v579, %v707
    %v709 = vand.u32 %v708, 4294901760
    %v710 = vsub.f32 %v708, %v709
    %v711 = vand.u32 %v710, 4294901760
    %712 = vmatpush1.msra.mxu0 %v711
    %713 = vmatprep.subr.mxu0 0.0
    %v714 = vand.u32 %v580, 4294901760
    %v715 = vsub.f32 %v580, %v714
    %v716 = vand.u32 %v715, 4294901760
    %v717 = vsub.f32 %v715, %v716
    %v718 = vand.u32 %v717, 4294901760
    %719 = vmatpush1.msra.mxu0 %v718
    %720 = vmatprep.subr.mxu0 0.0
    %v721 = vand.u32 %v581, 4294901760
    %v722 = vsub.f32 %v581, %v721
    %v723 = vand.u32 %v722, 4294901760
    %v724 = vsub.f32 %v722, %v723
    %v725 = vand.u32 %v724, 4294901760
    %726 = vmatpush1.msra.mxu0 %v725
    %727 = vmatprep.subr.mxu0 0.0
    %v728 = vand.u32 %v582, 4294901760
    %v729 = vsub.f32 %v582, %v728
    %v730 = vand.u32 %v729, 4294901760
    %v731 = vsub.f32 %v729, %v730
    %v732 = vand.u32 %v731, 4294901760
    %733 = vmatpush1.msra.mxu0 %v732
    %734 = vmatprep.subr.mxu0 0.0
    %v735 = vand.u32 %v583, 4294901760
    %v736 = vsub.f32 %v583, %v735
    %v737 = vand.u32 %v736, 4294901760
    %v738 = vsub.f32 %v736, %v737
    %v739 = vand.u32 %v738, 4294901760
    %740 = vmatpush1.msra.mxu0 %v739
    %741 = vmatprep.subr.mxu0 0.0
    %v742 = vand.u32 %v584, 4294901760
    %v743 = vsub.f32 %v584, %v742
    %v744 = vand.u32 %v743, 4294901760
    %v745 = vsub.f32 %v743, %v744
    %v746 = vand.u32 %v745, 4294901760
    %747 = vmatpush1.msra.mxu0 %v746
    %748 = vmatprep.subr.mxu0 0.0
    %749 = vmatpush1.msra.mxu0 0.0
    %750 = vmatprep.subr.mxu0 0.0
    %751 = vmatpush1.msra.mxu0 0.0
    %752 = vmatprep.subr.mxu0 0.0
    %753 = vmatpush1.msra.mxu0 0.0
    %754 = vmatprep.subr.mxu0 0.0
    %755 = vmatpush1.msra.mxu0 0.0
    %756 = vmatprep.subr.mxu0 0.0
    %757 = vmatpush1.msra.mxu0 0.0
    %758 = vmatprep.subr.mxu0 0.0
    %759 = vmatpush1.msra.mxu0 0.0
    %760 = vmatprep.subr.mxu0 0.0
    %761 = vmatpush1.msra.mxu0 0.0
    %762 = vmatprep.subr.mxu0 0.0
    %763 = vmatpush1.msra.mxu0 0.0
    %764 = vmatprep.subr.mxu0 0.0
    %765 = vmatpush1.msra.mxu0 0.0
    %766 = vmatprep.subr.mxu0 0.0
    %767 = vmatpush1.msra.mxu0 0.0
    %768 = vmatprep.subr.mxu0 0.0
    %769 = vmatpush1.msra.mxu0 0.0
    %770 = vmatprep.subr.mxu0 0.0
    %771 = vmatpush1.msra.mxu0 0.0
    %772 = vmatprep.subr.mxu0 0.0
    %773 = vmatpush1.msra.mxu0 0.0
    %774 = vmatprep.subr.mxu0 0.0
    %775 = vmatpush1.msra.mxu0 0.0
    %776 = vmatprep.subr.mxu0 0.0
    %777 = vmatpush1.msra.mxu0 0.0
    %778 = vmatprep.subr.mxu0 0.0
    %779 = vmatpush1.msra.mxu0 0.0
    %780 = vmatprep.subr.mxu0 0.0
    %781 = vmatpush1.msra.mxu0 0.0
    %782 = vmatprep.subr.mxu0 0.0
    %783 = vmatpush1.msra.mxu0 0.0
    %784 = vmatprep.subr.mxu0 0.0
    %785 = vmatpush1.msra.mxu0 0.0
    %786 = vmatprep.subr.mxu0 0.0
    %787 = vmatpush1.msra.mxu0 0.0
    %788 = vmatprep.subr.mxu0 0.0
    %789 = vmatpush1.msra.mxu0 0.0
    %790 = vmatprep.subr.mxu0 0.0
    %791 = vmatpush1.msra.mxu0 0.0
    %792 = vmatprep.subr.mxu0 0.0
    %793 = vmatpush1.msra.mxu0 0.0
    %794 = vmatprep.subr.mxu0 0.0
    %795 = vmatpush1.msra.mxu0 0.0
    %796 = vmatprep.mubr.f32.mxu0 0.0
    %v797 = vand.u32 %v594, 4294901760
    %798 = vmatmul.mubr.f32.gmra.mrb[0].mxu0 %v797
    %v799 = vpop.f32.mrb[0].mxu0
    %v800 = vadd.f32 %v679, %v799
    %v801 = vpop.f32.mrb[0].mxu0
    %802 = vmatprep.mubr.f32.mxu0 0.0
    %v803 = vand.u32 %v597, 4294901760
    %804 = vmatmul.mubr.f32.gmra.mrb[0].mxu0 %v803
    %v805 = vpop.f32.mrb[0].mxu0
    %v806 = vadd.f32 %v689, %v805
    %v807 = vpop.f32.mrb[0].mxu0
    %808 = vdwg.mxu0
    %809 = vmatprep.subr.mxu0 0.0
    %v810 = vand.u32 %v577, 4294901760
    %v811 = vsub.f32 %v577, %v810
    %812 = vmatpush1.msra.mxu0 %v811
    %813 = vmatprep.subr.mxu0 0.0
    %v814 = vand.u32 %v578, 4294901760
    %v815 = vsub.f32 %v578, %v814
    %816 = vmatpush1.msra.mxu0 %v815
    %817 = vmatprep.subr.mxu0 0.0
    %v818 = vand.u32 %v579, 4294901760
    %v819 = vsub.f32 %v579, %v818
    %820 = vmatpush1.msra.mxu0 %v819
    %821 = vmatprep.subr.mxu0 0.0
    %v822 = vand.u32 %v580, 4294901760
    %v823 = vsub.f32 %v580, %v822
    %824 = vmatpush1.msra.mxu0 %v823
    %825 = vmatprep.subr.mxu0 0.0
    %v826 = vand.u32 %v581, 4294901760
    %v827 = vsub.f32 %v581, %v826
    %828 = vmatpush1.msra.mxu0 %v827
    %829 = vmatprep.subr.mxu0 0.0
    %v830 = vand.u32 %v582, 4294901760
    %v831 = vsub.f32 %v582, %v830
    %832 = vmatpush1.msra.mxu0 %v831
    %833 = vmatprep.subr.mxu0 0.0
    %v834 = vand.u32 %v583, 4294901760
    %v835 = vsub.f32 %v583, %v834
    %836 = vmatpush1.msra.mxu0 %v835
    %837 = vmatprep.subr.mxu0 0.0
    %v838 = vand.u32 %v584, 4294901760
    %v839 = vsub.f32 %v584, %v838
    %840 = vmatpush1.msra.mxu0 %v839
    %841 = vmatprep.subr.mxu0 0.0
    %842 = vmatpush1.msra.mxu0 0.0
    %843 = vmatprep.subr.mxu0 0.0
    %844 = vmatpush1.msra.mxu0 0.0
    %845 = vmatprep.subr.mxu0 0.0
    %846 = vmatpush1.msra.mxu0 0.0
    %847 = vmatprep.subr.mxu0 0.0
    %848 = vmatpush1.msra.mxu0 0.0
    %849 = vmatprep.subr.mxu0 0.0
    %850 = vmatpush1.msra.mxu0 0.0
    %851 = vmatprep.subr.mxu0 0.0
    %852 = vmatpush1.msra.mxu0 0.0
    %853 = vmatprep.subr.mxu0 0.0
    %854 = vmatpush1.msra.mxu0 0.0
    %855 = vmatprep.subr.mxu0 0.0
    %856 = vmatpush1.msra.mxu0 0.0
    %857 = vmatprep.subr.mxu0 0.0
    %858 = vmatpush1.msra.mxu0 0.0
    %859 = vmatprep.subr.mxu0 0.0
    %860 = vmatpush1.msra.mxu0 0.0
    %861 = vmatprep.subr.mxu0 0.0
    %862 = vmatpush1.msra.mxu0 0.0
    %863 = vmatprep.subr.mxu0 0.0
    %864 = vmatpush1.msra.mxu0 0.0
    %865 = vmatprep.subr.mxu0 0.0
    %866 = vmatpush1.msra.mxu0 0.0
    %867 = vmatprep.subr.mxu0 0.0
    %868 = vmatpush1.msra.mxu0 0.0
    %869 = vmatprep.subr.mxu0 0.0
    %870 = vmatpush1.msra.mxu0 0.0
    %871 = vmatprep.subr.mxu0 0.0
    %872 = vmatpush1.msra.mxu0 0.0
    %873 = vmatprep.subr.mxu0 0.0
    %874 = vmatpush1.msra.mxu0 0.0
    %875 = vmatprep.subr.mxu0 0.0
    %876 = vmatpush1.msra.mxu0 0.0
    %877 = vmatprep.subr.mxu0 0.0
    %878 = vmatpush1.msra.mxu0 0.0
    %879 = vmatprep.subr.mxu0 0.0
    %880 = vmatpush1.msra.mxu0 0.0
    %881 = vmatprep.subr.mxu0 0.0
    %882 = vmatpush1.msra.mxu0 0.0
    %883 = vmatprep.subr.mxu0 0.0
    %884 = vmatpush1.msra.mxu0 0.0
    %885 = vmatprep.subr.mxu0 0.0
    %886 = vmatpush1.msra.mxu0 0.0
    %887 = vmatprep.subr.mxu0 0.0
    %888 = vmatpush1.msra.mxu0 0.0
    %889 = vmatprep.mubr.f32.mxu0 0.0
    %v890 = vand.u32 %v594, 4294901760
    %v891 = vsub.f32 %v594, %v890
    %892 = vmatmul.mubr.f32.gmra.mrb[0].mxu0 %v891
    %v893 = vpop.f32.mrb[0].mxu0
    %v894 = vadd.f32 %v800, %v893
    %v895 = vpop.f32.mrb[0].mxu0
    %896 = vmatprep.mubr.f32.mxu0 0.0
    %v897 = vand.u32 %v597, 4294901760
    %v898 = vsub.f32 %v597, %v897
    %899 = vmatmul.mubr.f32.gmra.mrb[0].mxu0 %v898
    %v900 = vpop.f32.mrb[0].mxu0
    %v901 = vadd.f32 %v806, %v900
    %v902 = vpop.f32.mrb[0].mxu0
    %903 = vdwg.mxu0
    %904 = vmatprep.subr.mxu0 0.0
    %v905 = vand.u32 %v577, 4294901760
    %906 = vmatpush1.msra.mxu0 %v905
    %907 = vmatprep.subr.mxu0 0.0
    %v908 = vand.u32 %v578, 4294901760
    %909 = vmatpush1.msra.mxu0 %v908
    %910 = vmatprep.subr.mxu0 0.0
    %v911 = vand.u32 %v579, 4294901760
    %912 = vmatpush1.msra.mxu0 %v911
    %913 = vmatprep.subr.mxu0 0.0
    %v914 = vand.u32 %v580, 4294901760
    %915 = vmatpush1.msra.mxu0 %v914
    %916 = vmatprep.subr.mxu0 0.0
    %v917 = vand.u32 %v581, 4294901760
    %918 = vmatpush1.msra.mxu0 %v917
    %919 = vmatprep.subr.mxu0 0.0
    %v920 = vand.u32 %v582, 4294901760
    %921 = vmatpush1.msra.mxu0 %v920
    %922 = vmatprep.subr.mxu0 0.0
    %v923 = vand.u32 %v583, 4294901760
    %924 = vmatpush1.msra.mxu0 %v923
    %925 = vmatprep.subr.mxu0 0.0
    %v926 = vand.u32 %v584, 4294901760
    %927 = vmatpush1.msra.mxu0 %v926
    %928 = vmatprep.subr.mxu0 0.0
    %929 = vmatpush1.msra.mxu0 0.0
    %930 = vmatprep.subr.mxu0 0.0
    %931 = vmatpush1.msra.mxu0 0.0
    %932 = vmatprep.subr.mxu0 0.0
    %933 = vmatpush1.msra.mxu0 0.0
    %934 = vmatprep.subr.mxu0 0.0
    %935 = vmatpush1.msra.mxu0 0.0
    %936 = vmatprep.subr.mxu0 0.0
    %937 = vmatpush1.msra.mxu0 0.0
    %938 = vmatprep.subr.mxu0 0.0
    %939 = vmatpush1.msra.mxu0 0.0
    %940 = vmatprep.subr.mxu0 0.0
    %941 = vmatpush1.msra.mxu0 0.0
    %942 = vmatprep.subr.mxu0 0.0
    %943 = vmatpush1.msra.mxu0 0.0
    %944 = vmatprep.subr.mxu0 0.0
    %945 = vmatpush1.msra.mxu0 0.0
    %946 = vmatprep.subr.mxu0 0.0
    %947 = vmatpush1.msra.mxu0 0.0
    %948 = vmatprep.subr.mxu0 0.0
    %949 = vmatpush1.msra.mxu0 0.0
    %950 = vmatprep.subr.mxu0 0.0
    %951 = vmatpush1.msra.mxu0 0.0
    %952 = vmatprep.subr.mxu0 0.0
    %953 = vmatpush1.msra.mxu0 0.0
    %954 = vmatprep.subr.mxu0 0.0
    %955 = vmatpush1.msra.mxu0 0.0
    %956 = vmatprep.subr.mxu0 0.0
    %957 = vmatpush1.msra.mxu0 0.0
    %958 = vmatprep.subr.mxu0 0.0
    %959 = vmatpush1.msra.mxu0 0.0
    %960 = vmatprep.subr.mxu0 0.0
    %961 = vmatpush1.msra.mxu0 0.0
    %962 = vmatprep.subr.mxu0 0.0
    %963 = vmatpush1.msra.mxu0 0.0
    %964 = vmatprep.subr.mxu0 0.0
    %965 = vmatpush1.msra.mxu0 0.0
    %966 = vmatprep.subr.mxu0 0.0
    %967 = vmatpush1.msra.mxu0 0.0
    %968 = vmatprep.subr.mxu0 0.0
    %969 = vmatpush1.msra.mxu0 0.0
    %970 = vmatprep.subr.mxu0 0.0
    %971 = vmatpush1.msra.mxu0 0.0
    %972 = vmatprep.subr.mxu0 0.0
    %973 = vmatpush1.msra.mxu0 0.0
    %974 = vmatprep.subr.mxu0 0.0
    %975 = vmatpush1.msra.mxu0 0.0
    %976 = vmatprep.mubr.f32.mxu0 0.0
    %v977 = vand.u32 %v594, 4294901760
    %v978 = vsub.f32 %v594, %v977
    %v979 = vand.u32 %v978, 4294901760
    %980 = vmatmul.mubr.f32.gmra.mrb[0].mxu0 %v979
    %v981 = vpop.f32.mrb[0].mxu0
    %v982 = vadd.f32 %v894, %v981
    %v983 = vpop.f32.mrb[0].mxu0
    %984 = vmatprep.mubr.f32.mxu0 0.0
    %v985 = vand.u32 %v597, 4294901760
    %v986 = vsub.f32 %v597, %v985
    %v987 = vand.u32 %v986, 4294901760
    %988 = vmatmul.mubr.f32.gmra.mrb[0].mxu0 %v987
    %v989 = vpop.f32.mrb[0].mxu0
    %v990 = vadd.f32 %v901, %v989
    %v991 = vpop.f32.mrb[0].mxu0
    %992 = vdwg.mxu0
    %993 = vmatprep.subr.mxu0 0.0
    %v994 = vand.u32 %v577, 4294901760
    %v995 = vsub.f32 %v577, %v994
    %v996 = vand.u32 %v995, 4294901760
    %997 = vmatpush1.msra.mxu0 %v996
    %998 = vmatprep.subr.mxu0 0.0
    %v999 = vand.u32 %v578, 4294901760
    %v1000 = vsub.f32 %v578, %v999
    %v1001 = vand.u32 %v1000, 4294901760
    %1002 = vmatpush1.msra.mxu0 %v1001
    %1003 = vmatprep.subr.mxu0 0.0
    %v1004 = vand.u32 %v579, 4294901760
    %v1005 = vsub.f32 %v579, %v1004
    %v1006 = vand.u32 %v1005, 4294901760
    %1007 = vmatpush1.msra.mxu0 %v1006
    %1008 = vmatprep.subr.mxu0 0.0
    %v1009 = vand.u32 %v580, 4294901760
    %v1010 = vsub.f32 %v580, %v1009
    %v1011 = vand.u32 %v1010, 4294901760
    %1012 = vmatpush1.msra.mxu0 %v1011
    %1013 = vmatprep.subr.mxu0 0.0
    %v1014 = vand.u32 %v581, 4294901760
    %v1015 = vsub.f32 %v581, %v1014
    %v1016 = vand.u32 %v1015, 4294901760
    %1017 = vmatpush1.msra.mxu0 %v1016
    %1018 = vmatprep.subr.mxu0 0.0
    %v1019 = vand.u32 %v582, 4294901760
    %v1020 = vsub.f32 %v582, %v1019
    %v1021 = vand.u32 %v1020, 4294901760
    %1022 = vmatpush1.msra.mxu0 %v1021
    %1023 = vmatprep.subr.mxu0 0.0
    %v1024 = vand.u32 %v583, 4294901760
    %v1025 = vsub.f32 %v583, %v1024
    %v1026 = vand.u32 %v1025, 4294901760
    %1027 = vmatpush1.msra.mxu0 %v1026
    %1028 = vmatprep.subr.mxu0 0.0
    %v1029 = vand.u32 %v584, 4294901760
    %v1030 = vsub.f32 %v584, %v1029
    %v1031 = vand.u32 %v1030, 4294901760
    %1032 = vmatpush1.msra.mxu0 %v1031
    %1033 = vmatprep.subr.mxu0 0.0
    %1034 = vmatpush1.msra.mxu0 0.0
    %1035 = vmatprep.subr.mxu0 0.0
    %1036 = vmatpush1.msra.mxu0 0.0
    %1037 = vmatprep.subr.mxu0 0.0
    %1038 = vmatpush1.msra.mxu0 0.0
    %1039 = vmatprep.subr.mxu0 0.0
    %1040 = vmatpush1.msra.mxu0 0.0
    %1041 = vmatprep.subr.mxu0 0.0
    %1042 = vmatpush1.msra.mxu0 0.0
    %1043 = vmatprep.subr.mxu0 0.0
    %1044 = vmatpush1.msra.mxu0 0.0
    %1045 = vmatprep.subr.mxu0 0.0
    %1046 = vmatpush1.msra.mxu0 0.0
    %1047 = vmatprep.subr.mxu0 0.0
    %1048 = vmatpush1.msra.mxu0 0.0
    %1049 = vmatprep.subr.mxu0 0.0
    %1050 = vmatpush1.msra.mxu0 0.0
    %1051 = vmatprep.subr.mxu0 0.0
    %1052 = vmatpush1.msra.mxu0 0.0
    %1053 = vmatprep.subr.mxu0 0.0
    %1054 = vmatpush1.msra.mxu0 0.0
    %1055 = vmatprep.subr.mxu0 0.0
    %1056 = vmatpush1.msra.mxu0 0.0
    %1057 = vmatprep.subr.mxu0 0.0
    %1058 = vmatpush1.msra.mxu0 0.0
    %1059 = vmatprep.subr.mxu0 0.0
    %1060 = vmatpush1.msra.mxu0 0.0
    %1061 = vmatprep.subr.mxu0 0.0
    %1062 = vmatpush1.msra.mxu0 0.0
    %1063 = vmatprep.subr.mxu0 0.0
    %1064 = vmatpush1.msra.mxu0 0.0
    %1065 = vmatprep.subr.mxu0 0.0
    %1066 = vmatpush1.msra.mxu0 0.0
    %1067 = vmatprep.subr.mxu0 0.0
    %1068 = vmatpush1.msra.mxu0 0.0
    %1069 = vmatprep.subr.mxu0 0.0
    %1070 = vmatpush1.msra.mxu0 0.0
    %1071 = vmatprep.subr.mxu0 0.0
    %1072 = vmatpush1.msra.mxu0 0.0
    %1073 = vmatprep.subr.mxu0 0.0
    %1074 = vmatpush1.msra.mxu0 0.0
    %1075 = vmatprep.subr.mxu0 0.0
    %1076 = vmatpush1.msra.mxu0 0.0
    %1077 = vmatprep.subr.mxu0 0.0
    %1078 = vmatpush1.msra.mxu0 0.0
    %1079 = vmatprep.subr.mxu0 0.0
    %1080 = vmatpush1.msra.mxu0 0.0
    %1081 = vmatprep.mubr.f32.mxu0 0.0
    %v1082 = vand.u32 %v594, 4294901760
    %1083 = vmatmul.mubr.f32.gmra.mrb[0].mxu0 %v1082
    %v1084 = vpop.f32.mrb[0].mxu0
    %v1085 = vadd.f32 %v982, %v1084
    %v1086 = vpop.f32.mrb[0].mxu0
    %1087 = vmatprep.mubr.f32.mxu0 0.0
    %v1088 = vand.u32 %v597, 4294901760
    %1089 = vmatmul.mubr.f32.gmra.mrb[0].mxu0 %v1088
    %v1090 = vpop.f32.mrb[0].mxu0
    %v1091 = vadd.f32 %v990, %v1090
    %v1092 = vpop.f32.mrb[0].mxu0
    %1093 = vdwg.mxu0
    %1094 = vmatprep.subr.mxu0 0.0
    %v1095 = vand.u32 %v577, 4294901760
    %1096 = vmatpush1.msra.mxu0 %v1095
    %1097 = vmatprep.subr.mxu0 0.0
    %v1098 = vand.u32 %v578, 4294901760
    %1099 = vmatpush1.msra.mxu0 %v1098
    %1100 = vmatprep.subr.mxu0 0.0
    %v1101 = vand.u32 %v579, 4294901760
    %1102 = vmatpush1.msra.mxu0 %v1101
    %1103 = vmatprep.subr.mxu0 0.0
    %v1104 = vand.u32 %v580, 4294901760
    %1105 = vmatpush1.msra.mxu0 %v1104
    %1106 = vmatprep.subr.mxu0 0.0
    %v1107 = vand.u32 %v581, 4294901760
    %1108 = vmatpush1.msra.mxu0 %v1107
    %1109 = vmatprep.subr.mxu0 0.0
    %v1110 = vand.u32 %v582, 4294901760
    %1111 = vmatpush1.msra.mxu0 %v1110
    %1112 = vmatprep.subr.mxu0 0.0
    %v1113 = vand.u32 %v583, 4294901760
    %1114 = vmatpush1.msra.mxu0 %v1113
    %1115 = vmatprep.subr.mxu0 0.0
    %v1116 = vand.u32 %v584, 4294901760
    %1117 = vmatpush1.msra.mxu0 %v1116
    %1118 = vmatprep.subr.mxu0 0.0
    %1119 = vmatpush1.msra.mxu0 0.0
    %1120 = vmatprep.subr.mxu0 0.0
    %1121 = vmatpush1.msra.mxu0 0.0
    %1122 = vmatprep.subr.mxu0 0.0
    %1123 = vmatpush1.msra.mxu0 0.0
    %1124 = vmatprep.subr.mxu0 0.0
    %1125 = vmatpush1.msra.mxu0 0.0
    %1126 = vmatprep.subr.mxu0 0.0
    %1127 = vmatpush1.msra.mxu0 0.0
    %1128 = vmatprep.subr.mxu0 0.0
    %1129 = vmatpush1.msra.mxu0 0.0
    %1130 = vmatprep.subr.mxu0 0.0
    %1131 = vmatpush1.msra.mxu0 0.0
    %1132 = vmatprep.subr.mxu0 0.0
    %1133 = vmatpush1.msra.mxu0 0.0
    %1134 = vmatprep.subr.mxu0 0.0
    %1135 = vmatpush1.msra.mxu0 0.0
    %1136 = vmatprep.subr.mxu0 0.0
    %1137 = vmatpush1.msra.mxu0 0.0
    %1138 = vmatprep.subr.mxu0 0.0
    %1139 = vmatpush1.msra.mxu0 0.0
    %1140 = vmatprep.subr.mxu0 0.0
    %1141 = vmatpush1.msra.mxu0 0.0
    %1142 = vmatprep.subr.mxu0 0.0
    %1143 = vmatpush1.msra.mxu0 0.0
    %1144 = vmatprep.subr.mxu0 0.0
    %1145 = vmatpush1.msra.mxu0 0.0
    %1146 = vmatprep.subr.mxu0 0.0
    %1147 = vmatpush1.msra.mxu0 0.0
    %1148 = vmatprep.subr.mxu0 0.0
    %1149 = vmatpush1.msra.mxu0 0.0
    %1150 = vmatprep.subr.mxu0 0.0
    %1151 = vmatpush1.msra.mxu0 0.0
    %1152 = vmatprep.subr.mxu0 0.0
    %1153 = vmatpush1.msra.mxu0 0.0
    %1154 = vmatprep.subr.mxu0 0.0
    %1155 = vmatpush1.msra.mxu0 0.0
    %1156 = vmatprep.subr.mxu0 0.0
    %1157 = vmatpush1.msra.mxu0 0.0
    %1158 = vmatprep.subr.mxu0 0.0
    %1159 = vmatpush1.msra.mxu0 0.0
    %1160 = vmatprep.subr.mxu0 0.0
    %1161 = vmatpush1.msra.mxu0 0.0
    %1162 = vmatprep.subr.mxu0 0.0
    %1163 = vmatpush1.msra.mxu0 0.0
    %1164 = vmatprep.subr.mxu0 0.0
    %1165 = vmatpush1.msra.mxu0 0.0
    %1166 = vmatprep.mubr.f32.mxu0 0.0
    %v1167 = vand.u32 %v594, 4294901760
    %1168 = vmatmul.mubr.f32.gmra.mrb[0].mxu0 %v1167
    %v1169 = vpop.f32.mrb[0].mxu0
    %v1170 = vadd.f32 %v1085, %v1169
    %v1171 = vpop.f32.mrb[0].mxu0
    %1172 = vmatprep.mubr.f32.mxu0 0.0
    %v1173 = vand.u32 %v597, 4294901760
    %1174 = vmatmul.mubr.f32.gmra.mrb[0].mxu0 %v1173
    %v1175 = vpop.f32.mrb[0].mxu0
    %v1176 = vadd.f32 %v1091, %v1175
    %v1177 = vpop.f32.mrb[0].mxu0
    %1178 = vdwg.mxu0
    %v1179 = vadd.f32 %v1170, %v27
    %v1180 = vadd.f32 %v1176, %v28
    %v1181 = vsel %vm40, %v1179, 0.0
    %1182 = vadd.xlane.f32.xlu0 %v1181
    %v1183 = vpop.xlane.xlu0 %1182
    %v1184 = vsel %vm40, %v1180, 0.0
    %1185 = vadd.xlane.f32.xlu0 %v1184
    %v1186 = vpop.xlane.xlu0 %1185
    %v1187 = vrcp.pop 32.0
    %v1188 = vmul.f32 %v1183, %v1187
    %v1189 = vmul.f32 %v1186, %v1187
    %v1190 = vsub.f32 %v1179, %v1188
    %v1191 = vsub.f32 %v1180, %v1189
    %v1192 = vmul.f32 %v1190, %v1190
    %v1193 = vmul.f32 %v1191, %v1191
    %v1194 = vsel %vm40, %v1192, 0.0
    %1195 = vadd.xlane.f32.xlu0 %v1194
    %v1196 = vpop.xlane.xlu0 %1195
    %v1197 = vsel %vm40, %v1193, 0.0
    %1198 = vadd.xlane.f32.xlu0 %v1197
    %v1199 = vpop.xlane.xlu0 %1198
    %v1200 = vmul.f32 %v1196, %v1187
    %v1201 = vmul.f32 %v1199, %v1187
    %v1202 = vadd.f32 %v1200, 1e-06
    %v1203 = vadd.f32 %v1201, 1e-06
    %v1204 = vrsqrt.pop %v1202
    %v1205 = vrsqrt.pop %v1203
    %v1206 = vmul.f32 %v1190, %v1204
    %v1207 = vmul.f32 %v1191, %v1205
    %v1208 = vld [vmem:[%s5] sm:$0x1]
    %v1210 = vlaneseq
    %v1211 = vshrl.u32 %v1210, 7
    %v1212 = vsub.s32 0, %v1211
    %v1213 = vrot.slane %v1208, %v1212
    %v1215 = vmul.f32 %v1206, %v1213
    %v1216 = vmul.f32 %v1207, %v1213
    %v1217 = vld [vmem:[%s6] sm:$0x1]
    %v1219 = vlaneseq
    %v1220 = vshrl.u32 %v1219, 7
    %v1221 = vsub.s32 0, %v1220
    %v1222 = vrot.slane %v1217, %v1221
    %v1224 = vadd.f32 %v1215, %v1222
    %v1225 = vadd.f32 %v1216, %v1222
    %1226 = vst.msk [vmem:[#allocation2] sm:$0xff] %vm40, %v1224
    %1227 = vst.msk [vmem:[#allocation2 + $0x8] sm:$0xff] %vm40, %v1225
    // Predicated region
    $region30: #{decoder_layer.21} parent=1 // pred_check
      _
    $region31: #{decoder_layer.21} parent=1 // pred_check_branch
      %1229 = sbr.rel (0) target = $region33
    $region32: #{decoder_layer.21} parent=1 // pred_region
      %s1231 = ssub.s32 256, 256
      %1232 = vsyncadd [#allocation3], %s1231
      %s1233 = sshll.u32 [#allocation2], 4
      %s1234 = int_to_ptr.vmem [resolvable:$true] %s1233
      %1239 = dma.vmem_to_hbm [thread:$0]  %s1234, 256, %s7, [#allocation3], 128, 128, 8
    $region33: #{decoder_layer.21} parent=1 // pred_fallthru
      _
    // Predicated region
    $region34: #{decoder_layer.21} parent=1 // pred_check
      _
    $region35: #{decoder_layer.21} parent=1 // pred_check_branch
      %1241 = sbr.rel (0) target = $region37
    $region36: #{decoder_layer.21} parent=1 // pred_region
      %1242 = dma.done [#allocation3], 256
    $region37: #{decoder_layer.21} parent=1 // pred_fallthru
      _
    %1243 = vsyncpa [#allocation3], 1

// kernel: decoder_layer.19
$region0: #{decoder_layer.19}
  #allocation0 [shape = 'u32[]', space=smem, size = 0x4, offset = 0x4, fixed_abs, tag = 'smem constant byte address 0x4 - core index']
  #allocation1 [shape = 'u32[144,128]{1,0:T(1,128)}', space=vmem, size = 0x12000, scoped, tag = 'internal scratch']
  %s0 = inlined_call_operand.vmem [shape: f32[2,4,8,8], index: 0, kind: input, shape index: {}]
  %s1 = inlined_call_operand.vmem [shape: f32[2,4,16,8], index: 1, kind: input, shape index: {}]
  %s2 = inlined_call_operand.vmem [shape: f32[2,4,16,8], index: 2, kind: input, shape index: {}]
  %s3 = inlined_call_operand.vmem [shape: f32[2,4,8,8], index: 3, kind: output, shape index: {0}]
  %s4 = inlined_call_operand.hbm [shape: f32[2,4,8,16], index: 4, kind: output, shape index: {1}]
  %5 = xla_tuple %s3, %s4
  %s6 = sld [smem:[#allocation0]]
  $region53: #{decoder_layer.19} parent=0
    _
  %s8 = ssub.s32 1, %s6
  %s9 = scalar_select 0, %s8, %s6
  $region1: #{decoder_layer.19} parent=0
    #allocation2 [shape = 'u8[8192]{0}', space=vmem, size = 0x2000, scoped, tag = 'output window, operand 1']
    #allocation3 [shape = 's32[2]{0}', space=sflag, size = 0x8, scoped, tag = 'scoped memory for decoder_layer.19']
    %10 = vsyncpa [#allocation3], 0
    %s11 = scalar_lea.sflag [#allocation3], 1
    %12 = vsyncpa %s11, 0
    loop: start=0, step=1, limit=10
    $region2: #{decoder_layer.19} parent=1 // loop_pre_header
      _
    $region3: #{decoder_layer.19} parent=1 // loop_header
      %s14 = sphi 0, %s18
      %p15 = scmp.ge.s32.totalorder %s14, 10
      %s21 = sphi 0, %s33
      %s22 = sphi 0, %s29
      %s23 = sphi 0, %s21
      %s24 = sphi 0, %s22
      %s25 = sphi 0, %s23
      %s26 = sphi 0, %s24
      %s38 = sphi 0, %s40
      %s41 = sphi 0, %s38
      %s42 = sphi 0, %s41
      %s58 = sphi 0, %s42
      %s66 = sphi 0, %s68
      %s69 = sphi 0, %s66
      %s70 = sphi 0, %s69
      %s86 = sphi 0, %s70
      %s94 = sphi 0, %s96
      %s97 = sphi 0, %s94
      %s98 = sphi 0, %s97
      %s114 = sphi 0, %s98
      %s122 = sphi 0, %s124
      %s125 = sphi 0, %s122
      %s126 = sphi 0, %s125
      %s142 = sphi 0, %s126
      %s150 = sphi 0, %s152
      %s153 = sphi 0, %s150
      %s154 = sphi 0, %s153
      %s170 = sphi 0, %s154
    $region4: #{decoder_layer.19} parent=1 // loop_header_branch
      %17 = sbr.rel (%p15) target = $region8
    $region5: #{decoder_layer.19} parent=1 // loop_body
      %s19 = ssub.s32 %s14, 1
      %s20 = ssub.s32 %s14, 2
      %s27 = sadd.s32 1, %s22
      %p28 = scmp.ge.s32.totalorder %s27, 4
      %s29 = scalar_select %p28, 0, %s27
      %s30 = sadd.s32 1, %s21
      %s31 = scalar_select %p28, %s30, %s21
      %p32 = scmp.ge.s32.totalorder %s31, 2
      %s33 = scalar_select %p32, 0, %s31
      %s34 = ssub.s32 %s21, %s33
      %s35 = ssub.s32 %s22, %s29
      %s36 = sor.u32 %s34, %s35
      %p37 = scmp.eq.s32.totalorder %s36, 0
      %s39 = sadd.s32 %s38, 1
      %s40 = scalar_select %p37, %s38, %s39
      %p43 = pneg %p37
      %p44 = scmp.eq.s32.totalorder %s14, 7
      %p45 = por %p43, %p44
      %p46 = scmp.ne.s32.totalorder %s38, %s41
      %p47 = scmp.eq.s32.totalorder %s14, 0
      %p48 = por %p46, %p47
      %p49 = scmp.ne.s32.totalorder %s38, %s41
      %p50 = scmp.eq.s32.totalorder %s19, 7
      %p51 = por %p49, %p50
      %p52 = scmp.ne.s32.totalorder %s41, %s42
      %p53 = scmp.eq.s32.totalorder %s19, 0
      %p54 = por %p52, %p53
      %p55 = scmp.ne.s32.totalorder %s41, %s42
      %p56 = scmp.eq.s32.totalorder %s20, 7
      %p57 = por %p55, %p56
      %p59 = scmp.ne.s32.totalorder %s42, %s58
      %p60 = scmp.eq.s32.totalorder %s20, 0
      %p61 = por %p59, %p60
      %s62 = ssub.s32 %s21, %s33
      %s63 = ssub.s32 %s22, %s29
      %s64 = sor.u32 %s62, %s63
      %p65 = scmp.eq.s32.totalorder %s64, 0
      %s67 = sadd.s32 %s66, 1
      %s68 = scalar_select %p65, %s66, %s67
      %p71 = pneg %p65
      %p72 = scmp.eq.s32.totalorder %s14, 7
      %p73 = por %p71, %p72
      %p74 = scmp.ne.s32.totalorder %s66, %s69
      %p75 = scmp.eq.s32.totalorder %s14, 0
      %p76 = por %p74, %p75
      %p77 = scmp.ne.s32.totalorder %s66, %s69
      %p78 = scmp.eq.s32.totalorder %s19, 7
      %p79 = por %p77, %p78
      %p80 = scmp.ne.s32.totalorder %s69, %s70
      %p81 = scmp.eq.s32.totalorder %s19, 0
      %p82 = por %p80, %p81
      %p83 = scmp.ne.s32.totalorder %s69, %s70
      %p84 = scmp.eq.s32.totalorder %s20, 7
      %p85 = por %p83, %p84
      %p87 = scmp.ne.s32.totalorder %s70, %s86
      %p88 = scmp.eq.s32.totalorder %s20, 0
      %p89 = por %p87, %p88
      %s90 = ssub.s32 %s21, %s33
      %s91 = ssub.s32 %s22, %s29
      %s92 = sor.u32 %s90, %s91
      %p93 = scmp.eq.s32.totalorder %s92, 0
      %s95 = sadd.s32 %s94, 1
      %s96 = scalar_select %p93, %s94, %s95
      %p99 = pneg %p93
      %p100 = scmp.eq.s32.totalorder %s14, 7
      %p101 = por %p99, %p100
      %p102 = scmp.ne.s32.totalorder %s94, %s97
      %p103 = scmp.eq.s32.totalorder %s14, 0
      %p104 = por %p102, %p103
      %p105 = scmp.ne.s32.totalorder %s94, %s97
      %p106 = scmp.eq.s32.totalorder %s19, 7
      %p107 = por %p105, %p106
      %p108 = scmp.ne.s32.totalorder %s97, %s98
      %p109 = scmp.eq.s32.totalorder %s19, 0
      %p110 = por %p108, %p109
      %p111 = scmp.ne.s32.totalorder %s97, %s98
      %p112 = scmp.eq.s32.totalorder %s20, 7
      %p113 = por %p111, %p112
      %p115 = scmp.ne.s32.totalorder %s98, %s114
      %p116 = scmp.eq.s32.totalorder %s20, 0
      %p117 = por %p115, %p116
      %s118 = ssub.s32 %s21, %s33
      %s119 = ssub.s32 %s22, %s29
      %s120 = sor.u32 %s118, %s119
      %p121 = scmp.eq.s32.totalorder %s120, 0
      %s123 = sadd.s32 %s122, 1
      %s124 = scalar_select %p121, %s122, %s123
      %p127 = pneg %p121
      %p128 = scmp.eq.s32.totalorder %s14, 7
      %p129 = por %p127, %p128
      %p130 = scmp.ne.s32.totalorder %s122, %s125
      %p131 = scmp.eq.s32.totalorder %s14, 0
      %p132 = por %p130, %p131
      %p133 = scmp.ne.s32.totalorder %s122, %s125
      %p134 = scmp.eq.s32.totalorder %s19, 7
      %p135 = por %p133, %p134
      %p136 = scmp.ne.s32.totalorder %s125, %s126
      %p137 = scmp.eq.s32.totalorder %s19, 0
      %p138 = por %p136, %p137
      %p139 = scmp.ne.s32.totalorder %s125, %s126
      %p140 = scmp.eq.s32.totalorder %s20, 7
      %p141 = por %p139, %p140
      %p143 = scmp.ne.s32.totalorder %s126, %s142
      %p144 = scmp.eq.s32.totalorder %s20, 0
      %p145 = por %p143, %p144
      %s146 = ssub.s32 %s21, %s33
      %s147 = ssub.s32 %s22, %s29
      %s148 = sor.u32 %s146, %s147
      %p149 = scmp.eq.s32.totalorder %s148, 0
      %s151 = sadd.s32 %s150, 1
      %s152 = scalar_select %p149, %s150, %s151
      %p155 = pneg %p149
      %p156 = scmp.eq.s32.totalorder %s14, 7
      %p157 = por %p155, %p156
      %p158 = scmp.ne.s32.totalorder %s150, %s153
      %p159 = scmp.eq.s32.totalorder %s14, 0
      %p160 = por %p158, %p159
      %p161 = scmp.ne.s32.totalorder %s150, %s153
      %p162 = scmp.eq.s32.totalorder %s19, 7
      %p163 = por %p161, %p162
      %p164 = scmp.ne.s32.totalorder %s153, %s154
      %p165 = scmp.eq.s32.totalorder %s19, 0
      %p166 = por %p164, %p165
      %p167 = scmp.ne.s32.totalorder %s153, %s154
      %p168 = scmp.eq.s32.totalorder %s20, 7
      %p169 = por %p167, %p168
      %p171 = scmp.ne.s32.totalorder %s154, %s170
      %p172 = scmp.eq.s32.totalorder %s20, 0
      %p173 = por %p171, %p172
      %p174 = scmp.le.s32.totalorder 1, %s14
      %p175 = scmp.lt.s32.totalorder %s14, 9
      %p176 = pnand %p174, %p175
      %p177 = pneg %p176
      // Predicated region
      $region9: #{decoder_layer.19} parent=5 // pred_check
        _
      $region10: #{decoder_layer.19} parent=5 // pred_check_branch
        %179 = sbr.rel (%p176) target = $region12
      $region11: #{decoder_layer.19} parent=5 // pred_region
        %s180 = ssub.s32 %s14, 1
      $region12: #{decoder_layer.19} parent=5 // pred_fallthru
        _
      %p181 = scmp.lt.s32.totalorder %s14, 8
      // Predicated region
      $region13: #{decoder_layer.19} parent=5 // pred_check
        %p182 = pneg %p181
      $region14: #{decoder_layer.19} parent=5 // pred_check_branch
        %184 = sbr.rel (%p182) target = $region16
      $region15: #{decoder_layer.19} parent=5 // pred_region
        // Predicated region
        $region17: #{decoder_layer.19} parent=15 // pred_check
          %p185 = pneg %p48
        $region18: #{decoder_layer.19} parent=15 // pred_check_branch
          %187 = sbr.rel (%p185) target = $region20
        $region19: #{decoder_layer.19} parent=15 // pred_region
          %p188 = scmp.lt.s32.totalorder %s21, 1
          %s189 = scalar_select %p188, %s21, 1
          %p190 = scmp.lt.s32.totalorder %s22, 3
          %s191 = scalar_select %p190, %s22, 3
          %s192 = smul.addr %s189, 4
          %s193 = sadd.s32 %s191, %s192
          %s194 = smul.addr %s193, 8
          %s195 = scalar_lea.vmem %s0, %s194
        $region20: #{decoder_layer.19} parent=15 // pred_fallthru
          _
        // Predicated region
        $region21: #{decoder_layer.19} parent=15 // pred_check
          %p196 = pneg %p76
        $region22: #{decoder_layer.19} parent=15 // pred_check_branch
          %198 = sbr.rel (%p196) target = $region24
        $region23: #{decoder_layer.19} parent=15 // pred_region
          %p199 = scmp.lt.s32.totalorder %s21, 1
          %s200 = scalar_select %p199, %s21, 1
          %p201 = scmp.lt.s32.totalorder %s22, 3
          %s202 = scalar_select %p201, %s22, 3
          %s203 = smul.addr %s202, 2
          %s204 = smul.addr %s200, 8
          %s205 = sadd.s32 %s203, %s204
          %s206 = smul.addr %s205, 8
          %s207 = scalar_lea.vmem %s1, %s206
        $region24: #{decoder_layer.19} parent=15 // pred_fallthru
          _
        // Predicated region
        $region25: #{decoder_layer.19} parent=15 // pred_check
          %p208 = pneg %p104
        $region26: #{decoder_layer.19} parent=15 // pred_check_branch
          %210 = sbr.rel (%p208) target = $region28
        $region27: #{decoder_layer.19} parent=15 // pred_region
          %p211 = scmp.lt.s32.totalorder %s21, 1
          %s212 = scalar_select %p211, %s21, 1
          %p213 = scmp.lt.s32.totalorder %s22, 3
          %s214 = scalar_select %p213, %s22, 3
          %s215 = smul.addr %s214, 2
          %s216 = smul.addr %s212, 8
          %s217 = sadd.s32 %s215, %s216
          %s218 = smul.addr %s217, 8
          %s219 = scalar_lea.vmem %s2, %s218
        $region28: #{decoder_layer.19} parent=15 // pred_fallthru
          _
      $region16: #{decoder_layer.19} parent=5 // pred_fallthru
        _
      %p220 = scmp.le.s32.totalorder 1, %s14
      %p221 = scmp.lt.s32.totalorder %s14, 9
      %p222 = pnand %p220, %p221
      %p223 = pneg %p222
      // Predicated region
      $region29: #{decoder_layer.19} parent=5 // pred_check
        _
      $region30: #{decoder_layer.19} parent=5 // pred_check_branch
        %225 = sbr.rel (%p222) target = $region32
      $region31: #{decoder_layer.19} parent=5 // pred_region
        %s226 = ssub.s32 %s14, 1
        %p227 = scmp.lt.s32.totalorder %s23, 1
        %s228 = scalar_select %p227, %s23, 1
        %p229 = scmp.lt.s32.totalorder %s24, 3
        %s230 = scalar_select %p229, %s24, 3
        %s231 = smul.addr %s228, 4
        %s232 = sadd.s32 %s230, %s231
        %s233 = smul.addr %s232, 8
        %s234 = scalar_lea.vmem %s0, %s233
        %p235 = pneg %p54
        %p236 = pneg %p51
        %p237 = scmp.lt.s32.totalorder %s23, 1
        %s238 = scalar_select %p237, %s23, 1
        %p239 = scmp.lt.s32.totalorder %s24, 3
        %s240 = scalar_select %p239, %s24, 3
        %s241 = smul.addr %s240, 2
        %s242 = smul.addr %s238, 8
        %s243 = sadd.s32 %s241, %s242
        %s244 = smul.addr %s243, 8
        %s245 = scalar_lea.vmem %s1, %s244
        %p246 = pneg %p82
        %p247 = pneg %p79
        %p248 = scmp.lt.s32.totalorder %s23, 1
        %s249 = scalar_select %p248, %s23, 1
        %p250 = scmp.lt.s32.totalorder %s24, 3
        %s251 = scalar_select %p250, %s24, 3
        %s252 = smul.addr %s251, 2
        %s253 = smul.addr %s249, 8
        %s254 = sadd.s32 %s252, %s253
        %s255 = smul.addr %s254, 8
        %s256 = scalar_lea.vmem %s2, %s255
        %p257 = pneg %p110
        %p258 = pneg %p107
        %p259 = pneg %p138
        %p260 = pneg %p135
        %p261 = scmp.lt.s32.totalorder %s23, 1
        %s262 = scalar_select %p261, %s23, 1
        %p263 = scmp.lt.s32.totalorder %s24, 3
        %s264 = scalar_select %p263, %s24, 3
        %s265 = smul.addr %s262, 4
        %s266 = sadd.s32 %s264, %s265
        %s267 = smul.addr %s266, 8
        %s268 = scalar_lea.vmem %s3, %s267
        %p269 = pneg %p166
        %p270 = pneg %p163
        %s271 = sand.u32 %s153, 1
        %s272 = scalar_lea.sflag [#allocation3], %s271
        %s273 = sand.u32 %s153, 1
        %s274 = smul.addr %s273, 8
        %s275 = scalar_lea.vmem [#allocation2], %s274
        %p276 = scmp.lt.s32.totalorder %s23, 1
        %s277 = scalar_select %p276, %s23, 1
        %p278 = scmp.lt.s32.totalorder %s24, 3
        %s279 = scalar_select %p278, %s24, 3
        %s280 = smul.addr %s277, 4
        %s281 = sadd.s32 %s279, %s280
        %s282 = smul.addr %s281, 8
        %s283 = scalar_lea.vmem %s0, %s282
        %p284 = scmp.lt.s32.totalorder %s23, 1
        %s285 = scalar_select %p284, %s23, 1
        %p286 = scmp.lt.s32.totalorder %s24, 3
        %s287 = scalar_select %p286, %s24, 3
        %s288 = smul.addr %s287, 2
        %s289 = smul.addr %s285, 8
        %s290 = sadd.s32 %s288, %s289
        %s291 = smul.addr %s290, 8
        %s292 = scalar_lea.vmem %s1, %s291
        %p293 = scmp.lt.s32.totalorder %s23, 1
        %s294 = scalar_select %p293, %s23, 1
        %p295 = scmp.lt.s32.totalorder %s24, 3
        %s296 = scalar_select %p295, %s24, 3
        %s297 = smul.addr %s296, 2
        %s298 = smul.addr %s294, 8
        %s299 = sadd.s32 %s297, %s298
        %s300 = smul.addr %s299, 8
        %s301 = scalar_lea.vmem %s2, %s300
        %p302 = scmp.lt.s32.totalorder %s23, 1
        %s303 = scalar_select %p302, %s23, 1
        %p304 = scmp.lt.s32.totalorder %s24, 3
        %s305 = scalar_select %p304, %s24, 3
        %s306 = smul.addr %s303, 4
        %s307 = sadd.s32 %s305, %s306
        %s308 = smul.addr %s307, 8
        %s309 = scalar_lea.vmem %s3, %s308
        %v310 = vld [vmem:[%s283] sm:$0xff]
        %v311 = vld [vmem:[%s292] sm:$0xff]
        %v312 = vld [vmem:[%s292 + $0x8] sm:$0xff]
        %v313 = vld [vmem:[%s301] sm:$0xff]
        %v314 = vld [vmem:[%s301 + $0x8] sm:$0xff]
        %v315 = vmul.f32 %v310, 0.35355338
        %vm316 = vcmask 64512
        %v318 = vsel %vm316, %v315, 0
        %v321 = vsel %vm316, %v311, 0
        %v324 = vsel %vm316, %v312, 0
        %326 = vmatprep.subr.mxu0 0.0
        %v327 = vand.u32 %v321, 4294901760
        %328 = vmatpush1.xpose.msra.mxu0 %v327
        %329 = vmatprep.subr.mxu0 0.0
        %v330 = vand.u32 %v324, 4294901760
        %331 = vmatpush1.xpose.msra.mxu0 %v330
        %332 = vmatprep.subr.mxu0 0.0
        %333 = vmatpush1.xpose.msra.mxu0 0.0
        %334 = vmatprep.subr.mxu0 0.0
        %335 = vmatpush1.xpose.msra.mxu0 0.0
        %336 = vmatprep.subr.mxu0 0.0
        %337 = vmatpush1.xpose.msra.mxu0 0.0
        %338 = vmatprep.subr.mxu0 0.0
        %339 = vmatpush1.xpose.msra.mxu0 0.0
        %340 = vmatprep.subr.mxu0 0.0
        %341 = vmatpush1.xpose.msra.mxu0 0.0
        %342 = vmatprep.subr.mxu0 0.0
        %343 = vmatpush1.xpose.msra.mxu0 0.0
        %344 = vmatprep.subr.mxu0 0.0
        %345 = vmatpush1.xpose.msra.mxu0 0.0
        %346 = vmatprep.subr.mxu0 0.0
        %347 = vmatpush1.xpose.msra.mxu0 0.0
        %348 = vmatprep.subr.mxu0 0.0
        %349 = vmatpush1.xpose.msra.mxu0 0.0
        %350 = vmatprep.subr.mxu0 0.0
        %351 = vmatpush1.xpose.msra.mxu0 0.0
        %352 = vmatprep.subr.mxu0 0.0
        %353 = vmatpush1.xpose.msra.mxu0 0.0
        %354 = vmatprep.subr.mxu0 0.0
        %355 = vmatpush1.xpose.msra.mxu0 0.0
        %356 = vmatprep.subr.mxu0 0.0
        %357 = vmatpush1.xpose.msra.mxu0 0.0
        %358 = vmatprep.subr.mxu0 0.0
        %359 = vmatpush1.xpose.msra.mxu0 0.0
        %360 = vmatprep.subr.mxu0 0.0
        %361 = vmatpush1.xpose.msra.mxu0 0.0
        %362 = vmatprep.subr.mxu0 0.0
        %363 = vmatpush1.xpose.msra.mxu0 0.0
        %364 = vmatprep.subr.mxu0 0.0
        %365 = vmatpush1.xpose.msra.mxu0 0.0
        %366 = vmatprep.subr.mxu0 0.0
        %367 = vmatpush1.xpose.msra.mxu0 0.0
        %368 = vmatprep.subr.mxu0 0.0
        %369 = vmatpush1.xpose.msra.mxu0 0.0
        %370 = vmatprep.subr.mxu0 0.0
        %371 = vmatpush1.xpose.msra.mxu0 0.0
        %372 = vmatprep.subr.mxu0 0.0
        %373 = vmatpush1.xpose.msra.mxu0 0.0
        %374 = vmatprep.subr.mxu0 0.0
        %375 = vmatpush1.xpose.msra.mxu0 0.0
        %376 = vmatprep.subr.mxu0 0.0
        %377 = vmatpush1.xpose.msra.mxu0 0.0
        %378 = vmatprep.subr.mxu0 0.0
        %379 = vmatpush1.xpose.msra.mxu0 0.0
        %380 = vmatprep.subr.mxu0 0.0
        %381 = vmatpush1.xpose.msra.mxu0 0.0
        %382 = vmatprep.subr.mxu0 0.0
        %383 = vmatpush1.xpose.msra.mxu0 0.0
        %384 = vmatprep.subr.mxu0 0.0
        %385 = vmatpush1.xpose.msra.mxu0 0.0
        %386 = vmatprep.subr.mxu0 0.0
        %387 = vmatpush1.xpose.msra.mxu0 0.0
        %388 = vmatprep.subr.mxu0 0.0
        %389 = vmatpush1.xpose.msra.mxu0 0.0
        %390 = vmatprep.subr.mxu0 0.0
        %391 = vmatpush1.xpose.msra.mxu0 0.0
        %392 = vmatprep.mubr.f32.mxu0 0.0
        %v393 = vand.u32 %v318, 4294901760
        %v394 = vsub.f32 %v318, %v393
        %v395 = vand.u32 %v394, 4294901760
        %v396 = vsub.f32 %v394, %v395
        %v397 = vand.u32 %v396, 4294901760
        %398 = vmatmul.mubr.f32.gmra.mrb[0].mxu0 %v397
        %v399 = vpop.f32.mrb[0].mxu0
        %v400 = vadd.f32 0.0, %v399
        %v401 = vpop.f32.mrb[0].mxu0
        %402 = vdwg.mxu0
        %403 = vmatprep.subr.mxu0 0.0
        %v404 = vand.u32 %v321, 4294901760
        %v405 = vsub.f32 %v321, %v404
        %v406 = vand.u32 %v405, 4294901760
        %v407 = vsub.f32 %v405, %v406
        %v408 = vand.u32 %v407, 4294901760
        %409 = vmatpush1.xpose.msra.mxu0 %v408
        %410 = vmatprep.subr.mxu0 0.0
        %v411 = vand.u32 %v324, 4294901760
        %v412 = vsub.f32 %v324, %v411
        %v413 = vand.u32 %v412, 4294901760
        %v414 = vsub.f32 %v412, %v413
        %v415 = vand.u32 %v414, 4294901760
        %416 = vmatpush1.xpose.msra.mxu0 %v415
        %417 = vmatprep.subr.mxu0 0.0
        %418 = vmatpush1.xpose.msra.mxu0 0.0
        %419 = vmatprep.subr.mxu0 0.0
        %420 = vmatpush1.xpose.msra.mxu0 0.0
        %421 = vmatprep.subr.mxu0 0.0
        %422 = vmatpush1.xpose.msra.mxu0 0.0
        %423 = vmatprep.subr.mxu0 0.0
        %424 = vmatpush1.xpose.msra.mxu0 0.0
        %425 = vmatprep.subr.mxu0 0.0
        %426 = vmatpush1.xpose.msra.mxu0 0.0
        %427 = vmatprep.subr.mxu0 0.0
        %428 = vmatpush1.xpose.msra.mxu0 0.0
        %429 = vmatprep.subr.mxu0 0.0
        %430 = vmatpush1.xpose.msra.mxu0 0.0
        %431 = vmatprep.subr.mxu0 0.0
        %432 = vmatpush1.xpose.msra.mxu0 0.0
        %433 = vmatprep.subr.mxu0 0.0
        %434 = vmatpush1.xpose.msra.mxu0 0.0
        %435 = vmatprep.subr.mxu0 0.0
        %436 = vmatpush1.xpose.msra.mxu0 0.0
        %437 = vmatprep.subr.mxu0 0.0
        %438 = vmatpush1.xpose.msra.mxu0 0.0
        %439 = vmatprep.subr.mxu0 0.0
        %440 = vmatpush1.xpose.msra.mxu0 0.0
        %441 = vmatprep.subr.mxu0 0.0
        %442 = vmatpush1.xpose.msra.mxu0 0.0
        %443 = vmatprep.subr.mxu0 0.0
        %444 = vmatpush1.xpose.msra.mxu0 0.0
        %445 = vmatprep.subr.mxu0 0.0
        %446 = vmatpush1.xpose.msra.mxu0 0.0
        %447 = vmatprep.subr.mxu0 0.0
        %448 = vmatpush1.xpose.msra.mxu0 0.0
        %449 = vmatprep.subr.mxu0 0.0
        %450 = vmatpush1.xpose.msra.mxu0 0.0
        %451 = vmatprep.subr.mxu0 0.0
        %452 = vmatpush1.xpose.msra.mxu0 0.0
        %453 = vmatprep.subr.mxu0 0.0
        %454 = vmatpush1.xpose.msra.mxu0 0.0
        %455 = vmatprep.subr.mxu0 0.0
        %456 = vmatpush1.xpose.msra.mxu0 0.0
        %457 = vmatprep.subr.mxu0 0.0
        %458 = vmatpush1.xpose.msra.mxu0 0.0
        %459 = vmatprep.subr.mxu0 0.0
        %460 = vmatpush1.xpose.msra.mxu0 0.0
        %461 = vmatprep.subr.mxu0 0.0
        %462 = vmatpush1.xpose.msra.mxu0 0.0
        %463 = vmatprep.subr.mxu0 0.0
        %464 = vmatpush1.xpose.msra.mxu0 0.0
        %465 = vmatprep.subr.mxu0 0.0
        %466 = vmatpush1.xpose.msra.mxu0 0.0
        %467 = vmatprep.subr.mxu0 0.0
        %468 = vmatpush1.xpose.msra.mxu0 0.0
        %469 = vmatprep.subr.mxu0 0.0
        %470 = vmatpush1.xpose.msra.mxu0 0.0
        %471 = vmatprep.subr.mxu0 0.0
        %472 = vmatpush1.xpose.msra.mxu0 0.0
        %473 = vmatprep.subr.mxu0 0.0
        %474 = vmatpush1.xpose.msra.mxu0 0.0
        %475 = vmatprep.subr.mxu0 0.0
        %476 = vmatpush1.xpose.msra.mxu0 0.0
        %477 = vmatprep.mubr.f32.mxu0 0.0
        %v478 = vand.u32 %v318, 4294901760
        %479 = vmatmul.mubr.f32.gmra.mrb[0].mxu0 %v478
        %v480 = vpop.f32.mrb[0].mxu0
        %v481 = vadd.f32 %v400, %v480
        %v482 = vpop.f32.mrb[0].mxu0
        %483 = vdwg.mxu0
        %484 = vmatprep.subr.mxu0 0.0
        %v485 = vand.u32 %v321, 4294901760
        %v486 = vsub.f32 %v321, %v485
        %487 = vmatpush1.xpose.msra.mxu0 %v486
        %488 = vmatprep.subr.mxu0 0.0
        %v489 = vand.u32 %v324, 4294901760
        %v490 = vsub.f32 %v324, %v489
        %491 = vmatpush1.xpose.msra.mxu0 %v490
        %492 = vmatprep.subr.mxu0 0.0
        %493 = vmatpush1.xpose.msra.mxu0 0.0
        %494 = vmatprep.subr.mxu0 0.0
        %495 = vmatpush1.xpose.msra.mxu0 0.0
        %496 = vmatprep.subr.mxu0 0.0
        %497 = vmatpush1.xpose.msra.mxu0 0.0
        %498 = vmatprep.subr.mxu0 0.0
        %499 = vmatpush1.xpose.msra.mxu0 0.0
        %500 = vmatprep.subr.mxu0 0.0
        %501 = vmatpush1.xpose.msra.mxu0 0.0
        %502 = vmatprep.subr.mxu0 0.0
        %503 = vmatpush1.xpose.msra.mxu0 0.0
        %504 = vmatprep.subr.mxu0 0.0
        %505 = vmatpush1.xpose.msra.mxu0 0.0
        %506 = vmatprep.subr.mxu0 0.0
        %507 = vmatpush1.xpose.msra.mxu0 0.0
        %508 = vmatprep.subr.mxu0 0.0
        %509 = vmatpush1.xpose.msra.mxu0 0.0
        %510 = vmatprep.subr.mxu0 0.0
        %511 = vmatpush1.xpose.msra.mxu0 0.0
        %512 = vmatprep.subr.mxu0 0.0
        %513 = vmatpush1.xpose.msra.mxu0 0.0
        %514 = vmatprep.subr.mxu0 0.0
        %515 = vmatpush1.xpose.msra.mxu0 0.0
        %516 = vmatprep.subr.mxu0 0.0
        %517 = vmatpush1.xpose.msra.mxu0 0.0
        %518 = vmatprep.subr.mxu0 0.0
        %519 = vmatpush1.xpose.msra.mxu0 0.0
        %520 = vmatprep.subr.mxu0 0.0
        %521 = vmatpush1.xpose.msra.mxu0 0.0
        %522 = vmatprep.subr.mxu0 0.0
        %523 = vmatpush1.xpose.msra.mxu0 0.0
        %524 = vmatprep.subr.mxu0 0.0
        %525 = vmatpush1.xpose.msra.mxu0 0.0
        %526 = vmatprep.subr.mxu0 0.0
        %527 = vmatpush1.xpose.msra.mxu0 0.0
        %528 = vmatprep.subr.mxu0 0.0
        %529 = vmatpush1.xpose.msra.mxu0 0.0
        %530 = vmatprep.subr.mxu0 0.0
        %531 = vmatpush1.xpose.msra.mxu0 0.0
        %532 = vmatprep.subr.mxu0 0.0
        %533 = vmatpush1.xpose.msra.mxu0 0.0
        %534 = vmatprep.subr.mxu0 0.0
        %535 = vmatpush1.xpose.msra.mxu0 0.0
        %536 = vmatprep.subr.mxu0 0.0
        %537 = vmatpush1.xpose.msra.mxu0 0.0
        %538 = vmatprep.subr.mxu0 0.0
        %539 = vmatpush1.xpose.msra.mxu0 0.0
        %540 = vmatprep.subr.mxu0 0.0
        %541 = vmatpush1.xpose.msra.mxu0 0.0
        %542 = vmatprep.subr.mxu0 0.0
        %543 = vmatpush1.xpose.msra.mxu0 0.0
        %544 = vmatprep.subr.mxu0 0.0
        %545 = vmatpush1.xpose.msra.mxu0 0.0
        %546 = vmatprep.subr.mxu0 0.0
        %547 = vmatpush1.xpose.msra.mxu0 0.0
        %548 = vmatprep.subr.mxu0 0.0
        %549 = vmatpush1.xpose.msra.mxu0 0.0
        %550 = vmatprep.subr.mxu0 0.0
        %551 = vmatpush1.xpose.msra.mxu0 0.0
        %552 = vmatprep.mubr.f32.mxu0 0.0
        %v553 = vand.u32 %v318, 4294901760
        %v554 = vsub.f32 %v318, %v553
        %555 = vmatmul.mubr.f32.gmra.mrb[0].mxu0 %v554
        %v556 = vpop.f32.mrb[0].mxu0
        %v557 = vadd.f32 %v481, %v556
        %v558 = vpop.f32.mrb[0].mxu0
        %559 = vdwg.mxu0
        %560 = vmatprep.subr.mxu0 0.0
        %v561 = vand.u32 %v321, 4294901760
        %562 = vmatpush1.xpose.msra.mxu0 %v561
        %563 = vmatprep.subr.mxu0 0.0
        %v564 = vand.u32 %v324, 4294901760
        %565 = vmatpush1.xpose.msra.mxu0 %v564
        %566 = vmatprep.subr.mxu0 0.0
        %567 = vmatpush1.xpose.msra.mxu0 0.0
        %568 = vmatprep.subr.mxu0 0.0
        %569 = vmatpush1.xpose.msra.mxu0 0.0
        %570 = vmatprep.subr.mxu0 0.0
        %571 = vmatpush1.xpose.msra.mxu0 0.0
        %572 = vmatprep.subr.mxu0 0.0
        %573 = vmatpush1.xpose.msra.mxu0 0.0
        %574 = vmatprep.subr.mxu0 0.0
        %575 = vmatpush1.xpose.msra.mxu0 0.0
        %576 = vmatprep.subr.mxu0 0.0
        %577 = vmatpush1.xpose.msra.mxu0 0.0
        %578 = vmatprep.subr.mxu0 0.0
        %579 = vmatpush1.xpose.msra.mxu0 0.0
        %580 = vmatprep.subr.mxu0 0.0
        %581 = vmatpush1.xpose.msra.mxu0 0.0
        %582 = vmatprep.subr.mxu0 0.0
        %583 = vmatpush1.xpose.msra.mxu0 0.0
        %584 = vmatprep.subr.mxu0 0.0
        %585 = vmatpush1.xpose.msra.mxu0 0.0
        %586 = vmatprep.subr.mxu0 0.0
        %587 = vmatpush1.xpose.msra.mxu0 0.0
        %588 = vmatprep.subr.mxu0 0.0
        %589 = vmatpush1.xpose.msra.mxu0 0.0
        %590 = vmatprep.subr.mxu0 0.0
        %591 = vmatpush1.xpose.msra.mxu0 0.0
        %592 = vmatprep.subr.mxu0 0.0
        %593 = vmatpush1.xpose.msra.mxu0 0.0
        %594 = vmatprep.subr.mxu0 0.0
        %595 = vmatpush1.xpose.msra.mxu0 0.0
        %596 = vmatprep.subr.mxu0 0.0
        %597 = vmatpush1.xpose.msra.mxu0 0.0
        %598 = vmatprep.subr.mxu0 0.0
        %599 = vmatpush1.xpose.msra.mxu0 0.0
        %600 = vmatprep.subr.mxu0 0.0
        %601 = vmatpush1.xpose.msra.mxu0 0.0
        %602 = vmatprep.subr.mxu0 0.0
        %603 = vmatpush1.xpose.msra.mxu0 0.0
        %604 = vmatprep.subr.mxu0 0.0
        %605 = vmatpush1.xpose.msra.mxu0 0.0
        %606 = vmatprep.subr.mxu0 0.0
        %607 = vmatpush1.xpose.msra.mxu0 0.0
        %608 = vmatprep.subr.mxu0 0.0
        %609 = vmatpush1.xpose.msra.mxu0 0.0
        %610 = vmatprep.subr.mxu0 0.0
        %611 = vmatpush1.xpose.msra.mxu0 0.0
        %612 = vmatprep.subr.mxu0 0.0
        %613 = vmatpush1.xpose.msra.mxu0 0.0
        %614 = vmatprep.subr.mxu0 0.0
        %615 = vmatpush1.xpose.msra.mxu0 0.0
        %616 = vmatprep.subr.mxu0 0.0
        %617 = vmatpush1.xpose.msra.mxu0 0.0
        %618 = vmatprep.subr.mxu0 0.0
        %619 = vmatpush1.xpose.msra.mxu0 0.0
        %620 = vmatprep.subr.mxu0 0.0
        %621 = vmatpush1.xpose.msra.mxu0 0.0
        %622 = vmatprep.subr.mxu0 0.0
        %623 = vmatpush1.xpose.msra.mxu0 0.0
        %624 = vmatprep.subr.mxu0 0.0
        %625 = vmatpush1.xpose.msra.mxu0 0.0
        %626 = vmatprep.mubr.f32.mxu0 0.0
        %v627 = vand.u32 %v318, 4294901760
        %v628 = vsub.f32 %v318, %v627
        %v629 = vand.u32 %v628, 4294901760
        %630 = vmatmul.mubr.f32.gmra.mrb[0].mxu0 %v629
        %v631 = vpop.f32.mrb[0].mxu0
        %v632 = vadd.f32 %v557, %v631
        %v633 = vpop.f32.mrb[0].mxu0
        %634 = vdwg.mxu0
        %635 = vmatprep.subr.mxu0 0.0
        %v636 = vand.u32 %v321, 4294901760
        %v637 = vsub.f32 %v321, %v636
        %v638 = vand.u32 %v637, 4294901760
        %639 = vmatpush1.xpose.msra.mxu0 %v638
        %640 = vmatprep.subr.mxu0 0.0
        %v641 = vand.u32 %v324, 4294901760
        %v642 = vsub.f32 %v324, %v641
        %v643 = vand.u32 %v642, 4294901760
        %644 = vmatpush1.xpose.msra.mxu0 %v643
        %645 = vmatprep.subr.mxu0 0.0
        %646 = vmatpush1.xpose.msra.mxu0 0.0
        %647 = vmatprep.subr.mxu0 0.0
        %648 = vmatpush1.xpose.msra.mxu0 0.0
        %649 = vmatprep.subr.mxu0 0.0
        %650 = vmatpush1.xpose.msra.mxu0 0.0
        %651 = vmatprep.subr.mxu0 0.0
        %652 = vmatpush1.xpose.msra.mxu0 0.0
        %653 = vmatprep.subr.mxu0 0.0
        %654 = vmatpush1.xpose.msra.mxu0 0.0
        %655 = vmatprep.subr.mxu0 0.0
        %656 = vmatpush1.xpose.msra.mxu0 0.0
        %657 = vmatprep.subr.mxu0 0.0
        %658 = vmatpush1.xpose.msra.mxu0 0.0
        %659 = vmatprep.subr.mxu0 0.0
        %660 = vmatpush1.xpose.msra.mxu0 0.0
        %661 = vmatprep.subr.mxu0 0.0
        %662 = vmatpush1.xpose.msra.mxu0 0.0
        %663 = vmatprep.subr.mxu0 0.0
        %664 = vmatpush1.xpose.msra.mxu0 0.0
        %665 = vmatprep.subr.mxu0 0.0
        %666 = vmatpush1.xpose.msra.mxu0 0.0
        %667 = vmatprep.subr.mxu0 0.0
        %668 = vmatpush1.xpose.msra.mxu0 0.0
        %669 = vmatprep.subr.mxu0 0.0
        %670 = vmatpush1.xpose.msra.mxu0 0.0
        %671 = vmatprep.subr.mxu0 0.0
        %672 = vmatpush1.xpose.msra.mxu0 0.0
        %673 = vmatprep.subr.mxu0 0.0
        %674 = vmatpush1.xpose.msra.mxu0 0.0
        %675 = vmatprep.subr.mxu0 0.0
        %676 = vmatpush1.xpose.msra.mxu0 0.0
        %677 = vmatprep.subr.mxu0 0.0
        %678 = vmatpush1.xpose.msra.mxu0 0.0
        %679 = vmatprep.subr.mxu0 0.0
        %680 = vmatpush1.xpose.msra.mxu0 0.0
        %681 = vmatprep.subr.mxu0 0.0
        %682 = vmatpush1.xpose.msra.mxu0 0.0
        %683 = vmatprep.subr.mxu0 0.0
        %684 = vmatpush1.xpose.msra.mxu0 0.0
        %685 = vmatprep.subr.mxu0 0.0
        %686 = vmatpush1.xpose.msra.mxu0 0.0
        %687 = vmatprep.subr.mxu0 0.0
        %688 = vmatpush1.xpose.msra.mxu0 0.0
        %689 = vmatprep.subr.mxu0 0.0
        %690 = vmatpush1.xpose.msra.mxu0 0.0
        %691 = vmatprep.subr.mxu0 0.0
        %692 = vmatpush1.xpose.msra.mxu0 0.0
        %693 = vmatprep.subr.mxu0 0.0
        %694 = vmatpush1.xpose.msra.mxu0 0.0
        %695 = vmatprep.subr.mxu0 0.0
        %696 = vmatpush1.xpose.msra.mxu0 0.0
        %697 = vmatprep.subr.mxu0 0.0
        %698 = vmatpush1.xpose.msra.mxu0 0.0
        %699 = vmatprep.subr.mxu0 0.0
        %700 = vmatpush1.xpose.msra.mxu0 0.0
        %701 = vmatprep.subr.mxu0 0.0
        %702 = vmatpush1.xpose.msra.mxu0 0.0
        %703 = vmatprep.subr.mxu0 0.0
        %704 = vmatpush1.xpose.msra.mxu0 0.0
        %705 = vmatprep.mubr.f32.mxu0 0.0
        %v706 = vand.u32 %v318, 4294901760
        %707 = vmatmul.mubr.f32.gmra.mrb[0].mxu0 %v706
        %v708 = vpop.f32.mrb[0].mxu0
        %v709 = vadd.f32 %v632, %v708
        %v710 = vpop.f32.mrb[0].mxu0
        %711 = vdwg.mxu0
        %712 = vmatprep.subr.mxu0 0.0
        %v713 = vand.u32 %v321, 4294901760
        %714 = vmatpush1.xpose.msra.mxu0 %v713
        %715 = vmatprep.subr.mxu0 0.0
        %v716 = vand.u32 %v324, 4294901760
        %717 = vmatpush1.xpose.msra.mxu0 %v716
        %718 = vmatprep.subr.mxu0 0.0
        %719 = vmatpush1.xpose.msra.mxu0 0.0
        %720 = vmatprep.subr.mxu0 0.0
        %721 = vmatpush1.xpose.msra.mxu0 0.0
        %722 = vmatprep.subr.mxu0 0.0
        %723 = vmatpush1.xpose.msra.mxu0 0.0
        %724 = vmatprep.subr.mxu0 0.0
        %725 = vmatpush1.xpose.msra.mxu0 0.0
        %726 = vmatprep.subr.mxu0 0.0
        %727 = vmatpush1.xpose.msra.mxu0 0.0
        %728 = vmatprep.subr.mxu0 0.0
        %729 = vmatpush1.xpose.msra.mxu0 0.0
        %730 = vmatprep.subr.mxu0 0.0
        %731 = vmatpush1.xpose.msra.mxu0 0.0
        %732 = vmatprep.subr.mxu0 0.0
        %733 = vmatpush1.xpose.msra.mxu0 0.0
        %734 = vmatprep.subr.mxu0 0.0
        %735 = vmatpush1.xpose.msra.mxu0 0.0
        %736 = vmatprep.subr.mxu0 0.0
        %737 = vmatpush1.xpose.msra.mxu0 0.0
        %738 = vmatprep.subr.mxu0 0.0
        %739 = vmatpush1.xpose.msra.mxu0 0.0
        %740 = vmatprep.subr.mxu0 0.0
        %741 = vmatpush1.xpose.msra.mxu0 0.0
        %742 = vmatprep.subr.mxu0 0.0
        %743 = vmatpush1.xpose.msra.mxu0 0.0
        %744 = vmatprep.subr.mxu0 0.0
        %745 = vmatpush1.xpose.msra.mxu0 0.0
        %746 = vmatprep.subr.mxu0 0.0
        %747 = vmatpush1.xpose.msra.mxu0 0.0
        %748 = vmatprep.subr.mxu0 0.0
        %749 = vmatpush1.xpose.msra.mxu0 0.0
        %750 = vmatprep.subr.mxu0 0.0
        %751 = vmatpush1.xpose.msra.mxu0 0.0
        %752 = vmatprep.subr.mxu0 0.0
        %753 = vmatpush1.xpose.msra.mxu0 0.0
        %754 = vmatprep.subr.mxu0 0.0
        %755 = vmatpush1.xpose.msra.mxu0 0.0
        %756 = vmatprep.subr.mxu0 0.0
        %757 = vmatpush1.xpose.msra.mxu0 0.0
        %758 = vmatprep.subr.mxu0 0.0
        %759 = vmatpush1.xpose.msra.mxu0 0.0
        %760 = vmatprep.subr.mxu0 0.0
        %761 = vmatpush1.xpose.msra.mxu0 0.0
        %762 = vmatprep.subr.mxu0 0.0
        %763 = vmatpush1.xpose.msra.mxu0 0.0
        %764 = vmatprep.subr.mxu0 0.0
        %765 = vmatpush1.xpose.msra.mxu0 0.0
        %766 = vmatprep.subr.mxu0 0.0
        %767 = vmatpush1.xpose.msra.mxu0 0.0
        %768 = vmatprep.subr.mxu0 0.0
        %769 = vmatpush1.xpose.msra.mxu0 0.0
        %770 = vmatprep.subr.mxu0 0.0
        %771 = vmatpush1.xpose.msra.mxu0 0.0
        %772 = vmatprep.subr.mxu0 0.0
        %773 = vmatpush1.xpose.msra.mxu0 0.0
        %774 = vmatprep.subr.mxu0 0.0
        %775 = vmatpush1.xpose.msra.mxu0 0.0
        %776 = vmatprep.subr.mxu0 0.0
        %777 = vmatpush1.xpose.msra.mxu0 0.0
        %778 = vmatprep.mubr.f32.mxu0 0.0
        %v779 = vand.u32 %v318, 4294901760
        %780 = vmatmul.mubr.f32.gmra.mrb[0].mxu0 %v779
        %v781 = vpop.f32.mrb[0].mxu0
        %v782 = vadd.f32 %v709, %v781
        %v783 = vpop.f32.mrb[0].mxu0
        %784 = vdwg.mxu0
        %vm785 = vcmask 130048
        %v786 = vsel %vm785, %v782, -inf
        %787 = vmax.xlane.f32.xlu0 %v786
        %v788 = vpop.xlane.xlu0 %787
        %v789 = vsub.f32 %v782, %v788
        %v790 = vmul.f32 %v789, 1.442695
        %v791 = vpow.pop %v790
        %v792 = vsel %vm785, %v791, 0.0
        %793 = vadd.xlane.f32.xlu0 %v792
        %v794 = vpop.xlane.xlu0 %793
        %v795 = vrcp.pop %v794
        %v796 = vmul.f32 %v791, %v795
        %v798 = vsel %vm785, %v796, 0
        %800 = vmatprep.subr.mxu0 0.0
        %v801 = vand.u32 %v313, 4294901760
        %802 = vmatpush1.msra.mxu0 %v801
        %803 = vmatprep.subr.mxu0 0.0
        %v804 = vand.u32 %v314, 4294901760
        %805 = vmatpush1.msra.mxu0 %v804
        %806 = vmatprep.subr.mxu0 0.0
        %807 = vmatpush1.msra.mxu0 0.0
        %808 = vmatprep.subr.mxu0 0.0
        %809 = vmatpush1.msra.mxu0 0.0
        %810 = vmatprep.subr.mxu0 0.0
        %811 = vmatpush1.msra.mxu0 0.0
        %812 = vmatprep.subr.mxu0 0.0
        %813 = vmatpush1.msra.mxu0 0.0
        %814 = vmatprep.subr.mxu0 0.0
        %815 = vmatpush1.msra.mxu0 0.0
        %816 = vmatprep.subr.mxu0 0.0
        %817 = vmatpush1.msra.mxu0 0.0
        %818 = vmatprep.subr.mxu0 0.0
        %819 = vmatpush1.msra.mxu0 0.0
        %820 = vmatprep.subr.mxu0 0.0
        %821 = vmatpush1.msra.mxu0 0.0
        %822 = vmatprep.subr.mxu0 0.0
        %823 = vmatpush1.msra.mxu0 0.0
        %824 = vmatprep.subr.mxu0 0.0
        %825 = vmatpush1.msra.mxu0 0.0
        %826 = vmatprep.subr.mxu0 0.0
        %827 = vmatpush1.msra.mxu0 0.0
        %828 = vmatprep.subr.mxu0 0.0
        %829 = vmatpush1.msra.mxu0 0.0
        %830 = vmatprep.subr.mxu0 0.0
        %831 = vmatpush1.msra.mxu0 0.0
        %832 = vmatprep.subr.mxu0 0.0
        %833 = vmatpush1.msra.mxu0 0.0
        %834 = vmatprep.subr.mxu0 0.0
        %835 = vmatpush1.msra.mxu0 0.0
        %836 = vmatprep.subr.mxu0 0.0
        %837 = vmatpush1.msra.mxu0 0.0
        %838 = vmatprep.subr.mxu0 0.0
        %839 = vmatpush1.msra.mxu0 0.0
        %840 = vmatprep.subr.mxu0 0.0
        %841 = vmatpush1.msra.mxu0 0.0
        %842 = vmatprep.subr.mxu0 0.0
        %843 = vmatpush1.msra.mxu0 0.0
        %844 = vmatprep.subr.mxu0 0.0
        %845 = vmatpush1.msra.mxu0 0.0
        %846 = vmatprep.subr.mxu0 0.0
        %847 = vmatpush1.msra.mxu0 0.0
        %848 = vmatprep.subr.mxu0 0.0
        %849 = vmatpush1.msra.mxu0 0.0
        %850 = vmatprep.subr.mxu0 0.0
        %851 = vmatpush1.msra.mxu0 0.0
        %852 = vmatprep.subr.mxu0 0.0
        %853 = vmatpush1.msra.mxu0 0.0
        %854 = vmatprep.subr.mxu0 0.0
        %855 = vmatpush1.msra.mxu0 0.0
        %856 = vmatprep.subr.mxu0 0.0
        %857 = vmatpush1.msra.mxu0 0.0
        %858 = vmatprep.subr.mxu0 0.0
        %859 = vmatpush1.msra.mxu0 0.0
        %860 = vmatprep.subr.mxu0 0.0
        %861 = vmatpush1.msra.mxu0 0.0
        %862 = vmatprep.subr.mxu0 0.0
        %863 = vmatpush1.msra.mxu0 0.0
        %864 = vmatprep.subr.mxu0 0.0
        %865 = vmatpush1.msra.mxu0 0.0
        %866 = vmatprep.mubr.f32.mxu0 0.0
        %v867 = vand.u32 %v798, 4294901760
        %v868 = vsub.f32 %v798, %v867
        %v869 = vand.u32 %v868, 4294901760
        %v870 = vsub.f32 %v868, %v869
        %v871 = vand.u32 %v870, 4294901760
        %872 = vmatmul.mubr.f32.gmra.mrb[0].mxu0 %v871
        %v873 = vpop.f32.mrb[0].mxu0
        %v874 = vadd.f32 0.0, %v873
        %v875 = vpop.f32.mrb[0].mxu0
        %876 = vdwg.mxu0
        %877 = vmatprep.subr.mxu0 0.0
        %v878 = vand.u32 %v313, 4294901760
        %v879 = vsub.f32 %v313, %v878
        %v880 = vand.u32 %v879, 4294901760
        %v881 = vsub.f32 %v879, %v880
        %v882 = vand.u32 %v881, 4294901760
        %883 = vmatpush1.msra.mxu0 %v882
        %884 = vmatprep.subr.mxu0 0.0
        %v885 = vand.u32 %v314, 4294901760
        %v886 = vsub.f32 %v314, %v885
        %v887 = vand.u32 %v886, 4294901760
        %v888 = vsub.f32 %v886, %v887
        %v889 = vand.u32 %v888, 4294901760
        %890 = vmatpush1.msra.mxu0 %v889
        %891 = vmatprep.subr.mxu0 0.0
        %892 = vmatpush1.msra.mxu0 0.0
        %893 = vmatprep.subr.mxu0 0.0
        %894 = vmatpush1.msra.mxu0 0.0
        %895 = vmatprep.subr.mxu0 0.0
        %896 = vmatpush1.msra.mxu0 0.0
        %897 = vmatprep.subr.mxu0 0.0
        %898 = vmatpush1.msra.mxu0 0.0
        %899 = vmatprep.subr.mxu0 0.0
        %900 = vmatpush1.msra.mxu0 0.0
        %901 = vmatprep.subr.mxu0 0.0
        %902 = vmatpush1.msra.mxu0 0.0
        %903 = vmatprep.subr.mxu0 0.0
        %904 = vmatpush1.msra.mxu0 0.0
        %905 = vmatprep.subr.mxu0 0.0
        %906 = vmatpush1.msra.mxu0 0.0
        %907 = vmatprep.subr.mxu0 0.0
        %908 = vmatpush1.msra.mxu0 0.0
        %909 = vmatprep.subr.mxu0 0.0
        %910 = vmatpush1.msra.mxu0 0.0
        %911 = vmatprep.subr.mxu0 0.0
        %912 = vmatpush1.msra.mxu0 0.0
        %913 = vmatprep.subr.mxu0 0.0
        %914 = vmatpush1.msra.mxu0 0.0
        %915 = vmatprep.subr.mxu0 0.0
        %916 = vmatpush1.msra.mxu0 0.0
        %917 = vmatprep.subr.mxu0 0.0
        %918 = vmatpush1.msra.mxu0 0.0
        %919 = vmatprep.subr.mxu0 0.0
        %920 = vmatpush1.msra.mxu0 0.0
        %921 = vmatprep.subr.mxu0 0.0
        %922 = vmatpush1.msra.mxu0 0.0
        %923 = vmatprep.subr.mxu0 0.0
        %924 = vmatpush1.msra.mxu0 0.0
        %925 = vmatprep.subr.mxu0 0.0
        %926 = vmatpush1.msra.mxu0 0.0
        %927 = vmatprep.subr.mxu0 0.0
        %928 = vmatpush1.msra.mxu0 0.0
        %929 = vmatprep.subr.mxu0 0.0
        %930 = vmatpush1.msra.mxu0 0.0
        %931 = vmatprep.subr.mxu0 0.0
        %932 = vmatpush1.msra.mxu0 0.0
        %933 = vmatprep.subr.mxu0 0.0
        %934 = vmatpush1.msra.mxu0 0.0
        %935 = vmatprep.subr.mxu0 0.0
        %936 = vmatpush1.msra.mxu0 0.0
        %937 = vmatprep.subr.mxu0 0.0
        %938 = vmatpush1.msra.mxu0 0.0
        %939 = vmatprep.subr.mxu0 0.0
        %940 = vmatpush1.msra.mxu0 0.0
        %941 = vmatprep.subr.mxu0 0.0
        %942 = vmatpush1.msra.mxu0 0.0
        %943 = vmatprep.subr.mxu0 0.0
        %944 = vmatpush1.msra.mxu0 0.0
        %945 = vmatprep.subr.mxu0 0.0
        %946 = vmatpush1.msra.mxu0 0.0
        %947 = vmatprep.subr.mxu0 0.0
        %948 = vmatpush1.msra.mxu0 0.0
        %949 = vmatprep.subr.mxu0 0.0
        %950 = vmatpush1.msra.mxu0 0.0
        %951 = vmatprep.mubr.f32.mxu0 0.0
        %v952 = vand.u32 %v798, 4294901760
        %953 = vmatmul.mubr.f32.gmra.mrb[0].mxu0 %v952
        %v954 = vpop.f32.mrb[0].mxu0
        %v955 = vadd.f32 %v874, %v954
        %v956 = vpop.f32.mrb[0].mxu0
        %957 = vdwg.mxu0
        %958 = vmatprep.subr.mxu0 0.0
        %v959 = vand.u32 %v313, 4294901760
        %v960 = vsub.f32 %v313, %v959
        %961 = vmatpush1.msra.mxu0 %v960
        %962 = vmatprep.subr.mxu0 0.0
        %v963 = vand.u32 %v314, 4294901760
        %v964 = vsub.f32 %v314, %v963
        %965 = vmatpush1.msra.mxu0 %v964
        %966 = vmatprep.subr.mxu0 0.0
        %967 = vmatpush1.msra.mxu0 0.0
        %968 = vmatprep.subr.mxu0 0.0
        %969 = vmatpush1.msra.mxu0 0.0
        %970 = vmatprep.subr.mxu0 0.0
        %971 = vmatpush1.msra.mxu0 0.0
        %972 = vmatprep.subr.mxu0 0.0
        %973 = vmatpush1.msra.mxu0 0.0
        %974 = vmatprep.subr.mxu0 0.0
        %975 = vmatpush1.msra.mxu0 0.0
        %976 = vmatprep.subr.mxu0 0.0
        %977 = vmatpush1.msra.mxu0 0.0
        %978 = vmatprep.subr.mxu0 0.0
        %979 = vmatpush1.msra.mxu0 0.0
        %980 = vmatprep.subr.mxu0 0.0
        %981 = vmatpush1.msra.mxu0 0.0
        %982 = vmatprep.subr.mxu0 0.0
        %983 = vmatpush1.msra.mxu0 0.0
        %984 = vmatprep.subr.mxu0 0.0
        %985 = vmatpush1.msra.mxu0 0.0
        %986 = vmatprep.subr.mxu0 0.0
        %987 = vmatpush1.msra.mxu0 0.0
        %988 = vmatprep.subr.mxu0 0.0
        %989 = vmatpush1.msra.mxu0 0.0
        %990 = vmatprep.subr.mxu0 0.0
        %991 = vmatpush1.msra.mxu0 0.0
        %992 = vmatprep.subr.mxu0 0.0
        %993 = vmatpush1.msra.mxu0 0.0
        %994 = vmatprep.subr.mxu0 0.0
        %995 = vmatpush1.msra.mxu0 0.0
        %996 = vmatprep.subr.mxu0 0.0
        %997 = vmatpush1.msra.mxu0 0.0
        %998 = vmatprep.subr.mxu0 0.0
        %999 = vmatpush1.msra.mxu0 0.0
        %1000 = vmatprep.subr.mxu0 0.0
        %1001 = vmatpush1.msra.mxu0 0.0
        %1002 = vmatprep.subr.mxu0 0.0
        %1003 = vmatpush1.msra.mxu0 0.0
        %1004 = vmatprep.subr.mxu0 0.0
        %1005 = vmatpush1.msra.mxu0 0.0
        %1006 = vmatprep.subr.mxu0 0.0
        %1007 = vmatpush1.msra.mxu0 0.0
        %1008 = vmatprep.subr.mxu0 0.0
        %1009 = vmatpush1.msra.mxu0 0.0
        %1010 = vmatprep.subr.mxu0 0.0
        %1011 = vmatpush1.msra.mxu0 0.0
        %1012 = vmatprep.subr.mxu0 0.0
        %1013 = vmatpush1.msra.mxu0 0.0
        %1014 = vmatprep.subr.mxu0 0.0
        %1015 = vmatpush1.msra.mxu0 0.0
        %1016 = vmatprep.subr.mxu0 0.0
        %1017 = vmatpush1.msra.mxu0 0.0
        %1018 = vmatprep.subr.mxu0 0.0
        %1019 = vmatpush1.msra.mxu0 0.0
        %1020 = vmatprep.subr.mxu0 0.0
        %1021 = vmatpush1.msra.mxu0 0.0
        %1022 = vmatprep.subr.mxu0 0.0
        %1023 = vmatpush1.msra.mxu0 0.0
        %1024 = vmatprep.subr.mxu0 0.0
        %1025 = vmatpush1.msra.mxu0 0.0
        %1026 = vmatprep.mubr.f32.mxu0 0.0
        %v1027 = vand.u32 %v798, 4294901760
        %v1028 = vsub.f32 %v798, %v1027
        %1029 = vmatmul.mubr.f32.gmra.mrb[0].mxu0 %v1028
        %v1030 = vpop.f32.mrb[0].mxu0
        %v1031 = vadd.f32 %v955, %v1030
        %v1032 = vpop.f32.mrb[0].mxu0
        %1033 = vdwg.mxu0
        %1034 = vmatprep.subr.mxu0 0.0
        %v1035 = vand.u32 %v313, 4294901760
        %1036 = vmatpush1.msra.mxu0 %v1035
        %1037 = vmatprep.subr.mxu0 0.0
        %v1038 = vand.u32 %v314, 4294901760
        %1039 = vmatpush1.msra.mxu0 %v1038
        %1040 = vmatprep.subr.mxu0 0.0
        %1041 = vmatpush1.msra.mxu0 0.0
        %1042 = vmatprep.subr.mxu0 0.0
        %1043 = vmatpush1.msra.mxu0 0.0
        %1044 = vmatprep.subr.mxu0 0.0
        %1045 = vmatpush1.msra.mxu0 0.0
        %1046 = vmatprep.subr.mxu0 0.0
        %1047 = vmatpush1.msra.mxu0 0.0
        %1048 = vmatprep.subr.mxu0 0.0
        %1049 = vmatpush1.msra.mxu0 0.0
        %1050 = vmatprep.subr.mxu0 0.0
        %1051 = vmatpush1.msra.mxu0 0.0
        %1052 = vmatprep.subr.mxu0 0.0
        %1053 = vmatpush1.msra.mxu0 0.0
        %1054 = vmatprep.subr.mxu0 0.0
        %1055 = vmatpush1.msra.mxu0 0.0
        %1056 = vmatprep.subr.mxu0 0.0
        %1057 = vmatpush1.msra.mxu0 0.0
        %1058 = vmatprep.subr.mxu0 0.0
        %1059 = vmatpush1.msra.mxu0 0.0
        %1060 = vmatprep.subr.mxu0 0.0
        %1061 = vmatpush1.msra.mxu0 0.0
        %1062 = vmatprep.subr.mxu0 0.0
        %1063 = vmatpush1.msra.mxu0 0.0
        %1064 = vmatprep.subr.mxu0 0.0
        %1065 = vmatpush1.msra.mxu0 0.0
        %1066 = vmatprep.subr.mxu0 0.0
        %1067 = vmatpush1.msra.mxu0 0.0
        %1068 = vmatprep.subr.mxu0 0.0
        %1069 = vmatpush1.msra.mxu0 0.0
        %1070 = vmatprep.subr.mxu0 0.0
        %1071 = vmatpush1.msra.mxu0 0.0
        %1072 = vmatprep.subr.mxu0 0.0
        %1073 = vmatpush1.msra.mxu0 0.0
        %1074 = vmatprep.subr.mxu0 0.0
        %1075 = vmatpush1.msra.mxu0 0.0
        %1076 = vmatprep.subr.mxu0 0.0
        %1077 = vmatpush1.msra.mxu0 0.0
        %1078 = vmatprep.subr.mxu0 0.0
        %1079 = vmatpush1.msra.mxu0 0.0
        %1080 = vmatprep.subr.mxu0 0.0
        %1081 = vmatpush1.msra.mxu0 0.0
        %1082 = vmatprep.subr.mxu0 0.0
        %1083 = vmatpush1.msra.mxu0 0.0
        %1084 = vmatprep.subr.mxu0 0.0
        %1085 = vmatpush1.msra.mxu0 0.0
        %1086 = vmatprep.subr.mxu0 0.0
        %1087 = vmatpush1.msra.mxu0 0.0
        %1088 = vmatprep.subr.mxu0 0.0
        %1089 = vmatpush1.msra.mxu0 0.0
        %1090 = vmatprep.subr.mxu0 0.0
        %1091 = vmatpush1.msra.mxu0 0.0
        %1092 = vmatprep.subr.mxu0 0.0
        %1093 = vmatpush1.msra.mxu0 0.0
        %1094 = vmatprep.subr.mxu0 0.0
        %1095 = vmatpush1.msra.mxu0 0.0
        %1096 = vmatprep.subr.mxu0 0.0
        %1097 = vmatpush1.msra.mxu0 0.0
        %1098 = vmatprep.subr.mxu0 0.0
        %1099 = vmatpush1.msra.mxu0 0.0
        %1100 = vmatprep.mubr.f32.mxu0 0.0
        %v1101 = vand.u32 %v798, 4294901760
        %v1102 = vsub.f32 %v798, %v1101
        %v1103 = vand.u32 %v1102, 4294901760
        %1104 = vmatmul.mubr.f32.gmra.mrb[0].mxu0 %v1103
        %v1105 = vpop.f32.mrb[0].mxu0
        %v1106 = vadd.f32 %v1031, %v1105
        %v1107 = vpop.f32.mrb[0].mxu0
        %1108 = vdwg.mxu0
        %1109 = vmatprep.subr.mxu0 0.0
        %v1110 = vand.u32 %v313, 4294901760
        %v1111 = vsub.f32 %v313, %v1110
        %v1112 = vand.u32 %v1111, 4294901760
        %1113 = vmatpush1.msra.mxu0 %v1112
        %1114 = vmatprep.subr.mxu0 0.0
        %v1115 = vand.u32 %v314, 4294901760
        %v1116 = vsub.f32 %v314, %v1115
        %v1117 = vand.u32 %v1116, 4294901760
        %1118 = vmatpush1.msra.mxu0 %v1117
        %1119 = vmatprep.subr.mxu0 0.0
        %1120 = vmatpush1.msra.mxu0 0.0
        %1121 = vmatprep.subr.mxu0 0.0
        %1122 = vmatpush1.msra.mxu0 0.0
        %1123 = vmatprep.subr.mxu0 0.0
        %1124 = vmatpush1.msra.mxu0 0.0
        %1125 = vmatprep.subr.mxu0 0.0
        %1126 = vmatpush1.msra.mxu0 0.0
        %1127 = vmatprep.subr.mxu0 0.0
        %1128 = vmatpush1.msra.mxu0 0.0
        %1129 = vmatprep.subr.mxu0 0.0
        %1130 = vmatpush1.msra.mxu0 0.0
        %1131 = vmatprep.subr.mxu0 0.0
        %1132 = vmatpush1.msra.mxu0 0.0
        %1133 = vmatprep.subr.mxu0 0.0
        %1134 = vmatpush1.msra.mxu0 0.0
        %1135 = vmatprep.subr.mxu0 0.0
        %1136 = vmatpush1.msra.mxu0 0.0
        %1137 = vmatprep.subr.mxu0 0.0
        %1138 = vmatpush1.msra.mxu0 0.0
        %1139 = vmatprep.subr.mxu0 0.0
        %1140 = vmatpush1.msra.mxu0 0.0
        %1141 = vmatprep.subr.mxu0 0.0
        %1142 = vmatpush1.msra.mxu0 0.0
        %1143 = vmatprep.subr.mxu0 0.0
        %1144 = vmatpush1.msra.mxu0 0.0
        %1145 = vmatprep.subr.mxu0 0.0
        %1146 = vmatpush1.msra.mxu0 0.0
        %1147 = vmatprep.subr.mxu0 0.0
        %1148 = vmatpush1.msra.mxu0 0.0
        %1149 = vmatprep.subr.mxu0 0.0
        %1150 = vmatpush1.msra.mxu0 0.0
        %1151 = vmatprep.subr.mxu0 0.0
        %1152 = vmatpush1.msra.mxu0 0.0
        %1153 = vmatprep.subr.mxu0 0.0
        %1154 = vmatpush1.msra.mxu0 0.0
        %1155 = vmatprep.subr.mxu0 0.0
        %1156 = vmatpush1.msra.mxu0 0.0
        %1157 = vmatprep.subr.mxu0 0.0
        %1158 = vmatpush1.msra.mxu0 0.0
        %1159 = vmatprep.subr.mxu0 0.0
        %1160 = vmatpush1.msra.mxu0 0.0
        %1161 = vmatprep.subr.mxu0 0.0
        %1162 = vmatpush1.msra.mxu0 0.0
        %1163 = vmatprep.subr.mxu0 0.0
        %1164 = vmatpush1.msra.mxu0 0.0
        %1165 = vmatprep.subr.mxu0 0.0
        %1166 = vmatpush1.msra.mxu0 0.0
        %1167 = vmatprep.subr.mxu0 0.0
        %1168 = vmatpush1.msra.mxu0 0.0
        %1169 = vmatprep.subr.mxu0 0.0
        %1170 = vmatpush1.msra.mxu0 0.0
        %1171 = vmatprep.subr.mxu0 0.0
        %1172 = vmatpush1.msra.mxu0 0.0
        %1173 = vmatprep.subr.mxu0 0.0
        %1174 = vmatpush1.msra.mxu0 0.0
        %1175 = vmatprep.subr.mxu0 0.0
        %1176 = vmatpush1.msra.mxu0 0.0
        %1177 = vmatprep.subr.mxu0 0.0
        %1178 = vmatpush1.msra.mxu0 0.0
        %1179 = vmatprep.mubr.f32.mxu0 0.0
        %v1180 = vand.u32 %v798, 4294901760
        %1181 = vmatmul.mubr.f32.gmra.mrb[0].mxu0 %v1180
        %v1182 = vpop.f32.mrb[0].mxu0
        %v1183 = vadd.f32 %v1106, %v1182
        %v1184 = vpop.f32.mrb[0].mxu0
        %1185 = vdwg.mxu0
        %1186 = vmatprep.subr.mxu0 0.0
        %v1187 = vand.u32 %v313, 4294901760
        %1188 = vmatpush1.msra.mxu0 %v1187
        %1189 = vmatprep.subr.mxu0 0.0
        %v1190 = vand.u32 %v314, 4294901760
        %1191 = vmatpush1.msra.mxu0 %v1190
        %1192 = vmatprep.subr.mxu0 0.0
        %1193 = vmatpush1.msra.mxu0 0.0
        %1194 = vmatprep.subr.mxu0 0.0
        %1195 = vmatpush1.msra.mxu0 0.0
        %1196 = vmatprep.subr.mxu0 0.0
        %1197 = vmatpush1.msra.mxu0 0.0
        %1198 = vmatprep.subr.mxu0 0.0
        %1199 = vmatpush1.msra.mxu0 0.0
        %1200 = vmatprep.subr.mxu0 0.0
        %1201 = vmatpush1.msra.mxu0 0.0
        %1202 = vmatprep.subr.mxu0 0.0
        %1203 = vmatpush1.msra.mxu0 0.0
        %1204 = vmatprep.subr.mxu0 0.0
        %1205 = vmatpush1.msra.mxu0 0.0
        %1206 = vmatprep.subr.mxu0 0.0
        %1207 = vmatpush1.msra.mxu0 0.0
        %1208 = vmatprep.subr.mxu0 0.0
        %1209 = vmatpush1.msra.mxu0 0.0
        %1210 = vmatprep.subr.mxu0 0.0
        %1211 = vmatpush1.msra.mxu0 0.0
        %1212 = vmatprep.subr.mxu0 0.0
        %1213 = vmatpush1.msra.mxu0 0.0
        %1214 = vmatprep.subr.mxu0 0.0
        %1215 = vmatpush1.msra.mxu0 0.0
        %1216 = vmatprep.subr.mxu0 0.0
        %1217 = vmatpush1.msra.mxu0 0.0
        %1218 = vmatprep.subr.mxu0 0.0
        %1219 = vmatpush1.msra.mxu0 0.0
        %1220 = vmatprep.subr.mxu0 0.0
        %1221 = vmatpush1.msra.mxu0 0.0
        %1222 = vmatprep.subr.mxu0 0.0
        %1223 = vmatpush1.msra.mxu0 0.0
        %1224 = vmatprep.subr.mxu0 0.0
        %1225 = vmatpush1.msra.mxu0 0.0
        %1226 = vmatprep.subr.mxu0 0.0
        %1227 = vmatpush1.msra.mxu0 0.0
        %1228 = vmatprep.subr.mxu0 0.0
        %1229 = vmatpush1.msra.mxu0 0.0
        %1230 = vmatprep.subr.mxu0 0.0
        %1231 = vmatpush1.msra.mxu0 0.0
        %1232 = vmatprep.subr.mxu0 0.0
        %1233 = vmatpush1.msra.mxu0 0.0
        %1234 = vmatprep.subr.mxu0 0.0
        %1235 = vmatpush1.msra.mxu0 0.0
        %1236 = vmatprep.subr.mxu0 0.0
        %1237 = vmatpush1.msra.mxu0 0.0
        %1238 = vmatprep.subr.mxu0 0.0
        %1239 = vmatpush1.msra.mxu0 0.0
        %1240 = vmatprep.subr.mxu0 0.0
        %1241 = vmatpush1.msra.mxu0 0.0
        %1242 = vmatprep.subr.mxu0 0.0
        %1243 = vmatpush1.msra.mxu0 0.0
        %1244 = vmatprep.subr.mxu0 0.0
        %1245 = vmatpush1.msra.mxu0 0.0
        %1246 = vmatprep.subr.mxu0 0.0
        %1247 = vmatpush1.msra.mxu0 0.0
        %1248 = vmatprep.subr.mxu0 0.0
        %1249 = vmatpush1.msra.mxu0 0.0
        %1250 = vmatprep.subr.mxu0 0.0
        %1251 = vmatpush1.msra.mxu0 0.0
        %1252 = vmatprep.mubr.f32.mxu0 0.0
        %v1253 = vand.u32 %v798, 4294901760
        %1254 = vmatmul.mubr.f32.gmra.mrb[0].mxu0 %v1253
        %v1255 = vpop.f32.mrb[0].mxu0
        %v1256 = vadd.f32 %v1183, %v1255
        %v1257 = vpop.f32.mrb[0].mxu0
        %1258 = vdwg.mxu0
        %1259 = vst.msk [vmem:[%s275] sm:$0xff] %vm785, %v796
        %1260 = vst.msk [vmem:[%s309] sm:$0xff] %vm316, %v1256
        %p1261 = scmp.lt.s32.totalorder %s23, 1
        %s1262 = scalar_select %p1261, %s23, 1
        %p1263 = scmp.lt.s32.totalorder %s24, 3
        %s1264 = scalar_select %p1263, %s24, 3
        %s1265 = smul.addr %s1262, 4
        %s1266 = sadd.s32 %s1264, %s1265
        %s1267 = smul.addr %s1266, 8
        %s1268 = scalar_lea.vmem %s3, %s1267
        %s1269 = sand.u32 %s153, 1
        %s1270 = scalar_lea.sflag [#allocation3], %s1269
        %s1271 = sand.u32 %s153, 1
        %s1272 = smul.addr %s1271, 8
        %s1273 = scalar_lea.vmem [#allocation2], %s1272
        // Predicated region
        $region33: #{decoder_layer.19} parent=31 // pred_check
          %p1274 = pneg %p135
        $region34: #{decoder_layer.19} parent=31 // pred_check_branch
          %1276 = sbr.rel (%p1274) target = $region36
        $region35: #{decoder_layer.19} parent=31 // pred_region
          _
        $region36: #{decoder_layer.19} parent=31 // pred_fallthru
          _
        // Predicated region
        $region37: #{decoder_layer.19} parent=31 // pred_check
          %p1277 = pneg %p163
        $region38: #{decoder_layer.19} parent=31 // pred_check_branch
          %1279 = sbr.rel (%p1277) target = $region40
        $region39: #{decoder_layer.19} parent=31 // pred_region
          %s1281 = ssub.s32 128, 128
          %1282 = vsyncadd %s1270, %s1281
          %s1283 = smul.addr %s23, 4
          %s1284 = sadd.s32 %s24, %s1283
          %s1285 = smul.addr %s1284, 128
          %s1286 = scalar_lea.hbm %s4, %s1285
          %s1288 = sshll.u32 %s1273, 4
          %s1289 = int_to_ptr.vmem [resolvable:$true] %s1288
          %1291 = dma.vmem_to_hbm [thread:$0]  %s1289, 128, %s1286, %s1270
        $region40: #{decoder_layer.19} parent=31 // pred_fallthru
          _
      $region32: #{decoder_layer.19} parent=5 // pred_fallthru
        _
      %p1292 = scmp.le.s32.totalorder 2, %s14
      // Predicated region
      $region41: #{decoder_layer.19} parent=5 // pred_check
        %p1293 = pneg %p1292
      $region42: #{decoder_layer.19} parent=5 // pred_check_branch
        %1295 = sbr.rel (%p1293) target = $region44
      $region43: #{decoder_layer.19} parent=5 // pred_region
        %s1296 = ssub.s32 %s14, 2
        // Predicated region
        $region45: #{decoder_layer.19} parent=43 // pred_check
          %p1297 = pneg %p141
        $region46: #{decoder_layer.19} parent=43 // pred_check_branch
          %1299 = sbr.rel (%p1297) target = $region48
        $region47: #{decoder_layer.19} parent=43 // pred_region
          %p1300 = scmp.lt.s32.totalorder %s25, 1
          %s1301 = scalar_select %p1300, %s25, 1
          %p1302 = scmp.lt.s32.totalorder %s26, 3
          %s1303 = scalar_select %p1302, %s26, 3
          %s1304 = smul.addr %s1301, 4
          %s1305 = sadd.s32 %s1303, %s1304
          %s1306 = smul.addr %s1305, 8
          %s1307 = scalar_lea.vmem %s3, %s1306
        $region48: #{decoder_layer.19} parent=43 // pred_fallthru
          _
        // Predicated region
        $region49: #{decoder_layer.19} parent=43 // pred_check
          %p1308 = pneg %p169
        $region50: #{decoder_layer.19} parent=43 // pred_check_branch
          %1310 = sbr.rel (%p1308) target = $region52
        $region51: #{decoder_layer.19} parent=43 // pred_region
          %s1311 = sand.u32 %s154, 1
          %s1312 = scalar_lea.sflag [#allocation3], %s1311
          %s1313 = sand.u32 %s154, 1
          %s1314 = smul.addr %s1313, 8
          %s1315 = scalar_lea.vmem [#allocation2], %s1314
          %1316 = dma.done %s1312, 128
        $region52: #{decoder_layer.19} parent=43 // pred_fallthru
          _
      $region44: #{decoder_layer.19} parent=5 // pred_fallthru
        _
    $region6: #{decoder_layer.19} parent=1 // loop_footer
      %s18 = sadd.s32 1, %s14
    $region7: #{decoder_layer.19} parent=1 // loop_footer_branch
      %13 = sbr.rel target = $region3
    $region8: #{decoder_layer.19} parent=1 // loop_exit
      _
    %1317 = vsyncpa [#allocation3], 1
    %s1318 = scalar_lea.sflag [#allocation3], 1
    %1319 = vsyncpa %s1318, 1

</llo_original>
